<compile_context>
chip_gen: v7x
topology: tpu7x:2x2x1
jax: 0.10.0
libtpu: 0.0.40
codegen_flags: <defaults>
</compile_context>

<pallas_src>
import jax
import jax.numpy as jnp
import numpy as np
from jax import lax
from jax.experimental import pallas as pl
from jax.experimental.pallas import tpu as pltpu

BT = 128          # batch rows per grid step (multiple of 8; 128 keeps all
                  # shifted row slices sublane-tile aligned and fits every
                  # TPU generation's VMEM comfortably)


# --------------------------- fused Pallas kernel -----------------------------

def _fused_fashion_cnn_kernel(cols_ref,           # [24*BT, 140] bf16 conv1 cols
                              w1_ref, b1_ref,     # [140, 256] bf16, [1, 128]
                              w2_ref, b2_ref,     # [640, 256], [1, 128]
                              wf1_ref, bf1_ref,   # [512, 128], [1, 128]
                              wf2_ref, bf2_ref,   # [128, 128], [1, 128]
                              wo_ref, bo_ref,     # [128, 128], [1, 128]
                              out_ref):           # [BT, 128]
    f32 = jnp.float32
    half = 12 * BT

    # ---- conv1 (+ pooling folded into lanes), ONE bf16 matmul ---------------
    # rows = (row-parity d1, pooled-row m, batch b); lanes = (col-parity d2,
    # pooled-col n, channel c).  y1[(d1,m,b),(d2,n,c)] = raw conv1 value at
    # pixel (2m+d1, 2n+d2) for channel c.
    y1 = jnp.dot(cols_ref[...], w1_ref[...], preferred_element_type=f32)  # [24*BT, 256]

    # maxpool1 = max over d1 (row halves) and d2 (lane halves); bias + ReLU
    # applied once afterwards (exact: both commute with max).
    t = jnp.maximum(y1[:half, :], y1[half:, :])                           # [12*BT, 256]
    p1 = jnp.maximum(t[:, :128], t[:, 128:])                              # [12*BT, 128]
    p1 = jnp.maximum(p1 + b1_ref[...], 0.0)                               # lanes = n*8+c

    # ---- conv2 as ONE K=640 matmul -------------------------------------------
    # LHS rows = (oh, b); LHS lanes = (ki, n*8+ci): a lane-tile-aligned concat
    # of five row-shifted slices of p1 (each slice is whole (8,128) tiles).
    lhs2 = jnp.concatenate(
        [p1[ki * BT:(ki + 8) * BT, :] for ki in range(5)], axis=1)        # [8*BT, 640]
    # Output lanes: [:,:128] = even output columns (ow=2j), [:,128:] = odd.
    y2 = jnp.dot(lhs2, w2_ref[...], preferred_element_type=f32)           # [8*BT, 256]
    y2e = y2[:, :128]
    y2o = y2[:, 128:]

    # ---- maxpool2 (+bias+ReLU, commuted) and fc1 im2col ----------------------
    # One [BT,128] block per pooled row i (lanes = j*16+co), concatenated
    # lane-tile-aligned into the fc1 LHS.
    blocks = []
    for i in range(4):
        r0 = (2 * i) * BT
        r1 = (2 * i + 1) * BT
        m = jnp.maximum(jnp.maximum(y2e[r0:r0 + BT, :], y2e[r1:r1 + BT, :]),
                        jnp.maximum(y2o[r0:r0 + BT, :], y2o[r1:r1 + BT, :]))
        blocks.append(jnp.maximum(m + b2_ref[...], 0.0))
    lhs1 = jnp.concatenate(blocks, axis=1)                                # [BT, 512]

    # ---- fc1 -> fc2 -> out, all lane-dense matmuls ---------------------------
    h1 = jnp.maximum(jnp.dot(lhs1, wf1_ref[...], preferred_element_type=f32)
                     + bf1_ref[...], 0.0)
    h2 = jnp.maximum(jnp.dot(h1, wf2_ref[...], preferred_element_type=f32)
                     + bf2_ref[...], 0.0)
    out_ref[...] = (jnp.dot(h2, wo_ref[...], preferred_element_type=f32)
                    + bo_ref[...])


# --------------------------- wrapper-side layout plumbing --------------------

def _conv1_cols(x, b_pad):
    """conv1 im2col, only duplicated over the 5 row-taps (K = 5*28 = 140).

    Returns [n_tiles*2*12*BT, 140] bf16 with
      rows = ((t*2 + d1)*12 + m)*BT + b,  lanes = ki*28 + w',
      value = x[t*BT+b, 0, 2m + d1 + ki, w'].
    """
    B = x.shape[0]
    xs = jnp.pad(x[:, 0].astype(jnp.float32), ((0, b_pad - B), (0, 0), (0, 0)))
    n_tiles = b_pad // BT
    planes = []
    for d1 in range(2):
        taps = jnp.stack([xs[:, d1 + ki:d1 + ki + 23:2, :] for ki in range(5)],
                         axis=2)                                          # [b_pad, 12, 5, 28]
        planes.append(taps)
    cols = jnp.stack(planes, axis=1)                                      # [b_pad, 2, 12, 5, 28]
    cols = cols.reshape(n_tiles, BT, 2, 12, 5, 28)
    cols = jnp.transpose(cols, (0, 2, 3, 1, 4, 5))                        # [t, d1, m, b, ki, w']
    return cols.reshape(n_tiles * 2 * 12 * BT, 140).astype(jnp.bfloat16)


def _prep_params(params):
    """Torch-layout parameters -> Toeplitz / lane-dense kernel layouts."""
    f32 = jnp.float32

    # conv1: W1[(ki,w'), (d2, n*8+c)] = w1[c,ki,kj] where kj = w' - 2n - d2.
    w1 = params["conv1_w"][:, 0]                                          # [6, 5, 5]
    wp = np.arange(28)[:, None, None, None]
    nn = np.arange(12)[None, :, None, None]
    d2 = np.arange(2)[None, None, :, None]
    kj = np.arange(5)[None, None, None, :]
    S1 = (wp == 2 * nn + d2 + kj).astype(np.float32)                      # [28,12,2,5]
    R1 = jnp.einsum("wndq,ciq->iwdnc", jnp.asarray(S1), w1)               # [5,28,2,12,6]
    R1 = jnp.pad(R1, ((0, 0), (0, 0), (0, 0), (0, 0), (0, 2)))            # c -> 8
    R1 = R1.reshape(5, 28, 2, 96)
    R1 = jnp.pad(R1, ((0, 0), (0, 0), (0, 0), (0, 32)))                   # 96 -> 128
    w1t = R1.reshape(140, 256).astype(jnp.bfloat16)
    b1l = jnp.tile(jnp.pad(params["conv1_b"], (0, 2)), 12)                # [96]
    b1l = jnp.pad(b1l, (0, 32)).reshape(1, 128).astype(f32)

    # conv2: W2[(ki, n*8+ci), (a, j*16+co)] = w2[co,ci,ki,kj], kj = n - (2j+a).
    w2 = params["conv2_w"]                                                # [12, 6, 5, 5]
    nn = np.arange(12)[:, None, None, None]
    av = np.arange(2)[None, :, None, None]
    jv = np.arange(4)[None, None, :, None]
    kj = np.arange(5)[None, None, None, :]
    S2 = (nn == 2 * jv + av + kj).astype(np.float32)                      # [12,2,4,5]
    R2 = jnp.einsum("najq,ociq->incajo", jnp.asarray(S2), w2)             # [5,12,6,2,4,12]
    R2 = jnp.pad(R2, ((0, 0), (0, 0), (0, 2), (0, 0), (0, 0), (0, 4)))    # ci->8, co->16
    R2 = R2.reshape(5, 96, 2, 64)
    R2 = jnp.pad(R2, ((0, 0), (0, 32), (0, 0), (0, 64)))                  # ->128, ->128
    w2t = R2.reshape(640, 256).astype(f32)
    b2l = jnp.tile(jnp.pad(params["conv2_b"], (0, 4)), 4)                 # [64]
    b2l = jnp.pad(b2l, (0, 64)).reshape(1, 128).astype(f32)

    # fc1: rows = i*128 + j*16 + co, cols = f; torch flatten index = co*16+i*4+j.
    wf1 = params["fc1_w"].reshape(90, 12, 4, 4)                           # (f, co, i, j)
    wf1 = jnp.transpose(wf1, (2, 3, 1, 0))                                # (i, j, co, f)
    wf1 = jnp.pad(wf1, ((0, 0), (0, 0), (0, 4), (0, 38)))                 # co->16, f->128
    wf1 = wf1.reshape(4, 64, 128)
    wf1 = jnp.pad(wf1, ((0, 0), (0, 64), (0, 0)))                         # 64 -> 128
    wf1 = wf1.reshape(512, 128).astype(f32)
    bf1 = jnp.pad(params["fc1_b"], (0, 38)).reshape(1, 128).astype(f32)

    wf2 = jnp.pad(params["fc2_w"].T, ((0, 38), (0, 83))).astype(f32)      # [128, 128]
    bf2 = jnp.pad(params["fc2_b"], (0, 83)).reshape(1, 128).astype(f32)

    no = params["out_w"].shape[0]
    wo = jnp.pad(params["out_w"].T, ((0, 83), (0, 128 - no))).astype(f32) # [128, 128]
    bo = jnp.pad(params["out_b"], (0, 128 - no)).reshape(1, 128).astype(f32)
    return w1t, b1l, w2t, b2l, wf1, bf1, wf2, bf2, wo, bo


def fashion_cnn_forward(x, params):
    B = x.shape[0]
    no_outputs = params["out_w"].shape[0]
    b_pad = ((B + BT - 1) // BT) * BT
    n_tiles = b_pad // BT

    cols = _conv1_cols(x, b_pad)                                          # [n_tiles*24*BT, 140]
    w1, b1, w2, b2, wf1, bf1, wf2, bf2, wo, bo = _prep_params(params)

    def const(shape):
        return pl.BlockSpec(shape, lambda i, _n=len(shape): (0,) * _n)

    out = pl.pallas_call(
        _fused_fashion_cnn_kernel,
        out_shape=jax.ShapeDtypeStruct((b_pad, 128), jnp.float32),
        grid=(n_tiles,),
        in_specs=[
            pl.BlockSpec((2 * 12 * BT, 140), lambda i: (i, 0)),
            const((140, 256)), const((1, 128)),
            const((640, 256)), const((1, 128)),
            const((512, 128)), const((1, 128)),
            const((128, 128)), const((1, 128)),
            const((128, 128)), const((1, 128)),
        ],
        out_specs=pl.BlockSpec((BT, 128), lambda i: (i, 0)),
        compiler_params=pltpu.CompilerParams(
            dimension_semantics=("parallel",),
            vmem_limit_bytes=48 * 1024 * 1024,
        ),
    )(cols, w1, b1, w2, b2, wf1, bf1, wf2, bf2, wo, bo)
    return out[:B, :no_outputs]


# --------------------------- reference & params ------------------------------

def torch_reference(x, params):
    def conv2d(x, w, b):
        y = lax.conv_general_dilated(x, w, (1, 1), "VALID",
                                     dimension_numbers=("NCHW", "OIHW", "NCHW"))
        return y + b.reshape(1, -1, 1, 1)

    def maxpool2(x):
        return lax.reduce_window(x, -jnp.inf, lax.max,
                                 (1, 1, 2, 2), (1, 1, 2, 2), "VALID")

    y = jax.nn.relu(conv2d(x, params["conv1_w"], params["conv1_b"]))
    y = maxpool2(y)
    y = jax.nn.relu(conv2d(y, params["conv2_w"], params["conv2_b"]))
    y = maxpool2(y)
    y = y.reshape(x.shape[0], -1)
    y = jax.nn.relu(y @ params["fc1_w"].T + params["fc1_b"])
    y = jax.nn.relu(y @ params["fc2_w"].T + params["fc2_b"])
    return y @ params["out_w"].T + params["out_b"]


def init_params(key, no_outputs):
    ks = jax.random.split(key, 10)

    def u(k, shape, fan_in):
        bound = 1.0 / np.sqrt(fan_in)
        return jax.random.uniform(k, shape, jnp.float32, -bound, bound)

    return {
        "conv1_w": u(ks[0], (6, 1, 5, 5), 25),
        "conv1_b": u(ks[1], (6,), 25),
        "conv2_w": u(ks[2], (12, 6, 5, 5), 150),
        "conv2_b": u(ks[3], (12,), 150),
        "fc1_w": u(ks[4], (90, 192), 192),
        "fc1_b": u(ks[5], (90,), 192),
        "fc2_w": u(ks[6], (45, 90), 90),
        "fc2_b": u(ks[7], (45,), 90),
        "out_w": u(ks[8], (no_outputs, 45), 45),
        "out_b": u(ks[9], (no_outputs,), 45),
    }


if __name__ == "__main__":
    key = jax.random.PRNGKey(0)
    kx, kp = jax.random.split(key)
    B, no_outputs = 2, 2
    x = jax.random.normal(kx, (B, 1, 28, 28), jnp.float32)
    params = init_params(kp, no_outputs)

    out = jax.jit(fashion_cnn_forward)(x, params)
    out = jax.block_until_ready(out)
    assert out.shape == (B, no_outputs)

    ref = torch_reference(x, params)
    np.testing.assert_allclose(np.asarray(out), np.asarray(ref),
                               rtol=1e-2, atol=1e-2)
    print("KERNEL_OK")
</pallas_src>

<mosaic_0001>
module attributes {stable_mosaic.version = 11 : i64} {
  func.func @_fused_fashion_cnn_kernel(%arg0: i32, %arg1: memref<3072x140xbf16, #tpu.memory_space<vmem>>, %arg2: memref<140x256xbf16, #tpu.memory_space<vmem>>, %arg3: memref<1x128xf32, #tpu.memory_space<vmem>>, %arg4: memref<640x256xf32, #tpu.memory_space<vmem>>, %arg5: memref<1x128xf32, #tpu.memory_space<vmem>>, %arg6: memref<512x128xf32, #tpu.memory_space<vmem>>, %arg7: memref<1x128xf32, #tpu.memory_space<vmem>>, %arg8: memref<128x128xf32, #tpu.memory_space<vmem>>, %arg9: memref<1x128xf32, #tpu.memory_space<vmem>>, %arg10: memref<128x128xf32, #tpu.memory_space<vmem>>, %arg11: memref<1x128xf32, #tpu.memory_space<vmem>>, %arg12: memref<128x128xf32, #tpu.memory_space<vmem>>) attributes {dimension_semantics = [#tpu.dimension_semantics<parallel>], iteration_bounds = array<i64: 1>, scalar_prefetch = 0 : i64, scratch_operands = 0 : i64, tpu.core_type = #tpu.core_type<tc>, window_params = [{transform_indices = @transform_0, window_bounds = array<i64: 3072, 140>}, {pipeline_mode = #tpu.pipeline_mode<synchronous>, transform_indices = @transform_1, window_bounds = array<i64: 140, 256>}, {pipeline_mode = #tpu.pipeline_mode<synchronous>, transform_indices = @transform_2, window_bounds = array<i64: 1, 128>}, {pipeline_mode = #tpu.pipeline_mode<synchronous>, transform_indices = @transform_3, window_bounds = array<i64: 640, 256>}, {pipeline_mode = #tpu.pipeline_mode<synchronous>, transform_indices = @transform_4, window_bounds = array<i64: 1, 128>}, {pipeline_mode = #tpu.pipeline_mode<synchronous>, transform_indices = @transform_5, window_bounds = array<i64: 512, 128>}, {pipeline_mode = #tpu.pipeline_mode<synchronous>, transform_indices = @transform_6, window_bounds = array<i64: 1, 128>}, {pipeline_mode = #tpu.pipeline_mode<synchronous>, transform_indices = @transform_7, window_bounds = array<i64: 128, 128>}, {pipeline_mode = #tpu.pipeline_mode<synchronous>, transform_indices = @transform_8, window_bounds = array<i64: 1, 128>}, {pipeline_mode = #tpu.pipeline_mode<synchronous>, transform_indices = @transform_9, window_bounds = array<i64: 128, 128>}, {pipeline_mode = #tpu.pipeline_mode<synchronous>, transform_indices = @transform_10, window_bounds = array<i64: 1, 128>}, {transform_indices = @transform_11, window_bounds = array<i64: 128, 128>}]} {
    %c0 = arith.constant 0 : index
    %c0_0 = arith.constant 0 : index
    %0 = vector.load %arg1[%c0, %c0_0] : memref<3072x140xbf16, #tpu.memory_space<vmem>>, vector<3072x140xbf16>
    %c0_1 = arith.constant 0 : index
    %c0_2 = arith.constant 0 : index
    %1 = vector.load %arg2[%c0_1, %c0_2] : memref<140x256xbf16, #tpu.memory_space<vmem>>, vector<140x256xbf16>
    %cst = arith.constant dense<0.000000e+00> : vector<3072x256xf32>
    %2 = tpu.matmul %0, %1, %cst {dimension_numbers = #tpu.dot_dimension_numbers<[1], [0], [0], [1], [0, 0, 1, 1], [], []>} : vector<3072x140xbf16>, vector<140x256xbf16>, vector<3072x256xf32> -> vector<3072x256xf32>
    %3 = vector.extract_strided_slice %2 {offsets = [0, 0], sizes = [1536, 256], strides = [1, 1]} : vector<3072x256xf32> to vector<1536x256xf32>
    %4 = vector.extract_strided_slice %2 {offsets = [1536, 0], sizes = [1536, 256], strides = [1, 1]} : vector<3072x256xf32> to vector<1536x256xf32>
    %5 = arith.maximumf %3, %4 : vector<1536x256xf32>
    %6 = vector.extract_strided_slice %5 {offsets = [0, 0], sizes = [1536, 128], strides = [1, 1]} : vector<1536x256xf32> to vector<1536x128xf32>
    %7 = vector.extract_strided_slice %5 {offsets = [0, 128], sizes = [1536, 128], strides = [1, 1]} : vector<1536x256xf32> to vector<1536x128xf32>
    %8 = arith.maximumf %6, %7 : vector<1536x128xf32>
    %c0_3 = arith.constant 0 : index
    %c0_4 = arith.constant 0 : index
    %9 = vector.load %arg3[%c0_3, %c0_4] : memref<1x128xf32, #tpu.memory_space<vmem>>, vector<1x128xf32>
    %10 = vector.broadcast %9 : vector<1x128xf32> to vector<1536x128xf32>
    %11 = arith.addf %8, %10 : vector<1536x128xf32>
    %cst_5 = arith.constant 0.000000e+00 : f32
    %12 = vector.broadcast %cst_5 : f32 to vector<1536x128xf32>
    %13 = arith.maximumf %11, %12 : vector<1536x128xf32>
    %14 = vector.extract_strided_slice %13 {offsets = [0, 0], sizes = [1024, 128], strides = [1, 1]} : vector<1536x128xf32> to vector<1024x128xf32>
    %15 = vector.extract_strided_slice %13 {offsets = [128, 0], sizes = [1024, 128], strides = [1, 1]} : vector<1536x128xf32> to vector<1024x128xf32>
    %16 = vector.extract_strided_slice %13 {offsets = [256, 0], sizes = [1024, 128], strides = [1, 1]} : vector<1536x128xf32> to vector<1024x128xf32>
    %17 = vector.extract_strided_slice %13 {offsets = [384, 0], sizes = [1024, 128], strides = [1, 1]} : vector<1536x128xf32> to vector<1024x128xf32>
    %18 = vector.extract_strided_slice %13 {offsets = [512, 0], sizes = [1024, 128], strides = [1, 1]} : vector<1536x128xf32> to vector<1024x128xf32>
    %19 = tpu.concatenate %14, %15, %16, %17, %18 in 1 : vector<1024x128xf32>, vector<1024x128xf32>, vector<1024x128xf32>, vector<1024x128xf32>, vector<1024x128xf32> -> vector<1024x640xf32>
    %c0_6 = arith.constant 0 : index
    %c0_7 = arith.constant 0 : index
    %20 = vector.load %arg4[%c0_6, %c0_7] : memref<640x256xf32, #tpu.memory_space<vmem>>, vector<640x256xf32>
    %cst_8 = arith.constant dense<0.000000e+00> : vector<1024x256xf32>
    %21 = tpu.matmul %19, %20, %cst_8 {dimension_numbers = #tpu.dot_dimension_numbers<[1], [0], [0], [1], [0, 0, 1, 1], [], []>} : vector<1024x640xf32>, vector<640x256xf32>, vector<1024x256xf32> -> vector<1024x256xf32>
    %22 = vector.extract_strided_slice %21 {offsets = [0, 0], sizes = [1024, 128], strides = [1, 1]} : vector<1024x256xf32> to vector<1024x128xf32>
    %23 = vector.extract_strided_slice %21 {offsets = [0, 128], sizes = [1024, 128], strides = [1, 1]} : vector<1024x256xf32> to vector<1024x128xf32>
    %24 = vector.extract_strided_slice %22 {offsets = [0, 0], sizes = [128, 128], strides = [1, 1]} : vector<1024x128xf32> to vector<128x128xf32>
    %25 = vector.extract_strided_slice %22 {offsets = [128, 0], sizes = [128, 128], strides = [1, 1]} : vector<1024x128xf32> to vector<128x128xf32>
    %26 = arith.maximumf %24, %25 : vector<128x128xf32>
    %27 = vector.extract_strided_slice %23 {offsets = [0, 0], sizes = [128, 128], strides = [1, 1]} : vector<1024x128xf32> to vector<128x128xf32>
    %28 = vector.extract_strided_slice %23 {offsets = [128, 0], sizes = [128, 128], strides = [1, 1]} : vector<1024x128xf32> to vector<128x128xf32>
    %29 = arith.maximumf %27, %28 : vector<128x128xf32>
    %30 = arith.maximumf %26, %29 : vector<128x128xf32>
    %c0_9 = arith.constant 0 : index
    %c0_10 = arith.constant 0 : index
    %31 = vector.load %arg5[%c0_9, %c0_10] : memref<1x128xf32, #tpu.memory_space<vmem>>, vector<1x128xf32>
    %32 = vector.broadcast %31 : vector<1x128xf32> to vector<128x128xf32>
    %33 = arith.addf %30, %32 : vector<128x128xf32>
    %cst_11 = arith.constant 0.000000e+00 : f32
    %34 = vector.broadcast %cst_11 : f32 to vector<128x128xf32>
    %35 = arith.maximumf %33, %34 : vector<128x128xf32>
    %36 = vector.extract_strided_slice %22 {offsets = [256, 0], sizes = [128, 128], strides = [1, 1]} : vector<1024x128xf32> to vector<128x128xf32>
    %37 = vector.extract_strided_slice %22 {offsets = [384, 0], sizes = [128, 128], strides = [1, 1]} : vector<1024x128xf32> to vector<128x128xf32>
    %38 = arith.maximumf %36, %37 : vector<128x128xf32>
    %39 = vector.extract_strided_slice %23 {offsets = [256, 0], sizes = [128, 128], strides = [1, 1]} : vector<1024x128xf32> to vector<128x128xf32>
    %40 = vector.extract_strided_slice %23 {offsets = [384, 0], sizes = [128, 128], strides = [1, 1]} : vector<1024x128xf32> to vector<128x128xf32>
    %41 = arith.maximumf %39, %40 : vector<128x128xf32>
    %42 = arith.maximumf %38, %41 : vector<128x128xf32>
    %c0_12 = arith.constant 0 : index
    %c0_13 = arith.constant 0 : index
    %43 = vector.load %arg5[%c0_12, %c0_13] : memref<1x128xf32, #tpu.memory_space<vmem>>, vector<1x128xf32>
    %44 = vector.broadcast %43 : vector<1x128xf32> to vector<128x128xf32>
    %45 = arith.addf %42, %44 : vector<128x128xf32>
    %cst_14 = arith.constant 0.000000e+00 : f32
    %46 = vector.broadcast %cst_14 : f32 to vector<128x128xf32>
    %47 = arith.maximumf %45, %46 : vector<128x128xf32>
    %48 = vector.extract_strided_slice %22 {offsets = [512, 0], sizes = [128, 128], strides = [1, 1]} : vector<1024x128xf32> to vector<128x128xf32>
    %49 = vector.extract_strided_slice %22 {offsets = [640, 0], sizes = [128, 128], strides = [1, 1]} : vector<1024x128xf32> to vector<128x128xf32>
    %50 = arith.maximumf %48, %49 : vector<128x128xf32>
    %51 = vector.extract_strided_slice %23 {offsets = [512, 0], sizes = [128, 128], strides = [1, 1]} : vector<1024x128xf32> to vector<128x128xf32>
    %52 = vector.extract_strided_slice %23 {offsets = [640, 0], sizes = [128, 128], strides = [1, 1]} : vector<1024x128xf32> to vector<128x128xf32>
    %53 = arith.maximumf %51, %52 : vector<128x128xf32>
    %54 = arith.maximumf %50, %53 : vector<128x128xf32>
    %c0_15 = arith.constant 0 : index
    %c0_16 = arith.constant 0 : index
    %55 = vector.load %arg5[%c0_15, %c0_16] : memref<1x128xf32, #tpu.memory_space<vmem>>, vector<1x128xf32>
    %56 = vector.broadcast %55 : vector<1x128xf32> to vector<128x128xf32>
    %57 = arith.addf %54, %56 : vector<128x128xf32>
    %cst_17 = arith.constant 0.000000e+00 : f32
    %58 = vector.broadcast %cst_17 : f32 to vector<128x128xf32>
    %59 = arith.maximumf %57, %58 : vector<128x128xf32>
    %60 = vector.extract_strided_slice %22 {offsets = [768, 0], sizes = [128, 128], strides = [1, 1]} : vector<1024x128xf32> to vector<128x128xf32>
    %61 = vector.extract_strided_slice %22 {offsets = [896, 0], sizes = [128, 128], strides = [1, 1]} : vector<1024x128xf32> to vector<128x128xf32>
    %62 = arith.maximumf %60, %61 : vector<128x128xf32>
    %63 = vector.extract_strided_slice %23 {offsets = [768, 0], sizes = [128, 128], strides = [1, 1]} : vector<1024x128xf32> to vector<128x128xf32>
    %64 = vector.extract_strided_slice %23 {offsets = [896, 0], sizes = [128, 128], strides = [1, 1]} : vector<1024x128xf32> to vector<128x128xf32>
    %65 = arith.maximumf %63, %64 : vector<128x128xf32>
    %66 = arith.maximumf %62, %65 : vector<128x128xf32>
    %c0_18 = arith.constant 0 : index
    %c0_19 = arith.constant 0 : index
    %67 = vector.load %arg5[%c0_18, %c0_19] : memref<1x128xf32, #tpu.memory_space<vmem>>, vector<1x128xf32>
    %68 = vector.broadcast %67 : vector<1x128xf32> to vector<128x128xf32>
    %69 = arith.addf %66, %68 : vector<128x128xf32>
    %cst_20 = arith.constant 0.000000e+00 : f32
    %70 = vector.broadcast %cst_20 : f32 to vector<128x128xf32>
    %71 = arith.maximumf %69, %70 : vector<128x128xf32>
    %72 = tpu.concatenate %35, %47, %59, %71 in 1 : vector<128x128xf32>, vector<128x128xf32>, vector<128x128xf32>, vector<128x128xf32> -> vector<128x512xf32>
    %c0_21 = arith.constant 0 : index
    %c0_22 = arith.constant 0 : index
    %73 = vector.load %arg6[%c0_21, %c0_22] : memref<512x128xf32, #tpu.memory_space<vmem>>, vector<512x128xf32>
    %cst_23 = arith.constant dense<0.000000e+00> : vector<128x128xf32>
    %74 = tpu.matmul %72, %73, %cst_23 {dimension_numbers = #tpu.dot_dimension_numbers<[1], [0], [0], [1], [0, 0, 1, 1], [], []>} : vector<128x512xf32>, vector<512x128xf32>, vector<128x128xf32> -> vector<128x128xf32>
    %c0_24 = arith.constant 0 : index
    %c0_25 = arith.constant 0 : index
    %75 = vector.load %arg7[%c0_24, %c0_25] : memref<1x128xf32, #tpu.memory_space<vmem>>, vector<1x128xf32>
    %76 = vector.broadcast %75 : vector<1x128xf32> to vector<128x128xf32>
    %77 = arith.addf %74, %76 : vector<128x128xf32>
    %cst_26 = arith.constant 0.000000e+00 : f32
    %78 = vector.broadcast %cst_26 : f32 to vector<128x128xf32>
    %79 = arith.maximumf %77, %78 : vector<128x128xf32>
    %c0_27 = arith.constant 0 : index
    %c0_28 = arith.constant 0 : index
    %80 = vector.load %arg8[%c0_27, %c0_28] : memref<128x128xf32, #tpu.memory_space<vmem>>, vector<128x128xf32>
    %cst_29 = arith.constant dense<0.000000e+00> : vector<128x128xf32>
    %81 = tpu.matmul %79, %80, %cst_29 {dimension_numbers = #tpu.dot_dimension_numbers<[1], [0], [0], [1], [0, 0, 1, 1], [], []>} : vector<128x128xf32>, vector<128x128xf32>, vector<128x128xf32> -> vector<128x128xf32>
    %c0_30 = arith.constant 0 : index
    %c0_31 = arith.constant 0 : index
    %82 = vector.load %arg9[%c0_30, %c0_31] : memref<1x128xf32, #tpu.memory_space<vmem>>, vector<1x128xf32>
    %83 = vector.broadcast %82 : vector<1x128xf32> to vector<128x128xf32>
    %84 = arith.addf %81, %83 : vector<128x128xf32>
    %cst_32 = arith.constant 0.000000e+00 : f32
    %85 = vector.broadcast %cst_32 : f32 to vector<128x128xf32>
    %86 = arith.maximumf %84, %85 : vector<128x128xf32>
    %c0_33 = arith.constant 0 : index
    %c0_34 = arith.constant 0 : index
    %87 = vector.load %arg10[%c0_33, %c0_34] : memref<128x128xf32, #tpu.memory_space<vmem>>, vector<128x128xf32>
    %cst_35 = arith.constant dense<0.000000e+00> : vector<128x128xf32>
    %88 = tpu.matmul %86, %87, %cst_35 {dimension_numbers = #tpu.dot_dimension_numbers<[1], [0], [0], [1], [0, 0, 1, 1], [], []>} : vector<128x128xf32>, vector<128x128xf32>, vector<128x128xf32> -> vector<128x128xf32>
    %c0_36 = arith.constant 0 : index
    %c0_37 = arith.constant 0 : index
    %89 = vector.load %arg11[%c0_36, %c0_37] : memref<1x128xf32, #tpu.memory_space<vmem>>, vector<1x128xf32>
    %90 = vector.broadcast %89 : vector<1x128xf32> to vector<128x128xf32>
    %91 = arith.addf %88, %90 : vector<128x128xf32>
    %c0_38 = arith.constant 0 : index
    %c0_39 = arith.constant 0 : index
    %92 = vector.load %arg12[%c0_38, %c0_39] : memref<128x128xf32, #tpu.memory_space<vmem>>, vector<128x128xf32>
    tpu.vector_store %arg12[%c0_38, %c0_39], %91 {strides = array<i32>} : memref<128x128xf32, #tpu.memory_space<vmem>>, vector<128x128xf32>,
    return
  }
  func.func @transform_0(%arg0: i32) -> (i32, i32) {
    %c0_i32 = arith.constant 0 : i32
    %c0_i32_0 = arith.constant 0 : i32
    return %arg0, %c0_i32 : i32, i32
  }
  func.func @transform_1(%arg0: i32) -> (i32, i32) {
    %c0_i32 = arith.constant 0 : i32
    %c0_i32_0 = arith.constant 0 : i32
    %c0_i32_1 = arith.constant 0 : i32
    return %c0_i32, %c0_i32_0 : i32, i32
  }
  func.func @transform_2(%arg0: i32) -> (i32, i32) {
    %c0_i32 = arith.constant 0 : i32
    %c0_i32_0 = arith.constant 0 : i32
    %c0_i32_1 = arith.constant 0 : i32
    return %c0_i32, %c0_i32_0 : i32, i32
  }
  func.func @transform_3(%arg0: i32) -> (i32, i32) {
    %c0_i32 = arith.constant 0 : i32
    %c0_i32_0 = arith.constant 0 : i32
    %c0_i32_1 = arith.constant 0 : i32
    return %c0_i32, %c0_i32_0 : i32, i32
  }
  func.func @transform_4(%arg0: i32) -> (i32, i32) {
    %c0_i32 = arith.constant 0 : i32
    %c0_i32_0 = arith.constant 0 : i32
    %c0_i32_1 = arith.constant 0 : i32
    return %c0_i32, %c0_i32_0 : i32, i32
  }
  func.func @transform_5(%arg0: i32) -> (i32, i32) {
    %c0_i32 = arith.constant 0 : i32
    %c0_i32_0 = arith.constant 0 : i32
    %c0_i32_1 = arith.constant 0 : i32
    return %c0_i32, %c0_i32_0 : i32, i32
  }
  func.func @transform_6(%arg0: i32) -> (i32, i32) {
    %c0_i32 = arith.constant 0 : i32
    %c0_i32_0 = arith.constant 0 : i32
    %c0_i32_1 = arith.constant 0 : i32
    return %c0_i32, %c0_i32_0 : i32, i32
  }
  func.func @transform_7(%arg0: i32) -> (i32, i32) {
    %c0_i32 = arith.constant 0 : i32
    %c0_i32_0 = arith.constant 0 : i32
    %c0_i32_1 = arith.constant 0 : i32
    return %c0_i32, %c0_i32_0 : i32, i32
  }
  func.func @transform_8(%arg0: i32) -> (i32, i32) {
    %c0_i32 = arith.constant 0 : i32
    %c0_i32_0 = arith.constant 0 : i32
    %c0_i32_1 = arith.constant 0 : i32
    return %c0_i32, %c0_i32_0 : i32, i32
  }
  func.func @transform_9(%arg0: i32) -> (i32, i32) {
    %c0_i32 = arith.constant 0 : i32
    %c0_i32_0 = arith.constant 0 : i32
    %c0_i32_1 = arith.constant 0 : i32
    return %c0_i32, %c0_i32_0 : i32, i32
  }
  func.func @transform_10(%arg0: i32) -> (i32, i32) {
    %c0_i32 = arith.constant 0 : i32
    %c0_i32_0 = arith.constant 0 : i32
    %c0_i32_1 = arith.constant 0 : i32
    return %c0_i32, %c0_i32_0 : i32, i32
  }
  func.func @transform_11(%arg0: i32) -> (i32, i32) {
    %c0_i32 = arith.constant 0 : i32
    %c0_i32_0 = arith.constant 0 : i32
    return %arg0, %c0_i32 : i32, i32
  }
}

</mosaic_0001>

<llo_original>
// kernel: tile.18
$region0: #{tile.18}
  #allocation0 [shape = 's32[1]{0}', space=sflag, size = 0x4, scoped, tag = 'scoped memory for tile.18']
  %s0 = inlined_call_operand.vmem [shape: f32[16], index: 0, kind: input, shape index: {}]
  %s1 = inlined_call_operand.vmem [shape: f32[4,16], index: 1, kind: output, shape index: {}]
  // Predicated region
  $region2: #{tile.18} parent=0 // pred_check
    _
  $region3: #{tile.18} parent=0 // pred_check_branch
    %3 = sbr.rel (0) target = $region5
  $region4: #{tile.18} parent=0 // pred_region
    _
  $region5: #{tile.18} parent=0 // pred_fallthru
    _
  %v4 = vld [vmem:[%s0] ss:$0 sm:$0xff]
  %5 = vst [vmem:[%s1] sm:$0xf] %v4

// kernel: tile.19
$region0: #{tile.19}
  %s0 = inlined_call_operand.vmem [shape: f32[4,16], index: 0, kind: input, shape index: {}]
  %s1 = inlined_call_operand.vmem [shape: f32[64], index: 1, kind: output, shape index: {}]
  $region1: #{tile.19} parent=0
    #allocation0 [shape = 'u8[4096]{0}', space=vmem, size = 0x1000, scoped, tag = 'scoped mem for output reshape']
    #allocation1 [shape = 'u8[4096]{0}', space=vmem, size = 0x1000, scoped, tag = 'scoped mem for input reshape']
    %s3 = sshllo.u32 0, 4
    %v4 = vld [vmem:[%s0] sm:%s3]
    %5 = vst [vmem:[#allocation1] sm:%s3] %v4
    %v6 = vld [vmem:[#allocation1] sm:$0x1]
    %vm7 = vcmask 130048
    %8 = vst.msk [vmem:[#allocation0] sm:$0x1] %vm7, %v6
    %s9 = scalar_lea.vmem [#allocation1], 3
    %v10 = vld [vmem:[%s9] sm:$0x1]
    %11 = vrot.lane.b32.xlu0 %v10, 48
    %v12 = vpop.permute.xlu0 %11
    %vm13 = vcmask 523648
    %14 = vst.msk [vmem:[#allocation0] sm:$0x1] %vm13, %v12
    %s15 = scalar_lea.vmem [#allocation1], 2
    %v16 = vld [vmem:[%s15] sm:$0x1]
    %17 = vrot.lane.b32.xlu0 %v16, 32
    %v18 = vpop.permute.xlu0 %17
    %vm19 = vcmask 392448
    %20 = vst.msk [vmem:[#allocation0] sm:$0x1] %vm19, %v18
    %s21 = scalar_lea.vmem [#allocation1], 1
    %v22 = vld [vmem:[%s21] sm:$0x1]
    %23 = vrot.lane.b32.xlu0 %v22, 16
    %v24 = vpop.permute.xlu0 %23
    %vm25 = vcmask 261248
    %26 = vst.msk [vmem:[#allocation0] sm:$0x1] %vm25, %v24
    %s28 = sshllo.u32 0, 1
    %v30 = vld [vmem:[#allocation0] sm:%s28]
    %s31 = sshllo.u32 0, 1
    %32 = vst [vmem:[%s1] sm:%s31] %v30

// kernel: tile.13
$region0: #{tile.13}
  #allocation0 [shape = 's32[1]{0}', space=sflag, size = 0x4, scoped, tag = 'scoped memory for tile.13']
  %s0 = inlined_call_operand.vmem [shape: f32[8], index: 0, kind: input, shape index: {}]
  %s1 = inlined_call_operand.vmem [shape: f32[12,8], index: 1, kind: output, shape index: {}]
  // Predicated region
  $region2: #{tile.13} parent=0 // pred_check
    _
  $region3: #{tile.13} parent=0 // pred_check_branch
    %3 = sbr.rel (0) target = $region5
  $region4: #{tile.13} parent=0 // pred_region
    _
  $region5: #{tile.13} parent=0 // pred_fallthru
    _
  %v4 = vld [vmem:[%s0] ss:$0 sm:$0xff]
  %5 = vst [vmem:[%s1] sm:$0xff] %v4
  %s6 = scalar_lea.vmem %s1, 8
  %7 = vst [vmem:[%s6] sm:$0xff] %v4

// kernel: tile.14
$region0: #{tile.14}
  %s0 = inlined_call_operand.vmem [shape: f32[12,8], index: 0, kind: input, shape index: {}]
  %s1 = inlined_call_operand.vmem [shape: f32[96], index: 1, kind: output, shape index: {}]
  $region1: #{tile.14} parent=0
    #allocation0 [shape = 'u8[4096]{0}', space=vmem, size = 0x1000, scoped, tag = 'scoped mem for output reshape']
    %v2 = vld [vmem:[%s0] sm:$0x1]
    %vm3 = vcmask 64512
    %4 = vst.msk [vmem:[#allocation0] sm:$0x1] %vm3, %v2
    %s5 = scalar_lea.vmem %s0, 11
    %v6 = vld [vmem:[%s5] sm:$0x1]
    %7 = vrot.lane.b32.xlu0 %v6, 88
    %v8 = vpop.permute.xlu0 %7
    %vm9 = vcmask 786112
    %10 = vst.msk [vmem:[#allocation0] sm:$0x1] %vm9, %v8
    %s11 = scalar_lea.vmem %s0, 10
    %v12 = vld [vmem:[%s11] sm:$0x1]
    %13 = vrot.lane.b32.xlu0 %v12, 80
    %v14 = vpop.permute.xlu0 %13
    %vm15 = vcmask 720512
    %16 = vst.msk [vmem:[#allocation0] sm:$0x1] %vm15, %v14
    %s17 = scalar_lea.vmem %s0, 9
    %v18 = vld [vmem:[%s17] sm:$0x1]
    %19 = vrot.lane.b32.xlu0 %v18, 72
    %v20 = vpop.permute.xlu0 %19
    %vm21 = vcmask 654912
    %22 = vst.msk [vmem:[#allocation0] sm:$0x1] %vm21, %v20
    %s23 = scalar_lea.vmem %s0, 8
    %v24 = vld [vmem:[%s23] sm:$0x1]
    %25 = vrot.lane.b32.xlu0 %v24, 64
    %v26 = vpop.permute.xlu0 %25
    %vm27 = vcmask 589312
    %28 = vst.msk [vmem:[#allocation0] sm:$0x1] %vm27, %v26
    %s29 = scalar_lea.vmem %s0, 7
    %v30 = vld [vmem:[%s29] sm:$0x1]
    %31 = vrot.lane.b32.xlu0 %v30, 56
    %v32 = vpop.permute.xlu0 %31
    %vm33 = vcmask 523712
    %34 = vst.msk [vmem:[#allocation0] sm:$0x1] %vm33, %v32
    %s35 = scalar_lea.vmem %s0, 6
    %v36 = vld [vmem:[%s35] sm:$0x1]
    %37 = vrot.lane.b32.xlu0 %v36, 48
    %v38 = vpop.permute.xlu0 %37
    %vm39 = vcmask 458112
    %40 = vst.msk [vmem:[#allocation0] sm:$0x1] %vm39, %v38
    %s41 = scalar_lea.vmem %s0, 5
    %v42 = vld [vmem:[%s41] sm:$0x1]
    %43 = vrot.lane.b32.xlu0 %v42, 40
    %v44 = vpop.permute.xlu0 %43
    %vm45 = vcmask 392512
    %46 = vst.msk [vmem:[#allocation0] sm:$0x1] %vm45, %v44
    %s47 = scalar_lea.vmem %s0, 4
    %v48 = vld [vmem:[%s47] sm:$0x1]
    %49 = vrot.lane.b32.xlu0 %v48, 32
    %v50 = vpop.permute.xlu0 %49
    %vm51 = vcmask 326912
    %52 = vst.msk [vmem:[#allocation0] sm:$0x1] %vm51, %v50
    %s53 = scalar_lea.vmem %s0, 3
    %v54 = vld [vmem:[%s53] sm:$0x1]
    %55 = vrot.lane.b32.xlu0 %v54, 24
    %v56 = vpop.permute.xlu0 %55
    %vm57 = vcmask 261312
    %58 = vst.msk [vmem:[#allocation0] sm:$0x1] %vm57, %v56
    %s59 = scalar_lea.vmem %s0, 2
    %v60 = vld [vmem:[%s59] sm:$0x1]
    %61 = vrot.lane.b32.xlu0 %v60, 16
    %v62 = vpop.permute.xlu0 %61
    %vm63 = vcmask 195712
    %64 = vst.msk [vmem:[#allocation0] sm:$0x1] %vm63, %v62
    %s65 = scalar_lea.vmem %s0, 1
    %v66 = vld [vmem:[%s65] sm:$0x1]
    %67 = vrot.lane.b32.xlu0 %v66, 8
    %v68 = vpop.permute.xlu0 %67
    %vm69 = vcmask 130112
    %70 = vst.msk [vmem:[#allocation0] sm:$0x1] %vm69, %v68
    %s72 = sshllo.u32 0, 1
    %v74 = vld [vmem:[#allocation0] sm:%s72]
    %s75 = sshllo.u32 0, 1
    %76 = vst [vmem:[%s1] sm:%s75] %v74

// kernel: fashion_cnn_forward.1
$region0: #{fashion_cnn_forward.1}
  #allocation0 [shape = 'u32[]', space=smem, size = 0x4, offset = 0x4, fixed_abs, tag = 'smem constant byte address 0x4 - core index']
  #allocation1 [shape = 'u32[144,128]{1,0:T(1,128)}', space=vmem, size = 0x12000, scoped, tag = 'internal scratch']
  %s0 = inlined_call_operand.vmem [shape: bf16[3072,140], index: 0, kind: input, shape index: {}]
  %s1 = inlined_call_operand.vmem [shape: bf16[140,256], index: 1, kind: input, shape index: {}]
  %s2 = inlined_call_operand.vmem [shape: f32[1,128], index: 2, kind: input, shape index: {}]
  %s3 = inlined_call_operand.vmem [shape: f32[640,256], index: 3, kind: input, shape index: {}]
  %s4 = inlined_call_operand.vmem [shape: f32[1,128], index: 4, kind: input, shape index: {}]
  %s5 = inlined_call_operand.vmem [shape: f32[512,128], index: 5, kind: input, shape index: {}]
  %s6 = inlined_call_operand.vmem [shape: f32[1,128], index: 6, kind: input, shape index: {}]
  %s7 = inlined_call_operand.vmem [shape: f32[128,128], index: 7, kind: input, shape index: {}]
  %s8 = inlined_call_operand.vmem [shape: f32[1,128], index: 8, kind: input, shape index: {}]
  %s9 = inlined_call_operand.vmem [shape: f32[128,128], index: 9, kind: input, shape index: {}]
  %s10 = inlined_call_operand.vmem [shape: f32[1,128], index: 10, kind: input, shape index: {}]
  %s11 = inlined_call_operand.vmem [shape: f32[128,128], index: 11, kind: output, shape index: {}]
  %s12 = sld [smem:[#allocation0]]
  $region54: #{fashion_cnn_forward.1} parent=0
    _
  %s14 = ssub.s32 1, %s12
  %s15 = scalar_select 0, %s14, %s12
  // Predicated region
  $region2: #{fashion_cnn_forward.1} parent=0 // pred_check
    _
  $region3: #{fashion_cnn_forward.1} parent=0 // pred_check_branch
    %17 = sbr.rel (0) target = $region5
  $region4: #{fashion_cnn_forward.1} parent=0 // pred_region
    _
  $region5: #{fashion_cnn_forward.1} parent=0 // pred_fallthru
    _
  // Predicated region
  $region6: #{fashion_cnn_forward.1} parent=0 // pred_check
    _
  $region7: #{fashion_cnn_forward.1} parent=0 // pred_check_branch
    %19 = sbr.rel (0) target = $region9
  $region8: #{fashion_cnn_forward.1} parent=0 // pred_region
    _
  $region9: #{fashion_cnn_forward.1} parent=0 // pred_fallthru
    _
  // Predicated region
  $region10: #{fashion_cnn_forward.1} parent=0 // pred_check
    _
  $region11: #{fashion_cnn_forward.1} parent=0 // pred_check_branch
    %21 = sbr.rel (0) target = $region13
  $region12: #{fashion_cnn_forward.1} parent=0 // pred_region
    _
  $region13: #{fashion_cnn_forward.1} parent=0 // pred_fallthru
    _
  // Predicated region
  $region14: #{fashion_cnn_forward.1} parent=0 // pred_check
    _
  $region15: #{fashion_cnn_forward.1} parent=0 // pred_check_branch
    %23 = sbr.rel (0) target = $region17
  $region16: #{fashion_cnn_forward.1} parent=0 // pred_region
    _
  $region17: #{fashion_cnn_forward.1} parent=0 // pred_fallthru
    _
  // Predicated region
  $region18: #{fashion_cnn_forward.1} parent=0 // pred_check
    _
  $region19: #{fashion_cnn_forward.1} parent=0 // pred_check_branch
    %25 = sbr.rel (0) target = $region21
  $region20: #{fashion_cnn_forward.1} parent=0 // pred_region
    _
  $region21: #{fashion_cnn_forward.1} parent=0 // pred_fallthru
    _
  // Predicated region
  $region22: #{fashion_cnn_forward.1} parent=0 // pred_check
    _
  $region23: #{fashion_cnn_forward.1} parent=0 // pred_check_branch
    %27 = sbr.rel (0) target = $region25
  $region24: #{fashion_cnn_forward.1} parent=0 // pred_region
    _
  $region25: #{fashion_cnn_forward.1} parent=0 // pred_fallthru
    _
  // Predicated region
  $region26: #{fashion_cnn_forward.1} parent=0 // pred_check
    _
  $region27: #{fashion_cnn_forward.1} parent=0 // pred_check_branch
    %29 = sbr.rel (0) target = $region29
  $region28: #{fashion_cnn_forward.1} parent=0 // pred_region
    _
  $region29: #{fashion_cnn_forward.1} parent=0 // pred_fallthru
    _
  // Predicated region
  $region30: #{fashion_cnn_forward.1} parent=0 // pred_check
    _
  $region31: #{fashion_cnn_forward.1} parent=0 // pred_check_branch
    %31 = sbr.rel (0) target = $region33
  $region32: #{fashion_cnn_forward.1} parent=0 // pred_region
    _
  $region33: #{fashion_cnn_forward.1} parent=0 // pred_fallthru
    _
  // Predicated region
  $region34: #{fashion_cnn_forward.1} parent=0 // pred_check
    _
  $region35: #{fashion_cnn_forward.1} parent=0 // pred_check_branch
    %33 = sbr.rel (0) target = $region37
  $region36: #{fashion_cnn_forward.1} parent=0 // pred_region
    _
  $region37: #{fashion_cnn_forward.1} parent=0 // pred_fallthru
    _
  // Predicated region
  $region38: #{fashion_cnn_forward.1} parent=0 // pred_check
    _
  $region39: #{fashion_cnn_forward.1} parent=0 // pred_check_branch
    %35 = sbr.rel (0) target = $region41
  $region40: #{fashion_cnn_forward.1} parent=0 // pred_region
    _
  $region41: #{fashion_cnn_forward.1} parent=0 // pred_fallthru
    _
  // Predicated region
  $region42: #{fashion_cnn_forward.1} parent=0 // pred_check
    _
  $region43: #{fashion_cnn_forward.1} parent=0 // pred_check_branch
    %37 = sbr.rel (0) target = $region45
  $region44: #{fashion_cnn_forward.1} parent=0 // pred_region
    _
  $region45: #{fashion_cnn_forward.1} parent=0 // pred_fallthru
    _
  %v39 = vld [vmem:[%s0] sm:$0xff]
  %v40 = vld [vmem:[%s0 + $0x8] sm:$0xff]
  %v41 = vld [vmem:[%s0 + $0x10] sm:$0xff]
  %v42 = vld [vmem:[%s0 + $0x18] sm:$0xff]
  %v43 = vld [vmem:[%s0 + $0x20] sm:$0xff]
  %v44 = vld [vmem:[%s0 + $0x28] sm:$0xff]
  %v45 = vld [vmem:[%s0 + $0x30] sm:$0xff]
  %v46 = vld [vmem:[%s0 + $0x38] sm:$0xff]
  %v47 = vld [vmem:[%s0 + $0x40] sm:$0xff]
  %v48 = vld [vmem:[%s0 + $0x48] sm:$0xff]
  %v49 = vld [vmem:[%s0 + $0x50] sm:$0xff]
  %v50 = vld [vmem:[%s0 + $0x58] sm:$0xff]
  %v51 = vld [vmem:[%s0 + $0x60] sm:$0xff]
  %v52 = vld [vmem:[%s0 + $0x68] sm:$0xff]
  %v53 = vld [vmem:[%s0 + $0x70] sm:$0xff]
  %v54 = vld [vmem:[%s0 + $0x78] sm:$0xff]
  %v55 = vld [vmem:[%s0 + $0x80] sm:$0xff]
  %v56 = vld [vmem:[%s0 + $0x88] sm:$0xff]
  %v57 = vld [vmem:[%s0 + $0x90] sm:$0xff]
  %v58 = vld [vmem:[%s0 + $0x98] sm:$0xff]
  %v59 = vld [vmem:[%s0 + $0xa0] sm:$0xff]
  %v60 = vld [vmem:[%s0 + $0xa8] sm:$0xff]
  %v61 = vld [vmem:[%s0 + $0xb0] sm:$0xff]
  %v62 = vld [vmem:[%s0 + $0xb8] sm:$0xff]
  %v63 = vld [vmem:[%s0 + $0xc0] sm:$0xff]
  %v64 = vld [vmem:[%s0 + $0xc8] sm:$0xff]
  %v65 = vld [vmem:[%s0 + $0xd0] sm:$0xff]
  %v66 = vld [vmem:[%s0 + $0xd8] sm:$0xff]
  %v67 = vld [vmem:[%s0 + $0xe0] sm:$0xff]
  %v68 = vld [vmem:[%s0 + $0xe8] sm:$0xff]
  %v69 = vld [vmem:[%s0 + $0xf0] sm:$0xff]
  %v70 = vld [vmem:[%s0 + $0xf8] sm:$0xff]
  %v71 = vld [vmem:[%s0 + $0x100] sm:$0xff]
  %v72 = vld [vmem:[%s0 + $0x108] sm:$0xff]
  %v73 = vld [vmem:[%s0 + $0x110] sm:$0xff]
  %v74 = vld [vmem:[%s0 + $0x118] sm:$0xff]
  %v75 = vld [vmem:[%s0 + $0x120] sm:$0xff]
  %v76 = vld [vmem:[%s0 + $0x128] sm:$0xff]
  %v77 = vld [vmem:[%s0 + $0x130] sm:$0xff]
  %v78 = vld [vmem:[%s0 + $0x138] sm:$0xff]
  %v79 = vld [vmem:[%s0 + $0x140] sm:$0xff]
  %v80 = vld [vmem:[%s0 + $0x148] sm:$0xff]
  %v81 = vld [vmem:[%s0 + $0x150] sm:$0xff]
  %v82 = vld [vmem:[%s0 + $0x158] sm:$0xff]
  %v83 = vld [vmem:[%s0 + $0x160] sm:$0xff]
  %v84 = vld [vmem:[%s0 + $0x168] sm:$0xff]
  %v85 = vld [vmem:[%s0 + $0x170] sm:$0xff]
  %v86 = vld [vmem:[%s0 + $0x178] sm:$0xff]
  %v87 = vld [vmem:[%s0 + $0x180] sm:$0xff]
  %v88 = vld [vmem:[%s0 + $0x188] sm:$0xff]
  %v89 = vld [vmem:[%s0 + $0x190] sm:$0xff]
  %v90 = vld [vmem:[%s0 + $0x198] sm:$0xff]
  %v91 = vld [vmem:[%s0 + $0x1a0] sm:$0xff]
  %v92 = vld [vmem:[%s0 + $0x1a8] sm:$0xff]
  %v93 = vld [vmem:[%s0 + $0x1b0] sm:$0xff]
  %v94 = vld [vmem:[%s0 + $0x1b8] sm:$0xff]
  %v95 = vld [vmem:[%s0 + $0x1c0] sm:$0xff]
  %v96 = vld [vmem:[%s0 + $0x1c8] sm:$0xff]
  %v97 = vld [vmem:[%s0 + $0x1d0] sm:$0xff]
  %v98 = vld [vmem:[%s0 + $0x1d8] sm:$0xff]
  %v99 = vld [vmem:[%s0 + $0x1e0] sm:$0xff]
  %v100 = vld [vmem:[%s0 + $0x1e8] sm:$0xff]
  %v101 = vld [vmem:[%s0 + $0x1f0] sm:$0xff]
  %v102 = vld [vmem:[%s0 + $0x1f8] sm:$0xff]
  %v103 = vld [vmem:[%s0 + $0x200] sm:$0xff]
  %v104 = vld [vmem:[%s0 + $0x208] sm:$0xff]
  %v105 = vld [vmem:[%s0 + $0x210] sm:$0xff]
  %v106 = vld [vmem:[%s0 + $0x218] sm:$0xff]
  %v107 = vld [vmem:[%s0 + $0x220] sm:$0xff]
  %v108 = vld [vmem:[%s0 + $0x228] sm:$0xff]
  %v109 = vld [vmem:[%s0 + $0x230] sm:$0xff]
  %v110 = vld [vmem:[%s0 + $0x238] sm:$0xff]
  %v111 = vld [vmem:[%s0 + $0x240] sm:$0xff]
  %v112 = vld [vmem:[%s0 + $0x248] sm:$0xff]
  %v113 = vld [vmem:[%s0 + $0x250] sm:$0xff]
  %v114 = vld [vmem:[%s0 + $0x258] sm:$0xff]
  %v115 = vld [vmem:[%s0 + $0x260] sm:$0xff]
  %v116 = vld [vmem:[%s0 + $0x268] sm:$0xff]
  %v117 = vld [vmem:[%s0 + $0x270] sm:$0xff]
  %v118 = vld [vmem:[%s0 + $0x278] sm:$0xff]
  %v119 = vld [vmem:[%s0 + $0x280] sm:$0xff]
  %v120 = vld [vmem:[%s0 + $0x288] sm:$0xff]
  %v121 = vld [vmem:[%s0 + $0x290] sm:$0xff]
  %v122 = vld [vmem:[%s0 + $0x298] sm:$0xff]
  %v123 = vld [vmem:[%s0 + $0x2a0] sm:$0xff]
  %v124 = vld [vmem:[%s0 + $0x2a8] sm:$0xff]
  %v125 = vld [vmem:[%s0 + $0x2b0] sm:$0xff]
  %v126 = vld [vmem:[%s0 + $0x2b8] sm:$0xff]
  %v127 = vld [vmem:[%s0 + $0x2c0] sm:$0xff]
  %v128 = vld [vmem:[%s0 + $0x2c8] sm:$0xff]
  %v129 = vld [vmem:[%s0 + $0x2d0] sm:$0xff]
  %v130 = vld [vmem:[%s0 + $0x2d8] sm:$0xff]
  %v131 = vld [vmem:[%s0 + $0x2e0] sm:$0xff]
  %v132 = vld [vmem:[%s0 + $0x2e8] sm:$0xff]
  %v133 = vld [vmem:[%s0 + $0x2f0] sm:$0xff]
  %v134 = vld [vmem:[%s0 + $0x2f8] sm:$0xff]
  %v135 = vld [vmem:[%s0 + $0x300] sm:$0xff]
  %v136 = vld [vmem:[%s0 + $0x308] sm:$0xff]
  %v137 = vld [vmem:[%s0 + $0x310] sm:$0xff]
  %v138 = vld [vmem:[%s0 + $0x318] sm:$0xff]
  %v139 = vld [vmem:[%s0 + $0x320] sm:$0xff]
  %v140 = vld [vmem:[%s0 + $0x328] sm:$0xff]
  %v141 = vld [vmem:[%s0 + $0x330] sm:$0xff]
  %v142 = vld [vmem:[%s0 + $0x338] sm:$0xff]
  %v143 = vld [vmem:[%s0 + $0x340] sm:$0xff]
  %v144 = vld [vmem:[%s0 + $0x348] sm:$0xff]
  %v145 = vld [vmem:[%s0 + $0x350] sm:$0xff]
  %v146 = vld [vmem:[%s0 + $0x358] sm:$0xff]
  %v147 = vld [vmem:[%s0 + $0x360] sm:$0xff]
  %v148 = vld [vmem:[%s0 + $0x368] sm:$0xff]
  %v149 = vld [vmem:[%s0 + $0x370] sm:$0xff]
  %v150 = vld [vmem:[%s0 + $0x378] sm:$0xff]
  %v151 = vld [vmem:[%s0 + $0x380] sm:$0xff]
  %v152 = vld [vmem:[%s0 + $0x388] sm:$0xff]
  %v153 = vld [vmem:[%s0 + $0x390] sm:$0xff]
  %v154 = vld [vmem:[%s0 + $0x398] sm:$0xff]
  %v155 = vld [vmem:[%s0 + $0x3a0] sm:$0xff]
  %v156 = vld [vmem:[%s0 + $0x3a8] sm:$0xff]
  %v157 = vld [vmem:[%s0 + $0x3b0] sm:$0xff]
  %v158 = vld [vmem:[%s0 + $0x3b8] sm:$0xff]
  %v159 = vld [vmem:[%s0 + $0x3c0] sm:$0xff]
  %v160 = vld [vmem:[%s0 + $0x3c8] sm:$0xff]
  %v161 = vld [vmem:[%s0 + $0x3d0] sm:$0xff]
  %v162 = vld [vmem:[%s0 + $0x3d8] sm:$0xff]
  %v163 = vld [vmem:[%s0 + $0x3e0] sm:$0xff]
  %v164 = vld [vmem:[%s0 + $0x3e8] sm:$0xff]
  %v165 = vld [vmem:[%s0 + $0x3f0] sm:$0xff]
  %v166 = vld [vmem:[%s0 + $0x3f8] sm:$0xff]
  %v167 = vld [vmem:[%s0 + $0x400] sm:$0xff]
  %v168 = vld [vmem:[%s0 + $0x408] sm:$0xff]
  %v169 = vld [vmem:[%s0 + $0x410] sm:$0xff]
  %v170 = vld [vmem:[%s0 + $0x418] sm:$0xff]
  %v171 = vld [vmem:[%s0 + $0x420] sm:$0xff]
  %v172 = vld [vmem:[%s0 + $0x428] sm:$0xff]
  %v173 = vld [vmem:[%s0 + $0x430] sm:$0xff]
  %v174 = vld [vmem:[%s0 + $0x438] sm:$0xff]
  %v175 = vld [vmem:[%s0 + $0x440] sm:$0xff]
  %v176 = vld [vmem:[%s0 + $0x448] sm:$0xff]
  %v177 = vld [vmem:[%s0 + $0x450] sm:$0xff]
  %v178 = vld [vmem:[%s0 + $0x458] sm:$0xff]
  %v179 = vld [vmem:[%s0 + $0x460] sm:$0xff]
  %v180 = vld [vmem:[%s0 + $0x468] sm:$0xff]
  %v181 = vld [vmem:[%s0 + $0x470] sm:$0xff]
  %v182 = vld [vmem:[%s0 + $0x478] sm:$0xff]
  %v183 = vld [vmem:[%s0 + $0x480] sm:$0xff]
  %v184 = vld [vmem:[%s0 + $0x488] sm:$0xff]
  %v185 = vld [vmem:[%s0 + $0x490] sm:$0xff]
  %v186 = vld [vmem:[%s0 + $0x498] sm:$0xff]
  %v187 = vld [vmem:[%s0 + $0x4a0] sm:$0xff]
  %v188 = vld [vmem:[%s0 + $0x4a8] sm:$0xff]
  %v189 = vld [vmem:[%s0 + $0x4b0] sm:$0xff]
  %v190 = vld [vmem:[%s0 + $0x4b8] sm:$0xff]
  %v191 = vld [vmem:[%s0 + $0x4c0] sm:$0xff]
  %v192 = vld [vmem:[%s0 + $0x4c8] sm:$0xff]
  %v193 = vld [vmem:[%s0 + $0x4d0] sm:$0xff]
  %v194 = vld [vmem:[%s0 + $0x4d8] sm:$0xff]
  %v195 = vld [vmem:[%s0 + $0x4e0] sm:$0xff]
  %v196 = vld [vmem:[%s0 + $0x4e8] sm:$0xff]
  %v197 = vld [vmem:[%s0 + $0x4f0] sm:$0xff]
  %v198 = vld [vmem:[%s0 + $0x4f8] sm:$0xff]
  %v199 = vld [vmem:[%s0 + $0x500] sm:$0xff]
  %v200 = vld [vmem:[%s0 + $0x508] sm:$0xff]
  %v201 = vld [vmem:[%s0 + $0x510] sm:$0xff]
  %v202 = vld [vmem:[%s0 + $0x518] sm:$0xff]
  %v203 = vld [vmem:[%s0 + $0x520] sm:$0xff]
  %v204 = vld [vmem:[%s0 + $0x528] sm:$0xff]
  %v205 = vld [vmem:[%s0 + $0x530] sm:$0xff]
  %v206 = vld [vmem:[%s0 + $0x538] sm:$0xff]
  %v207 = vld [vmem:[%s0 + $0x540] sm:$0xff]
  %v208 = vld [vmem:[%s0 + $0x548] sm:$0xff]
  %v209 = vld [vmem:[%s0 + $0x550] sm:$0xff]
  %v210 = vld [vmem:[%s0 + $0x558] sm:$0xff]
  %v211 = vld [vmem:[%s0 + $0x560] sm:$0xff]
  %v212 = vld [vmem:[%s0 + $0x568] sm:$0xff]
  %v213 = vld [vmem:[%s0 + $0x570] sm:$0xff]
  %v214 = vld [vmem:[%s0 + $0x578] sm:$0xff]
  %v215 = vld [vmem:[%s0 + $0x580] sm:$0xff]
  %v216 = vld [vmem:[%s0 + $0x588] sm:$0xff]
  %v217 = vld [vmem:[%s0 + $0x590] sm:$0xff]
  %v218 = vld [vmem:[%s0 + $0x598] sm:$0xff]
  %v219 = vld [vmem:[%s0 + $0x5a0] sm:$0xff]
  %v220 = vld [vmem:[%s0 + $0x5a8] sm:$0xff]
  %v221 = vld [vmem:[%s0 + $0x5b0] sm:$0xff]
  %v222 = vld [vmem:[%s0 + $0x5b8] sm:$0xff]
  %v223 = vld [vmem:[%s0 + $0x5c0] sm:$0xff]
  %v224 = vld [vmem:[%s0 + $0x5c8] sm:$0xff]
  %v225 = vld [vmem:[%s0 + $0x5d0] sm:$0xff]
  %v226 = vld [vmem:[%s0 + $0x5d8] sm:$0xff]
  %v227 = vld [vmem:[%s0 + $0x5e0] sm:$0xff]
  %v228 = vld [vmem:[%s0 + $0x5e8] sm:$0xff]
  %v229 = vld [vmem:[%s0 + $0x5f0] sm:$0xff]
  %v230 = vld [vmem:[%s0 + $0x5f8] sm:$0xff]
  %v231 = vld [vmem:[%s0 + $0x600] sm:$0xff]
  %v232 = vld [vmem:[%s0 + $0x608] sm:$0xff]
  %v233 = vld [vmem:[%s0 + $0x610] sm:$0xff]
  %v234 = vld [vmem:[%s0 + $0x618] sm:$0xff]
  %v235 = vld [vmem:[%s0 + $0x620] sm:$0xff]
  %v236 = vld [vmem:[%s0 + $0x628] sm:$0xff]
  %v237 = vld [vmem:[%s0 + $0x630] sm:$0xff]
  %v238 = vld [vmem:[%s0 + $0x638] sm:$0xff]
  %v239 = vld [vmem:[%s0 + $0x640] sm:$0xff]
  %v240 = vld [vmem:[%s0 + $0x648] sm:$0xff]
  %v241 = vld [vmem:[%s0 + $0x650] sm:$0xff]
  %v242 = vld [vmem:[%s0 + $0x658] sm:$0xff]
  %v243 = vld [vmem:[%s0 + $0x660] sm:$0xff]
  %v244 = vld [vmem:[%s0 + $0x668] sm:$0xff]
  %v245 = vld [vmem:[%s0 + $0x670] sm:$0xff]
  %v246 = vld [vmem:[%s0 + $0x678] sm:$0xff]
  %v247 = vld [vmem:[%s0 + $0x680] sm:$0xff]
  %v248 = vld [vmem:[%s0 + $0x688] sm:$0xff]
  %v249 = vld [vmem:[%s0 + $0x690] sm:$0xff]
  %v250 = vld [vmem:[%s0 + $0x698] sm:$0xff]
  %v251 = vld [vmem:[%s0 + $0x6a0] sm:$0xff]
  %v252 = vld [vmem:[%s0 + $0x6a8] sm:$0xff]
  %v253 = vld [vmem:[%s0 + $0x6b0] sm:$0xff]
  %v254 = vld [vmem:[%s0 + $0x6b8] sm:$0xff]
  %v255 = vld [vmem:[%s0 + $0x6c0] sm:$0xff]
  %v256 = vld [vmem:[%s0 + $0x6c8] sm:$0xff]
  %v257 = vld [vmem:[%s0 + $0x6d0] sm:$0xff]
  %v258 = vld [vmem:[%s0 + $0x6d8] sm:$0xff]
  %v259 = vld [vmem:[%s0 + $0x6e0] sm:$0xff]
  %v260 = vld [vmem:[%s0 + $0x6e8] sm:$0xff]
  %v261 = vld [vmem:[%s0 + $0x6f0] sm:$0xff]
  %v262 = vld [vmem:[%s0 + $0x6f8] sm:$0xff]
  %v263 = vld [vmem:[%s0 + $0x700] sm:$0xff]
  %v264 = vld [vmem:[%s0 + $0x708] sm:$0xff]
  %v265 = vld [vmem:[%s0 + $0x710] sm:$0xff]
  %v266 = vld [vmem:[%s0 + $0x718] sm:$0xff]
  %v267 = vld [vmem:[%s0 + $0x720] sm:$0xff]
  %v268 = vld [vmem:[%s0 + $0x728] sm:$0xff]
  %v269 = vld [vmem:[%s0 + $0x730] sm:$0xff]
  %v270 = vld [vmem:[%s0 + $0x738] sm:$0xff]
  %v271 = vld [vmem:[%s0 + $0x740] sm:$0xff]
  %v272 = vld [vmem:[%s0 + $0x748] sm:$0xff]
  %v273 = vld [vmem:[%s0 + $0x750] sm:$0xff]
  %v274 = vld [vmem:[%s0 + $0x758] sm:$0xff]
  %v275 = vld [vmem:[%s0 + $0x760] sm:$0xff]
  %v276 = vld [vmem:[%s0 + $0x768] sm:$0xff]
  %v277 = vld [vmem:[%s0 + $0x770] sm:$0xff]
  %v278 = vld [vmem:[%s0 + $0x778] sm:$0xff]
  %v279 = vld [vmem:[%s0 + $0x780] sm:$0xff]
  %v280 = vld [vmem:[%s0 + $0x788] sm:$0xff]
  %v281 = vld [vmem:[%s0 + $0x790] sm:$0xff]
  %v282 = vld [vmem:[%s0 + $0x798] sm:$0xff]
  %v283 = vld [vmem:[%s0 + $0x7a0] sm:$0xff]
  %v284 = vld [vmem:[%s0 + $0x7a8] sm:$0xff]
  %v285 = vld [vmem:[%s0 + $0x7b0] sm:$0xff]
  %v286 = vld [vmem:[%s0 + $0x7b8] sm:$0xff]
  %v287 = vld [vmem:[%s0 + $0x7c0] sm:$0xff]
  %v288 = vld [vmem:[%s0 + $0x7c8] sm:$0xff]
  %v289 = vld [vmem:[%s0 + $0x7d0] sm:$0xff]
  %v290 = vld [vmem:[%s0 + $0x7d8] sm:$0xff]
  %v291 = vld [vmem:[%s0 + $0x7e0] sm:$0xff]
  %v292 = vld [vmem:[%s0 + $0x7e8] sm:$0xff]
  %v293 = vld [vmem:[%s0 + $0x7f0] sm:$0xff]
  %v294 = vld [vmem:[%s0 + $0x7f8] sm:$0xff]
  %v295 = vld [vmem:[%s0 + $0x800] sm:$0xff]
  %v296 = vld [vmem:[%s0 + $0x808] sm:$0xff]
  %v297 = vld [vmem:[%s0 + $0x810] sm:$0xff]
  %v298 = vld [vmem:[%s0 + $0x818] sm:$0xff]
  %v299 = vld [vmem:[%s0 + $0x820] sm:$0xff]
  %v300 = vld [vmem:[%s0 + $0x828] sm:$0xff]
  %v301 = vld [vmem:[%s0 + $0x830] sm:$0xff]
  %v302 = vld [vmem:[%s0 + $0x838] sm:$0xff]
  %v303 = vld [vmem:[%s0 + $0x840] sm:$0xff]
  %v304 = vld [vmem:[%s0 + $0x848] sm:$0xff]
  %v305 = vld [vmem:[%s0 + $0x850] sm:$0xff]
  %v306 = vld [vmem:[%s0 + $0x858] sm:$0xff]
  %v307 = vld [vmem:[%s0 + $0x860] sm:$0xff]
  %v308 = vld [vmem:[%s0 + $0x868] sm:$0xff]
  %v309 = vld [vmem:[%s0 + $0x870] sm:$0xff]
  %v310 = vld [vmem:[%s0 + $0x878] sm:$0xff]
  %v311 = vld [vmem:[%s0 + $0x880] sm:$0xff]
  %v312 = vld [vmem:[%s0 + $0x888] sm:$0xff]
  %v313 = vld [vmem:[%s0 + $0x890] sm:$0xff]
  %v314 = vld [vmem:[%s0 + $0x898] sm:$0xff]
  %v315 = vld [vmem:[%s0 + $0x8a0] sm:$0xff]
  %v316 = vld [vmem:[%s0 + $0x8a8] sm:$0xff]
  %v317 = vld [vmem:[%s0 + $0x8b0] sm:$0xff]
  %v318 = vld [vmem:[%s0 + $0x8b8] sm:$0xff]
  %v319 = vld [vmem:[%s0 + $0x8c0] sm:$0xff]
  %v320 = vld [vmem:[%s0 + $0x8c8] sm:$0xff]
  %v321 = vld [vmem:[%s0 + $0x8d0] sm:$0xff]
  %v322 = vld [vmem:[%s0 + $0x8d8] sm:$0xff]
  %v323 = vld [vmem:[%s0 + $0x8e0] sm:$0xff]
  %v324 = vld [vmem:[%s0 + $0x8e8] sm:$0xff]
  %v325 = vld [vmem:[%s0 + $0x8f0] sm:$0xff]
  %v326 = vld [vmem:[%s0 + $0x8f8] sm:$0xff]
  %v327 = vld [vmem:[%s0 + $0x900] sm:$0xff]
  %v328 = vld [vmem:[%s0 + $0x908] sm:$0xff]
  %v329 = vld [vmem:[%s0 + $0x910] sm:$0xff]
  %v330 = vld [vmem:[%s0 + $0x918] sm:$0xff]
  %v331 = vld [vmem:[%s0 + $0x920] sm:$0xff]
  %v332 = vld [vmem:[%s0 + $0x928] sm:$0xff]
  %v333 = vld [vmem:[%s0 + $0x930] sm:$0xff]
  %v334 = vld [vmem:[%s0 + $0x938] sm:$0xff]
  %v335 = vld [vmem:[%s0 + $0x940] sm:$0xff]
  %v336 = vld [vmem:[%s0 + $0x948] sm:$0xff]
  %v337 = vld [vmem:[%s0 + $0x950] sm:$0xff]
  %v338 = vld [vmem:[%s0 + $0x958] sm:$0xff]
  %v339 = vld [vmem:[%s0 + $0x960] sm:$0xff]
  %v340 = vld [vmem:[%s0 + $0x968] sm:$0xff]
  %v341 = vld [vmem:[%s0 + $0x970] sm:$0xff]
  %v342 = vld [vmem:[%s0 + $0x978] sm:$0xff]
  %v343 = vld [vmem:[%s0 + $0x980] sm:$0xff]
  %v344 = vld [vmem:[%s0 + $0x988] sm:$0xff]
  %v345 = vld [vmem:[%s0 + $0x990] sm:$0xff]
  %v346 = vld [vmem:[%s0 + $0x998] sm:$0xff]
  %v347 = vld [vmem:[%s0 + $0x9a0] sm:$0xff]
  %v348 = vld [vmem:[%s0 + $0x9a8] sm:$0xff]
  %v349 = vld [vmem:[%s0 + $0x9b0] sm:$0xff]
  %v350 = vld [vmem:[%s0 + $0x9b8] sm:$0xff]
  %v351 = vld [vmem:[%s0 + $0x9c0] sm:$0xff]
  %v352 = vld [vmem:[%s0 + $0x9c8] sm:$0xff]
  %v353 = vld [vmem:[%s0 + $0x9d0] sm:$0xff]
  %v354 = vld [vmem:[%s0 + $0x9d8] sm:$0xff]
  %v355 = vld [vmem:[%s0 + $0x9e0] sm:$0xff]
  %v356 = vld [vmem:[%s0 + $0x9e8] sm:$0xff]
  %v357 = vld [vmem:[%s0 + $0x9f0] sm:$0xff]
  %v358 = vld [vmem:[%s0 + $0x9f8] sm:$0xff]
  %v359 = vld [vmem:[%s0 + $0xa00] sm:$0xff]
  %v360 = vld [vmem:[%s0 + $0xa08] sm:$0xff]
  %v361 = vld [vmem:[%s0 + $0xa10] sm:$0xff]
  %v362 = vld [vmem:[%s0 + $0xa18] sm:$0xff]
  %v363 = vld [vmem:[%s0 + $0xa20] sm:$0xff]
  %v364 = vld [vmem:[%s0 + $0xa28] sm:$0xff]
  %v365 = vld [vmem:[%s0 + $0xa30] sm:$0xff]
  %v366 = vld [vmem:[%s0 + $0xa38] sm:$0xff]
  %v367 = vld [vmem:[%s0 + $0xa40] sm:$0xff]
  %v368 = vld [vmem:[%s0 + $0xa48] sm:$0xff]
  %v369 = vld [vmem:[%s0 + $0xa50] sm:$0xff]
  %v370 = vld [vmem:[%s0 + $0xa58] sm:$0xff]
  %v371 = vld [vmem:[%s0 + $0xa60] sm:$0xff]
  %v372 = vld [vmem:[%s0 + $0xa68] sm:$0xff]
  %v373 = vld [vmem:[%s0 + $0xa70] sm:$0xff]
  %v374 = vld [vmem:[%s0 + $0xa78] sm:$0xff]
  %v375 = vld [vmem:[%s0 + $0xa80] sm:$0xff]
  %v376 = vld [vmem:[%s0 + $0xa88] sm:$0xff]
  %v377 = vld [vmem:[%s0 + $0xa90] sm:$0xff]
  %v378 = vld [vmem:[%s0 + $0xa98] sm:$0xff]
  %v379 = vld [vmem:[%s0 + $0xaa0] sm:$0xff]
  %v380 = vld [vmem:[%s0 + $0xaa8] sm:$0xff]
  %v381 = vld [vmem:[%s0 + $0xab0] sm:$0xff]
  %v382 = vld [vmem:[%s0 + $0xab8] sm:$0xff]
  %v383 = vld [vmem:[%s0 + $0xac0] sm:$0xff]
  %v384 = vld [vmem:[%s0 + $0xac8] sm:$0xff]
  %v385 = vld [vmem:[%s0 + $0xad0] sm:$0xff]
  %v386 = vld [vmem:[%s0 + $0xad8] sm:$0xff]
  %v387 = vld [vmem:[%s0 + $0xae0] sm:$0xff]
  %v388 = vld [vmem:[%s0 + $0xae8] sm:$0xff]
  %v389 = vld [vmem:[%s0 + $0xaf0] sm:$0xff]
  %v390 = vld [vmem:[%s0 + $0xaf8] sm:$0xff]
  %v391 = vld [vmem:[%s0 + $0xb00] sm:$0xff]
  %v392 = vld [vmem:[%s0 + $0xb08] sm:$0xff]
  %v393 = vld [vmem:[%s0 + $0xb10] sm:$0xff]
  %v394 = vld [vmem:[%s0 + $0xb18] sm:$0xff]
  %v395 = vld [vmem:[%s0 + $0xb20] sm:$0xff]
  %v396 = vld [vmem:[%s0 + $0xb28] sm:$0xff]
  %v397 = vld [vmem:[%s0 + $0xb30] sm:$0xff]
  %v398 = vld [vmem:[%s0 + $0xb38] sm:$0xff]
  %v399 = vld [vmem:[%s0 + $0xb40] sm:$0xff]
  %v400 = vld [vmem:[%s0 + $0xb48] sm:$0xff]
  %v401 = vld [vmem:[%s0 + $0xb50] sm:$0xff]
  %v402 = vld [vmem:[%s0 + $0xb58] sm:$0xff]
  %v403 = vld [vmem:[%s0 + $0xb60] sm:$0xff]
  %v404 = vld [vmem:[%s0 + $0xb68] sm:$0xff]
  %v405 = vld [vmem:[%s0 + $0xb70] sm:$0xff]
  %v406 = vld [vmem:[%s0 + $0xb78] sm:$0xff]
  %v407 = vld [vmem:[%s0 + $0xb80] sm:$0xff]
  %v408 = vld [vmem:[%s0 + $0xb88] sm:$0xff]
  %v409 = vld [vmem:[%s0 + $0xb90] sm:$0xff]
  %v410 = vld [vmem:[%s0 + $0xb98] sm:$0xff]
  %v411 = vld [vmem:[%s0 + $0xba0] sm:$0xff]
  %v412 = vld [vmem:[%s0 + $0xba8] sm:$0xff]
  %v413 = vld [vmem:[%s0 + $0xbb0] sm:$0xff]
  %v414 = vld [vmem:[%s0 + $0xbb8] sm:$0xff]
  %v415 = vld [vmem:[%s0 + $0xbc0] sm:$0xff]
  %v416 = vld [vmem:[%s0 + $0xbc8] sm:$0xff]
  %v417 = vld [vmem:[%s0 + $0xbd0] sm:$0xff]
  %v418 = vld [vmem:[%s0 + $0xbd8] sm:$0xff]
  %v419 = vld [vmem:[%s0 + $0xbe0] sm:$0xff]
  %v420 = vld [vmem:[%s0 + $0xbe8] sm:$0xff]
  %v421 = vld [vmem:[%s0 + $0xbf0] sm:$0xff]
  %v422 = vld [vmem:[%s0 + $0xbf8] sm:$0xff]
  %v423 = vld [vmem:[%s1] sm:$0xff]
  %v424 = vld [vmem:[%s1 + $0x8] sm:$0xff]
  %v425 = vld [vmem:[%s1 + $0x10] sm:$0xff]
  %v426 = vld [vmem:[%s1 + $0x18] sm:$0xff]
  %v427 = vld [vmem:[%s1 + $0x20] sm:$0xff]
  %v428 = vld [vmem:[%s1 + $0x28] sm:$0xff]
  %v429 = vld [vmem:[%s1 + $0x30] sm:$0xff]
  %v430 = vld [vmem:[%s1 + $0x38] sm:$0xff]
  %v431 = vld [vmem:[%s1 + $0x40] sm:$0xff]
  %v432 = vld [vmem:[%s1 + $0x48] sm:$0xff]
  %v433 = vld [vmem:[%s1 + $0x50] sm:$0xff]
  %v434 = vld [vmem:[%s1 + $0x58] sm:$0xff]
  %v435 = vld [vmem:[%s1 + $0x60] sm:$0xff]
  %v436 = vld [vmem:[%s1 + $0x68] sm:$0xff]
  %v437 = vld [vmem:[%s1 + $0x70] sm:$0xff]
  %v438 = vld [vmem:[%s1 + $0x78] sm:$0xff]
  %v439 = vld [vmem:[%s1 + $0x80] sm:$0xff]
  %v440 = vld [vmem:[%s1 + $0x88] sm:$0x33]
  %v825 = vunpack.c.l.b16 %v39
  %v826 = vunpack.c.h.b16 %v39
  %v827 = vunpack.c.l.b16 %v40
  %v828 = vunpack.c.h.b16 %v40
  %v829 = vunpack.c.l.b16 %v41
  %v830 = vunpack.c.h.b16 %v41
  %v831 = vunpack.c.l.b16 %v42
  %v832 = vunpack.c.h.b16 %v42
  %v833 = vunpack.c.l.b16 %v43
  %v834 = vunpack.c.h.b16 %v43
  %v835 = vunpack.c.l.b16 %v44
  %v836 = vunpack.c.h.b16 %v44
  %v837 = vunpack.c.l.b16 %v45
  %v838 = vunpack.c.h.b16 %v45
  %v839 = vunpack.c.l.b16 %v46
  %v840 = vunpack.c.h.b16 %v46
  %v841 = vunpack.c.l.b16 %v47
  %v842 = vunpack.c.h.b16 %v47
  %v843 = vunpack.c.l.b16 %v48
  %v844 = vunpack.c.h.b16 %v48
  %v845 = vunpack.c.l.b16 %v49
  %v846 = vunpack.c.h.b16 %v49
  %v847 = vunpack.c.l.b16 %v50
  %v848 = vunpack.c.h.b16 %v50
  %v849 = vunpack.c.l.b16 %v51
  %v850 = vunpack.c.h.b16 %v51
  %v851 = vunpack.c.l.b16 %v52
  %v852 = vunpack.c.h.b16 %v52
  %v853 = vunpack.c.l.b16 %v53
  %v854 = vunpack.c.h.b16 %v53
  %v855 = vunpack.c.l.b16 %v54
  %v856 = vunpack.c.h.b16 %v54
  %v857 = vunpack.c.l.b16 %v55
  %v858 = vunpack.c.h.b16 %v55
  %v859 = vunpack.c.l.b16 %v56
  %v860 = vunpack.c.h.b16 %v56
  %v861 = vunpack.c.l.b16 %v57
  %v862 = vunpack.c.h.b16 %v57
  %v863 = vunpack.c.l.b16 %v58
  %v864 = vunpack.c.h.b16 %v58
  %v865 = vunpack.c.l.b16 %v59
  %v866 = vunpack.c.h.b16 %v59
  %v867 = vunpack.c.l.b16 %v60
  %v868 = vunpack.c.h.b16 %v60
  %v869 = vunpack.c.l.b16 %v61
  %v870 = vunpack.c.h.b16 %v61
  %v871 = vunpack.c.l.b16 %v62
  %v872 = vunpack.c.h.b16 %v62
  %v873 = vunpack.c.l.b16 %v63
  %v874 = vunpack.c.h.b16 %v63
  %v875 = vunpack.c.l.b16 %v64
  %v876 = vunpack.c.h.b16 %v64
  %v877 = vunpack.c.l.b16 %v65
  %v878 = vunpack.c.h.b16 %v65
  %v879 = vunpack.c.l.b16 %v66
  %v880 = vunpack.c.h.b16 %v66
  %v881 = vunpack.c.l.b16 %v67
  %v882 = vunpack.c.h.b16 %v67
  %v883 = vunpack.c.l.b16 %v68
  %v884 = vunpack.c.h.b16 %v68
  %v885 = vunpack.c.l.b16 %v69
  %v886 = vunpack.c.h.b16 %v69
  %v887 = vunpack.c.l.b16 %v70
  %v888 = vunpack.c.h.b16 %v70
  %v889 = vunpack.c.l.b16 %v71
  %v890 = vunpack.c.h.b16 %v71
  %v891 = vunpack.c.l.b16 %v72
  %v892 = vunpack.c.h.b16 %v72
  %v893 = vunpack.c.l.b16 %v73
  %v894 = vunpack.c.h.b16 %v73
  %v895 = vunpack.c.l.b16 %v74
  %v896 = vunpack.c.h.b16 %v74
  %v897 = vunpack.c.l.b16 %v75
  %v898 = vunpack.c.h.b16 %v75
  %v899 = vunpack.c.l.b16 %v76
  %v900 = vunpack.c.h.b16 %v76
  %v901 = vunpack.c.l.b16 %v77
  %v902 = vunpack.c.h.b16 %v77
  %v903 = vunpack.c.l.b16 %v78
  %v904 = vunpack.c.h.b16 %v78
  %v905 = vunpack.c.l.b16 %v79
  %v906 = vunpack.c.h.b16 %v79
  %v907 = vunpack.c.l.b16 %v80
  %v908 = vunpack.c.h.b16 %v80
  %v909 = vunpack.c.l.b16 %v81
  %v910 = vunpack.c.h.b16 %v81
  %v911 = vunpack.c.l.b16 %v82
  %v912 = vunpack.c.h.b16 %v82
  %v913 = vunpack.c.l.b16 %v83
  %v914 = vunpack.c.h.b16 %v83
  %v915 = vunpack.c.l.b16 %v84
  %v916 = vunpack.c.h.b16 %v84
  %v917 = vunpack.c.l.b16 %v85
  %v918 = vunpack.c.h.b16 %v85
  %v919 = vunpack.c.l.b16 %v86
  %v920 = vunpack.c.h.b16 %v86
  %v921 = vunpack.c.l.b16 %v87
  %v922 = vunpack.c.h.b16 %v87
  %v923 = vunpack.c.l.b16 %v88
  %v924 = vunpack.c.h.b16 %v88
  %v925 = vunpack.c.l.b16 %v89
  %v926 = vunpack.c.h.b16 %v89
  %v927 = vunpack.c.l.b16 %v90
  %v928 = vunpack.c.h.b16 %v90
  %v929 = vunpack.c.l.b16 %v91
  %v930 = vunpack.c.h.b16 %v91
  %v931 = vunpack.c.l.b16 %v92
  %v932 = vunpack.c.h.b16 %v92
  %v933 = vunpack.c.l.b16 %v93
  %v934 = vunpack.c.h.b16 %v93
  %v935 = vunpack.c.l.b16 %v94
  %v936 = vunpack.c.h.b16 %v94
  %v937 = vunpack.c.l.b16 %v95
  %v938 = vunpack.c.h.b16 %v95
  %v939 = vunpack.c.l.b16 %v96
  %v940 = vunpack.c.h.b16 %v96
  %v941 = vunpack.c.l.b16 %v97
  %v942 = vunpack.c.h.b16 %v97
  %v943 = vunpack.c.l.b16 %v98
  %v944 = vunpack.c.h.b16 %v98
  %v945 = vunpack.c.l.b16 %v99
  %v946 = vunpack.c.h.b16 %v99
  %v947 = vunpack.c.l.b16 %v100
  %v948 = vunpack.c.h.b16 %v100
  %v949 = vunpack.c.l.b16 %v101
  %v950 = vunpack.c.h.b16 %v101
  %v951 = vunpack.c.l.b16 %v102
  %v952 = vunpack.c.h.b16 %v102
  %v953 = vunpack.c.l.b16 %v103
  %v954 = vunpack.c.h.b16 %v103
  %v955 = vunpack.c.l.b16 %v104
  %v956 = vunpack.c.h.b16 %v104
  %v957 = vunpack.c.l.b16 %v105
  %v958 = vunpack.c.h.b16 %v105
  %v959 = vunpack.c.l.b16 %v106
  %v960 = vunpack.c.h.b16 %v106
  %v961 = vunpack.c.l.b16 %v107
  %v962 = vunpack.c.h.b16 %v107
  %v963 = vunpack.c.l.b16 %v108
  %v964 = vunpack.c.h.b16 %v108
  %v965 = vunpack.c.l.b16 %v109
  %v966 = vunpack.c.h.b16 %v109
  %v967 = vunpack.c.l.b16 %v110
  %v968 = vunpack.c.h.b16 %v110
  %v969 = vunpack.c.l.b16 %v111
  %v970 = vunpack.c.h.b16 %v111
  %v971 = vunpack.c.l.b16 %v112
  %v972 = vunpack.c.h.b16 %v112
  %v973 = vunpack.c.l.b16 %v113
  %v974 = vunpack.c.h.b16 %v113
  %v975 = vunpack.c.l.b16 %v114
  %v976 = vunpack.c.h.b16 %v114
  %v977 = vunpack.c.l.b16 %v115
  %v978 = vunpack.c.h.b16 %v115
  %v979 = vunpack.c.l.b16 %v116
  %v980 = vunpack.c.h.b16 %v116
  %v981 = vunpack.c.l.b16 %v117
  %v982 = vunpack.c.h.b16 %v117
  %v983 = vunpack.c.l.b16 %v118
  %v984 = vunpack.c.h.b16 %v118
  %v985 = vunpack.c.l.b16 %v119
  %v986 = vunpack.c.h.b16 %v119
  %v987 = vunpack.c.l.b16 %v120
  %v988 = vunpack.c.h.b16 %v120
  %v989 = vunpack.c.l.b16 %v121
  %v990 = vunpack.c.h.b16 %v121
  %v991 = vunpack.c.l.b16 %v122
  %v992 = vunpack.c.h.b16 %v122
  %v993 = vunpack.c.l.b16 %v123
  %v994 = vunpack.c.h.b16 %v123
  %v995 = vunpack.c.l.b16 %v124
  %v996 = vunpack.c.h.b16 %v124
  %v997 = vunpack.c.l.b16 %v125
  %v998 = vunpack.c.h.b16 %v125
  %v999 = vunpack.c.l.b16 %v126
  %v1000 = vunpack.c.h.b16 %v126
  %v1001 = vunpack.c.l.b16 %v127
  %v1002 = vunpack.c.h.b16 %v127
  %v1003 = vunpack.c.l.b16 %v128
  %v1004 = vunpack.c.h.b16 %v128
  %v1005 = vunpack.c.l.b16 %v129
  %v1006 = vunpack.c.h.b16 %v129
  %v1007 = vunpack.c.l.b16 %v130
  %v1008 = vunpack.c.h.b16 %v130
  %v1009 = vunpack.c.l.b16 %v131
  %v1010 = vunpack.c.h.b16 %v131
  %v1011 = vunpack.c.l.b16 %v132
  %v1012 = vunpack.c.h.b16 %v132
  %v1013 = vunpack.c.l.b16 %v133
  %v1014 = vunpack.c.h.b16 %v133
  %v1015 = vunpack.c.l.b16 %v134
  %v1016 = vunpack.c.h.b16 %v134
  %v1017 = vunpack.c.l.b16 %v135
  %v1018 = vunpack.c.h.b16 %v135
  %v1019 = vunpack.c.l.b16 %v136
  %v1020 = vunpack.c.h.b16 %v136
  %v1021 = vunpack.c.l.b16 %v137
  %v1022 = vunpack.c.h.b16 %v137
  %v1023 = vunpack.c.l.b16 %v138
  %v1024 = vunpack.c.h.b16 %v138
  %v1025 = vunpack.c.l.b16 %v139
  %v1026 = vunpack.c.h.b16 %v139
  %v1027 = vunpack.c.l.b16 %v140
  %v1028 = vunpack.c.h.b16 %v140
  %v1029 = vunpack.c.l.b16 %v141
  %v1030 = vunpack.c.h.b16 %v141
  %v1031 = vunpack.c.l.b16 %v142
  %v1032 = vunpack.c.h.b16 %v142
  %v1033 = vunpack.c.l.b16 %v143
  %v1034 = vunpack.c.h.b16 %v143
  %v1035 = vunpack.c.l.b16 %v144
  %v1036 = vunpack.c.h.b16 %v144
  %v1037 = vunpack.c.l.b16 %v145
  %v1038 = vunpack.c.h.b16 %v145
  %v1039 = vunpack.c.l.b16 %v146
  %v1040 = vunpack.c.h.b16 %v146
  %v1041 = vunpack.c.l.b16 %v147
  %v1042 = vunpack.c.h.b16 %v147
  %v1043 = vunpack.c.l.b16 %v148
  %v1044 = vunpack.c.h.b16 %v148
  %v1045 = vunpack.c.l.b16 %v149
  %v1046 = vunpack.c.h.b16 %v149
  %v1047 = vunpack.c.l.b16 %v150
  %v1048 = vunpack.c.h.b16 %v150
  %v1049 = vunpack.c.l.b16 %v151
  %v1050 = vunpack.c.h.b16 %v151
  %v1051 = vunpack.c.l.b16 %v152
  %v1052 = vunpack.c.h.b16 %v152
  %v1053 = vunpack.c.l.b16 %v153
  %v1054 = vunpack.c.h.b16 %v153
  %v1055 = vunpack.c.l.b16 %v154
  %v1056 = vunpack.c.h.b16 %v154
  %v1057 = vunpack.c.l.b16 %v155
  %v1058 = vunpack.c.h.b16 %v155
  %v1059 = vunpack.c.l.b16 %v156
  %v1060 = vunpack.c.h.b16 %v156
  %v1061 = vunpack.c.l.b16 %v157
  %v1062 = vunpack.c.h.b16 %v157
  %v1063 = vunpack.c.l.b16 %v158
  %v1064 = vunpack.c.h.b16 %v158
  %v1065 = vunpack.c.l.b16 %v159
  %v1066 = vunpack.c.h.b16 %v159
  %v1067 = vunpack.c.l.b16 %v160
  %v1068 = vunpack.c.h.b16 %v160
  %v1069 = vunpack.c.l.b16 %v161
  %v1070 = vunpack.c.h.b16 %v161
  %v1071 = vunpack.c.l.b16 %v162
  %v1072 = vunpack.c.h.b16 %v162
  %v1073 = vunpack.c.l.b16 %v163
  %v1074 = vunpack.c.h.b16 %v163
  %v1075 = vunpack.c.l.b16 %v164
  %v1076 = vunpack.c.h.b16 %v164
  %v1077 = vunpack.c.l.b16 %v165
  %v1078 = vunpack.c.h.b16 %v165
  %v1079 = vunpack.c.l.b16 %v166
  %v1080 = vunpack.c.h.b16 %v166
  %v1081 = vunpack.c.l.b16 %v167
  %v1082 = vunpack.c.h.b16 %v167
  %v1083 = vunpack.c.l.b16 %v168
  %v1084 = vunpack.c.h.b16 %v168
  %v1085 = vunpack.c.l.b16 %v169
  %v1086 = vunpack.c.h.b16 %v169
  %v1087 = vunpack.c.l.b16 %v170
  %v1088 = vunpack.c.h.b16 %v170
  %v1089 = vunpack.c.l.b16 %v171
  %v1090 = vunpack.c.h.b16 %v171
  %v1091 = vunpack.c.l.b16 %v172
  %v1092 = vunpack.c.h.b16 %v172
  %v1093 = vunpack.c.l.b16 %v173
  %v1094 = vunpack.c.h.b16 %v173
  %v1095 = vunpack.c.l.b16 %v174
  %v1096 = vunpack.c.h.b16 %v174
  %v1097 = vunpack.c.l.b16 %v175
  %v1098 = vunpack.c.h.b16 %v175
  %v1099 = vunpack.c.l.b16 %v176
  %v1100 = vunpack.c.h.b16 %v176
  %v1101 = vunpack.c.l.b16 %v177
  %v1102 = vunpack.c.h.b16 %v177
  %v1103 = vunpack.c.l.b16 %v178
  %v1104 = vunpack.c.h.b16 %v178
  %v1105 = vunpack.c.l.b16 %v179
  %v1106 = vunpack.c.h.b16 %v179
  %v1107 = vunpack.c.l.b16 %v180
  %v1108 = vunpack.c.h.b16 %v180
  %v1109 = vunpack.c.l.b16 %v181
  %v1110 = vunpack.c.h.b16 %v181
  %v1111 = vunpack.c.l.b16 %v182
  %v1112 = vunpack.c.h.b16 %v182
  %v1113 = vunpack.c.l.b16 %v183
  %v1114 = vunpack.c.h.b16 %v183
  %v1115 = vunpack.c.l.b16 %v184
  %v1116 = vunpack.c.h.b16 %v184
  %v1117 = vunpack.c.l.b16 %v185
  %v1118 = vunpack.c.h.b16 %v185
  %v1119 = vunpack.c.l.b16 %v186
  %v1120 = vunpack.c.h.b16 %v186
  %v1121 = vunpack.c.l.b16 %v187
  %v1122 = vunpack.c.h.b16 %v187
  %v1123 = vunpack.c.l.b16 %v188
  %v1124 = vunpack.c.h.b16 %v188
  %v1125 = vunpack.c.l.b16 %v189
  %v1126 = vunpack.c.h.b16 %v189
  %v1127 = vunpack.c.l.b16 %v190
  %v1128 = vunpack.c.h.b16 %v190
  %v1129 = vunpack.c.l.b16 %v191
  %v1130 = vunpack.c.h.b16 %v191
  %v1131 = vunpack.c.l.b16 %v192
  %v1132 = vunpack.c.h.b16 %v192
  %v1133 = vunpack.c.l.b16 %v193
  %v1134 = vunpack.c.h.b16 %v193
  %v1135 = vunpack.c.l.b16 %v194
  %v1136 = vunpack.c.h.b16 %v194
  %v1137 = vunpack.c.l.b16 %v195
  %v1138 = vunpack.c.h.b16 %v195
  %v1139 = vunpack.c.l.b16 %v196
  %v1140 = vunpack.c.h.b16 %v196
  %v1141 = vunpack.c.l.b16 %v197
  %v1142 = vunpack.c.h.b16 %v197
  %v1143 = vunpack.c.l.b16 %v198
  %v1144 = vunpack.c.h.b16 %v198
  %v1145 = vunpack.c.l.b16 %v199
  %v1146 = vunpack.c.h.b16 %v199
  %v1147 = vunpack.c.l.b16 %v200
  %v1148 = vunpack.c.h.b16 %v200
  %v1149 = vunpack.c.l.b16 %v201
  %v1150 = vunpack.c.h.b16 %v201
  %v1151 = vunpack.c.l.b16 %v202
  %v1152 = vunpack.c.h.b16 %v202
  %v1153 = vunpack.c.l.b16 %v203
  %v1154 = vunpack.c.h.b16 %v203
  %v1155 = vunpack.c.l.b16 %v204
  %v1156 = vunpack.c.h.b16 %v204
  %v1157 = vunpack.c.l.b16 %v205
  %v1158 = vunpack.c.h.b16 %v205
  %v1159 = vunpack.c.l.b16 %v206
  %v1160 = vunpack.c.h.b16 %v206
  %v1161 = vunpack.c.l.b16 %v207
  %v1162 = vunpack.c.h.b16 %v207
  %v1163 = vunpack.c.l.b16 %v208
  %v1164 = vunpack.c.h.b16 %v208
  %v1165 = vunpack.c.l.b16 %v209
  %v1166 = vunpack.c.h.b16 %v209
  %v1167 = vunpack.c.l.b16 %v210
  %v1168 = vunpack.c.h.b16 %v210
  %v1169 = vunpack.c.l.b16 %v211
  %v1170 = vunpack.c.h.b16 %v211
  %v1171 = vunpack.c.l.b16 %v212
  %v1172 = vunpack.c.h.b16 %v212
  %v1173 = vunpack.c.l.b16 %v213
  %v1174 = vunpack.c.h.b16 %v213
  %v1175 = vunpack.c.l.b16 %v214
  %v1176 = vunpack.c.h.b16 %v214
  %v1177 = vunpack.c.l.b16 %v215
  %v1178 = vunpack.c.h.b16 %v215
  %v1179 = vunpack.c.l.b16 %v216
  %v1180 = vunpack.c.h.b16 %v216
  %v1181 = vunpack.c.l.b16 %v217
  %v1182 = vunpack.c.h.b16 %v217
  %v1183 = vunpack.c.l.b16 %v218
  %v1184 = vunpack.c.h.b16 %v218
  %v1185 = vunpack.c.l.b16 %v219
  %v1186 = vunpack.c.h.b16 %v219
  %v1187 = vunpack.c.l.b16 %v220
  %v1188 = vunpack.c.h.b16 %v220
  %v1189 = vunpack.c.l.b16 %v221
  %v1190 = vunpack.c.h.b16 %v221
  %v1191 = vunpack.c.l.b16 %v222
  %v1192 = vunpack.c.h.b16 %v222
  %v1193 = vunpack.c.l.b16 %v223
  %v1194 = vunpack.c.h.b16 %v223
  %v1195 = vunpack.c.l.b16 %v224
  %v1196 = vunpack.c.h.b16 %v224
  %v1197 = vunpack.c.l.b16 %v225
  %v1198 = vunpack.c.h.b16 %v225
  %v1199 = vunpack.c.l.b16 %v226
  %v1200 = vunpack.c.h.b16 %v226
  %v1201 = vunpack.c.l.b16 %v227
  %v1202 = vunpack.c.h.b16 %v227
  %v1203 = vunpack.c.l.b16 %v228
  %v1204 = vunpack.c.h.b16 %v228
  %v1205 = vunpack.c.l.b16 %v229
  %v1206 = vunpack.c.h.b16 %v229
  %v1207 = vunpack.c.l.b16 %v230
  %v1208 = vunpack.c.h.b16 %v230
  %v1209 = vunpack.c.l.b16 %v231
  %v1210 = vunpack.c.h.b16 %v231
  %v1211 = vunpack.c.l.b16 %v232
  %v1212 = vunpack.c.h.b16 %v232
  %v1213 = vunpack.c.l.b16 %v233
  %v1214 = vunpack.c.h.b16 %v233
  %v1215 = vunpack.c.l.b16 %v234
  %v1216 = vunpack.c.h.b16 %v234
  %v1217 = vunpack.c.l.b16 %v235
  %v1218 = vunpack.c.h.b16 %v235
  %v1219 = vunpack.c.l.b16 %v236
  %v1220 = vunpack.c.h.b16 %v236
  %v1221 = vunpack.c.l.b16 %v237
  %v1222 = vunpack.c.h.b16 %v237
  %v1223 = vunpack.c.l.b16 %v238
  %v1224 = vunpack.c.h.b16 %v238
  %v1225 = vunpack.c.l.b16 %v239
  %v1226 = vunpack.c.h.b16 %v239
  %v1227 = vunpack.c.l.b16 %v240
  %v1228 = vunpack.c.h.b16 %v240
  %v1229 = vunpack.c.l.b16 %v241
  %v1230 = vunpack.c.h.b16 %v241
  %v1231 = vunpack.c.l.b16 %v242
  %v1232 = vunpack.c.h.b16 %v242
  %v1233 = vunpack.c.l.b16 %v243
  %v1234 = vunpack.c.h.b16 %v243
  %v1235 = vunpack.c.l.b16 %v244
  %v1236 = vunpack.c.h.b16 %v244
  %v1237 = vunpack.c.l.b16 %v245
  %v1238 = vunpack.c.h.b16 %v245
  %v1239 = vunpack.c.l.b16 %v246
  %v1240 = vunpack.c.h.b16 %v246
  %v1241 = vunpack.c.l.b16 %v247
  %v1242 = vunpack.c.h.b16 %v247
  %v1243 = vunpack.c.l.b16 %v248
  %v1244 = vunpack.c.h.b16 %v248
  %v1245 = vunpack.c.l.b16 %v249
  %v1246 = vunpack.c.h.b16 %v249
  %v1247 = vunpack.c.l.b16 %v250
  %v1248 = vunpack.c.h.b16 %v250
  %v1249 = vunpack.c.l.b16 %v251
  %v1250 = vunpack.c.h.b16 %v251
  %v1251 = vunpack.c.l.b16 %v252
  %v1252 = vunpack.c.h.b16 %v252
  %v1253 = vunpack.c.l.b16 %v253
  %v1254 = vunpack.c.h.b16 %v253
  %v1255 = vunpack.c.l.b16 %v254
  %v1256 = vunpack.c.h.b16 %v254
  %v1257 = vunpack.c.l.b16 %v255
  %v1258 = vunpack.c.h.b16 %v255
  %v1259 = vunpack.c.l.b16 %v256
  %v1260 = vunpack.c.h.b16 %v256
  %v1261 = vunpack.c.l.b16 %v257
  %v1262 = vunpack.c.h.b16 %v257
  %v1263 = vunpack.c.l.b16 %v258
  %v1264 = vunpack.c.h.b16 %v258
  %v1265 = vunpack.c.l.b16 %v259
  %v1266 = vunpack.c.h.b16 %v259
  %v1267 = vunpack.c.l.b16 %v260
  %v1268 = vunpack.c.h.b16 %v260
  %v1269 = vunpack.c.l.b16 %v261
  %v1270 = vunpack.c.h.b16 %v261
  %v1271 = vunpack.c.l.b16 %v262
  %v1272 = vunpack.c.h.b16 %v262
  %v1273 = vunpack.c.l.b16 %v263
  %v1274 = vunpack.c.h.b16 %v263
  %v1275 = vunpack.c.l.b16 %v264
  %v1276 = vunpack.c.h.b16 %v264
  %v1277 = vunpack.c.l.b16 %v265
  %v1278 = vunpack.c.h.b16 %v265
  %v1279 = vunpack.c.l.b16 %v266
  %v1280 = vunpack.c.h.b16 %v266
  %v1281 = vunpack.c.l.b16 %v267
  %v1282 = vunpack.c.h.b16 %v267
  %v1283 = vunpack.c.l.b16 %v268
  %v1284 = vunpack.c.h.b16 %v268
  %v1285 = vunpack.c.l.b16 %v269
  %v1286 = vunpack.c.h.b16 %v269
  %v1287 = vunpack.c.l.b16 %v270
  %v1288 = vunpack.c.h.b16 %v270
  %v1289 = vunpack.c.l.b16 %v271
  %v1290 = vunpack.c.h.b16 %v271
  %v1291 = vunpack.c.l.b16 %v272
  %v1292 = vunpack.c.h.b16 %v272
  %v1293 = vunpack.c.l.b16 %v273
  %v1294 = vunpack.c.h.b16 %v273
  %v1295 = vunpack.c.l.b16 %v274
  %v1296 = vunpack.c.h.b16 %v274
  %v1297 = vunpack.c.l.b16 %v275
  %v1298 = vunpack.c.h.b16 %v275
  %v1299 = vunpack.c.l.b16 %v276
  %v1300 = vunpack.c.h.b16 %v276
  %v1301 = vunpack.c.l.b16 %v277
  %v1302 = vunpack.c.h.b16 %v277
  %v1303 = vunpack.c.l.b16 %v278
  %v1304 = vunpack.c.h.b16 %v278
  %v1305 = vunpack.c.l.b16 %v279
  %v1306 = vunpack.c.h.b16 %v279
  %v1307 = vunpack.c.l.b16 %v280
  %v1308 = vunpack.c.h.b16 %v280
  %v1309 = vunpack.c.l.b16 %v281
  %v1310 = vunpack.c.h.b16 %v281
  %v1311 = vunpack.c.l.b16 %v282
  %v1312 = vunpack.c.h.b16 %v282
  %v1313 = vunpack.c.l.b16 %v283
  %v1314 = vunpack.c.h.b16 %v283
  %v1315 = vunpack.c.l.b16 %v284
  %v1316 = vunpack.c.h.b16 %v284
  %v1317 = vunpack.c.l.b16 %v285
  %v1318 = vunpack.c.h.b16 %v285
  %v1319 = vunpack.c.l.b16 %v286
  %v1320 = vunpack.c.h.b16 %v286
  %v1321 = vunpack.c.l.b16 %v287
  %v1322 = vunpack.c.h.b16 %v287
  %v1323 = vunpack.c.l.b16 %v288
  %v1324 = vunpack.c.h.b16 %v288
  %v1325 = vunpack.c.l.b16 %v289
  %v1326 = vunpack.c.h.b16 %v289
  %v1327 = vunpack.c.l.b16 %v290
  %v1328 = vunpack.c.h.b16 %v290
  %v1329 = vunpack.c.l.b16 %v291
  %v1330 = vunpack.c.h.b16 %v291
  %v1331 = vunpack.c.l.b16 %v292
  %v1332 = vunpack.c.h.b16 %v292
  %v1333 = vunpack.c.l.b16 %v293
  %v1334 = vunpack.c.h.b16 %v293
  %v1335 = vunpack.c.l.b16 %v294
  %v1336 = vunpack.c.h.b16 %v294
  %v1337 = vunpack.c.l.b16 %v295
  %v1338 = vunpack.c.h.b16 %v295
  %v1339 = vunpack.c.l.b16 %v296
  %v1340 = vunpack.c.h.b16 %v296
  %v1341 = vunpack.c.l.b16 %v297
  %v1342 = vunpack.c.h.b16 %v297
  %v1343 = vunpack.c.l.b16 %v298
  %v1344 = vunpack.c.h.b16 %v298
  %v1345 = vunpack.c.l.b16 %v299
  %v1346 = vunpack.c.h.b16 %v299
  %v1347 = vunpack.c.l.b16 %v300
  %v1348 = vunpack.c.h.b16 %v300
  %v1349 = vunpack.c.l.b16 %v301
  %v1350 = vunpack.c.h.b16 %v301
  %v1351 = vunpack.c.l.b16 %v302
  %v1352 = vunpack.c.h.b16 %v302
  %v1353 = vunpack.c.l.b16 %v303
  %v1354 = vunpack.c.h.b16 %v303
  %v1355 = vunpack.c.l.b16 %v304
  %v1356 = vunpack.c.h.b16 %v304
  %v1357 = vunpack.c.l.b16 %v305
  %v1358 = vunpack.c.h.b16 %v305
  %v1359 = vunpack.c.l.b16 %v306
  %v1360 = vunpack.c.h.b16 %v306
  %v1361 = vunpack.c.l.b16 %v307
  %v1362 = vunpack.c.h.b16 %v307
  %v1363 = vunpack.c.l.b16 %v308
  %v1364 = vunpack.c.h.b16 %v308
  %v1365 = vunpack.c.l.b16 %v309
  %v1366 = vunpack.c.h.b16 %v309
  %v1367 = vunpack.c.l.b16 %v310
  %v1368 = vunpack.c.h.b16 %v310
  %v1369 = vunpack.c.l.b16 %v311
  %v1370 = vunpack.c.h.b16 %v311
  %v1371 = vunpack.c.l.b16 %v312
  %v1372 = vunpack.c.h.b16 %v312
  %v1373 = vunpack.c.l.b16 %v313
  %v1374 = vunpack.c.h.b16 %v313
  %v1375 = vunpack.c.l.b16 %v314
  %v1376 = vunpack.c.h.b16 %v314
  %v1377 = vunpack.c.l.b16 %v315
  %v1378 = vunpack.c.h.b16 %v315
  %v1379 = vunpack.c.l.b16 %v316
  %v1380 = vunpack.c.h.b16 %v316
  %v1381 = vunpack.c.l.b16 %v317
  %v1382 = vunpack.c.h.b16 %v317
  %v1383 = vunpack.c.l.b16 %v318
  %v1384 = vunpack.c.h.b16 %v318
  %v1385 = vunpack.c.l.b16 %v319
  %v1386 = vunpack.c.h.b16 %v319
  %v1387 = vunpack.c.l.b16 %v320
  %v1388 = vunpack.c.h.b16 %v320
  %v1389 = vunpack.c.l.b16 %v321
  %v1390 = vunpack.c.h.b16 %v321
  %v1391 = vunpack.c.l.b16 %v322
  %v1392 = vunpack.c.h.b16 %v322
  %v1393 = vunpack.c.l.b16 %v323
  %v1394 = vunpack.c.h.b16 %v323
  %v1395 = vunpack.c.l.b16 %v324
  %v1396 = vunpack.c.h.b16 %v324
  %v1397 = vunpack.c.l.b16 %v325
  %v1398 = vunpack.c.h.b16 %v325
  %v1399 = vunpack.c.l.b16 %v326
  %v1400 = vunpack.c.h.b16 %v326
  %v1401 = vunpack.c.l.b16 %v327
  %v1402 = vunpack.c.h.b16 %v327
  %v1403 = vunpack.c.l.b16 %v328
  %v1404 = vunpack.c.h.b16 %v328
  %v1405 = vunpack.c.l.b16 %v329
  %v1406 = vunpack.c.h.b16 %v329
  %v1407 = vunpack.c.l.b16 %v330
  %v1408 = vunpack.c.h.b16 %v330
  %v1409 = vunpack.c.l.b16 %v331
  %v1410 = vunpack.c.h.b16 %v331
  %v1411 = vunpack.c.l.b16 %v332
  %v1412 = vunpack.c.h.b16 %v332
  %v1413 = vunpack.c.l.b16 %v333
  %v1414 = vunpack.c.h.b16 %v333
  %v1415 = vunpack.c.l.b16 %v334
  %v1416 = vunpack.c.h.b16 %v334
  %v1417 = vunpack.c.l.b16 %v335
  %v1418 = vunpack.c.h.b16 %v335
  %v1419 = vunpack.c.l.b16 %v336
  %v1420 = vunpack.c.h.b16 %v336
  %v1421 = vunpack.c.l.b16 %v337
  %v1422 = vunpack.c.h.b16 %v337
  %v1423 = vunpack.c.l.b16 %v338
  %v1424 = vunpack.c.h.b16 %v338
  %v1425 = vunpack.c.l.b16 %v339
  %v1426 = vunpack.c.h.b16 %v339
  %v1427 = vunpack.c.l.b16 %v340
  %v1428 = vunpack.c.h.b16 %v340
  %v1429 = vunpack.c.l.b16 %v341
  %v1430 = vunpack.c.h.b16 %v341
  %v1431 = vunpack.c.l.b16 %v342
  %v1432 = vunpack.c.h.b16 %v342
  %v1433 = vunpack.c.l.b16 %v343
  %v1434 = vunpack.c.h.b16 %v343
  %v1435 = vunpack.c.l.b16 %v344
  %v1436 = vunpack.c.h.b16 %v344
  %v1437 = vunpack.c.l.b16 %v345
  %v1438 = vunpack.c.h.b16 %v345
  %v1439 = vunpack.c.l.b16 %v346
  %v1440 = vunpack.c.h.b16 %v346
  %v1441 = vunpack.c.l.b16 %v347
  %v1442 = vunpack.c.h.b16 %v347
  %v1443 = vunpack.c.l.b16 %v348
  %v1444 = vunpack.c.h.b16 %v348
  %v1445 = vunpack.c.l.b16 %v349
  %v1446 = vunpack.c.h.b16 %v349
  %v1447 = vunpack.c.l.b16 %v350
  %v1448 = vunpack.c.h.b16 %v350
  %v1449 = vunpack.c.l.b16 %v351
  %v1450 = vunpack.c.h.b16 %v351
  %v1451 = vunpack.c.l.b16 %v352
  %v1452 = vunpack.c.h.b16 %v352
  %v1453 = vunpack.c.l.b16 %v353
  %v1454 = vunpack.c.h.b16 %v353
  %v1455 = vunpack.c.l.b16 %v354
  %v1456 = vunpack.c.h.b16 %v354
  %v1457 = vunpack.c.l.b16 %v355
  %v1458 = vunpack.c.h.b16 %v355
  %v1459 = vunpack.c.l.b16 %v356
  %v1460 = vunpack.c.h.b16 %v356
  %v1461 = vunpack.c.l.b16 %v357
  %v1462 = vunpack.c.h.b16 %v357
  %v1463 = vunpack.c.l.b16 %v358
  %v1464 = vunpack.c.h.b16 %v358
  %v1465 = vunpack.c.l.b16 %v359
  %v1466 = vunpack.c.h.b16 %v359
  %v1467 = vunpack.c.l.b16 %v360
  %v1468 = vunpack.c.h.b16 %v360
  %v1469 = vunpack.c.l.b16 %v361
  %v1470 = vunpack.c.h.b16 %v361
  %v1471 = vunpack.c.l.b16 %v362
  %v1472 = vunpack.c.h.b16 %v362
  %v1473 = vunpack.c.l.b16 %v363
  %v1474 = vunpack.c.h.b16 %v363
  %v1475 = vunpack.c.l.b16 %v364
  %v1476 = vunpack.c.h.b16 %v364
  %v1477 = vunpack.c.l.b16 %v365
  %v1478 = vunpack.c.h.b16 %v365
  %v1479 = vunpack.c.l.b16 %v366
  %v1480 = vunpack.c.h.b16 %v366
  %v1481 = vunpack.c.l.b16 %v367
  %v1482 = vunpack.c.h.b16 %v367
  %v1483 = vunpack.c.l.b16 %v368
  %v1484 = vunpack.c.h.b16 %v368
  %v1485 = vunpack.c.l.b16 %v369
  %v1486 = vunpack.c.h.b16 %v369
  %v1487 = vunpack.c.l.b16 %v370
  %v1488 = vunpack.c.h.b16 %v370
  %v1489 = vunpack.c.l.b16 %v371
  %v1490 = vunpack.c.h.b16 %v371
  %v1491 = vunpack.c.l.b16 %v372
  %v1492 = vunpack.c.h.b16 %v372
  %v1493 = vunpack.c.l.b16 %v373
  %v1494 = vunpack.c.h.b16 %v373
  %v1495 = vunpack.c.l.b16 %v374
  %v1496 = vunpack.c.h.b16 %v374
  %v1497 = vunpack.c.l.b16 %v375
  %v1498 = vunpack.c.h.b16 %v375
  %v1499 = vunpack.c.l.b16 %v376
  %v1500 = vunpack.c.h.b16 %v376
  %v1501 = vunpack.c.l.b16 %v377
  %v1502 = vunpack.c.h.b16 %v377
  %v1503 = vunpack.c.l.b16 %v378
  %v1504 = vunpack.c.h.b16 %v378
  %v1505 = vunpack.c.l.b16 %v379
  %v1506 = vunpack.c.h.b16 %v379
  %v1507 = vunpack.c.l.b16 %v380
  %v1508 = vunpack.c.h.b16 %v380
  %v1509 = vunpack.c.l.b16 %v381
  %v1510 = vunpack.c.h.b16 %v381
  %v1511 = vunpack.c.l.b16 %v382
  %v1512 = vunpack.c.h.b16 %v382
  %v1513 = vunpack.c.l.b16 %v383
  %v1514 = vunpack.c.h.b16 %v383
  %v1515 = vunpack.c.l.b16 %v384
  %v1516 = vunpack.c.h.b16 %v384
  %v1517 = vunpack.c.l.b16 %v385
  %v1518 = vunpack.c.h.b16 %v385
  %v1519 = vunpack.c.l.b16 %v386
  %v1520 = vunpack.c.h.b16 %v386
  %v1521 = vunpack.c.l.b16 %v387
  %v1522 = vunpack.c.h.b16 %v387
  %v1523 = vunpack.c.l.b16 %v388
  %v1524 = vunpack.c.h.b16 %v388
  %v1525 = vunpack.c.l.b16 %v389
  %v1526 = vunpack.c.h.b16 %v389
  %v1527 = vunpack.c.l.b16 %v390
  %v1528 = vunpack.c.h.b16 %v390
  %v1529 = vunpack.c.l.b16 %v391
  %v1530 = vunpack.c.h.b16 %v391
  %v1531 = vunpack.c.l.b16 %v392
  %v1532 = vunpack.c.h.b16 %v392
  %v1533 = vunpack.c.l.b16 %v393
  %v1534 = vunpack.c.h.b16 %v393
  %v1535 = vunpack.c.l.b16 %v394
  %v1536 = vunpack.c.h.b16 %v394
  %v1537 = vunpack.c.l.b16 %v395
  %v1538 = vunpack.c.h.b16 %v395
  %v1539 = vunpack.c.l.b16 %v396
  %v1540 = vunpack.c.h.b16 %v396
  %v1541 = vunpack.c.l.b16 %v397
  %v1542 = vunpack.c.h.b16 %v397
  %v1543 = vunpack.c.l.b16 %v398
  %v1544 = vunpack.c.h.b16 %v398
  %v1545 = vunpack.c.l.b16 %v399
  %v1546 = vunpack.c.h.b16 %v399
  %v1547 = vunpack.c.l.b16 %v400
  %v1548 = vunpack.c.h.b16 %v400
  %v1549 = vunpack.c.l.b16 %v401
  %v1550 = vunpack.c.h.b16 %v401
  %v1551 = vunpack.c.l.b16 %v402
  %v1552 = vunpack.c.h.b16 %v402
  %v1553 = vunpack.c.l.b16 %v403
  %v1554 = vunpack.c.h.b16 %v403
  %v1555 = vunpack.c.l.b16 %v404
  %v1556 = vunpack.c.h.b16 %v404
  %v1557 = vunpack.c.l.b16 %v405
  %v1558 = vunpack.c.h.b16 %v405
  %v1559 = vunpack.c.l.b16 %v406
  %v1560 = vunpack.c.h.b16 %v406
  %v1561 = vunpack.c.l.b16 %v407
  %v1562 = vunpack.c.h.b16 %v407
  %v1563 = vunpack.c.l.b16 %v408
  %v1564 = vunpack.c.h.b16 %v408
  %v1565 = vunpack.c.l.b16 %v409
  %v1566 = vunpack.c.h.b16 %v409
  %v1567 = vunpack.c.l.b16 %v410
  %v1568 = vunpack.c.h.b16 %v410
  %v1569 = vunpack.c.l.b16 %v411
  %v1570 = vunpack.c.h.b16 %v411
  %v1571 = vunpack.c.l.b16 %v412
  %v1572 = vunpack.c.h.b16 %v412
  %v1573 = vunpack.c.l.b16 %v413
  %v1574 = vunpack.c.h.b16 %v413
  %v1575 = vunpack.c.l.b16 %v414
  %v1576 = vunpack.c.h.b16 %v414
  %v1577 = vunpack.c.l.b16 %v415
  %v1578 = vunpack.c.h.b16 %v415
  %v1579 = vunpack.c.l.b16 %v416
  %v1580 = vunpack.c.h.b16 %v416
  %v1581 = vunpack.c.l.b16 %v417
  %v1582 = vunpack.c.h.b16 %v417
  %v1583 = vunpack.c.l.b16 %v418
  %v1584 = vunpack.c.h.b16 %v418
  %v1585 = vunpack.c.l.b16 %v419
  %v1586 = vunpack.c.h.b16 %v419
  %v1587 = vunpack.c.l.b16 %v420
  %v1588 = vunpack.c.h.b16 %v420
  %v1589 = vunpack.c.l.b16 %v421
  %v1590 = vunpack.c.h.b16 %v421
  %v1591 = vunpack.c.l.b16 %v422
  %v1592 = vunpack.c.h.b16 %v422
  %v1593 = vpack.c.b16 %v827, %v825
  %v1594 = vpack.c.b16 %v828, %v826
  %v1595 = vpack.c.b16 %v831, %v829
  %v1596 = vpack.c.b16 %v832, %v830
  %v1597 = vpack.c.b16 %v835, %v833
  %v1598 = vpack.c.b16 %v836, %v834
  %v1599 = vpack.c.b16 %v839, %v837
  %v1600 = vpack.c.b16 %v840, %v838
  %v1601 = vpack.c.b16 %v843, %v841
  %v1602 = vpack.c.b16 %v844, %v842
  %v1603 = vpack.c.b16 %v847, %v845
  %v1604 = vpack.c.b16 %v848, %v846
  %v1605 = vpack.c.b16 %v851, %v849
  %v1606 = vpack.c.b16 %v852, %v850
  %v1607 = vpack.c.b16 %v855, %v853
  %v1608 = vpack.c.b16 %v856, %v854
  %v1609 = vpack.c.b16 %v859, %v857
  %v1610 = vpack.c.b16 %v860, %v858
  %v1611 = vpack.c.b16 %v863, %v861
  %v1612 = vpack.c.b16 %v864, %v862
  %v1613 = vpack.c.b16 %v867, %v865
  %v1614 = vpack.c.b16 %v868, %v866
  %v1615 = vpack.c.b16 %v871, %v869
  %v1616 = vpack.c.b16 %v872, %v870
  %v1617 = vpack.c.b16 %v875, %v873
  %v1618 = vpack.c.b16 %v876, %v874
  %v1619 = vpack.c.b16 %v879, %v877
  %v1620 = vpack.c.b16 %v880, %v878
  %v1621 = vpack.c.b16 %v883, %v881
  %v1622 = vpack.c.b16 %v884, %v882
  %v1623 = vpack.c.b16 %v887, %v885
  %v1624 = vpack.c.b16 %v888, %v886
  %v1625 = vpack.c.b16 %v891, %v889
  %v1626 = vpack.c.b16 %v892, %v890
  %v1627 = vpack.c.b16 %v895, %v893
  %v1628 = vpack.c.b16 %v896, %v894
  %v1629 = vpack.c.b16 %v899, %v897
  %v1630 = vpack.c.b16 %v900, %v898
  %v1631 = vpack.c.b16 %v903, %v901
  %v1632 = vpack.c.b16 %v904, %v902
  %v1633 = vpack.c.b16 %v907, %v905
  %v1634 = vpack.c.b16 %v908, %v906
  %v1635 = vpack.c.b16 %v911, %v909
  %v1636 = vpack.c.b16 %v912, %v910
  %v1637 = vpack.c.b16 %v915, %v913
  %v1638 = vpack.c.b16 %v916, %v914
  %v1639 = vpack.c.b16 %v919, %v917
  %v1640 = vpack.c.b16 %v920, %v918
  %v1641 = vpack.c.b16 %v923, %v921
  %v1642 = vpack.c.b16 %v924, %v922
  %v1643 = vpack.c.b16 %v927, %v925
  %v1644 = vpack.c.b16 %v928, %v926
  %v1645 = vpack.c.b16 %v931, %v929
  %v1646 = vpack.c.b16 %v932, %v930
  %v1647 = vpack.c.b16 %v935, %v933
  %v1648 = vpack.c.b16 %v936, %v934
  %v1649 = vpack.c.b16 %v939, %v937
  %v1650 = vpack.c.b16 %v940, %v938
  %v1651 = vpack.c.b16 %v943, %v941
  %v1652 = vpack.c.b16 %v944, %v942
  %v1653 = vpack.c.b16 %v947, %v945
  %v1654 = vpack.c.b16 %v948, %v946
  %v1655 = vpack.c.b16 %v951, %v949
  %v1656 = vpack.c.b16 %v952, %v950
  %v1657 = vpack.c.b16 %v955, %v953
  %v1658 = vpack.c.b16 %v956, %v954
  %v1659 = vpack.c.b16 %v959, %v957
  %v1660 = vpack.c.b16 %v960, %v958
  %v1661 = vpack.c.b16 %v963, %v961
  %v1662 = vpack.c.b16 %v964, %v962
  %v1663 = vpack.c.b16 %v967, %v965
  %v1664 = vpack.c.b16 %v968, %v966
  %v1665 = vpack.c.b16 %v971, %v969
  %v1666 = vpack.c.b16 %v972, %v970
  %v1667 = vpack.c.b16 %v975, %v973
  %v1668 = vpack.c.b16 %v976, %v974
  %v1669 = vpack.c.b16 %v979, %v977
  %v1670 = vpack.c.b16 %v980, %v978
  %v1671 = vpack.c.b16 %v983, %v981
  %v1672 = vpack.c.b16 %v984, %v982
  %v1673 = vpack.c.b16 %v987, %v985
  %v1674 = vpack.c.b16 %v988, %v986
  %v1675 = vpack.c.b16 %v991, %v989
  %v1676 = vpack.c.b16 %v992, %v990
  %v1677 = vpack.c.b16 %v995, %v993
  %v1678 = vpack.c.b16 %v996, %v994
  %v1679 = vpack.c.b16 %v999, %v997
  %v1680 = vpack.c.b16 %v1000, %v998
  %v1681 = vpack.c.b16 %v1003, %v1001
  %v1682 = vpack.c.b16 %v1004, %v1002
  %v1683 = vpack.c.b16 %v1007, %v1005
  %v1684 = vpack.c.b16 %v1008, %v1006
  %v1685 = vpack.c.b16 %v1011, %v1009
  %v1686 = vpack.c.b16 %v1012, %v1010
  %v1687 = vpack.c.b16 %v1015, %v1013
  %v1688 = vpack.c.b16 %v1016, %v1014
  %v1689 = vpack.c.b16 %v1019, %v1017
  %v1690 = vpack.c.b16 %v1020, %v1018
  %v1691 = vpack.c.b16 %v1023, %v1021
  %v1692 = vpack.c.b16 %v1024, %v1022
  %v1693 = vpack.c.b16 %v1027, %v1025
  %v1694 = vpack.c.b16 %v1028, %v1026
  %v1695 = vpack.c.b16 %v1031, %v1029
  %v1696 = vpack.c.b16 %v1032, %v1030
  %v1697 = vpack.c.b16 %v1035, %v1033
  %v1698 = vpack.c.b16 %v1036, %v1034
  %v1699 = vpack.c.b16 %v1039, %v1037
  %v1700 = vpack.c.b16 %v1040, %v1038
  %v1701 = vpack.c.b16 %v1043, %v1041
  %v1702 = vpack.c.b16 %v1044, %v1042
  %v1703 = vpack.c.b16 %v1047, %v1045
  %v1704 = vpack.c.b16 %v1048, %v1046
  %v1705 = vpack.c.b16 %v1051, %v1049
  %v1706 = vpack.c.b16 %v1052, %v1050
  %v1707 = vpack.c.b16 %v1055, %v1053
  %v1708 = vpack.c.b16 %v1056, %v1054
  %v1709 = vpack.c.b16 %v1059, %v1057
  %v1710 = vpack.c.b16 %v1060, %v1058
  %v1711 = vpack.c.b16 %v1063, %v1061
  %v1712 = vpack.c.b16 %v1064, %v1062
  %v1713 = vpack.c.b16 %v1067, %v1065
  %v1714 = vpack.c.b16 %v1068, %v1066
  %v1715 = vpack.c.b16 %v1071, %v1069
  %v1716 = vpack.c.b16 %v1072, %v1070
  %v1717 = vpack.c.b16 %v1075, %v1073
  %v1718 = vpack.c.b16 %v1076, %v1074
  %v1719 = vpack.c.b16 %v1079, %v1077
  %v1720 = vpack.c.b16 %v1080, %v1078
  %v1721 = vpack.c.b16 %v1083, %v1081
  %v1722 = vpack.c.b16 %v1084, %v1082
  %v1723 = vpack.c.b16 %v1087, %v1085
  %v1724 = vpack.c.b16 %v1088, %v1086
  %v1725 = vpack.c.b16 %v1091, %v1089
  %v1726 = vpack.c.b16 %v1092, %v1090
  %v1727 = vpack.c.b16 %v1095, %v1093
  %v1728 = vpack.c.b16 %v1096, %v1094
  %v1729 = vpack.c.b16 %v1099, %v1097
  %v1730 = vpack.c.b16 %v1100, %v1098
  %v1731 = vpack.c.b16 %v1103, %v1101
  %v1732 = vpack.c.b16 %v1104, %v1102
  %v1733 = vpack.c.b16 %v1107, %v1105
  %v1734 = vpack.c.b16 %v1108, %v1106
  %v1735 = vpack.c.b16 %v1111, %v1109
  %v1736 = vpack.c.b16 %v1112, %v1110
  %v1737 = vpack.c.b16 %v1115, %v1113
  %v1738 = vpack.c.b16 %v1116, %v1114
  %v1739 = vpack.c.b16 %v1119, %v1117
  %v1740 = vpack.c.b16 %v1120, %v1118
  %v1741 = vpack.c.b16 %v1123, %v1121
  %v1742 = vpack.c.b16 %v1124, %v1122
  %v1743 = vpack.c.b16 %v1127, %v1125
  %v1744 = vpack.c.b16 %v1128, %v1126
  %v1745 = vpack.c.b16 %v1131, %v1129
  %v1746 = vpack.c.b16 %v1132, %v1130
  %v1747 = vpack.c.b16 %v1135, %v1133
  %v1748 = vpack.c.b16 %v1136, %v1134
  %v1749 = vpack.c.b16 %v1139, %v1137
  %v1750 = vpack.c.b16 %v1140, %v1138
  %v1751 = vpack.c.b16 %v1143, %v1141
  %v1752 = vpack.c.b16 %v1144, %v1142
  %v1753 = vpack.c.b16 %v1147, %v1145
  %v1754 = vpack.c.b16 %v1148, %v1146
  %v1755 = vpack.c.b16 %v1151, %v1149
  %v1756 = vpack.c.b16 %v1152, %v1150
  %v1757 = vpack.c.b16 %v1155, %v1153
  %v1758 = vpack.c.b16 %v1156, %v1154
  %v1759 = vpack.c.b16 %v1159, %v1157
  %v1760 = vpack.c.b16 %v1160, %v1158
  %v1761 = vpack.c.b16 %v1163, %v1161
  %v1762 = vpack.c.b16 %v1164, %v1162
  %v1763 = vpack.c.b16 %v1167, %v1165
  %v1764 = vpack.c.b16 %v1168, %v1166
  %v1765 = vpack.c.b16 %v1171, %v1169
  %v1766 = vpack.c.b16 %v1172, %v1170
  %v1767 = vpack.c.b16 %v1175, %v1173
  %v1768 = vpack.c.b16 %v1176, %v1174
  %v1769 = vpack.c.b16 %v1179, %v1177
  %v1770 = vpack.c.b16 %v1180, %v1178
  %v1771 = vpack.c.b16 %v1183, %v1181
  %v1772 = vpack.c.b16 %v1184, %v1182
  %v1773 = vpack.c.b16 %v1187, %v1185
  %v1774 = vpack.c.b16 %v1188, %v1186
  %v1775 = vpack.c.b16 %v1191, %v1189
  %v1776 = vpack.c.b16 %v1192, %v1190
  %v1777 = vpack.c.b16 %v1195, %v1193
  %v1778 = vpack.c.b16 %v1196, %v1194
  %v1779 = vpack.c.b16 %v1199, %v1197
  %v1780 = vpack.c.b16 %v1200, %v1198
  %v1781 = vpack.c.b16 %v1203, %v1201
  %v1782 = vpack.c.b16 %v1204, %v1202
  %v1783 = vpack.c.b16 %v1207, %v1205
  %v1784 = vpack.c.b16 %v1208, %v1206
  %v1785 = vpack.c.b16 %v1211, %v1209
  %v1786 = vpack.c.b16 %v1212, %v1210
  %v1787 = vpack.c.b16 %v1215, %v1213
  %v1788 = vpack.c.b16 %v1216, %v1214
  %v1789 = vpack.c.b16 %v1219, %v1217
  %v1790 = vpack.c.b16 %v1220, %v1218
  %v1791 = vpack.c.b16 %v1223, %v1221
  %v1792 = vpack.c.b16 %v1224, %v1222
  %v1793 = vpack.c.b16 %v1227, %v1225
  %v1794 = vpack.c.b16 %v1228, %v1226
  %v1795 = vpack.c.b16 %v1231, %v1229
  %v1796 = vpack.c.b16 %v1232, %v1230
  %v1797 = vpack.c.b16 %v1235, %v1233
  %v1798 = vpack.c.b16 %v1236, %v1234
  %v1799 = vpack.c.b16 %v1239, %v1237
  %v1800 = vpack.c.b16 %v1240, %v1238
  %v1801 = vpack.c.b16 %v1243, %v1241
  %v1802 = vpack.c.b16 %v1244, %v1242
  %v1803 = vpack.c.b16 %v1247, %v1245
  %v1804 = vpack.c.b16 %v1248, %v1246
  %v1805 = vpack.c.b16 %v1251, %v1249
  %v1806 = vpack.c.b16 %v1252, %v1250
  %v1807 = vpack.c.b16 %v1255, %v1253
  %v1808 = vpack.c.b16 %v1256, %v1254
  %v1809 = vpack.c.b16 %v1259, %v1257
  %v1810 = vpack.c.b16 %v1260, %v1258
  %v1811 = vpack.c.b16 %v1263, %v1261
  %v1812 = vpack.c.b16 %v1264, %v1262
  %v1813 = vpack.c.b16 %v1267, %v1265
  %v1814 = vpack.c.b16 %v1268, %v1266
  %v1815 = vpack.c.b16 %v1271, %v1269
  %v1816 = vpack.c.b16 %v1272, %v1270
  %v1817 = vpack.c.b16 %v1275, %v1273
  %v1818 = vpack.c.b16 %v1276, %v1274
  %v1819 = vpack.c.b16 %v1279, %v1277
  %v1820 = vpack.c.b16 %v1280, %v1278
  %v1821 = vpack.c.b16 %v1283, %v1281
  %v1822 = vpack.c.b16 %v1284, %v1282
  %v1823 = vpack.c.b16 %v1287, %v1285
  %v1824 = vpack.c.b16 %v1288, %v1286
  %v1825 = vpack.c.b16 %v1291, %v1289
  %v1826 = vpack.c.b16 %v1292, %v1290
  %v1827 = vpack.c.b16 %v1295, %v1293
  %v1828 = vpack.c.b16 %v1296, %v1294
  %v1829 = vpack.c.b16 %v1299, %v1297
  %v1830 = vpack.c.b16 %v1300, %v1298
  %v1831 = vpack.c.b16 %v1303, %v1301
  %v1832 = vpack.c.b16 %v1304, %v1302
  %v1833 = vpack.c.b16 %v1307, %v1305
  %v1834 = vpack.c.b16 %v1308, %v1306
  %v1835 = vpack.c.b16 %v1311, %v1309
  %v1836 = vpack.c.b16 %v1312, %v1310
  %v1837 = vpack.c.b16 %v1315, %v1313
  %v1838 = vpack.c.b16 %v1316, %v1314
  %v1839 = vpack.c.b16 %v1319, %v1317
  %v1840 = vpack.c.b16 %v1320, %v1318
  %v1841 = vpack.c.b16 %v1323, %v1321
  %v1842 = vpack.c.b16 %v1324, %v1322
  %v1843 = vpack.c.b16 %v1327, %v1325
  %v1844 = vpack.c.b16 %v1328, %v1326
  %v1845 = vpack.c.b16 %v1331, %v1329
  %v1846 = vpack.c.b16 %v1332, %v1330
  %v1847 = vpack.c.b16 %v1335, %v1333
  %v1848 = vpack.c.b16 %v1336, %v1334
  %v1849 = vpack.c.b16 %v1339, %v1337
  %v1850 = vpack.c.b16 %v1340, %v1338
  %v1851 = vpack.c.b16 %v1343, %v1341
  %v1852 = vpack.c.b16 %v1344, %v1342
  %v1853 = vpack.c.b16 %v1347, %v1345
  %v1854 = vpack.c.b16 %v1348, %v1346
  %v1855 = vpack.c.b16 %v1351, %v1349
  %v1856 = vpack.c.b16 %v1352, %v1350
  %v1857 = vpack.c.b16 %v1355, %v1353
  %v1858 = vpack.c.b16 %v1356, %v1354
  %v1859 = vpack.c.b16 %v1359, %v1357
  %v1860 = vpack.c.b16 %v1360, %v1358
  %v1861 = vpack.c.b16 %v1363, %v1361
  %v1862 = vpack.c.b16 %v1364, %v1362
  %v1863 = vpack.c.b16 %v1367, %v1365
  %v1864 = vpack.c.b16 %v1368, %v1366
  %v1865 = vpack.c.b16 %v1371, %v1369
  %v1866 = vpack.c.b16 %v1372, %v1370
  %v1867 = vpack.c.b16 %v1375, %v1373
  %v1868 = vpack.c.b16 %v1376, %v1374
  %v1869 = vpack.c.b16 %v1379, %v1377
  %v1870 = vpack.c.b16 %v1380, %v1378
  %v1871 = vpack.c.b16 %v1383, %v1381
  %v1872 = vpack.c.b16 %v1384, %v1382
  %v1873 = vpack.c.b16 %v1387, %v1385
  %v1874 = vpack.c.b16 %v1388, %v1386
  %v1875 = vpack.c.b16 %v1391, %v1389
  %v1876 = vpack.c.b16 %v1392, %v1390
  %v1877 = vpack.c.b16 %v1395, %v1393
  %v1878 = vpack.c.b16 %v1396, %v1394
  %v1879 = vpack.c.b16 %v1399, %v1397
  %v1880 = vpack.c.b16 %v1400, %v1398
  %v1881 = vpack.c.b16 %v1403, %v1401
  %v1882 = vpack.c.b16 %v1404, %v1402
  %v1883 = vpack.c.b16 %v1407, %v1405
  %v1884 = vpack.c.b16 %v1408, %v1406
  %v1885 = vpack.c.b16 %v1411, %v1409
  %v1886 = vpack.c.b16 %v1412, %v1410
  %v1887 = vpack.c.b16 %v1415, %v1413
  %v1888 = vpack.c.b16 %v1416, %v1414
  %v1889 = vpack.c.b16 %v1419, %v1417
  %v1890 = vpack.c.b16 %v1420, %v1418
  %v1891 = vpack.c.b16 %v1423, %v1421
  %v1892 = vpack.c.b16 %v1424, %v1422
  %v1893 = vpack.c.b16 %v1427, %v1425
  %v1894 = vpack.c.b16 %v1428, %v1426
  %v1895 = vpack.c.b16 %v1431, %v1429
  %v1896 = vpack.c.b16 %v1432, %v1430
  %v1897 = vpack.c.b16 %v1435, %v1433
  %v1898 = vpack.c.b16 %v1436, %v1434
  %v1899 = vpack.c.b16 %v1439, %v1437
  %v1900 = vpack.c.b16 %v1440, %v1438
  %v1901 = vpack.c.b16 %v1443, %v1441
  %v1902 = vpack.c.b16 %v1444, %v1442
  %v1903 = vpack.c.b16 %v1447, %v1445
  %v1904 = vpack.c.b16 %v1448, %v1446
  %v1905 = vpack.c.b16 %v1451, %v1449
  %v1906 = vpack.c.b16 %v1452, %v1450
  %v1907 = vpack.c.b16 %v1455, %v1453
  %v1908 = vpack.c.b16 %v1456, %v1454
  %v1909 = vpack.c.b16 %v1459, %v1457
  %v1910 = vpack.c.b16 %v1460, %v1458
  %v1911 = vpack.c.b16 %v1463, %v1461
  %v1912 = vpack.c.b16 %v1464, %v1462
  %v1913 = vpack.c.b16 %v1467, %v1465
  %v1914 = vpack.c.b16 %v1468, %v1466
  %v1915 = vpack.c.b16 %v1471, %v1469
  %v1916 = vpack.c.b16 %v1472, %v1470
  %v1917 = vpack.c.b16 %v1475, %v1473
  %v1918 = vpack.c.b16 %v1476, %v1474
  %v1919 = vpack.c.b16 %v1479, %v1477
  %v1920 = vpack.c.b16 %v1480, %v1478
  %v1921 = vpack.c.b16 %v1483, %v1481
  %v1922 = vpack.c.b16 %v1484, %v1482
  %v1923 = vpack.c.b16 %v1487, %v1485
  %v1924 = vpack.c.b16 %v1488, %v1486
  %v1925 = vpack.c.b16 %v1491, %v1489
  %v1926 = vpack.c.b16 %v1492, %v1490
  %v1927 = vpack.c.b16 %v1495, %v1493
  %v1928 = vpack.c.b16 %v1496, %v1494
  %v1929 = vpack.c.b16 %v1499, %v1497
  %v1930 = vpack.c.b16 %v1500, %v1498
  %v1931 = vpack.c.b16 %v1503, %v1501
  %v1932 = vpack.c.b16 %v1504, %v1502
  %v1933 = vpack.c.b16 %v1507, %v1505
  %v1934 = vpack.c.b16 %v1508, %v1506
  %v1935 = vpack.c.b16 %v1511, %v1509
  %v1936 = vpack.c.b16 %v1512, %v1510
  %v1937 = vpack.c.b16 %v1515, %v1513
  %v1938 = vpack.c.b16 %v1516, %v1514
  %v1939 = vpack.c.b16 %v1519, %v1517
  %v1940 = vpack.c.b16 %v1520, %v1518
  %v1941 = vpack.c.b16 %v1523, %v1521
  %v1942 = vpack.c.b16 %v1524, %v1522
  %v1943 = vpack.c.b16 %v1527, %v1525
  %v1944 = vpack.c.b16 %v1528, %v1526
  %v1945 = vpack.c.b16 %v1531, %v1529
  %v1946 = vpack.c.b16 %v1532, %v1530
  %v1947 = vpack.c.b16 %v1535, %v1533
  %v1948 = vpack.c.b16 %v1536, %v1534
  %v1949 = vpack.c.b16 %v1539, %v1537
  %v1950 = vpack.c.b16 %v1540, %v1538
  %v1951 = vpack.c.b16 %v1543, %v1541
  %v1952 = vpack.c.b16 %v1544, %v1542
  %v1953 = vpack.c.b16 %v1547, %v1545
  %v1954 = vpack.c.b16 %v1548, %v1546
  %v1955 = vpack.c.b16 %v1551, %v1549
  %v1956 = vpack.c.b16 %v1552, %v1550
  %v1957 = vpack.c.b16 %v1555, %v1553
  %v1958 = vpack.c.b16 %v1556, %v1554
  %v1959 = vpack.c.b16 %v1559, %v1557
  %v1960 = vpack.c.b16 %v1560, %v1558
  %v1961 = vpack.c.b16 %v1563, %v1561
  %v1962 = vpack.c.b16 %v1564, %v1562
  %v1963 = vpack.c.b16 %v1567, %v1565
  %v1964 = vpack.c.b16 %v1568, %v1566
  %v1965 = vpack.c.b16 %v1571, %v1569
  %v1966 = vpack.c.b16 %v1572, %v1570
  %v1967 = vpack.c.b16 %v1575, %v1573
  %v1968 = vpack.c.b16 %v1576, %v1574
  %v1969 = vpack.c.b16 %v1579, %v1577
  %v1970 = vpack.c.b16 %v1580, %v1578
  %v1971 = vpack.c.b16 %v1583, %v1581
  %v1972 = vpack.c.b16 %v1584, %v1582
  %v1973 = vpack.c.b16 %v1587, %v1585
  %v1974 = vpack.c.b16 %v1588, %v1586
  %v1975 = vpack.c.b16 %v1591, %v1589
  %v1976 = vpack.c.b16 %v1592, %v1590
  %v2187 = vunpack.c.l.b16 %v423
  %v2188 = vunpack.c.h.b16 %v423
  %v2189 = vunpack.c.l.b16 %v424
  %v2190 = vunpack.c.h.b16 %v424
  %v2191 = vunpack.c.l.b16 %v425
  %v2192 = vunpack.c.h.b16 %v425
  %v2193 = vunpack.c.l.b16 %v426
  %v2194 = vunpack.c.h.b16 %v426
  %v2195 = vunpack.c.l.b16 %v427
  %v2196 = vunpack.c.h.b16 %v427
  %v2197 = vunpack.c.l.b16 %v428
  %v2198 = vunpack.c.h.b16 %v428
  %v2199 = vunpack.c.l.b16 %v429
  %v2200 = vunpack.c.h.b16 %v429
  %v2201 = vunpack.c.l.b16 %v430
  %v2202 = vunpack.c.h.b16 %v430
  %v2203 = vunpack.c.l.b16 %v431
  %v2204 = vunpack.c.h.b16 %v431
  %v2205 = vunpack.c.l.b16 %v432
  %v2206 = vunpack.c.h.b16 %v432
  %v2207 = vunpack.c.l.b16 %v433
  %v2208 = vunpack.c.h.b16 %v433
  %v2209 = vunpack.c.l.b16 %v434
  %v2210 = vunpack.c.h.b16 %v434
  %v2211 = vunpack.c.l.b16 %v435
  %v2212 = vunpack.c.h.b16 %v435
  %v2213 = vunpack.c.l.b16 %v436
  %v2214 = vunpack.c.h.b16 %v436
  %v2215 = vunpack.c.l.b16 %v437
  %v2216 = vunpack.c.h.b16 %v437
  %v2217 = vunpack.c.l.b16 %v438
  %v2218 = vunpack.c.h.b16 %v438
  %v2219 = vunpack.c.l.b16 %v439
  %v2220 = vunpack.c.h.b16 %v439
  %v2221 = vunpack.c.l.b16 %v440
  %v2222 = vunpack.c.h.b16 %v440
  %v2223 = vpack.c.b16 %v2189, %v2187
  %v2224 = vpack.c.b16 %v2190, %v2188
  %v2225 = vpack.c.b16 %v2193, %v2191
  %v2226 = vpack.c.b16 %v2194, %v2192
  %v2227 = vpack.c.b16 %v2197, %v2195
  %v2228 = vpack.c.b16 %v2198, %v2196
  %v2229 = vpack.c.b16 %v2201, %v2199
  %v2230 = vpack.c.b16 %v2202, %v2200
  %v2231 = vpack.c.b16 %v2205, %v2203
  %v2232 = vpack.c.b16 %v2206, %v2204
  %v2233 = vpack.c.b16 %v2209, %v2207
  %v2234 = vpack.c.b16 %v2210, %v2208
  %v2235 = vpack.c.b16 %v2213, %v2211
  %v2236 = vpack.c.b16 %v2214, %v2212
  %v2237 = vpack.c.b16 %v2217, %v2215
  %v2238 = vpack.c.b16 %v2218, %v2216
  %v2239 = vpack.c.b16 %v2221, %v2219
  %v2240 = vpack.c.b16 %v2222, %v2220
  %vm2257 = vcmask 97280
  %v2259 = vsel %vm2257, %v1594, 0
  %v2262 = vsel %vm2257, %v1596, 0
  %v2265 = vsel %vm2257, %v1598, 0
  %v2268 = vsel %vm2257, %v1600, 0
  %v2271 = vsel %vm2257, %v1602, 0
  %v2274 = vsel %vm2257, %v1604, 0
  %v2277 = vsel %vm2257, %v1606, 0
  %v2280 = vsel %vm2257, %v1608, 0
  %v2283 = vsel %vm2257, %v1610, 0
  %v2286 = vsel %vm2257, %v1612, 0
  %v2289 = vsel %vm2257, %v1614, 0
  %v2292 = vsel %vm2257, %v1616, 0
  %v2295 = vsel %vm2257, %v1618, 0
  %v2298 = vsel %vm2257, %v1620, 0
  %v2301 = vsel %vm2257, %v1622, 0
  %v2304 = vsel %vm2257, %v1624, 0
  %v2307 = vsel %vm2257, %v1626, 0
  %v2310 = vsel %vm2257, %v1628, 0
  %v2313 = vsel %vm2257, %v1630, 0
  %v2316 = vsel %vm2257, %v1632, 0
  %v2319 = vsel %vm2257, %v1634, 0
  %v2322 = vsel %vm2257, %v1636, 0
  %v2325 = vsel %vm2257, %v1638, 0
  %v2328 = vsel %vm2257, %v1640, 0
  %v2331 = vsel %vm2257, %v1642, 0
  %v2334 = vsel %vm2257, %v1644, 0
  %v2337 = vsel %vm2257, %v1646, 0
  %v2340 = vsel %vm2257, %v1648, 0
  %v2343 = vsel %vm2257, %v1650, 0
  %v2346 = vsel %vm2257, %v1652, 0
  %v2349 = vsel %vm2257, %v1654, 0
  %v2352 = vsel %vm2257, %v1656, 0
  %v2355 = vsel %vm2257, %v1658, 0
  %v2358 = vsel %vm2257, %v1660, 0
  %v2361 = vsel %vm2257, %v1662, 0
  %v2364 = vsel %vm2257, %v1664, 0
  %v2367 = vsel %vm2257, %v1666, 0
  %v2370 = vsel %vm2257, %v1668, 0
  %v2373 = vsel %vm2257, %v1670, 0
  %v2376 = vsel %vm2257, %v1672, 0
  %v2379 = vsel %vm2257, %v1674, 0
  %v2382 = vsel %vm2257, %v1676, 0
  %v2385 = vsel %vm2257, %v1678, 0
  %v2388 = vsel %vm2257, %v1680, 0
  %v2391 = vsel %vm2257, %v1682, 0
  %v2394 = vsel %vm2257, %v1684, 0
  %v2397 = vsel %vm2257, %v1686, 0
  %v2400 = vsel %vm2257, %v1688, 0
  %v2403 = vsel %vm2257, %v1690, 0
  %v2406 = vsel %vm2257, %v1692, 0
  %v2409 = vsel %vm2257, %v1694, 0
  %v2412 = vsel %vm2257, %v1696, 0
  %v2415 = vsel %vm2257, %v1698, 0
  %v2418 = vsel %vm2257, %v1700, 0
  %v2421 = vsel %vm2257, %v1702, 0
  %v2424 = vsel %vm2257, %v1704, 0
  %v2427 = vsel %vm2257, %v1706, 0
  %v2430 = vsel %vm2257, %v1708, 0
  %v2433 = vsel %vm2257, %v1710, 0
  %v2436 = vsel %vm2257, %v1712, 0
  %v2439 = vsel %vm2257, %v1714, 0
  %v2442 = vsel %vm2257, %v1716, 0
  %v2445 = vsel %vm2257, %v1718, 0
  %v2448 = vsel %vm2257, %v1720, 0
  %v2451 = vsel %vm2257, %v1722, 0
  %v2454 = vsel %vm2257, %v1724, 0
  %v2457 = vsel %vm2257, %v1726, 0
  %v2460 = vsel %vm2257, %v1728, 0
  %v2463 = vsel %vm2257, %v1730, 0
  %v2466 = vsel %vm2257, %v1732, 0
  %v2469 = vsel %vm2257, %v1734, 0
  %v2472 = vsel %vm2257, %v1736, 0
  %v2475 = vsel %vm2257, %v1738, 0
  %v2478 = vsel %vm2257, %v1740, 0
  %v2481 = vsel %vm2257, %v1742, 0
  %v2484 = vsel %vm2257, %v1744, 0
  %v2487 = vsel %vm2257, %v1746, 0
  %v2490 = vsel %vm2257, %v1748, 0
  %v2493 = vsel %vm2257, %v1750, 0
  %v2496 = vsel %vm2257, %v1752, 0
  %v2499 = vsel %vm2257, %v1754, 0
  %v2502 = vsel %vm2257, %v1756, 0
  %v2505 = vsel %vm2257, %v1758, 0
  %v2508 = vsel %vm2257, %v1760, 0
  %v2511 = vsel %vm2257, %v1762, 0
  %v2514 = vsel %vm2257, %v1764, 0
  %v2517 = vsel %vm2257, %v1766, 0
  %v2520 = vsel %vm2257, %v1768, 0
  %v2523 = vsel %vm2257, %v1770, 0
  %v2526 = vsel %vm2257, %v1772, 0
  %v2529 = vsel %vm2257, %v1774, 0
  %v2532 = vsel %vm2257, %v1776, 0
  %v2535 = vsel %vm2257, %v1778, 0
  %v2538 = vsel %vm2257, %v1780, 0
  %v2541 = vsel %vm2257, %v1782, 0
  %v2544 = vsel %vm2257, %v1784, 0
  %v2547 = vsel %vm2257, %v1786, 0
  %v2550 = vsel %vm2257, %v1788, 0
  %v2553 = vsel %vm2257, %v1790, 0
  %v2556 = vsel %vm2257, %v1792, 0
  %v2559 = vsel %vm2257, %v1794, 0
  %v2562 = vsel %vm2257, %v1796, 0
  %v2565 = vsel %vm2257, %v1798, 0
  %v2568 = vsel %vm2257, %v1800, 0
  %v2571 = vsel %vm2257, %v1802, 0
  %v2574 = vsel %vm2257, %v1804, 0
  %v2577 = vsel %vm2257, %v1806, 0
  %v2580 = vsel %vm2257, %v1808, 0
  %v2583 = vsel %vm2257, %v1810, 0
  %v2586 = vsel %vm2257, %v1812, 0
  %v2589 = vsel %vm2257, %v1814, 0
  %v2592 = vsel %vm2257, %v1816, 0
  %v2595 = vsel %vm2257, %v1818, 0
  %v2598 = vsel %vm2257, %v1820, 0
  %v2601 = vsel %vm2257, %v1822, 0
  %v2604 = vsel %vm2257, %v1824, 0
  %v2607 = vsel %vm2257, %v1826, 0
  %v2610 = vsel %vm2257, %v1828, 0
  %v2613 = vsel %vm2257, %v1830, 0
  %v2616 = vsel %vm2257, %v1832, 0
  %v2619 = vsel %vm2257, %v1834, 0
  %v2622 = vsel %vm2257, %v1836, 0
  %v2625 = vsel %vm2257, %v1838, 0
  %v2628 = vsel %vm2257, %v1840, 0
  %v2631 = vsel %vm2257, %v1842, 0
  %v2634 = vsel %vm2257, %v1844, 0
  %v2637 = vsel %vm2257, %v1846, 0
  %v2640 = vsel %vm2257, %v1848, 0
  %v2643 = vsel %vm2257, %v1850, 0
  %v2646 = vsel %vm2257, %v1852, 0
  %v2649 = vsel %vm2257, %v1854, 0
  %v2652 = vsel %vm2257, %v1856, 0
  %v2655 = vsel %vm2257, %v1858, 0
  %v2658 = vsel %vm2257, %v1860, 0
  %v2661 = vsel %vm2257, %v1862, 0
  %v2664 = vsel %vm2257, %v1864, 0
  %v2667 = vsel %vm2257, %v1866, 0
  %v2670 = vsel %vm2257, %v1868, 0
  %v2673 = vsel %vm2257, %v1870, 0
  %v2676 = vsel %vm2257, %v1872, 0
  %v2679 = vsel %vm2257, %v1874, 0
  %v2682 = vsel %vm2257, %v1876, 0
  %v2685 = vsel %vm2257, %v1878, 0
  %v2688 = vsel %vm2257, %v1880, 0
  %v2691 = vsel %vm2257, %v1882, 0
  %v2694 = vsel %vm2257, %v1884, 0
  %v2697 = vsel %vm2257, %v1886, 0
  %v2700 = vsel %vm2257, %v1888, 0
  %v2703 = vsel %vm2257, %v1890, 0
  %v2706 = vsel %vm2257, %v1892, 0
  %v2709 = vsel %vm2257, %v1894, 0
  %v2712 = vsel %vm2257, %v1896, 0
  %v2715 = vsel %vm2257, %v1898, 0
  %v2718 = vsel %vm2257, %v1900, 0
  %v2721 = vsel %vm2257, %v1902, 0
  %v2724 = vsel %vm2257, %v1904, 0
  %v2727 = vsel %vm2257, %v1906, 0
  %v2730 = vsel %vm2257, %v1908, 0
  %v2733 = vsel %vm2257, %v1910, 0
  %v2736 = vsel %vm2257, %v1912, 0
  %v2739 = vsel %vm2257, %v1914, 0
  %v2742 = vsel %vm2257, %v1916, 0
  %v2745 = vsel %vm2257, %v1918, 0
  %v2748 = vsel %vm2257, %v1920, 0
  %v2751 = vsel %vm2257, %v1922, 0
  %v2754 = vsel %vm2257, %v1924, 0
  %v2757 = vsel %vm2257, %v1926, 0
  %v2760 = vsel %vm2257, %v1928, 0
  %v2763 = vsel %vm2257, %v1930, 0
  %v2766 = vsel %vm2257, %v1932, 0
  %v2769 = vsel %vm2257, %v1934, 0
  %v2772 = vsel %vm2257, %v1936, 0
  %v2775 = vsel %vm2257, %v1938, 0
  %v2778 = vsel %vm2257, %v1940, 0
  %v2781 = vsel %vm2257, %v1942, 0
  %v2784 = vsel %vm2257, %v1944, 0
  %v2787 = vsel %vm2257, %v1946, 0
  %v2790 = vsel %vm2257, %v1948, 0
  %v2793 = vsel %vm2257, %v1950, 0
  %v2796 = vsel %vm2257, %v1952, 0
  %v2799 = vsel %vm2257, %v1954, 0
  %v2802 = vsel %vm2257, %v1956, 0
  %v2805 = vsel %vm2257, %v1958, 0
  %v2808 = vsel %vm2257, %v1960, 0
  %v2811 = vsel %vm2257, %v1962, 0
  %v2814 = vsel %vm2257, %v1964, 0
  %v2817 = vsel %vm2257, %v1966, 0
  %v2820 = vsel %vm2257, %v1968, 0
  %v2823 = vsel %vm2257, %v1970, 0
  %v2826 = vsel %vm2257, %v1972, 0
  %v2829 = vsel %vm2257, %v1974, 0
  %v2832 = vsel %vm2257, %v1976, 0
  %vm2834 = vcmask 1045504
  %v2836 = vsel %vm2834, %v2239, 0
  %v2839 = vsel %vm2834, %v2240, 0
  %2841 = vmatprep.subr.bf16.mxu0 %v2224
  %2842 = vmatpush1.bf16.msra.mxu0 %v2223
  %2843 = vmatprep.subr.bf16.mxu0 %v2226
  %2844 = vmatpush1.bf16.msra.mxu0 %v2225
  %2845 = vmatprep.subr.bf16.mxu0 %v2228
  %2846 = vmatpush1.bf16.msra.mxu0 %v2227
  %2847 = vmatprep.subr.bf16.mxu0 %v2230
  %2848 = vmatpush1.bf16.msra.mxu0 %v2229
  %2849 = vmatprep.subr.bf16.mxu0 %v2232
  %2850 = vmatpush1.bf16.msra.mxu0 %v2231
  %2851 = vmatprep.subr.bf16.mxu0 %v2234
  %2852 = vmatpush1.bf16.msra.mxu0 %v2233
  %2853 = vmatprep.subr.bf16.mxu0 %v2236
  %2854 = vmatpush1.bf16.msra.mxu0 %v2235
  %2855 = vmatprep.subr.bf16.mxu0 %v2238
  %2856 = vmatpush1.bf16.msra.mxu0 %v2237
  %2857 = vmatprep.subr.bf16.mxu0 %v2839
  %2858 = vmatpush1.bf16.msra.mxu0 %v2836
  %2859 = vmatprep.subr.bf16.mxu0 0
  %2860 = vmatpush1.bf16.msra.mxu0 0
  %2861 = vmatprep.subr.bf16.mxu0 0
  %2862 = vmatpush1.bf16.msra.mxu0 0
  %2863 = vmatprep.subr.bf16.mxu0 0
  %2864 = vmatpush1.bf16.msra.mxu0 0
  %2865 = vmatprep.subr.bf16.mxu0 0
  %2866 = vmatpush1.bf16.msra.mxu0 0
  %2867 = vmatprep.subr.bf16.mxu0 0
  %2868 = vmatpush1.bf16.msra.mxu0 0
  %2869 = vmatprep.subr.bf16.mxu0 0
  %2870 = vmatpush1.bf16.msra.mxu0 0
  %2871 = vmatprep.subr.bf16.mxu0 0
  %2872 = vmatpush1.bf16.msra.mxu0 0
  %2873 = vmatprep.mubr.bf16.mxu0 %v2259
  %2874 = vmatmul.mubr.bf16.gmra.mrb[0].mxu0 %v1593
  %v2875 = vpop.f32.mrb[0].mxu0
  %v2876 = vadd.f32 0.0, %v2875
  %v2877 = vpop.f32.mrb[0].mxu0
  %v2878 = vadd.f32 0.0, %v2877
  %v2879 = vpop.f32.mrb[0].mxu0
  %v2880 = vadd.f32 0.0, %v2879
  %v2881 = vpop.f32.mrb[0].mxu0
  %v2882 = vadd.f32 0.0, %v2881
  %2883 = vmatprep.mubr.bf16.mxu0 %v2262
  %2884 = vmatmul.mubr.bf16.gmra.mrb[0].mxu0 %v1595
  %v2885 = vpop.f32.mrb[0].mxu0
  %v2886 = vadd.f32 0.0, %v2885
  %v2887 = vpop.f32.mrb[0].mxu0
  %v2888 = vadd.f32 0.0, %v2887
  %v2889 = vpop.f32.mrb[0].mxu0
  %v2890 = vadd.f32 0.0, %v2889
  %v2891 = vpop.f32.mrb[0].mxu0
  %v2892 = vadd.f32 0.0, %v2891
  %2893 = vmatprep.mubr.bf16.mxu0 %v2265
  %2894 = vmatmul.mubr.bf16.gmra.mrb[0].mxu0 %v1597
  %v2895 = vpop.f32.mrb[0].mxu0
  %v2896 = vadd.f32 0.0, %v2895
  %v2897 = vpop.f32.mrb[0].mxu0
  %v2898 = vadd.f32 0.0, %v2897
  %v2899 = vpop.f32.mrb[0].mxu0
  %v2900 = vadd.f32 0.0, %v2899
  %v2901 = vpop.f32.mrb[0].mxu0
  %v2902 = vadd.f32 0.0, %v2901
  %2903 = vmatprep.mubr.bf16.mxu0 %v2268
  %2904 = vmatmul.mubr.bf16.gmra.mrb[0].mxu0 %v1599
  %v2905 = vpop.f32.mrb[0].mxu0
  %v2906 = vadd.f32 0.0, %v2905
  %v2907 = vpop.f32.mrb[0].mxu0
  %v2908 = vadd.f32 0.0, %v2907
  %v2909 = vpop.f32.mrb[0].mxu0
  %v2910 = vadd.f32 0.0, %v2909
  %v2911 = vpop.f32.mrb[0].mxu0
  %v2912 = vadd.f32 0.0, %v2911
  %2913 = vmatprep.mubr.bf16.mxu0 %v2271
  %2914 = vmatmul.mubr.bf16.gmra.mrb[0].mxu0 %v1601
  %v2915 = vpop.f32.mrb[0].mxu0
  %v2916 = vadd.f32 0.0, %v2915
  %v2917 = vpop.f32.mrb[0].mxu0
  %v2918 = vadd.f32 0.0, %v2917
  %v2919 = vpop.f32.mrb[0].mxu0
  %v2920 = vadd.f32 0.0, %v2919
  %v2921 = vpop.f32.mrb[0].mxu0
  %v2922 = vadd.f32 0.0, %v2921
  %2923 = vmatprep.mubr.bf16.mxu0 %v2274
  %2924 = vmatmul.mubr.bf16.gmra.mrb[0].mxu0 %v1603
  %v2925 = vpop.f32.mrb[0].mxu0
  %v2926 = vadd.f32 0.0, %v2925
  %v2927 = vpop.f32.mrb[0].mxu0
  %v2928 = vadd.f32 0.0, %v2927
  %v2929 = vpop.f32.mrb[0].mxu0
  %v2930 = vadd.f32 0.0, %v2929
  %v2931 = vpop.f32.mrb[0].mxu0
  %v2932 = vadd.f32 0.0, %v2931
  %2933 = vmatprep.mubr.bf16.mxu0 %v2277
  %2934 = vmatmul.mubr.bf16.gmra.mrb[0].mxu0 %v1605
  %v2935 = vpop.f32.mrb[0].mxu0
  %v2936 = vadd.f32 0.0, %v2935
  %v2937 = vpop.f32.mrb[0].mxu0
  %v2938 = vadd.f32 0.0, %v2937
  %v2939 = vpop.f32.mrb[0].mxu0
  %v2940 = vadd.f32 0.0, %v2939
  %v2941 = vpop.f32.mrb[0].mxu0
  %v2942 = vadd.f32 0.0, %v2941
  %2943 = vmatprep.mubr.bf16.mxu0 %v2280
  %2944 = vmatmul.mubr.bf16.gmra.mrb[0].mxu0 %v1607
  %v2945 = vpop.f32.mrb[0].mxu0
  %v2946 = vadd.f32 0.0, %v2945
  %v2947 = vpop.f32.mrb[0].mxu0
  %v2948 = vadd.f32 0.0, %v2947
  %v2949 = vpop.f32.mrb[0].mxu0
  %v2950 = vadd.f32 0.0, %v2949
  %v2951 = vpop.f32.mrb[0].mxu0
  %v2952 = vadd.f32 0.0, %v2951
  %2953 = vmatprep.mubr.bf16.mxu0 %v2283
  %2954 = vmatmul.mubr.bf16.gmra.mrb[0].mxu0 %v1609
  %v2955 = vpop.f32.mrb[0].mxu0
  %v2956 = vadd.f32 0.0, %v2955
  %v2957 = vpop.f32.mrb[0].mxu0
  %v2958 = vadd.f32 0.0, %v2957
  %v2959 = vpop.f32.mrb[0].mxu0
  %v2960 = vadd.f32 0.0, %v2959
  %v2961 = vpop.f32.mrb[0].mxu0
  %v2962 = vadd.f32 0.0, %v2961
  %2963 = vmatprep.mubr.bf16.mxu0 %v2286
  %2964 = vmatmul.mubr.bf16.gmra.mrb[0].mxu0 %v1611
  %v2965 = vpop.f32.mrb[0].mxu0
  %v2966 = vadd.f32 0.0, %v2965
  %v2967 = vpop.f32.mrb[0].mxu0
  %v2968 = vadd.f32 0.0, %v2967
  %v2969 = vpop.f32.mrb[0].mxu0
  %v2970 = vadd.f32 0.0, %v2969
  %v2971 = vpop.f32.mrb[0].mxu0
  %v2972 = vadd.f32 0.0, %v2971
  %2973 = vmatprep.mubr.bf16.mxu0 %v2289
  %2974 = vmatmul.mubr.bf16.gmra.mrb[0].mxu0 %v1613
  %v2975 = vpop.f32.mrb[0].mxu0
  %v2976 = vadd.f32 0.0, %v2975
  %v2977 = vpop.f32.mrb[0].mxu0
  %v2978 = vadd.f32 0.0, %v2977
  %v2979 = vpop.f32.mrb[0].mxu0
  %v2980 = vadd.f32 0.0, %v2979
  %v2981 = vpop.f32.mrb[0].mxu0
  %v2982 = vadd.f32 0.0, %v2981
  %2983 = vmatprep.mubr.bf16.mxu0 %v2292
  %2984 = vmatmul.mubr.bf16.gmra.mrb[0].mxu0 %v1615
  %v2985 = vpop.f32.mrb[0].mxu0
  %v2986 = vadd.f32 0.0, %v2985
  %v2987 = vpop.f32.mrb[0].mxu0
  %v2988 = vadd.f32 0.0, %v2987
  %v2989 = vpop.f32.mrb[0].mxu0
  %v2990 = vadd.f32 0.0, %v2989
  %v2991 = vpop.f32.mrb[0].mxu0
  %v2992 = vadd.f32 0.0, %v2991
  %2993 = vmatprep.mubr.bf16.mxu0 %v2295
  %2994 = vmatmul.mubr.bf16.gmra.mrb[0].mxu0 %v1617
  %v2995 = vpop.f32.mrb[0].mxu0
  %v2996 = vadd.f32 0.0, %v2995
  %v2997 = vpop.f32.mrb[0].mxu0
  %v2998 = vadd.f32 0.0, %v2997
  %v2999 = vpop.f32.mrb[0].mxu0
  %v3000 = vadd.f32 0.0, %v2999
  %v3001 = vpop.f32.mrb[0].mxu0
  %v3002 = vadd.f32 0.0, %v3001
  %3003 = vmatprep.mubr.bf16.mxu0 %v2298
  %3004 = vmatmul.mubr.bf16.gmra.mrb[0].mxu0 %v1619
  %v3005 = vpop.f32.mrb[0].mxu0
  %v3006 = vadd.f32 0.0, %v3005
  %v3007 = vpop.f32.mrb[0].mxu0
  %v3008 = vadd.f32 0.0, %v3007
  %v3009 = vpop.f32.mrb[0].mxu0
  %v3010 = vadd.f32 0.0, %v3009
  %v3011 = vpop.f32.mrb[0].mxu0
  %v3012 = vadd.f32 0.0, %v3011
  %3013 = vmatprep.mubr.bf16.mxu0 %v2301
  %3014 = vmatmul.mubr.bf16.gmra.mrb[0].mxu0 %v1621
  %v3015 = vpop.f32.mrb[0].mxu0
  %v3016 = vadd.f32 0.0, %v3015
  %v3017 = vpop.f32.mrb[0].mxu0
  %v3018 = vadd.f32 0.0, %v3017
  %v3019 = vpop.f32.mrb[0].mxu0
  %v3020 = vadd.f32 0.0, %v3019
  %v3021 = vpop.f32.mrb[0].mxu0
  %v3022 = vadd.f32 0.0, %v3021
  %3023 = vmatprep.mubr.bf16.mxu0 %v2304
  %3024 = vmatmul.mubr.bf16.gmra.mrb[0].mxu0 %v1623
  %v3025 = vpop.f32.mrb[0].mxu0
  %v3026 = vadd.f32 0.0, %v3025
  %v3027 = vpop.f32.mrb[0].mxu0
  %v3028 = vadd.f32 0.0, %v3027
  %v3029 = vpop.f32.mrb[0].mxu0
  %v3030 = vadd.f32 0.0, %v3029
  %v3031 = vpop.f32.mrb[0].mxu0
  %v3032 = vadd.f32 0.0, %v3031
  %3033 = vmatprep.mubr.bf16.mxu0 %v2307
  %3034 = vmatmul.mubr.bf16.gmra.mrb[0].mxu0 %v1625
  %v3035 = vpop.f32.mrb[0].mxu0
  %v3036 = vadd.f32 0.0, %v3035
  %v3037 = vpop.f32.mrb[0].mxu0
  %v3038 = vadd.f32 0.0, %v3037
  %v3039 = vpop.f32.mrb[0].mxu0
  %v3040 = vadd.f32 0.0, %v3039
  %v3041 = vpop.f32.mrb[0].mxu0
  %v3042 = vadd.f32 0.0, %v3041
  %3043 = vmatprep.mubr.bf16.mxu0 %v2310
  %3044 = vmatmul.mubr.bf16.gmra.mrb[0].mxu0 %v1627
  %v3045 = vpop.f32.mrb[0].mxu0
  %v3046 = vadd.f32 0.0, %v3045
  %v3047 = vpop.f32.mrb[0].mxu0
  %v3048 = vadd.f32 0.0, %v3047
  %v3049 = vpop.f32.mrb[0].mxu0
  %v3050 = vadd.f32 0.0, %v3049
  %v3051 = vpop.f32.mrb[0].mxu0
  %v3052 = vadd.f32 0.0, %v3051
  %3053 = vmatprep.mubr.bf16.mxu0 %v2313
  %3054 = vmatmul.mubr.bf16.gmra.mrb[0].mxu0 %v1629
  %v3055 = vpop.f32.mrb[0].mxu0
  %v3056 = vadd.f32 0.0, %v3055
  %v3057 = vpop.f32.mrb[0].mxu0
  %v3058 = vadd.f32 0.0, %v3057
  %v3059 = vpop.f32.mrb[0].mxu0
  %v3060 = vadd.f32 0.0, %v3059
  %v3061 = vpop.f32.mrb[0].mxu0
  %v3062 = vadd.f32 0.0, %v3061
  %3063 = vmatprep.mubr.bf16.mxu0 %v2316
  %3064 = vmatmul.mubr.bf16.gmra.mrb[0].mxu0 %v1631
  %v3065 = vpop.f32.mrb[0].mxu0
  %v3066 = vadd.f32 0.0, %v3065
  %v3067 = vpop.f32.mrb[0].mxu0
  %v3068 = vadd.f32 0.0, %v3067
  %v3069 = vpop.f32.mrb[0].mxu0
  %v3070 = vadd.f32 0.0, %v3069
  %v3071 = vpop.f32.mrb[0].mxu0
  %v3072 = vadd.f32 0.0, %v3071
  %3073 = vmatprep.mubr.bf16.mxu0 %v2319
  %3074 = vmatmul.mubr.bf16.gmra.mrb[0].mxu0 %v1633
  %v3075 = vpop.f32.mrb[0].mxu0
  %v3076 = vadd.f32 0.0, %v3075
  %v3077 = vpop.f32.mrb[0].mxu0
  %v3078 = vadd.f32 0.0, %v3077
  %v3079 = vpop.f32.mrb[0].mxu0
  %v3080 = vadd.f32 0.0, %v3079
  %v3081 = vpop.f32.mrb[0].mxu0
  %v3082 = vadd.f32 0.0, %v3081
  %3083 = vmatprep.mubr.bf16.mxu0 %v2322
  %3084 = vmatmul.mubr.bf16.gmra.mrb[0].mxu0 %v1635
  %v3085 = vpop.f32.mrb[0].mxu0
  %v3086 = vadd.f32 0.0, %v3085
  %v3087 = vpop.f32.mrb[0].mxu0
  %v3088 = vadd.f32 0.0, %v3087
  %v3089 = vpop.f32.mrb[0].mxu0
  %v3090 = vadd.f32 0.0, %v3089
  %v3091 = vpop.f32.mrb[0].mxu0
  %v3092 = vadd.f32 0.0, %v3091
  %3093 = vmatprep.mubr.bf16.mxu0 %v2325
  %3094 = vmatmul.mubr.bf16.gmra.mrb[0].mxu0 %v1637
  %v3095 = vpop.f32.mrb[0].mxu0
  %v3096 = vadd.f32 0.0, %v3095
  %v3097 = vpop.f32.mrb[0].mxu0
  %v3098 = vadd.f32 0.0, %v3097
  %v3099 = vpop.f32.mrb[0].mxu0
  %v3100 = vadd.f32 0.0, %v3099
  %v3101 = vpop.f32.mrb[0].mxu0
  %v3102 = vadd.f32 0.0, %v3101
  %3103 = vmatprep.mubr.bf16.mxu0 %v2328
  %3104 = vmatmul.mubr.bf16.gmra.mrb[0].mxu0 %v1639
  %v3105 = vpop.f32.mrb[0].mxu0
  %v3106 = vadd.f32 0.0, %v3105
  %v3107 = vpop.f32.mrb[0].mxu0
  %v3108 = vadd.f32 0.0, %v3107
  %v3109 = vpop.f32.mrb[0].mxu0
  %v3110 = vadd.f32 0.0, %v3109
  %v3111 = vpop.f32.mrb[0].mxu0
  %v3112 = vadd.f32 0.0, %v3111
  %3113 = vmatprep.mubr.bf16.mxu0 %v2331
  %3114 = vmatmul.mubr.bf16.gmra.mrb[0].mxu0 %v1641
  %v3115 = vpop.f32.mrb[0].mxu0
  %v3116 = vadd.f32 0.0, %v3115
  %v3117 = vpop.f32.mrb[0].mxu0
  %v3118 = vadd.f32 0.0, %v3117
  %v3119 = vpop.f32.mrb[0].mxu0
  %v3120 = vadd.f32 0.0, %v3119
  %v3121 = vpop.f32.mrb[0].mxu0
  %v3122 = vadd.f32 0.0, %v3121
  %3123 = vmatprep.mubr.bf16.mxu0 %v2334
  %3124 = vmatmul.mubr.bf16.gmra.mrb[0].mxu0 %v1643
  %v3125 = vpop.f32.mrb[0].mxu0
  %v3126 = vadd.f32 0.0, %v3125
  %v3127 = vpop.f32.mrb[0].mxu0
  %v3128 = vadd.f32 0.0, %v3127
  %v3129 = vpop.f32.mrb[0].mxu0
  %v3130 = vadd.f32 0.0, %v3129
  %v3131 = vpop.f32.mrb[0].mxu0
  %v3132 = vadd.f32 0.0, %v3131
  %3133 = vmatprep.mubr.bf16.mxu0 %v2337
  %3134 = vmatmul.mubr.bf16.gmra.mrb[0].mxu0 %v1645
  %v3135 = vpop.f32.mrb[0].mxu0
  %v3136 = vadd.f32 0.0, %v3135
  %v3137 = vpop.f32.mrb[0].mxu0
  %v3138 = vadd.f32 0.0, %v3137
  %v3139 = vpop.f32.mrb[0].mxu0
  %v3140 = vadd.f32 0.0, %v3139
  %v3141 = vpop.f32.mrb[0].mxu0
  %v3142 = vadd.f32 0.0, %v3141
  %3143 = vmatprep.mubr.bf16.mxu0 %v2340
  %3144 = vmatmul.mubr.bf16.gmra.mrb[0].mxu0 %v1647
  %v3145 = vpop.f32.mrb[0].mxu0
  %v3146 = vadd.f32 0.0, %v3145
  %v3147 = vpop.f32.mrb[0].mxu0
  %v3148 = vadd.f32 0.0, %v3147
  %v3149 = vpop.f32.mrb[0].mxu0
  %v3150 = vadd.f32 0.0, %v3149
  %v3151 = vpop.f32.mrb[0].mxu0
  %v3152 = vadd.f32 0.0, %v3151
  %3153 = vmatprep.mubr.bf16.mxu0 %v2343
  %3154 = vmatmul.mubr.bf16.gmra.mrb[0].mxu0 %v1649
  %v3155 = vpop.f32.mrb[0].mxu0
  %v3156 = vadd.f32 0.0, %v3155
  %v3157 = vpop.f32.mrb[0].mxu0
  %v3158 = vadd.f32 0.0, %v3157
  %v3159 = vpop.f32.mrb[0].mxu0
  %v3160 = vadd.f32 0.0, %v3159
  %v3161 = vpop.f32.mrb[0].mxu0
  %v3162 = vadd.f32 0.0, %v3161
  %3163 = vmatprep.mubr.bf16.mxu0 %v2346
  %3164 = vmatmul.mubr.bf16.gmra.mrb[0].mxu0 %v1651
  %v3165 = vpop.f32.mrb[0].mxu0
  %v3166 = vadd.f32 0.0, %v3165
  %v3167 = vpop.f32.mrb[0].mxu0
  %v3168 = vadd.f32 0.0, %v3167
  %v3169 = vpop.f32.mrb[0].mxu0
  %v3170 = vadd.f32 0.0, %v3169
  %v3171 = vpop.f32.mrb[0].mxu0
  %v3172 = vadd.f32 0.0, %v3171
  %3173 = vmatprep.mubr.bf16.mxu0 %v2349
  %3174 = vmatmul.mubr.bf16.gmra.mrb[0].mxu0 %v1653
  %v3175 = vpop.f32.mrb[0].mxu0
  %v3176 = vadd.f32 0.0, %v3175
  %v3177 = vpop.f32.mrb[0].mxu0
  %v3178 = vadd.f32 0.0, %v3177
  %v3179 = vpop.f32.mrb[0].mxu0
  %v3180 = vadd.f32 0.0, %v3179
  %v3181 = vpop.f32.mrb[0].mxu0
  %v3182 = vadd.f32 0.0, %v3181
  %3183 = vmatprep.mubr.bf16.mxu0 %v2352
  %3184 = vmatmul.mubr.bf16.gmra.mrb[0].mxu0 %v1655
  %v3185 = vpop.f32.mrb[0].mxu0
  %v3186 = vadd.f32 0.0, %v3185
  %v3187 = vpop.f32.mrb[0].mxu0
  %v3188 = vadd.f32 0.0, %v3187
  %v3189 = vpop.f32.mrb[0].mxu0
  %v3190 = vadd.f32 0.0, %v3189
  %v3191 = vpop.f32.mrb[0].mxu0
  %v3192 = vadd.f32 0.0, %v3191
  %3193 = vmatprep.mubr.bf16.mxu0 %v2355
  %3194 = vmatmul.mubr.bf16.gmra.mrb[0].mxu0 %v1657
  %v3195 = vpop.f32.mrb[0].mxu0
  %v3196 = vadd.f32 0.0, %v3195
  %v3197 = vpop.f32.mrb[0].mxu0
  %v3198 = vadd.f32 0.0, %v3197
  %v3199 = vpop.f32.mrb[0].mxu0
  %v3200 = vadd.f32 0.0, %v3199
  %v3201 = vpop.f32.mrb[0].mxu0
  %v3202 = vadd.f32 0.0, %v3201
  %3203 = vmatprep.mubr.bf16.mxu0 %v2358
  %3204 = vmatmul.mubr.bf16.gmra.mrb[0].mxu0 %v1659
  %v3205 = vpop.f32.mrb[0].mxu0
  %v3206 = vadd.f32 0.0, %v3205
  %v3207 = vpop.f32.mrb[0].mxu0
  %v3208 = vadd.f32 0.0, %v3207
  %v3209 = vpop.f32.mrb[0].mxu0
  %v3210 = vadd.f32 0.0, %v3209
  %v3211 = vpop.f32.mrb[0].mxu0
  %v3212 = vadd.f32 0.0, %v3211
  %3213 = vmatprep.mubr.bf16.mxu0 %v2361
  %3214 = vmatmul.mubr.bf16.gmra.mrb[0].mxu0 %v1661
  %v3215 = vpop.f32.mrb[0].mxu0
  %v3216 = vadd.f32 0.0, %v3215
  %v3217 = vpop.f32.mrb[0].mxu0
  %v3218 = vadd.f32 0.0, %v3217
  %v3219 = vpop.f32.mrb[0].mxu0
  %v3220 = vadd.f32 0.0, %v3219
  %v3221 = vpop.f32.mrb[0].mxu0
  %v3222 = vadd.f32 0.0, %v3221
  %3223 = vmatprep.mubr.bf16.mxu0 %v2364
  %3224 = vmatmul.mubr.bf16.gmra.mrb[0].mxu0 %v1663
  %v3225 = vpop.f32.mrb[0].mxu0
  %v3226 = vadd.f32 0.0, %v3225
  %v3227 = vpop.f32.mrb[0].mxu0
  %v3228 = vadd.f32 0.0, %v3227
  %v3229 = vpop.f32.mrb[0].mxu0
  %v3230 = vadd.f32 0.0, %v3229
  %v3231 = vpop.f32.mrb[0].mxu0
  %v3232 = vadd.f32 0.0, %v3231
  %3233 = vmatprep.mubr.bf16.mxu0 %v2367
  %3234 = vmatmul.mubr.bf16.gmra.mrb[0].mxu0 %v1665
  %v3235 = vpop.f32.mrb[0].mxu0
  %v3236 = vadd.f32 0.0, %v3235
  %v3237 = vpop.f32.mrb[0].mxu0
  %v3238 = vadd.f32 0.0, %v3237
  %v3239 = vpop.f32.mrb[0].mxu0
  %v3240 = vadd.f32 0.0, %v3239
  %v3241 = vpop.f32.mrb[0].mxu0
  %v3242 = vadd.f32 0.0, %v3241
  %3243 = vmatprep.mubr.bf16.mxu0 %v2370
  %3244 = vmatmul.mubr.bf16.gmra.mrb[0].mxu0 %v1667
  %v3245 = vpop.f32.mrb[0].mxu0
  %v3246 = vadd.f32 0.0, %v3245
  %v3247 = vpop.f32.mrb[0].mxu0
  %v3248 = vadd.f32 0.0, %v3247
  %v3249 = vpop.f32.mrb[0].mxu0
  %v3250 = vadd.f32 0.0, %v3249
  %v3251 = vpop.f32.mrb[0].mxu0
  %v3252 = vadd.f32 0.0, %v3251
  %3253 = vmatprep.mubr.bf16.mxu0 %v2373
  %3254 = vmatmul.mubr.bf16.gmra.mrb[0].mxu0 %v1669
  %v3255 = vpop.f32.mrb[0].mxu0
  %v3256 = vadd.f32 0.0, %v3255
  %v3257 = vpop.f32.mrb[0].mxu0
  %v3258 = vadd.f32 0.0, %v3257
  %v3259 = vpop.f32.mrb[0].mxu0
  %v3260 = vadd.f32 0.0, %v3259
  %v3261 = vpop.f32.mrb[0].mxu0
  %v3262 = vadd.f32 0.0, %v3261
  %3263 = vmatprep.mubr.bf16.mxu0 %v2376
  %3264 = vmatmul.mubr.bf16.gmra.mrb[0].mxu0 %v1671
  %v3265 = vpop.f32.mrb[0].mxu0
  %v3266 = vadd.f32 0.0, %v3265
  %v3267 = vpop.f32.mrb[0].mxu0
  %v3268 = vadd.f32 0.0, %v3267
  %v3269 = vpop.f32.mrb[0].mxu0
  %v3270 = vadd.f32 0.0, %v3269
  %v3271 = vpop.f32.mrb[0].mxu0
  %v3272 = vadd.f32 0.0, %v3271
  %3273 = vmatprep.mubr.bf16.mxu0 %v2379
  %3274 = vmatmul.mubr.bf16.gmra.mrb[0].mxu0 %v1673
  %v3275 = vpop.f32.mrb[0].mxu0
  %v3276 = vadd.f32 0.0, %v3275
  %v3277 = vpop.f32.mrb[0].mxu0
  %v3278 = vadd.f32 0.0, %v3277
  %v3279 = vpop.f32.mrb[0].mxu0
  %v3280 = vadd.f32 0.0, %v3279
  %v3281 = vpop.f32.mrb[0].mxu0
  %v3282 = vadd.f32 0.0, %v3281
  %3283 = vmatprep.mubr.bf16.mxu0 %v2382
  %3284 = vmatmul.mubr.bf16.gmra.mrb[0].mxu0 %v1675
  %v3285 = vpop.f32.mrb[0].mxu0
  %v3286 = vadd.f32 0.0, %v3285
  %v3287 = vpop.f32.mrb[0].mxu0
  %v3288 = vadd.f32 0.0, %v3287
  %v3289 = vpop.f32.mrb[0].mxu0
  %v3290 = vadd.f32 0.0, %v3289
  %v3291 = vpop.f32.mrb[0].mxu0
  %v3292 = vadd.f32 0.0, %v3291
  %3293 = vmatprep.mubr.bf16.mxu0 %v2385
  %3294 = vmatmul.mubr.bf16.gmra.mrb[0].mxu0 %v1677
  %v3295 = vpop.f32.mrb[0].mxu0
  %v3296 = vadd.f32 0.0, %v3295
  %v3297 = vpop.f32.mrb[0].mxu0
  %v3298 = vadd.f32 0.0, %v3297
  %v3299 = vpop.f32.mrb[0].mxu0
  %v3300 = vadd.f32 0.0, %v3299
  %v3301 = vpop.f32.mrb[0].mxu0
  %v3302 = vadd.f32 0.0, %v3301
  %3303 = vmatprep.mubr.bf16.mxu0 %v2388
  %3304 = vmatmul.mubr.bf16.gmra.mrb[0].mxu0 %v1679
  %v3305 = vpop.f32.mrb[0].mxu0
  %v3306 = vadd.f32 0.0, %v3305
  %v3307 = vpop.f32.mrb[0].mxu0
  %v3308 = vadd.f32 0.0, %v3307
  %v3309 = vpop.f32.mrb[0].mxu0
  %v3310 = vadd.f32 0.0, %v3309
  %v3311 = vpop.f32.mrb[0].mxu0
  %v3312 = vadd.f32 0.0, %v3311
  %3313 = vmatprep.mubr.bf16.mxu0 %v2391
  %3314 = vmatmul.mubr.bf16.gmra.mrb[0].mxu0 %v1681
  %v3315 = vpop.f32.mrb[0].mxu0
  %v3316 = vadd.f32 0.0, %v3315
  %v3317 = vpop.f32.mrb[0].mxu0
  %v3318 = vadd.f32 0.0, %v3317
  %v3319 = vpop.f32.mrb[0].mxu0
  %v3320 = vadd.f32 0.0, %v3319
  %v3321 = vpop.f32.mrb[0].mxu0
  %v3322 = vadd.f32 0.0, %v3321
  %3323 = vmatprep.mubr.bf16.mxu0 %v2394
  %3324 = vmatmul.mubr.bf16.gmra.mrb[0].mxu0 %v1683
  %v3325 = vpop.f32.mrb[0].mxu0
  %v3326 = vadd.f32 0.0, %v3325
  %v3327 = vpop.f32.mrb[0].mxu0
  %v3328 = vadd.f32 0.0, %v3327
  %v3329 = vpop.f32.mrb[0].mxu0
  %v3330 = vadd.f32 0.0, %v3329
  %v3331 = vpop.f32.mrb[0].mxu0
  %v3332 = vadd.f32 0.0, %v3331
  %3333 = vmatprep.mubr.bf16.mxu0 %v2397
  %3334 = vmatmul.mubr.bf16.gmra.mrb[0].mxu0 %v1685
  %v3335 = vpop.f32.mrb[0].mxu0
  %v3336 = vadd.f32 0.0, %v3335
  %v3337 = vpop.f32.mrb[0].mxu0
  %v3338 = vadd.f32 0.0, %v3337
  %v3339 = vpop.f32.mrb[0].mxu0
  %v3340 = vadd.f32 0.0, %v3339
  %v3341 = vpop.f32.mrb[0].mxu0
  %v3342 = vadd.f32 0.0, %v3341
  %3343 = vmatprep.mubr.bf16.mxu0 %v2400
  %3344 = vmatmul.mubr.bf16.gmra.mrb[0].mxu0 %v1687
  %v3345 = vpop.f32.mrb[0].mxu0
  %v3346 = vadd.f32 0.0, %v3345
  %v3347 = vpop.f32.mrb[0].mxu0
  %v3348 = vadd.f32 0.0, %v3347
  %v3349 = vpop.f32.mrb[0].mxu0
  %v3350 = vadd.f32 0.0, %v3349
  %v3351 = vpop.f32.mrb[0].mxu0
  %v3352 = vadd.f32 0.0, %v3351
  %3353 = vmatprep.mubr.bf16.mxu0 %v2403
  %3354 = vmatmul.mubr.bf16.gmra.mrb[0].mxu0 %v1689
  %v3355 = vpop.f32.mrb[0].mxu0
  %v3356 = vadd.f32 0.0, %v3355
  %v3357 = vpop.f32.mrb[0].mxu0
  %v3358 = vadd.f32 0.0, %v3357
  %v3359 = vpop.f32.mrb[0].mxu0
  %v3360 = vadd.f32 0.0, %v3359
  %v3361 = vpop.f32.mrb[0].mxu0
  %v3362 = vadd.f32 0.0, %v3361
  %3363 = vmatprep.mubr.bf16.mxu0 %v2406
  %3364 = vmatmul.mubr.bf16.gmra.mrb[0].mxu0 %v1691
  %v3365 = vpop.f32.mrb[0].mxu0
  %v3366 = vadd.f32 0.0, %v3365
  %v3367 = vpop.f32.mrb[0].mxu0
  %v3368 = vadd.f32 0.0, %v3367
  %v3369 = vpop.f32.mrb[0].mxu0
  %v3370 = vadd.f32 0.0, %v3369
  %v3371 = vpop.f32.mrb[0].mxu0
  %v3372 = vadd.f32 0.0, %v3371
  %3373 = vmatprep.mubr.bf16.mxu0 %v2409
  %3374 = vmatmul.mubr.bf16.gmra.mrb[0].mxu0 %v1693
  %v3375 = vpop.f32.mrb[0].mxu0
  %v3376 = vadd.f32 0.0, %v3375
  %v3377 = vpop.f32.mrb[0].mxu0
  %v3378 = vadd.f32 0.0, %v3377
  %v3379 = vpop.f32.mrb[0].mxu0
  %v3380 = vadd.f32 0.0, %v3379
  %v3381 = vpop.f32.mrb[0].mxu0
  %v3382 = vadd.f32 0.0, %v3381
  %3383 = vmatprep.mubr.bf16.mxu0 %v2412
  %3384 = vmatmul.mubr.bf16.gmra.mrb[0].mxu0 %v1695
  %v3385 = vpop.f32.mrb[0].mxu0
  %v3386 = vadd.f32 0.0, %v3385
  %v3387 = vpop.f32.mrb[0].mxu0
  %v3388 = vadd.f32 0.0, %v3387
  %v3389 = vpop.f32.mrb[0].mxu0
  %v3390 = vadd.f32 0.0, %v3389
  %v3391 = vpop.f32.mrb[0].mxu0
  %v3392 = vadd.f32 0.0, %v3391
  %3393 = vmatprep.mubr.bf16.mxu0 %v2415
  %3394 = vmatmul.mubr.bf16.gmra.mrb[0].mxu0 %v1697
  %v3395 = vpop.f32.mrb[0].mxu0
  %v3396 = vadd.f32 0.0, %v3395
  %v3397 = vpop.f32.mrb[0].mxu0
  %v3398 = vadd.f32 0.0, %v3397
  %v3399 = vpop.f32.mrb[0].mxu0
  %v3400 = vadd.f32 0.0, %v3399
  %v3401 = vpop.f32.mrb[0].mxu0
  %v3402 = vadd.f32 0.0, %v3401
  %3403 = vmatprep.mubr.bf16.mxu0 %v2418
  %3404 = vmatmul.mubr.bf16.gmra.mrb[0].mxu0 %v1699
  %v3405 = vpop.f32.mrb[0].mxu0
  %v3406 = vadd.f32 0.0, %v3405
  %v3407 = vpop.f32.mrb[0].mxu0
  %v3408 = vadd.f32 0.0, %v3407
  %v3409 = vpop.f32.mrb[0].mxu0
  %v3410 = vadd.f32 0.0, %v3409
  %v3411 = vpop.f32.mrb[0].mxu0
  %v3412 = vadd.f32 0.0, %v3411
  %3413 = vmatprep.mubr.bf16.mxu0 %v2421
  %3414 = vmatmul.mubr.bf16.gmra.mrb[0].mxu0 %v1701
  %v3415 = vpop.f32.mrb[0].mxu0
  %v3416 = vadd.f32 0.0, %v3415
  %v3417 = vpop.f32.mrb[0].mxu0
  %v3418 = vadd.f32 0.0, %v3417
  %v3419 = vpop.f32.mrb[0].mxu0
  %v3420 = vadd.f32 0.0, %v3419
  %v3421 = vpop.f32.mrb[0].mxu0
  %v3422 = vadd.f32 0.0, %v3421
  %3423 = vmatprep.mubr.bf16.mxu0 %v2424
  %3424 = vmatmul.mubr.bf16.gmra.mrb[0].mxu0 %v1703
  %v3425 = vpop.f32.mrb[0].mxu0
  %v3426 = vadd.f32 0.0, %v3425
  %v3427 = vpop.f32.mrb[0].mxu0
  %v3428 = vadd.f32 0.0, %v3427
  %v3429 = vpop.f32.mrb[0].mxu0
  %v3430 = vadd.f32 0.0, %v3429
  %v3431 = vpop.f32.mrb[0].mxu0
  %v3432 = vadd.f32 0.0, %v3431
  %3433 = vmatprep.mubr.bf16.mxu0 %v2427
  %3434 = vmatmul.mubr.bf16.gmra.mrb[0].mxu0 %v1705
  %v3435 = vpop.f32.mrb[0].mxu0
  %v3436 = vadd.f32 0.0, %v3435
  %v3437 = vpop.f32.mrb[0].mxu0
  %v3438 = vadd.f32 0.0, %v3437
  %v3439 = vpop.f32.mrb[0].mxu0
  %v3440 = vadd.f32 0.0, %v3439
  %v3441 = vpop.f32.mrb[0].mxu0
  %v3442 = vadd.f32 0.0, %v3441
  %3443 = vmatprep.mubr.bf16.mxu0 %v2430
  %3444 = vmatmul.mubr.bf16.gmra.mrb[0].mxu0 %v1707
  %v3445 = vpop.f32.mrb[0].mxu0
  %v3446 = vadd.f32 0.0, %v3445
  %v3447 = vpop.f32.mrb[0].mxu0
  %v3448 = vadd.f32 0.0, %v3447
  %v3449 = vpop.f32.mrb[0].mxu0
  %v3450 = vadd.f32 0.0, %v3449
  %v3451 = vpop.f32.mrb[0].mxu0
  %v3452 = vadd.f32 0.0, %v3451
  %3453 = vmatprep.mubr.bf16.mxu0 %v2433
  %3454 = vmatmul.mubr.bf16.gmra.mrb[0].mxu0 %v1709
  %v3455 = vpop.f32.mrb[0].mxu0
  %v3456 = vadd.f32 0.0, %v3455
  %v3457 = vpop.f32.mrb[0].mxu0
  %v3458 = vadd.f32 0.0, %v3457
  %v3459 = vpop.f32.mrb[0].mxu0
  %v3460 = vadd.f32 0.0, %v3459
  %v3461 = vpop.f32.mrb[0].mxu0
  %v3462 = vadd.f32 0.0, %v3461
  %3463 = vmatprep.mubr.bf16.mxu0 %v2436
  %3464 = vmatmul.mubr.bf16.gmra.mrb[0].mxu0 %v1711
  %v3465 = vpop.f32.mrb[0].mxu0
  %v3466 = vadd.f32 0.0, %v3465
  %v3467 = vpop.f32.mrb[0].mxu0
  %v3468 = vadd.f32 0.0, %v3467
  %v3469 = vpop.f32.mrb[0].mxu0
  %v3470 = vadd.f32 0.0, %v3469
  %v3471 = vpop.f32.mrb[0].mxu0
  %v3472 = vadd.f32 0.0, %v3471
  %3473 = vmatprep.mubr.bf16.mxu0 %v2439
  %3474 = vmatmul.mubr.bf16.gmra.mrb[0].mxu0 %v1713
  %v3475 = vpop.f32.mrb[0].mxu0
  %v3476 = vadd.f32 0.0, %v3475
  %v3477 = vpop.f32.mrb[0].mxu0
  %v3478 = vadd.f32 0.0, %v3477
  %v3479 = vpop.f32.mrb[0].mxu0
  %v3480 = vadd.f32 0.0, %v3479
  %v3481 = vpop.f32.mrb[0].mxu0
  %v3482 = vadd.f32 0.0, %v3481
  %3483 = vmatprep.mubr.bf16.mxu0 %v2442
  %3484 = vmatmul.mubr.bf16.gmra.mrb[0].mxu0 %v1715
  %v3485 = vpop.f32.mrb[0].mxu0
  %v3486 = vadd.f32 0.0, %v3485
  %v3487 = vpop.f32.mrb[0].mxu0
  %v3488 = vadd.f32 0.0, %v3487
  %v3489 = vpop.f32.mrb[0].mxu0
  %v3490 = vadd.f32 0.0, %v3489
  %v3491 = vpop.f32.mrb[0].mxu0
  %v3492 = vadd.f32 0.0, %v3491
  %3493 = vmatprep.mubr.bf16.mxu0 %v2445
  %3494 = vmatmul.mubr.bf16.gmra.mrb[0].mxu0 %v1717
  %v3495 = vpop.f32.mrb[0].mxu0
  %v3496 = vadd.f32 0.0, %v3495
  %v3497 = vpop.f32.mrb[0].mxu0
  %v3498 = vadd.f32 0.0, %v3497
  %v3499 = vpop.f32.mrb[0].mxu0
  %v3500 = vadd.f32 0.0, %v3499
  %v3501 = vpop.f32.mrb[0].mxu0
  %v3502 = vadd.f32 0.0, %v3501
  %3503 = vmatprep.mubr.bf16.mxu0 %v2448
  %3504 = vmatmul.mubr.bf16.gmra.mrb[0].mxu0 %v1719
  %v3505 = vpop.f32.mrb[0].mxu0
  %v3506 = vadd.f32 0.0, %v3505
  %v3507 = vpop.f32.mrb[0].mxu0
  %v3508 = vadd.f32 0.0, %v3507
  %v3509 = vpop.f32.mrb[0].mxu0
  %v3510 = vadd.f32 0.0, %v3509
  %v3511 = vpop.f32.mrb[0].mxu0
  %v3512 = vadd.f32 0.0, %v3511
  %3513 = vmatprep.mubr.bf16.mxu0 %v2451
  %3514 = vmatmul.mubr.bf16.gmra.mrb[0].mxu0 %v1721
  %v3515 = vpop.f32.mrb[0].mxu0
  %v3516 = vadd.f32 0.0, %v3515
  %v3517 = vpop.f32.mrb[0].mxu0
  %v3518 = vadd.f32 0.0, %v3517
  %v3519 = vpop.f32.mrb[0].mxu0
  %v3520 = vadd.f32 0.0, %v3519
  %v3521 = vpop.f32.mrb[0].mxu0
  %v3522 = vadd.f32 0.0, %v3521
  %3523 = vmatprep.mubr.bf16.mxu0 %v2454
  %3524 = vmatmul.mubr.bf16.gmra.mrb[0].mxu0 %v1723
  %v3525 = vpop.f32.mrb[0].mxu0
  %v3526 = vadd.f32 0.0, %v3525
  %v3527 = vpop.f32.mrb[0].mxu0
  %v3528 = vadd.f32 0.0, %v3527
  %v3529 = vpop.f32.mrb[0].mxu0
  %v3530 = vadd.f32 0.0, %v3529
  %v3531 = vpop.f32.mrb[0].mxu0
  %v3532 = vadd.f32 0.0, %v3531
  %3533 = vmatprep.mubr.bf16.mxu0 %v2457
  %3534 = vmatmul.mubr.bf16.gmra.mrb[0].mxu0 %v1725
  %v3535 = vpop.f32.mrb[0].mxu0
  %v3536 = vadd.f32 0.0, %v3535
  %v3537 = vpop.f32.mrb[0].mxu0
  %v3538 = vadd.f32 0.0, %v3537
  %v3539 = vpop.f32.mrb[0].mxu0
  %v3540 = vadd.f32 0.0, %v3539
  %v3541 = vpop.f32.mrb[0].mxu0
  %v3542 = vadd.f32 0.0, %v3541
  %3543 = vmatprep.mubr.bf16.mxu0 %v2460
  %3544 = vmatmul.mubr.bf16.gmra.mrb[0].mxu0 %v1727
  %v3545 = vpop.f32.mrb[0].mxu0
  %v3546 = vadd.f32 0.0, %v3545
  %v3547 = vpop.f32.mrb[0].mxu0
  %v3548 = vadd.f32 0.0, %v3547
  %v3549 = vpop.f32.mrb[0].mxu0
  %v3550 = vadd.f32 0.0, %v3549
  %v3551 = vpop.f32.mrb[0].mxu0
  %v3552 = vadd.f32 0.0, %v3551
  %3553 = vmatprep.mubr.bf16.mxu0 %v2463
  %3554 = vmatmul.mubr.bf16.gmra.mrb[0].mxu0 %v1729
  %v3555 = vpop.f32.mrb[0].mxu0
  %v3556 = vadd.f32 0.0, %v3555
  %v3557 = vpop.f32.mrb[0].mxu0
  %v3558 = vadd.f32 0.0, %v3557
  %v3559 = vpop.f32.mrb[0].mxu0
  %v3560 = vadd.f32 0.0, %v3559
  %v3561 = vpop.f32.mrb[0].mxu0
  %v3562 = vadd.f32 0.0, %v3561
  %3563 = vmatprep.mubr.bf16.mxu0 %v2466
  %3564 = vmatmul.mubr.bf16.gmra.mrb[0].mxu0 %v1731
  %v3565 = vpop.f32.mrb[0].mxu0
  %v3566 = vadd.f32 0.0, %v3565
  %v3567 = vpop.f32.mrb[0].mxu0
  %v3568 = vadd.f32 0.0, %v3567
  %v3569 = vpop.f32.mrb[0].mxu0
  %v3570 = vadd.f32 0.0, %v3569
  %v3571 = vpop.f32.mrb[0].mxu0
  %v3572 = vadd.f32 0.0, %v3571
  %3573 = vmatprep.mubr.bf16.mxu0 %v2469
  %3574 = vmatmul.mubr.bf16.gmra.mrb[0].mxu0 %v1733
  %v3575 = vpop.f32.mrb[0].mxu0
  %v3576 = vadd.f32 0.0, %v3575
  %v3577 = vpop.f32.mrb[0].mxu0
  %v3578 = vadd.f32 0.0, %v3577
  %v3579 = vpop.f32.mrb[0].mxu0
  %v3580 = vadd.f32 0.0, %v3579
  %v3581 = vpop.f32.mrb[0].mxu0
  %v3582 = vadd.f32 0.0, %v3581
  %3583 = vmatprep.mubr.bf16.mxu0 %v2472
  %3584 = vmatmul.mubr.bf16.gmra.mrb[0].mxu0 %v1735
  %v3585 = vpop.f32.mrb[0].mxu0
  %v3586 = vadd.f32 0.0, %v3585
  %v3587 = vpop.f32.mrb[0].mxu0
  %v3588 = vadd.f32 0.0, %v3587
  %v3589 = vpop.f32.mrb[0].mxu0
  %v3590 = vadd.f32 0.0, %v3589
  %v3591 = vpop.f32.mrb[0].mxu0
  %v3592 = vadd.f32 0.0, %v3591
  %3593 = vmatprep.mubr.bf16.mxu0 %v2475
  %3594 = vmatmul.mubr.bf16.gmra.mrb[0].mxu0 %v1737
  %v3595 = vpop.f32.mrb[0].mxu0
  %v3596 = vadd.f32 0.0, %v3595
  %v3597 = vpop.f32.mrb[0].mxu0
  %v3598 = vadd.f32 0.0, %v3597
  %v3599 = vpop.f32.mrb[0].mxu0
  %v3600 = vadd.f32 0.0, %v3599
  %v3601 = vpop.f32.mrb[0].mxu0
  %v3602 = vadd.f32 0.0, %v3601
  %3603 = vmatprep.mubr.bf16.mxu0 %v2478
  %3604 = vmatmul.mubr.bf16.gmra.mrb[0].mxu0 %v1739
  %v3605 = vpop.f32.mrb[0].mxu0
  %v3606 = vadd.f32 0.0, %v3605
  %v3607 = vpop.f32.mrb[0].mxu0
  %v3608 = vadd.f32 0.0, %v3607
  %v3609 = vpop.f32.mrb[0].mxu0
  %v3610 = vadd.f32 0.0, %v3609
  %v3611 = vpop.f32.mrb[0].mxu0
  %v3612 = vadd.f32 0.0, %v3611
  %3613 = vmatprep.mubr.bf16.mxu0 %v2481
  %3614 = vmatmul.mubr.bf16.gmra.mrb[0].mxu0 %v1741
  %v3615 = vpop.f32.mrb[0].mxu0
  %v3616 = vadd.f32 0.0, %v3615
  %v3617 = vpop.f32.mrb[0].mxu0
  %v3618 = vadd.f32 0.0, %v3617
  %v3619 = vpop.f32.mrb[0].mxu0
  %v3620 = vadd.f32 0.0, %v3619
  %v3621 = vpop.f32.mrb[0].mxu0
  %v3622 = vadd.f32 0.0, %v3621
  %3623 = vmatprep.mubr.bf16.mxu0 %v2484
  %3624 = vmatmul.mubr.bf16.gmra.mrb[0].mxu0 %v1743
  %v3625 = vpop.f32.mrb[0].mxu0
  %v3626 = vadd.f32 0.0, %v3625
  %v3627 = vpop.f32.mrb[0].mxu0
  %v3628 = vadd.f32 0.0, %v3627
  %v3629 = vpop.f32.mrb[0].mxu0
  %v3630 = vadd.f32 0.0, %v3629
  %v3631 = vpop.f32.mrb[0].mxu0
  %v3632 = vadd.f32 0.0, %v3631
  %3633 = vmatprep.mubr.bf16.mxu0 %v2487
  %3634 = vmatmul.mubr.bf16.gmra.mrb[0].mxu0 %v1745
  %v3635 = vpop.f32.mrb[0].mxu0
  %v3636 = vadd.f32 0.0, %v3635
  %v3637 = vpop.f32.mrb[0].mxu0
  %v3638 = vadd.f32 0.0, %v3637
  %v3639 = vpop.f32.mrb[0].mxu0
  %v3640 = vadd.f32 0.0, %v3639
  %v3641 = vpop.f32.mrb[0].mxu0
  %v3642 = vadd.f32 0.0, %v3641
  %3643 = vmatprep.mubr.bf16.mxu0 %v2490
  %3644 = vmatmul.mubr.bf16.gmra.mrb[0].mxu0 %v1747
  %v3645 = vpop.f32.mrb[0].mxu0
  %v3646 = vadd.f32 0.0, %v3645
  %v3647 = vpop.f32.mrb[0].mxu0
  %v3648 = vadd.f32 0.0, %v3647
  %v3649 = vpop.f32.mrb[0].mxu0
  %v3650 = vadd.f32 0.0, %v3649
  %v3651 = vpop.f32.mrb[0].mxu0
  %v3652 = vadd.f32 0.0, %v3651
  %3653 = vmatprep.mubr.bf16.mxu0 %v2493
  %3654 = vmatmul.mubr.bf16.gmra.mrb[0].mxu0 %v1749
  %v3655 = vpop.f32.mrb[0].mxu0
  %v3656 = vadd.f32 0.0, %v3655
  %v3657 = vpop.f32.mrb[0].mxu0
  %v3658 = vadd.f32 0.0, %v3657
  %v3659 = vpop.f32.mrb[0].mxu0
  %v3660 = vadd.f32 0.0, %v3659
  %v3661 = vpop.f32.mrb[0].mxu0
  %v3662 = vadd.f32 0.0, %v3661
  %3663 = vmatprep.mubr.bf16.mxu0 %v2496
  %3664 = vmatmul.mubr.bf16.gmra.mrb[0].mxu0 %v1751
  %v3665 = vpop.f32.mrb[0].mxu0
  %v3666 = vadd.f32 0.0, %v3665
  %v3667 = vpop.f32.mrb[0].mxu0
  %v3668 = vadd.f32 0.0, %v3667
  %v3669 = vpop.f32.mrb[0].mxu0
  %v3670 = vadd.f32 0.0, %v3669
  %v3671 = vpop.f32.mrb[0].mxu0
  %v3672 = vadd.f32 0.0, %v3671
  %3673 = vmatprep.mubr.bf16.mxu0 %v2499
  %3674 = vmatmul.mubr.bf16.gmra.mrb[0].mxu0 %v1753
  %v3675 = vpop.f32.mrb[0].mxu0
  %v3676 = vadd.f32 0.0, %v3675
  %v3677 = vpop.f32.mrb[0].mxu0
  %v3678 = vadd.f32 0.0, %v3677
  %v3679 = vpop.f32.mrb[0].mxu0
  %v3680 = vadd.f32 0.0, %v3679
  %v3681 = vpop.f32.mrb[0].mxu0
  %v3682 = vadd.f32 0.0, %v3681
  %3683 = vmatprep.mubr.bf16.mxu0 %v2502
  %3684 = vmatmul.mubr.bf16.gmra.mrb[0].mxu0 %v1755
  %v3685 = vpop.f32.mrb[0].mxu0
  %v3686 = vadd.f32 0.0, %v3685
  %v3687 = vpop.f32.mrb[0].mxu0
  %v3688 = vadd.f32 0.0, %v3687
  %v3689 = vpop.f32.mrb[0].mxu0
  %v3690 = vadd.f32 0.0, %v3689
  %v3691 = vpop.f32.mrb[0].mxu0
  %v3692 = vadd.f32 0.0, %v3691
  %3693 = vmatprep.mubr.bf16.mxu0 %v2505
  %3694 = vmatmul.mubr.bf16.gmra.mrb[0].mxu0 %v1757
  %v3695 = vpop.f32.mrb[0].mxu0
  %v3696 = vadd.f32 0.0, %v3695
  %v3697 = vpop.f32.mrb[0].mxu0
  %v3698 = vadd.f32 0.0, %v3697
  %v3699 = vpop.f32.mrb[0].mxu0
  %v3700 = vadd.f32 0.0, %v3699
  %v3701 = vpop.f32.mrb[0].mxu0
  %v3702 = vadd.f32 0.0, %v3701
  %3703 = vmatprep.mubr.bf16.mxu0 %v2508
  %3704 = vmatmul.mubr.bf16.gmra.mrb[0].mxu0 %v1759
  %v3705 = vpop.f32.mrb[0].mxu0
  %v3706 = vadd.f32 0.0, %v3705
  %v3707 = vpop.f32.mrb[0].mxu0
  %v3708 = vadd.f32 0.0, %v3707
  %v3709 = vpop.f32.mrb[0].mxu0
  %v3710 = vadd.f32 0.0, %v3709
  %v3711 = vpop.f32.mrb[0].mxu0
  %v3712 = vadd.f32 0.0, %v3711
  %3713 = vmatprep.mubr.bf16.mxu0 %v2511
  %3714 = vmatmul.mubr.bf16.gmra.mrb[0].mxu0 %v1761
  %v3715 = vpop.f32.mrb[0].mxu0
  %v3716 = vadd.f32 0.0, %v3715
  %v3717 = vpop.f32.mrb[0].mxu0
  %v3718 = vadd.f32 0.0, %v3717
  %v3719 = vpop.f32.mrb[0].mxu0
  %v3720 = vadd.f32 0.0, %v3719
  %v3721 = vpop.f32.mrb[0].mxu0
  %v3722 = vadd.f32 0.0, %v3721
  %3723 = vmatprep.mubr.bf16.mxu0 %v2514
  %3724 = vmatmul.mubr.bf16.gmra.mrb[0].mxu0 %v1763
  %v3725 = vpop.f32.mrb[0].mxu0
  %v3726 = vadd.f32 0.0, %v3725
  %v3727 = vpop.f32.mrb[0].mxu0
  %v3728 = vadd.f32 0.0, %v3727
  %v3729 = vpop.f32.mrb[0].mxu0
  %v3730 = vadd.f32 0.0, %v3729
  %v3731 = vpop.f32.mrb[0].mxu0
  %v3732 = vadd.f32 0.0, %v3731
  %3733 = vmatprep.mubr.bf16.mxu0 %v2517
  %3734 = vmatmul.mubr.bf16.gmra.mrb[0].mxu0 %v1765
  %v3735 = vpop.f32.mrb[0].mxu0
  %v3736 = vadd.f32 0.0, %v3735
  %v3737 = vpop.f32.mrb[0].mxu0
  %v3738 = vadd.f32 0.0, %v3737
  %v3739 = vpop.f32.mrb[0].mxu0
  %v3740 = vadd.f32 0.0, %v3739
  %v3741 = vpop.f32.mrb[0].mxu0
  %v3742 = vadd.f32 0.0, %v3741
  %3743 = vmatprep.mubr.bf16.mxu0 %v2520
  %3744 = vmatmul.mubr.bf16.gmra.mrb[0].mxu0 %v1767
  %v3745 = vpop.f32.mrb[0].mxu0
  %v3746 = vadd.f32 0.0, %v3745
  %v3747 = vpop.f32.mrb[0].mxu0
  %v3748 = vadd.f32 0.0, %v3747
  %v3749 = vpop.f32.mrb[0].mxu0
  %v3750 = vadd.f32 0.0, %v3749
  %v3751 = vpop.f32.mrb[0].mxu0
  %v3752 = vadd.f32 0.0, %v3751
  %3753 = vmatprep.mubr.bf16.mxu0 %v2523
  %3754 = vmatmul.mubr.bf16.gmra.mrb[0].mxu0 %v1769
  %v3755 = vpop.f32.mrb[0].mxu0
  %v3756 = vadd.f32 0.0, %v3755
  %v3757 = vpop.f32.mrb[0].mxu0
  %v3758 = vadd.f32 0.0, %v3757
  %v3759 = vpop.f32.mrb[0].mxu0
  %v3760 = vadd.f32 0.0, %v3759
  %v3761 = vpop.f32.mrb[0].mxu0
  %v3762 = vadd.f32 0.0, %v3761
  %3763 = vmatprep.mubr.bf16.mxu0 %v2526
  %3764 = vmatmul.mubr.bf16.gmra.mrb[0].mxu0 %v1771
  %v3765 = vpop.f32.mrb[0].mxu0
  %v3766 = vadd.f32 0.0, %v3765
  %v3767 = vpop.f32.mrb[0].mxu0
  %v3768 = vadd.f32 0.0, %v3767
  %v3769 = vpop.f32.mrb[0].mxu0
  %v3770 = vadd.f32 0.0, %v3769
  %v3771 = vpop.f32.mrb[0].mxu0
  %v3772 = vadd.f32 0.0, %v3771
  %3773 = vmatprep.mubr.bf16.mxu0 %v2529
  %3774 = vmatmul.mubr.bf16.gmra.mrb[0].mxu0 %v1773
  %v3775 = vpop.f32.mrb[0].mxu0
  %v3776 = vadd.f32 0.0, %v3775
  %v3777 = vpop.f32.mrb[0].mxu0
  %v3778 = vadd.f32 0.0, %v3777
  %v3779 = vpop.f32.mrb[0].mxu0
  %v3780 = vadd.f32 0.0, %v3779
  %v3781 = vpop.f32.mrb[0].mxu0
  %v3782 = vadd.f32 0.0, %v3781
  %3783 = vmatprep.mubr.bf16.mxu0 %v2532
  %3784 = vmatmul.mubr.bf16.gmra.mrb[0].mxu0 %v1775
  %v3785 = vpop.f32.mrb[0].mxu0
  %v3786 = vadd.f32 0.0, %v3785
  %v3787 = vpop.f32.mrb[0].mxu0
  %v3788 = vadd.f32 0.0, %v3787
  %v3789 = vpop.f32.mrb[0].mxu0
  %v3790 = vadd.f32 0.0, %v3789
  %v3791 = vpop.f32.mrb[0].mxu0
  %v3792 = vadd.f32 0.0, %v3791
  %3793 = vmatprep.mubr.bf16.mxu0 %v2535
  %3794 = vmatmul.mubr.bf16.gmra.mrb[0].mxu0 %v1777
  %v3795 = vpop.f32.mrb[0].mxu0
  %v3796 = vadd.f32 0.0, %v3795
  %v3797 = vpop.f32.mrb[0].mxu0
  %v3798 = vadd.f32 0.0, %v3797
  %v3799 = vpop.f32.mrb[0].mxu0
  %v3800 = vadd.f32 0.0, %v3799
  %v3801 = vpop.f32.mrb[0].mxu0
  %v3802 = vadd.f32 0.0, %v3801
  %3803 = vmatprep.mubr.bf16.mxu0 %v2538
  %3804 = vmatmul.mubr.bf16.gmra.mrb[0].mxu0 %v1779
  %v3805 = vpop.f32.mrb[0].mxu0
  %v3806 = vadd.f32 0.0, %v3805
  %v3807 = vpop.f32.mrb[0].mxu0
  %v3808 = vadd.f32 0.0, %v3807
  %v3809 = vpop.f32.mrb[0].mxu0
  %v3810 = vadd.f32 0.0, %v3809
  %v3811 = vpop.f32.mrb[0].mxu0
  %v3812 = vadd.f32 0.0, %v3811
  %3813 = vmatprep.mubr.bf16.mxu0 %v2541
  %3814 = vmatmul.mubr.bf16.gmra.mrb[0].mxu0 %v1781
  %v3815 = vpop.f32.mrb[0].mxu0
  %v3816 = vadd.f32 0.0, %v3815
  %v3817 = vpop.f32.mrb[0].mxu0
  %v3818 = vadd.f32 0.0, %v3817
  %v3819 = vpop.f32.mrb[0].mxu0
  %v3820 = vadd.f32 0.0, %v3819
  %v3821 = vpop.f32.mrb[0].mxu0
  %v3822 = vadd.f32 0.0, %v3821
  %3823 = vmatprep.mubr.bf16.mxu0 %v2544
  %3824 = vmatmul.mubr.bf16.gmra.mrb[0].mxu0 %v1783
  %v3825 = vpop.f32.mrb[0].mxu0
  %v3826 = vadd.f32 0.0, %v3825
  %v3827 = vpop.f32.mrb[0].mxu0
  %v3828 = vadd.f32 0.0, %v3827
  %v3829 = vpop.f32.mrb[0].mxu0
  %v3830 = vadd.f32 0.0, %v3829
  %v3831 = vpop.f32.mrb[0].mxu0
  %v3832 = vadd.f32 0.0, %v3831
  %3833 = vmatprep.mubr.bf16.mxu0 %v2547
  %3834 = vmatmul.mubr.bf16.gmra.mrb[0].mxu0 %v1785
  %v3835 = vpop.f32.mrb[0].mxu0
  %v3836 = vadd.f32 0.0, %v3835
  %v3837 = vpop.f32.mrb[0].mxu0
  %v3838 = vadd.f32 0.0, %v3837
  %v3839 = vpop.f32.mrb[0].mxu0
  %v3840 = vadd.f32 0.0, %v3839
  %v3841 = vpop.f32.mrb[0].mxu0
  %v3842 = vadd.f32 0.0, %v3841
  %3843 = vmatprep.mubr.bf16.mxu0 %v2550
  %3844 = vmatmul.mubr.bf16.gmra.mrb[0].mxu0 %v1787
  %v3845 = vpop.f32.mrb[0].mxu0
  %v3846 = vadd.f32 0.0, %v3845
  %v3847 = vpop.f32.mrb[0].mxu0
  %v3848 = vadd.f32 0.0, %v3847
  %v3849 = vpop.f32.mrb[0].mxu0
  %v3850 = vadd.f32 0.0, %v3849
  %v3851 = vpop.f32.mrb[0].mxu0
  %v3852 = vadd.f32 0.0, %v3851
  %3853 = vmatprep.mubr.bf16.mxu0 %v2553
  %3854 = vmatmul.mubr.bf16.gmra.mrb[0].mxu0 %v1789
  %v3855 = vpop.f32.mrb[0].mxu0
  %v3856 = vadd.f32 0.0, %v3855
  %v3857 = vpop.f32.mrb[0].mxu0
  %v3858 = vadd.f32 0.0, %v3857
  %v3859 = vpop.f32.mrb[0].mxu0
  %v3860 = vadd.f32 0.0, %v3859
  %v3861 = vpop.f32.mrb[0].mxu0
  %v3862 = vadd.f32 0.0, %v3861
  %3863 = vmatprep.mubr.bf16.mxu0 %v2556
  %3864 = vmatmul.mubr.bf16.gmra.mrb[0].mxu0 %v1791
  %v3865 = vpop.f32.mrb[0].mxu0
  %v3866 = vadd.f32 0.0, %v3865
  %v3867 = vpop.f32.mrb[0].mxu0
  %v3868 = vadd.f32 0.0, %v3867
  %v3869 = vpop.f32.mrb[0].mxu0
  %v3870 = vadd.f32 0.0, %v3869
  %v3871 = vpop.f32.mrb[0].mxu0
  %v3872 = vadd.f32 0.0, %v3871
  %3873 = vmatprep.mubr.bf16.mxu0 %v2559
  %3874 = vmatmul.mubr.bf16.gmra.mrb[0].mxu0 %v1793
  %v3875 = vpop.f32.mrb[0].mxu0
  %v3876 = vadd.f32 0.0, %v3875
  %v3877 = vpop.f32.mrb[0].mxu0
  %v3878 = vadd.f32 0.0, %v3877
  %v3879 = vpop.f32.mrb[0].mxu0
  %v3880 = vadd.f32 0.0, %v3879
  %v3881 = vpop.f32.mrb[0].mxu0
  %v3882 = vadd.f32 0.0, %v3881
  %3883 = vmatprep.mubr.bf16.mxu0 %v2562
  %3884 = vmatmul.mubr.bf16.gmra.mrb[0].mxu0 %v1795
  %v3885 = vpop.f32.mrb[0].mxu0
  %v3886 = vadd.f32 0.0, %v3885
  %v3887 = vpop.f32.mrb[0].mxu0
  %v3888 = vadd.f32 0.0, %v3887
  %v3889 = vpop.f32.mrb[0].mxu0
  %v3890 = vadd.f32 0.0, %v3889
  %v3891 = vpop.f32.mrb[0].mxu0
  %v3892 = vadd.f32 0.0, %v3891
  %3893 = vmatprep.mubr.bf16.mxu0 %v2565
  %3894 = vmatmul.mubr.bf16.gmra.mrb[0].mxu0 %v1797
  %v3895 = vpop.f32.mrb[0].mxu0
  %v3896 = vadd.f32 0.0, %v3895
  %v3897 = vpop.f32.mrb[0].mxu0
  %v3898 = vadd.f32 0.0, %v3897
  %v3899 = vpop.f32.mrb[0].mxu0
  %v3900 = vadd.f32 0.0, %v3899
  %v3901 = vpop.f32.mrb[0].mxu0
  %v3902 = vadd.f32 0.0, %v3901
  %3903 = vmatprep.mubr.bf16.mxu0 %v2568
  %3904 = vmatmul.mubr.bf16.gmra.mrb[0].mxu0 %v1799
  %v3905 = vpop.f32.mrb[0].mxu0
  %v3906 = vadd.f32 0.0, %v3905
  %v3907 = vpop.f32.mrb[0].mxu0
  %v3908 = vadd.f32 0.0, %v3907
  %v3909 = vpop.f32.mrb[0].mxu0
  %v3910 = vadd.f32 0.0, %v3909
  %v3911 = vpop.f32.mrb[0].mxu0
  %v3912 = vadd.f32 0.0, %v3911
  %3913 = vmatprep.mubr.bf16.mxu0 %v2571
  %3914 = vmatmul.mubr.bf16.gmra.mrb[0].mxu0 %v1801
  %v3915 = vpop.f32.mrb[0].mxu0
  %v3916 = vadd.f32 0.0, %v3915
  %v3917 = vpop.f32.mrb[0].mxu0
  %v3918 = vadd.f32 0.0, %v3917
  %v3919 = vpop.f32.mrb[0].mxu0
  %v3920 = vadd.f32 0.0, %v3919
  %v3921 = vpop.f32.mrb[0].mxu0
  %v3922 = vadd.f32 0.0, %v3921
  %3923 = vmatprep.mubr.bf16.mxu0 %v2574
  %3924 = vmatmul.mubr.bf16.gmra.mrb[0].mxu0 %v1803
  %v3925 = vpop.f32.mrb[0].mxu0
  %v3926 = vadd.f32 0.0, %v3925
  %v3927 = vpop.f32.mrb[0].mxu0
  %v3928 = vadd.f32 0.0, %v3927
  %v3929 = vpop.f32.mrb[0].mxu0
  %v3930 = vadd.f32 0.0, %v3929
  %v3931 = vpop.f32.mrb[0].mxu0
  %v3932 = vadd.f32 0.0, %v3931
  %3933 = vmatprep.mubr.bf16.mxu0 %v2577
  %3934 = vmatmul.mubr.bf16.gmra.mrb[0].mxu0 %v1805
  %v3935 = vpop.f32.mrb[0].mxu0
  %v3936 = vadd.f32 0.0, %v3935
  %v3937 = vpop.f32.mrb[0].mxu0
  %v3938 = vadd.f32 0.0, %v3937
  %v3939 = vpop.f32.mrb[0].mxu0
  %v3940 = vadd.f32 0.0, %v3939
  %v3941 = vpop.f32.mrb[0].mxu0
  %v3942 = vadd.f32 0.0, %v3941
  %3943 = vmatprep.mubr.bf16.mxu0 %v2580
  %3944 = vmatmul.mubr.bf16.gmra.mrb[0].mxu0 %v1807
  %v3945 = vpop.f32.mrb[0].mxu0
  %v3946 = vadd.f32 0.0, %v3945
  %v3947 = vpop.f32.mrb[0].mxu0
  %v3948 = vadd.f32 0.0, %v3947
  %v3949 = vpop.f32.mrb[0].mxu0
  %v3950 = vadd.f32 0.0, %v3949
  %v3951 = vpop.f32.mrb[0].mxu0
  %v3952 = vadd.f32 0.0, %v3951
  %3953 = vmatprep.mubr.bf16.mxu0 %v2583
  %3954 = vmatmul.mubr.bf16.gmra.mrb[0].mxu0 %v1809
  %v3955 = vpop.f32.mrb[0].mxu0
  %v3956 = vadd.f32 0.0, %v3955
  %v3957 = vpop.f32.mrb[0].mxu0
  %v3958 = vadd.f32 0.0, %v3957
  %v3959 = vpop.f32.mrb[0].mxu0
  %v3960 = vadd.f32 0.0, %v3959
  %v3961 = vpop.f32.mrb[0].mxu0
  %v3962 = vadd.f32 0.0, %v3961
  %3963 = vmatprep.mubr.bf16.mxu0 %v2586
  %3964 = vmatmul.mubr.bf16.gmra.mrb[0].mxu0 %v1811
  %v3965 = vpop.f32.mrb[0].mxu0
  %v3966 = vadd.f32 0.0, %v3965
  %v3967 = vpop.f32.mrb[0].mxu0
  %v3968 = vadd.f32 0.0, %v3967
  %v3969 = vpop.f32.mrb[0].mxu0
  %v3970 = vadd.f32 0.0, %v3969
  %v3971 = vpop.f32.mrb[0].mxu0
  %v3972 = vadd.f32 0.0, %v3971
  %3973 = vmatprep.mubr.bf16.mxu0 %v2589
  %3974 = vmatmul.mubr.bf16.gmra.mrb[0].mxu0 %v1813
  %v3975 = vpop.f32.mrb[0].mxu0
  %v3976 = vadd.f32 0.0, %v3975
  %v3977 = vpop.f32.mrb[0].mxu0
  %v3978 = vadd.f32 0.0, %v3977
  %v3979 = vpop.f32.mrb[0].mxu0
  %v3980 = vadd.f32 0.0, %v3979
  %v3981 = vpop.f32.mrb[0].mxu0
  %v3982 = vadd.f32 0.0, %v3981
  %3983 = vmatprep.mubr.bf16.mxu0 %v2592
  %3984 = vmatmul.mubr.bf16.gmra.mrb[0].mxu0 %v1815
  %v3985 = vpop.f32.mrb[0].mxu0
  %v3986 = vadd.f32 0.0, %v3985
  %v3987 = vpop.f32.mrb[0].mxu0
  %v3988 = vadd.f32 0.0, %v3987
  %v3989 = vpop.f32.mrb[0].mxu0
  %v3990 = vadd.f32 0.0, %v3989
  %v3991 = vpop.f32.mrb[0].mxu0
  %v3992 = vadd.f32 0.0, %v3991
  %3993 = vmatprep.mubr.bf16.mxu0 %v2595
  %3994 = vmatmul.mubr.bf16.gmra.mrb[0].mxu0 %v1817
  %v3995 = vpop.f32.mrb[0].mxu0
  %v3996 = vadd.f32 0.0, %v3995
  %v3997 = vpop.f32.mrb[0].mxu0
  %v3998 = vadd.f32 0.0, %v3997
  %v3999 = vpop.f32.mrb[0].mxu0
  %v4000 = vadd.f32 0.0, %v3999
  %v4001 = vpop.f32.mrb[0].mxu0
  %v4002 = vadd.f32 0.0, %v4001
  %4003 = vmatprep.mubr.bf16.mxu0 %v2598
  %4004 = vmatmul.mubr.bf16.gmra.mrb[0].mxu0 %v1819
  %v4005 = vpop.f32.mrb[0].mxu0
  %v4006 = vadd.f32 0.0, %v4005
  %v4007 = vpop.f32.mrb[0].mxu0
  %v4008 = vadd.f32 0.0, %v4007
  %v4009 = vpop.f32.mrb[0].mxu0
  %v4010 = vadd.f32 0.0, %v4009
  %v4011 = vpop.f32.mrb[0].mxu0
  %v4012 = vadd.f32 0.0, %v4011
  %4013 = vmatprep.mubr.bf16.mxu0 %v2601
  %4014 = vmatmul.mubr.bf16.gmra.mrb[0].mxu0 %v1821
  %v4015 = vpop.f32.mrb[0].mxu0
  %v4016 = vadd.f32 0.0, %v4015
  %v4017 = vpop.f32.mrb[0].mxu0
  %v4018 = vadd.f32 0.0, %v4017
  %v4019 = vpop.f32.mrb[0].mxu0
  %v4020 = vadd.f32 0.0, %v4019
  %v4021 = vpop.f32.mrb[0].mxu0
  %v4022 = vadd.f32 0.0, %v4021
  %4023 = vmatprep.mubr.bf16.mxu0 %v2604
  %4024 = vmatmul.mubr.bf16.gmra.mrb[0].mxu0 %v1823
  %v4025 = vpop.f32.mrb[0].mxu0
  %v4026 = vadd.f32 0.0, %v4025
  %v4027 = vpop.f32.mrb[0].mxu0
  %v4028 = vadd.f32 0.0, %v4027
  %v4029 = vpop.f32.mrb[0].mxu0
  %v4030 = vadd.f32 0.0, %v4029
  %v4031 = vpop.f32.mrb[0].mxu0
  %v4032 = vadd.f32 0.0, %v4031
  %4033 = vmatprep.mubr.bf16.mxu0 %v2607
  %4034 = vmatmul.mubr.bf16.gmra.mrb[0].mxu0 %v1825
  %v4035 = vpop.f32.mrb[0].mxu0
  %v4036 = vadd.f32 0.0, %v4035
  %v4037 = vpop.f32.mrb[0].mxu0
  %v4038 = vadd.f32 0.0, %v4037
  %v4039 = vpop.f32.mrb[0].mxu0
  %v4040 = vadd.f32 0.0, %v4039
  %v4041 = vpop.f32.mrb[0].mxu0
  %v4042 = vadd.f32 0.0, %v4041
  %4043 = vmatprep.mubr.bf16.mxu0 %v2610
  %4044 = vmatmul.mubr.bf16.gmra.mrb[0].mxu0 %v1827
  %v4045 = vpop.f32.mrb[0].mxu0
  %v4046 = vadd.f32 0.0, %v4045
  %v4047 = vpop.f32.mrb[0].mxu0
  %v4048 = vadd.f32 0.0, %v4047
  %v4049 = vpop.f32.mrb[0].mxu0
  %v4050 = vadd.f32 0.0, %v4049
  %v4051 = vpop.f32.mrb[0].mxu0
  %v4052 = vadd.f32 0.0, %v4051
  %4053 = vmatprep.mubr.bf16.mxu0 %v2613
  %4054 = vmatmul.mubr.bf16.gmra.mrb[0].mxu0 %v1829
  %v4055 = vpop.f32.mrb[0].mxu0
  %v4056 = vadd.f32 0.0, %v4055
  %v4057 = vpop.f32.mrb[0].mxu0
  %v4058 = vadd.f32 0.0, %v4057
  %v4059 = vpop.f32.mrb[0].mxu0
  %v4060 = vadd.f32 0.0, %v4059
  %v4061 = vpop.f32.mrb[0].mxu0
  %v4062 = vadd.f32 0.0, %v4061
  %4063 = vmatprep.mubr.bf16.mxu0 %v2616
  %4064 = vmatmul.mubr.bf16.gmra.mrb[0].mxu0 %v1831
  %v4065 = vpop.f32.mrb[0].mxu0
  %v4066 = vadd.f32 0.0, %v4065
  %v4067 = vpop.f32.mrb[0].mxu0
  %v4068 = vadd.f32 0.0, %v4067
  %v4069 = vpop.f32.mrb[0].mxu0
  %v4070 = vadd.f32 0.0, %v4069
  %v4071 = vpop.f32.mrb[0].mxu0
  %v4072 = vadd.f32 0.0, %v4071
  %4073 = vmatprep.mubr.bf16.mxu0 %v2619
  %4074 = vmatmul.mubr.bf16.gmra.mrb[0].mxu0 %v1833
  %v4075 = vpop.f32.mrb[0].mxu0
  %v4076 = vadd.f32 0.0, %v4075
  %v4077 = vpop.f32.mrb[0].mxu0
  %v4078 = vadd.f32 0.0, %v4077
  %v4079 = vpop.f32.mrb[0].mxu0
  %v4080 = vadd.f32 0.0, %v4079
  %v4081 = vpop.f32.mrb[0].mxu0
  %v4082 = vadd.f32 0.0, %v4081
  %4083 = vmatprep.mubr.bf16.mxu0 %v2622
  %4084 = vmatmul.mubr.bf16.gmra.mrb[0].mxu0 %v1835
  %v4085 = vpop.f32.mrb[0].mxu0
  %v4086 = vadd.f32 0.0, %v4085
  %v4087 = vpop.f32.mrb[0].mxu0
  %v4088 = vadd.f32 0.0, %v4087
  %v4089 = vpop.f32.mrb[0].mxu0
  %v4090 = vadd.f32 0.0, %v4089
  %v4091 = vpop.f32.mrb[0].mxu0
  %v4092 = vadd.f32 0.0, %v4091
  %4093 = vmatprep.mubr.bf16.mxu0 %v2625
  %4094 = vmatmul.mubr.bf16.gmra.mrb[0].mxu0 %v1837
  %v4095 = vpop.f32.mrb[0].mxu0
  %v4096 = vadd.f32 0.0, %v4095
  %v4097 = vpop.f32.mrb[0].mxu0
  %v4098 = vadd.f32 0.0, %v4097
  %v4099 = vpop.f32.mrb[0].mxu0
  %v4100 = vadd.f32 0.0, %v4099
  %v4101 = vpop.f32.mrb[0].mxu0
  %v4102 = vadd.f32 0.0, %v4101
  %4103 = vmatprep.mubr.bf16.mxu0 %v2628
  %4104 = vmatmul.mubr.bf16.gmra.mrb[0].mxu0 %v1839
  %v4105 = vpop.f32.mrb[0].mxu0
  %v4106 = vadd.f32 0.0, %v4105
  %v4107 = vpop.f32.mrb[0].mxu0
  %v4108 = vadd.f32 0.0, %v4107
  %v4109 = vpop.f32.mrb[0].mxu0
  %v4110 = vadd.f32 0.0, %v4109
  %v4111 = vpop.f32.mrb[0].mxu0
  %v4112 = vadd.f32 0.0, %v4111
  %4113 = vmatprep.mubr.bf16.mxu0 %v2631
  %4114 = vmatmul.mubr.bf16.gmra.mrb[0].mxu0 %v1841
  %v4115 = vpop.f32.mrb[0].mxu0
  %v4116 = vadd.f32 0.0, %v4115
  %v4117 = vpop.f32.mrb[0].mxu0
  %v4118 = vadd.f32 0.0, %v4117
  %v4119 = vpop.f32.mrb[0].mxu0
  %v4120 = vadd.f32 0.0, %v4119
  %v4121 = vpop.f32.mrb[0].mxu0
  %v4122 = vadd.f32 0.0, %v4121
  %4123 = vmatprep.mubr.bf16.mxu0 %v2634
  %4124 = vmatmul.mubr.bf16.gmra.mrb[0].mxu0 %v1843
  %v4125 = vpop.f32.mrb[0].mxu0
  %v4126 = vadd.f32 0.0, %v4125
  %v4127 = vpop.f32.mrb[0].mxu0
  %v4128 = vadd.f32 0.0, %v4127
  %v4129 = vpop.f32.mrb[0].mxu0
  %v4130 = vadd.f32 0.0, %v4129
  %v4131 = vpop.f32.mrb[0].mxu0
  %v4132 = vadd.f32 0.0, %v4131
  %4133 = vmatprep.mubr.bf16.mxu0 %v2637
  %4134 = vmatmul.mubr.bf16.gmra.mrb[0].mxu0 %v1845
  %v4135 = vpop.f32.mrb[0].mxu0
  %v4136 = vadd.f32 0.0, %v4135
  %v4137 = vpop.f32.mrb[0].mxu0
  %v4138 = vadd.f32 0.0, %v4137
  %v4139 = vpop.f32.mrb[0].mxu0
  %v4140 = vadd.f32 0.0, %v4139
  %v4141 = vpop.f32.mrb[0].mxu0
  %v4142 = vadd.f32 0.0, %v4141
  %4143 = vmatprep.mubr.bf16.mxu0 %v2640
  %4144 = vmatmul.mubr.bf16.gmra.mrb[0].mxu0 %v1847
  %v4145 = vpop.f32.mrb[0].mxu0
  %v4146 = vadd.f32 0.0, %v4145
  %v4147 = vpop.f32.mrb[0].mxu0
  %v4148 = vadd.f32 0.0, %v4147
  %v4149 = vpop.f32.mrb[0].mxu0
  %v4150 = vadd.f32 0.0, %v4149
  %v4151 = vpop.f32.mrb[0].mxu0
  %v4152 = vadd.f32 0.0, %v4151
  %4153 = vmatprep.mubr.bf16.mxu0 %v2643
  %4154 = vmatmul.mubr.bf16.gmra.mrb[0].mxu0 %v1849
  %v4155 = vpop.f32.mrb[0].mxu0
  %v4156 = vadd.f32 0.0, %v4155
  %v4157 = vpop.f32.mrb[0].mxu0
  %v4158 = vadd.f32 0.0, %v4157
  %v4159 = vpop.f32.mrb[0].mxu0
  %v4160 = vadd.f32 0.0, %v4159
  %v4161 = vpop.f32.mrb[0].mxu0
  %v4162 = vadd.f32 0.0, %v4161
  %4163 = vmatprep.mubr.bf16.mxu0 %v2646
  %4164 = vmatmul.mubr.bf16.gmra.mrb[0].mxu0 %v1851
  %v4165 = vpop.f32.mrb[0].mxu0
  %v4166 = vadd.f32 0.0, %v4165
  %v4167 = vpop.f32.mrb[0].mxu0
  %v4168 = vadd.f32 0.0, %v4167
  %v4169 = vpop.f32.mrb[0].mxu0
  %v4170 = vadd.f32 0.0, %v4169
  %v4171 = vpop.f32.mrb[0].mxu0
  %v4172 = vadd.f32 0.0, %v4171
  %4173 = vmatprep.mubr.bf16.mxu0 %v2649
  %4174 = vmatmul.mubr.bf16.gmra.mrb[0].mxu0 %v1853
  %v4175 = vpop.f32.mrb[0].mxu0
  %v4176 = vadd.f32 0.0, %v4175
  %v4177 = vpop.f32.mrb[0].mxu0
  %v4178 = vadd.f32 0.0, %v4177
  %v4179 = vpop.f32.mrb[0].mxu0
  %v4180 = vadd.f32 0.0, %v4179
  %v4181 = vpop.f32.mrb[0].mxu0
  %v4182 = vadd.f32 0.0, %v4181
  %4183 = vmatprep.mubr.bf16.mxu0 %v2652
  %4184 = vmatmul.mubr.bf16.gmra.mrb[0].mxu0 %v1855
  %v4185 = vpop.f32.mrb[0].mxu0
  %v4186 = vadd.f32 0.0, %v4185
  %v4187 = vpop.f32.mrb[0].mxu0
  %v4188 = vadd.f32 0.0, %v4187
  %v4189 = vpop.f32.mrb[0].mxu0
  %v4190 = vadd.f32 0.0, %v4189
  %v4191 = vpop.f32.mrb[0].mxu0
  %v4192 = vadd.f32 0.0, %v4191
  %4193 = vmatprep.mubr.bf16.mxu0 %v2655
  %4194 = vmatmul.mubr.bf16.gmra.mrb[0].mxu0 %v1857
  %v4195 = vpop.f32.mrb[0].mxu0
  %v4196 = vadd.f32 0.0, %v4195
  %v4197 = vpop.f32.mrb[0].mxu0
  %v4198 = vadd.f32 0.0, %v4197
  %v4199 = vpop.f32.mrb[0].mxu0
  %v4200 = vadd.f32 0.0, %v4199
  %v4201 = vpop.f32.mrb[0].mxu0
  %v4202 = vadd.f32 0.0, %v4201
  %4203 = vmatprep.mubr.bf16.mxu0 %v2658
  %4204 = vmatmul.mubr.bf16.gmra.mrb[0].mxu0 %v1859
  %v4205 = vpop.f32.mrb[0].mxu0
  %v4206 = vadd.f32 0.0, %v4205
  %v4207 = vpop.f32.mrb[0].mxu0
  %v4208 = vadd.f32 0.0, %v4207
  %v4209 = vpop.f32.mrb[0].mxu0
  %v4210 = vadd.f32 0.0, %v4209
  %v4211 = vpop.f32.mrb[0].mxu0
  %v4212 = vadd.f32 0.0, %v4211
  %4213 = vmatprep.mubr.bf16.mxu0 %v2661
  %4214 = vmatmul.mubr.bf16.gmra.mrb[0].mxu0 %v1861
  %v4215 = vpop.f32.mrb[0].mxu0
  %v4216 = vadd.f32 0.0, %v4215
  %v4217 = vpop.f32.mrb[0].mxu0
  %v4218 = vadd.f32 0.0, %v4217
  %v4219 = vpop.f32.mrb[0].mxu0
  %v4220 = vadd.f32 0.0, %v4219
  %v4221 = vpop.f32.mrb[0].mxu0
  %v4222 = vadd.f32 0.0, %v4221
  %4223 = vmatprep.mubr.bf16.mxu0 %v2664
  %4224 = vmatmul.mubr.bf16.gmra.mrb[0].mxu0 %v1863
  %v4225 = vpop.f32.mrb[0].mxu0
  %v4226 = vadd.f32 0.0, %v4225
  %v4227 = vpop.f32.mrb[0].mxu0
  %v4228 = vadd.f32 0.0, %v4227
  %v4229 = vpop.f32.mrb[0].mxu0
  %v4230 = vadd.f32 0.0, %v4229
  %v4231 = vpop.f32.mrb[0].mxu0
  %v4232 = vadd.f32 0.0, %v4231
  %4233 = vmatprep.mubr.bf16.mxu0 %v2667
  %4234 = vmatmul.mubr.bf16.gmra.mrb[0].mxu0 %v1865
  %v4235 = vpop.f32.mrb[0].mxu0
  %v4236 = vadd.f32 0.0, %v4235
  %v4237 = vpop.f32.mrb[0].mxu0
  %v4238 = vadd.f32 0.0, %v4237
  %v4239 = vpop.f32.mrb[0].mxu0
  %v4240 = vadd.f32 0.0, %v4239
  %v4241 = vpop.f32.mrb[0].mxu0
  %v4242 = vadd.f32 0.0, %v4241
  %4243 = vmatprep.mubr.bf16.mxu0 %v2670
  %4244 = vmatmul.mubr.bf16.gmra.mrb[0].mxu0 %v1867
  %v4245 = vpop.f32.mrb[0].mxu0
  %v4246 = vadd.f32 0.0, %v4245
  %v4247 = vpop.f32.mrb[0].mxu0
  %v4248 = vadd.f32 0.0, %v4247
  %v4249 = vpop.f32.mrb[0].mxu0
  %v4250 = vadd.f32 0.0, %v4249
  %v4251 = vpop.f32.mrb[0].mxu0
  %v4252 = vadd.f32 0.0, %v4251
  %4253 = vmatprep.mubr.bf16.mxu0 %v2673
  %4254 = vmatmul.mubr.bf16.gmra.mrb[0].mxu0 %v1869
  %v4255 = vpop.f32.mrb[0].mxu0
  %v4256 = vadd.f32 0.0, %v4255
  %v4257 = vpop.f32.mrb[0].mxu0
  %v4258 = vadd.f32 0.0, %v4257
  %v4259 = vpop.f32.mrb[0].mxu0
  %v4260 = vadd.f32 0.0, %v4259
  %v4261 = vpop.f32.mrb[0].mxu0
  %v4262 = vadd.f32 0.0, %v4261
  %4263 = vmatprep.mubr.bf16.mxu0 %v2676
  %4264 = vmatmul.mubr.bf16.gmra.mrb[0].mxu0 %v1871
  %v4265 = vpop.f32.mrb[0].mxu0
  %v4266 = vadd.f32 0.0, %v4265
  %v4267 = vpop.f32.mrb[0].mxu0
  %v4268 = vadd.f32 0.0, %v4267
  %v4269 = vpop.f32.mrb[0].mxu0
  %v4270 = vadd.f32 0.0, %v4269
  %v4271 = vpop.f32.mrb[0].mxu0
  %v4272 = vadd.f32 0.0, %v4271
  %4273 = vmatprep.mubr.bf16.mxu0 %v2679
  %4274 = vmatmul.mubr.bf16.gmra.mrb[0].mxu0 %v1873
  %v4275 = vpop.f32.mrb[0].mxu0
  %v4276 = vadd.f32 0.0, %v4275
  %v4277 = vpop.f32.mrb[0].mxu0
  %v4278 = vadd.f32 0.0, %v4277
  %v4279 = vpop.f32.mrb[0].mxu0
  %v4280 = vadd.f32 0.0, %v4279
  %v4281 = vpop.f32.mrb[0].mxu0
  %v4282 = vadd.f32 0.0, %v4281
  %4283 = vmatprep.mubr.bf16.mxu0 %v2682
  %4284 = vmatmul.mubr.bf16.gmra.mrb[0].mxu0 %v1875
  %v4285 = vpop.f32.mrb[0].mxu0
  %v4286 = vadd.f32 0.0, %v4285
  %v4287 = vpop.f32.mrb[0].mxu0
  %v4288 = vadd.f32 0.0, %v4287
  %v4289 = vpop.f32.mrb[0].mxu0
  %v4290 = vadd.f32 0.0, %v4289
  %v4291 = vpop.f32.mrb[0].mxu0
  %v4292 = vadd.f32 0.0, %v4291
  %4293 = vmatprep.mubr.bf16.mxu0 %v2685
  %4294 = vmatmul.mubr.bf16.gmra.mrb[0].mxu0 %v1877
  %v4295 = vpop.f32.mrb[0].mxu0
  %v4296 = vadd.f32 0.0, %v4295
  %v4297 = vpop.f32.mrb[0].mxu0
  %v4298 = vadd.f32 0.0, %v4297
  %v4299 = vpop.f32.mrb[0].mxu0
  %v4300 = vadd.f32 0.0, %v4299
  %v4301 = vpop.f32.mrb[0].mxu0
  %v4302 = vadd.f32 0.0, %v4301
  %4303 = vmatprep.mubr.bf16.mxu0 %v2688
  %4304 = vmatmul.mubr.bf16.gmra.mrb[0].mxu0 %v1879
  %v4305 = vpop.f32.mrb[0].mxu0
  %v4306 = vadd.f32 0.0, %v4305
  %v4307 = vpop.f32.mrb[0].mxu0
  %v4308 = vadd.f32 0.0, %v4307
  %v4309 = vpop.f32.mrb[0].mxu0
  %v4310 = vadd.f32 0.0, %v4309
  %v4311 = vpop.f32.mrb[0].mxu0
  %v4312 = vadd.f32 0.0, %v4311
  %4313 = vmatprep.mubr.bf16.mxu0 %v2691
  %4314 = vmatmul.mubr.bf16.gmra.mrb[0].mxu0 %v1881
  %v4315 = vpop.f32.mrb[0].mxu0
  %v4316 = vadd.f32 0.0, %v4315
  %v4317 = vpop.f32.mrb[0].mxu0
  %v4318 = vadd.f32 0.0, %v4317
  %v4319 = vpop.f32.mrb[0].mxu0
  %v4320 = vadd.f32 0.0, %v4319
  %v4321 = vpop.f32.mrb[0].mxu0
  %v4322 = vadd.f32 0.0, %v4321
  %4323 = vmatprep.mubr.bf16.mxu0 %v2694
  %4324 = vmatmul.mubr.bf16.gmra.mrb[0].mxu0 %v1883
  %v4325 = vpop.f32.mrb[0].mxu0
  %v4326 = vadd.f32 0.0, %v4325
  %v4327 = vpop.f32.mrb[0].mxu0
  %v4328 = vadd.f32 0.0, %v4327
  %v4329 = vpop.f32.mrb[0].mxu0
  %v4330 = vadd.f32 0.0, %v4329
  %v4331 = vpop.f32.mrb[0].mxu0
  %v4332 = vadd.f32 0.0, %v4331
  %4333 = vmatprep.mubr.bf16.mxu0 %v2697
  %4334 = vmatmul.mubr.bf16.gmra.mrb[0].mxu0 %v1885
  %v4335 = vpop.f32.mrb[0].mxu0
  %v4336 = vadd.f32 0.0, %v4335
  %v4337 = vpop.f32.mrb[0].mxu0
  %v4338 = vadd.f32 0.0, %v4337
  %v4339 = vpop.f32.mrb[0].mxu0
  %v4340 = vadd.f32 0.0, %v4339
  %v4341 = vpop.f32.mrb[0].mxu0
  %v4342 = vadd.f32 0.0, %v4341
  %4343 = vmatprep.mubr.bf16.mxu0 %v2700
  %4344 = vmatmul.mubr.bf16.gmra.mrb[0].mxu0 %v1887
  %v4345 = vpop.f32.mrb[0].mxu0
  %v4346 = vadd.f32 0.0, %v4345
  %v4347 = vpop.f32.mrb[0].mxu0
  %v4348 = vadd.f32 0.0, %v4347
  %v4349 = vpop.f32.mrb[0].mxu0
  %v4350 = vadd.f32 0.0, %v4349
  %v4351 = vpop.f32.mrb[0].mxu0
  %v4352 = vadd.f32 0.0, %v4351
  %4353 = vmatprep.mubr.bf16.mxu0 %v2703
  %4354 = vmatmul.mubr.bf16.gmra.mrb[0].mxu0 %v1889
  %v4355 = vpop.f32.mrb[0].mxu0
  %v4356 = vadd.f32 0.0, %v4355
  %v4357 = vpop.f32.mrb[0].mxu0
  %v4358 = vadd.f32 0.0, %v4357
  %v4359 = vpop.f32.mrb[0].mxu0
  %v4360 = vadd.f32 0.0, %v4359
  %v4361 = vpop.f32.mrb[0].mxu0
  %v4362 = vadd.f32 0.0, %v4361
  %4363 = vmatprep.mubr.bf16.mxu0 %v2706
  %4364 = vmatmul.mubr.bf16.gmra.mrb[0].mxu0 %v1891
  %v4365 = vpop.f32.mrb[0].mxu0
  %v4366 = vadd.f32 0.0, %v4365
  %v4367 = vpop.f32.mrb[0].mxu0
  %v4368 = vadd.f32 0.0, %v4367
  %v4369 = vpop.f32.mrb[0].mxu0
  %v4370 = vadd.f32 0.0, %v4369
  %v4371 = vpop.f32.mrb[0].mxu0
  %v4372 = vadd.f32 0.0, %v4371
  %4373 = vmatprep.mubr.bf16.mxu0 %v2709
  %4374 = vmatmul.mubr.bf16.gmra.mrb[0].mxu0 %v1893
  %v4375 = vpop.f32.mrb[0].mxu0
  %v4376 = vadd.f32 0.0, %v4375
  %v4377 = vpop.f32.mrb[0].mxu0
  %v4378 = vadd.f32 0.0, %v4377
  %v4379 = vpop.f32.mrb[0].mxu0
  %v4380 = vadd.f32 0.0, %v4379
  %v4381 = vpop.f32.mrb[0].mxu0
  %v4382 = vadd.f32 0.0, %v4381
  %4383 = vmatprep.mubr.bf16.mxu0 %v2712
  %4384 = vmatmul.mubr.bf16.gmra.mrb[0].mxu0 %v1895
  %v4385 = vpop.f32.mrb[0].mxu0
  %v4386 = vadd.f32 0.0, %v4385
  %v4387 = vpop.f32.mrb[0].mxu0
  %v4388 = vadd.f32 0.0, %v4387
  %v4389 = vpop.f32.mrb[0].mxu0
  %v4390 = vadd.f32 0.0, %v4389
  %v4391 = vpop.f32.mrb[0].mxu0
  %v4392 = vadd.f32 0.0, %v4391
  %4393 = vmatprep.mubr.bf16.mxu0 %v2715
  %4394 = vmatmul.mubr.bf16.gmra.mrb[0].mxu0 %v1897
  %v4395 = vpop.f32.mrb[0].mxu0
  %v4396 = vadd.f32 0.0, %v4395
  %v4397 = vpop.f32.mrb[0].mxu0
  %v4398 = vadd.f32 0.0, %v4397
  %v4399 = vpop.f32.mrb[0].mxu0
  %v4400 = vadd.f32 0.0, %v4399
  %v4401 = vpop.f32.mrb[0].mxu0
  %v4402 = vadd.f32 0.0, %v4401
  %4403 = vmatprep.mubr.bf16.mxu0 %v2718
  %4404 = vmatmul.mubr.bf16.gmra.mrb[0].mxu0 %v1899
  %v4405 = vpop.f32.mrb[0].mxu0
  %v4406 = vadd.f32 0.0, %v4405
  %v4407 = vpop.f32.mrb[0].mxu0
  %v4408 = vadd.f32 0.0, %v4407
  %v4409 = vpop.f32.mrb[0].mxu0
  %v4410 = vadd.f32 0.0, %v4409
  %v4411 = vpop.f32.mrb[0].mxu0
  %v4412 = vadd.f32 0.0, %v4411
  %4413 = vmatprep.mubr.bf16.mxu0 %v2721
  %4414 = vmatmul.mubr.bf16.gmra.mrb[0].mxu0 %v1901
  %v4415 = vpop.f32.mrb[0].mxu0
  %v4416 = vadd.f32 0.0, %v4415
  %v4417 = vpop.f32.mrb[0].mxu0
  %v4418 = vadd.f32 0.0, %v4417
  %v4419 = vpop.f32.mrb[0].mxu0
  %v4420 = vadd.f32 0.0, %v4419
  %v4421 = vpop.f32.mrb[0].mxu0
  %v4422 = vadd.f32 0.0, %v4421
  %4423 = vmatprep.mubr.bf16.mxu0 %v2724
  %4424 = vmatmul.mubr.bf16.gmra.mrb[0].mxu0 %v1903
  %v4425 = vpop.f32.mrb[0].mxu0
  %v4426 = vadd.f32 0.0, %v4425
  %v4427 = vpop.f32.mrb[0].mxu0
  %v4428 = vadd.f32 0.0, %v4427
  %v4429 = vpop.f32.mrb[0].mxu0
  %v4430 = vadd.f32 0.0, %v4429
  %v4431 = vpop.f32.mrb[0].mxu0
  %v4432 = vadd.f32 0.0, %v4431
  %4433 = vmatprep.mubr.bf16.mxu0 %v2727
  %4434 = vmatmul.mubr.bf16.gmra.mrb[0].mxu0 %v1905
  %v4435 = vpop.f32.mrb[0].mxu0
  %v4436 = vadd.f32 0.0, %v4435
  %v4437 = vpop.f32.mrb[0].mxu0
  %v4438 = vadd.f32 0.0, %v4437
  %v4439 = vpop.f32.mrb[0].mxu0
  %v4440 = vadd.f32 0.0, %v4439
  %v4441 = vpop.f32.mrb[0].mxu0
  %v4442 = vadd.f32 0.0, %v4441
  %4443 = vmatprep.mubr.bf16.mxu0 %v2730
  %4444 = vmatmul.mubr.bf16.gmra.mrb[0].mxu0 %v1907
  %v4445 = vpop.f32.mrb[0].mxu0
  %v4446 = vadd.f32 0.0, %v4445
  %v4447 = vpop.f32.mrb[0].mxu0
  %v4448 = vadd.f32 0.0, %v4447
  %v4449 = vpop.f32.mrb[0].mxu0
  %v4450 = vadd.f32 0.0, %v4449
  %v4451 = vpop.f32.mrb[0].mxu0
  %v4452 = vadd.f32 0.0, %v4451
  %4453 = vmatprep.mubr.bf16.mxu0 %v2733
  %4454 = vmatmul.mubr.bf16.gmra.mrb[0].mxu0 %v1909
  %v4455 = vpop.f32.mrb[0].mxu0
  %v4456 = vadd.f32 0.0, %v4455
  %v4457 = vpop.f32.mrb[0].mxu0
  %v4458 = vadd.f32 0.0, %v4457
  %v4459 = vpop.f32.mrb[0].mxu0
  %v4460 = vadd.f32 0.0, %v4459
  %v4461 = vpop.f32.mrb[0].mxu0
  %v4462 = vadd.f32 0.0, %v4461
  %4463 = vmatprep.mubr.bf16.mxu0 %v2736
  %4464 = vmatmul.mubr.bf16.gmra.mrb[0].mxu0 %v1911
  %v4465 = vpop.f32.mrb[0].mxu0
  %v4466 = vadd.f32 0.0, %v4465
  %v4467 = vpop.f32.mrb[0].mxu0
  %v4468 = vadd.f32 0.0, %v4467
  %v4469 = vpop.f32.mrb[0].mxu0
  %v4470 = vadd.f32 0.0, %v4469
  %v4471 = vpop.f32.mrb[0].mxu0
  %v4472 = vadd.f32 0.0, %v4471
  %4473 = vmatprep.mubr.bf16.mxu0 %v2739
  %4474 = vmatmul.mubr.bf16.gmra.mrb[0].mxu0 %v1913
  %v4475 = vpop.f32.mrb[0].mxu0
  %v4476 = vadd.f32 0.0, %v4475
  %v4477 = vpop.f32.mrb[0].mxu0
  %v4478 = vadd.f32 0.0, %v4477
  %v4479 = vpop.f32.mrb[0].mxu0
  %v4480 = vadd.f32 0.0, %v4479
  %v4481 = vpop.f32.mrb[0].mxu0
  %v4482 = vadd.f32 0.0, %v4481
  %4483 = vmatprep.mubr.bf16.mxu0 %v2742
  %4484 = vmatmul.mubr.bf16.gmra.mrb[0].mxu0 %v1915
  %v4485 = vpop.f32.mrb[0].mxu0
  %v4486 = vadd.f32 0.0, %v4485
  %v4487 = vpop.f32.mrb[0].mxu0
  %v4488 = vadd.f32 0.0, %v4487
  %v4489 = vpop.f32.mrb[0].mxu0
  %v4490 = vadd.f32 0.0, %v4489
  %v4491 = vpop.f32.mrb[0].mxu0
  %v4492 = vadd.f32 0.0, %v4491
  %4493 = vmatprep.mubr.bf16.mxu0 %v2745
  %4494 = vmatmul.mubr.bf16.gmra.mrb[0].mxu0 %v1917
  %v4495 = vpop.f32.mrb[0].mxu0
  %v4496 = vadd.f32 0.0, %v4495
  %v4497 = vpop.f32.mrb[0].mxu0
  %v4498 = vadd.f32 0.0, %v4497
  %v4499 = vpop.f32.mrb[0].mxu0
  %v4500 = vadd.f32 0.0, %v4499
  %v4501 = vpop.f32.mrb[0].mxu0
  %v4502 = vadd.f32 0.0, %v4501
  %4503 = vmatprep.mubr.bf16.mxu0 %v2748
  %4504 = vmatmul.mubr.bf16.gmra.mrb[0].mxu0 %v1919
  %v4505 = vpop.f32.mrb[0].mxu0
  %v4506 = vadd.f32 0.0, %v4505
  %v4507 = vpop.f32.mrb[0].mxu0
  %v4508 = vadd.f32 0.0, %v4507
  %v4509 = vpop.f32.mrb[0].mxu0
  %v4510 = vadd.f32 0.0, %v4509
  %v4511 = vpop.f32.mrb[0].mxu0
  %v4512 = vadd.f32 0.0, %v4511
  %4513 = vmatprep.mubr.bf16.mxu0 %v2751
  %4514 = vmatmul.mubr.bf16.gmra.mrb[0].mxu0 %v1921
  %v4515 = vpop.f32.mrb[0].mxu0
  %v4516 = vadd.f32 0.0, %v4515
  %v4517 = vpop.f32.mrb[0].mxu0
  %v4518 = vadd.f32 0.0, %v4517
  %v4519 = vpop.f32.mrb[0].mxu0
  %v4520 = vadd.f32 0.0, %v4519
  %v4521 = vpop.f32.mrb[0].mxu0
  %v4522 = vadd.f32 0.0, %v4521
  %4523 = vmatprep.mubr.bf16.mxu0 %v2754
  %4524 = vmatmul.mubr.bf16.gmra.mrb[0].mxu0 %v1923
  %v4525 = vpop.f32.mrb[0].mxu0
  %v4526 = vadd.f32 0.0, %v4525
  %v4527 = vpop.f32.mrb[0].mxu0
  %v4528 = vadd.f32 0.0, %v4527
  %v4529 = vpop.f32.mrb[0].mxu0
  %v4530 = vadd.f32 0.0, %v4529
  %v4531 = vpop.f32.mrb[0].mxu0
  %v4532 = vadd.f32 0.0, %v4531
  %4533 = vmatprep.mubr.bf16.mxu0 %v2757
  %4534 = vmatmul.mubr.bf16.gmra.mrb[0].mxu0 %v1925
  %v4535 = vpop.f32.mrb[0].mxu0
  %v4536 = vadd.f32 0.0, %v4535
  %v4537 = vpop.f32.mrb[0].mxu0
  %v4538 = vadd.f32 0.0, %v4537
  %v4539 = vpop.f32.mrb[0].mxu0
  %v4540 = vadd.f32 0.0, %v4539
  %v4541 = vpop.f32.mrb[0].mxu0
  %v4542 = vadd.f32 0.0, %v4541
  %4543 = vmatprep.mubr.bf16.mxu0 %v2760
  %4544 = vmatmul.mubr.bf16.gmra.mrb[0].mxu0 %v1927
  %v4545 = vpop.f32.mrb[0].mxu0
  %v4546 = vadd.f32 0.0, %v4545
  %v4547 = vpop.f32.mrb[0].mxu0
  %v4548 = vadd.f32 0.0, %v4547
  %v4549 = vpop.f32.mrb[0].mxu0
  %v4550 = vadd.f32 0.0, %v4549
  %v4551 = vpop.f32.mrb[0].mxu0
  %v4552 = vadd.f32 0.0, %v4551
  %4553 = vmatprep.mubr.bf16.mxu0 %v2763
  %4554 = vmatmul.mubr.bf16.gmra.mrb[0].mxu0 %v1929
  %v4555 = vpop.f32.mrb[0].mxu0
  %v4556 = vadd.f32 0.0, %v4555
  %v4557 = vpop.f32.mrb[0].mxu0
  %v4558 = vadd.f32 0.0, %v4557
  %v4559 = vpop.f32.mrb[0].mxu0
  %v4560 = vadd.f32 0.0, %v4559
  %v4561 = vpop.f32.mrb[0].mxu0
  %v4562 = vadd.f32 0.0, %v4561
  %4563 = vmatprep.mubr.bf16.mxu0 %v2766
  %4564 = vmatmul.mubr.bf16.gmra.mrb[0].mxu0 %v1931
  %v4565 = vpop.f32.mrb[0].mxu0
  %v4566 = vadd.f32 0.0, %v4565
  %v4567 = vpop.f32.mrb[0].mxu0
  %v4568 = vadd.f32 0.0, %v4567
  %v4569 = vpop.f32.mrb[0].mxu0
  %v4570 = vadd.f32 0.0, %v4569
  %v4571 = vpop.f32.mrb[0].mxu0
  %v4572 = vadd.f32 0.0, %v4571
  %4573 = vmatprep.mubr.bf16.mxu0 %v2769
  %4574 = vmatmul.mubr.bf16.gmra.mrb[0].mxu0 %v1933
  %v4575 = vpop.f32.mrb[0].mxu0
  %v4576 = vadd.f32 0.0, %v4575
  %v4577 = vpop.f32.mrb[0].mxu0
  %v4578 = vadd.f32 0.0, %v4577
  %v4579 = vpop.f32.mrb[0].mxu0
  %v4580 = vadd.f32 0.0, %v4579
  %v4581 = vpop.f32.mrb[0].mxu0
  %v4582 = vadd.f32 0.0, %v4581
  %4583 = vmatprep.mubr.bf16.mxu0 %v2772
  %4584 = vmatmul.mubr.bf16.gmra.mrb[0].mxu0 %v1935
  %v4585 = vpop.f32.mrb[0].mxu0
  %v4586 = vadd.f32 0.0, %v4585
  %v4587 = vpop.f32.mrb[0].mxu0
  %v4588 = vadd.f32 0.0, %v4587
  %v4589 = vpop.f32.mrb[0].mxu0
  %v4590 = vadd.f32 0.0, %v4589
  %v4591 = vpop.f32.mrb[0].mxu0
  %v4592 = vadd.f32 0.0, %v4591
  %4593 = vmatprep.mubr.bf16.mxu0 %v2775
  %4594 = vmatmul.mubr.bf16.gmra.mrb[0].mxu0 %v1937
  %v4595 = vpop.f32.mrb[0].mxu0
  %v4596 = vadd.f32 0.0, %v4595
  %v4597 = vpop.f32.mrb[0].mxu0
  %v4598 = vadd.f32 0.0, %v4597
  %v4599 = vpop.f32.mrb[0].mxu0
  %v4600 = vadd.f32 0.0, %v4599
  %v4601 = vpop.f32.mrb[0].mxu0
  %v4602 = vadd.f32 0.0, %v4601
  %4603 = vmatprep.mubr.bf16.mxu0 %v2778
  %4604 = vmatmul.mubr.bf16.gmra.mrb[0].mxu0 %v1939
  %v4605 = vpop.f32.mrb[0].mxu0
  %v4606 = vadd.f32 0.0, %v4605
  %v4607 = vpop.f32.mrb[0].mxu0
  %v4608 = vadd.f32 0.0, %v4607
  %v4609 = vpop.f32.mrb[0].mxu0
  %v4610 = vadd.f32 0.0, %v4609
  %v4611 = vpop.f32.mrb[0].mxu0
  %v4612 = vadd.f32 0.0, %v4611
  %4613 = vmatprep.mubr.bf16.mxu0 %v2781
  %4614 = vmatmul.mubr.bf16.gmra.mrb[0].mxu0 %v1941
  %v4615 = vpop.f32.mrb[0].mxu0
  %v4616 = vadd.f32 0.0, %v4615
  %v4617 = vpop.f32.mrb[0].mxu0
  %v4618 = vadd.f32 0.0, %v4617
  %v4619 = vpop.f32.mrb[0].mxu0
  %v4620 = vadd.f32 0.0, %v4619
  %v4621 = vpop.f32.mrb[0].mxu0
  %v4622 = vadd.f32 0.0, %v4621
  %4623 = vmatprep.mubr.bf16.mxu0 %v2784
  %4624 = vmatmul.mubr.bf16.gmra.mrb[0].mxu0 %v1943
  %v4625 = vpop.f32.mrb[0].mxu0
  %v4626 = vadd.f32 0.0, %v4625
  %v4627 = vpop.f32.mrb[0].mxu0
  %v4628 = vadd.f32 0.0, %v4627
  %v4629 = vpop.f32.mrb[0].mxu0
  %v4630 = vadd.f32 0.0, %v4629
  %v4631 = vpop.f32.mrb[0].mxu0
  %v4632 = vadd.f32 0.0, %v4631
  %4633 = vmatprep.mubr.bf16.mxu0 %v2787
  %4634 = vmatmul.mubr.bf16.gmra.mrb[0].mxu0 %v1945
  %v4635 = vpop.f32.mrb[0].mxu0
  %v4636 = vadd.f32 0.0, %v4635
  %v4637 = vpop.f32.mrb[0].mxu0
  %v4638 = vadd.f32 0.0, %v4637
  %v4639 = vpop.f32.mrb[0].mxu0
  %v4640 = vadd.f32 0.0, %v4639
  %v4641 = vpop.f32.mrb[0].mxu0
  %v4642 = vadd.f32 0.0, %v4641
  %4643 = vmatprep.mubr.bf16.mxu0 %v2790
  %4644 = vmatmul.mubr.bf16.gmra.mrb[0].mxu0 %v1947
  %v4645 = vpop.f32.mrb[0].mxu0
  %v4646 = vadd.f32 0.0, %v4645
  %v4647 = vpop.f32.mrb[0].mxu0
  %v4648 = vadd.f32 0.0, %v4647
  %v4649 = vpop.f32.mrb[0].mxu0
  %v4650 = vadd.f32 0.0, %v4649
  %v4651 = vpop.f32.mrb[0].mxu0
  %v4652 = vadd.f32 0.0, %v4651
  %4653 = vmatprep.mubr.bf16.mxu0 %v2793
  %4654 = vmatmul.mubr.bf16.gmra.mrb[0].mxu0 %v1949
  %v4655 = vpop.f32.mrb[0].mxu0
  %v4656 = vadd.f32 0.0, %v4655
  %v4657 = vpop.f32.mrb[0].mxu0
  %v4658 = vadd.f32 0.0, %v4657
  %v4659 = vpop.f32.mrb[0].mxu0
  %v4660 = vadd.f32 0.0, %v4659
  %v4661 = vpop.f32.mrb[0].mxu0
  %v4662 = vadd.f32 0.0, %v4661
  %4663 = vmatprep.mubr.bf16.mxu0 %v2796
  %4664 = vmatmul.mubr.bf16.gmra.mrb[0].mxu0 %v1951
  %v4665 = vpop.f32.mrb[0].mxu0
  %v4666 = vadd.f32 0.0, %v4665
  %v4667 = vpop.f32.mrb[0].mxu0
  %v4668 = vadd.f32 0.0, %v4667
  %v4669 = vpop.f32.mrb[0].mxu0
  %v4670 = vadd.f32 0.0, %v4669
  %v4671 = vpop.f32.mrb[0].mxu0
  %v4672 = vadd.f32 0.0, %v4671
  %4673 = vmatprep.mubr.bf16.mxu0 %v2799
  %4674 = vmatmul.mubr.bf16.gmra.mrb[0].mxu0 %v1953
  %v4675 = vpop.f32.mrb[0].mxu0
  %v4676 = vadd.f32 0.0, %v4675
  %v4677 = vpop.f32.mrb[0].mxu0
  %v4678 = vadd.f32 0.0, %v4677
  %v4679 = vpop.f32.mrb[0].mxu0
  %v4680 = vadd.f32 0.0, %v4679
  %v4681 = vpop.f32.mrb[0].mxu0
  %v4682 = vadd.f32 0.0, %v4681
  %4683 = vmatprep.mubr.bf16.mxu0 %v2802
  %4684 = vmatmul.mubr.bf16.gmra.mrb[0].mxu0 %v1955
  %v4685 = vpop.f32.mrb[0].mxu0
  %v4686 = vadd.f32 0.0, %v4685
  %v4687 = vpop.f32.mrb[0].mxu0
  %v4688 = vadd.f32 0.0, %v4687
  %v4689 = vpop.f32.mrb[0].mxu0
  %v4690 = vadd.f32 0.0, %v4689
  %v4691 = vpop.f32.mrb[0].mxu0
  %v4692 = vadd.f32 0.0, %v4691
  %4693 = vmatprep.mubr.bf16.mxu0 %v2805
  %4694 = vmatmul.mubr.bf16.gmra.mrb[0].mxu0 %v1957
  %v4695 = vpop.f32.mrb[0].mxu0
  %v4696 = vadd.f32 0.0, %v4695
  %v4697 = vpop.f32.mrb[0].mxu0
  %v4698 = vadd.f32 0.0, %v4697
  %v4699 = vpop.f32.mrb[0].mxu0
  %v4700 = vadd.f32 0.0, %v4699
  %v4701 = vpop.f32.mrb[0].mxu0
  %v4702 = vadd.f32 0.0, %v4701
  %4703 = vmatprep.mubr.bf16.mxu0 %v2808
  %4704 = vmatmul.mubr.bf16.gmra.mrb[0].mxu0 %v1959
  %v4705 = vpop.f32.mrb[0].mxu0
  %v4706 = vadd.f32 0.0, %v4705
  %v4707 = vpop.f32.mrb[0].mxu0
  %v4708 = vadd.f32 0.0, %v4707
  %v4709 = vpop.f32.mrb[0].mxu0
  %v4710 = vadd.f32 0.0, %v4709
  %v4711 = vpop.f32.mrb[0].mxu0
  %v4712 = vadd.f32 0.0, %v4711
  %4713 = vmatprep.mubr.bf16.mxu0 %v2811
  %4714 = vmatmul.mubr.bf16.gmra.mrb[0].mxu0 %v1961
  %v4715 = vpop.f32.mrb[0].mxu0
  %v4716 = vadd.f32 0.0, %v4715
  %v4717 = vpop.f32.mrb[0].mxu0
  %v4718 = vadd.f32 0.0, %v4717
  %v4719 = vpop.f32.mrb[0].mxu0
  %v4720 = vadd.f32 0.0, %v4719
  %v4721 = vpop.f32.mrb[0].mxu0
  %v4722 = vadd.f32 0.0, %v4721
  %4723 = vmatprep.mubr.bf16.mxu0 %v2814
  %4724 = vmatmul.mubr.bf16.gmra.mrb[0].mxu0 %v1963
  %v4725 = vpop.f32.mrb[0].mxu0
  %v4726 = vadd.f32 0.0, %v4725
  %v4727 = vpop.f32.mrb[0].mxu0
  %v4728 = vadd.f32 0.0, %v4727
  %v4729 = vpop.f32.mrb[0].mxu0
  %v4730 = vadd.f32 0.0, %v4729
  %v4731 = vpop.f32.mrb[0].mxu0
  %v4732 = vadd.f32 0.0, %v4731
  %4733 = vmatprep.mubr.bf16.mxu0 %v2817
  %4734 = vmatmul.mubr.bf16.gmra.mrb[0].mxu0 %v1965
  %v4735 = vpop.f32.mrb[0].mxu0
  %v4736 = vadd.f32 0.0, %v4735
  %v4737 = vpop.f32.mrb[0].mxu0
  %v4738 = vadd.f32 0.0, %v4737
  %v4739 = vpop.f32.mrb[0].mxu0
  %v4740 = vadd.f32 0.0, %v4739
  %v4741 = vpop.f32.mrb[0].mxu0
  %v4742 = vadd.f32 0.0, %v4741
  %4743 = vmatprep.mubr.bf16.mxu0 %v2820
  %4744 = vmatmul.mubr.bf16.gmra.mrb[0].mxu0 %v1967
  %v4745 = vpop.f32.mrb[0].mxu0
  %v4746 = vadd.f32 0.0, %v4745
  %v4747 = vpop.f32.mrb[0].mxu0
  %v4748 = vadd.f32 0.0, %v4747
  %v4749 = vpop.f32.mrb[0].mxu0
  %v4750 = vadd.f32 0.0, %v4749
  %v4751 = vpop.f32.mrb[0].mxu0
  %v4752 = vadd.f32 0.0, %v4751
  %4753 = vmatprep.mubr.bf16.mxu0 %v2823
  %4754 = vmatmul.mubr.bf16.gmra.mrb[0].mxu0 %v1969
  %v4755 = vpop.f32.mrb[0].mxu0
  %v4756 = vadd.f32 0.0, %v4755
  %v4757 = vpop.f32.mrb[0].mxu0
  %v4758 = vadd.f32 0.0, %v4757
  %v4759 = vpop.f32.mrb[0].mxu0
  %v4760 = vadd.f32 0.0, %v4759
  %v4761 = vpop.f32.mrb[0].mxu0
  %v4762 = vadd.f32 0.0, %v4761
  %4763 = vmatprep.mubr.bf16.mxu0 %v2826
  %4764 = vmatmul.mubr.bf16.gmra.mrb[0].mxu0 %v1971
  %v4765 = vpop.f32.mrb[0].mxu0
  %v4766 = vadd.f32 0.0, %v4765
  %v4767 = vpop.f32.mrb[0].mxu0
  %v4768 = vadd.f32 0.0, %v4767
  %v4769 = vpop.f32.mrb[0].mxu0
  %v4770 = vadd.f32 0.0, %v4769
  %v4771 = vpop.f32.mrb[0].mxu0
  %v4772 = vadd.f32 0.0, %v4771
  %4773 = vmatprep.mubr.bf16.mxu0 %v2829
  %4774 = vmatmul.mubr.bf16.gmra.mrb[0].mxu0 %v1973
  %v4775 = vpop.f32.mrb[0].mxu0
  %v4776 = vadd.f32 0.0, %v4775
  %v4777 = vpop.f32.mrb[0].mxu0
  %v4778 = vadd.f32 0.0, %v4777
  %v4779 = vpop.f32.mrb[0].mxu0
  %v4780 = vadd.f32 0.0, %v4779
  %v4781 = vpop.f32.mrb[0].mxu0
  %v4782 = vadd.f32 0.0, %v4781
  %4783 = vmatprep.mubr.bf16.mxu0 %v2832
  %4784 = vmatmul.mubr.bf16.gmra.mrb[0].mxu0 %v1975
  %v4785 = vpop.f32.mrb[0].mxu0
  %v4786 = vadd.f32 0.0, %v4785
  %v4787 = vpop.f32.mrb[0].mxu0
  %v4788 = vadd.f32 0.0, %v4787
  %v4789 = vpop.f32.mrb[0].mxu0
  %v4790 = vadd.f32 0.0, %v4789
  %v4791 = vpop.f32.mrb[0].mxu0
  %v4792 = vadd.f32 0.0, %v4791
  %4793 = vdwg.mxu0
  %v4794 = vmax.f32 %v2876, %v3836
  %v4795 = vmax.f32 %v2878, %v3838
  %v4796 = vmax.f32 %v2880, %v3840
  %v4797 = vmax.f32 %v2882, %v3842
  %v4798 = vmax.f32 %v2886, %v3846
  %v4799 = vmax.f32 %v2888, %v3848
  %v4800 = vmax.f32 %v2890, %v3850
  %v4801 = vmax.f32 %v2892, %v3852
  %v4802 = vmax.f32 %v2896, %v3856
  %v4803 = vmax.f32 %v2898, %v3858
  %v4804 = vmax.f32 %v2900, %v3860
  %v4805 = vmax.f32 %v2902, %v3862
  %v4806 = vmax.f32 %v2906, %v3866
  %v4807 = vmax.f32 %v2908, %v3868
  %v4808 = vmax.f32 %v2910, %v3870
  %v4809 = vmax.f32 %v2912, %v3872
  %v4810 = vmax.f32 %v2916, %v3876
  %v4811 = vmax.f32 %v2918, %v3878
  %v4812 = vmax.f32 %v2920, %v3880
  %v4813 = vmax.f32 %v2922, %v3882
  %v4814 = vmax.f32 %v2926, %v3886
  %v4815 = vmax.f32 %v2928, %v3888
  %v4816 = vmax.f32 %v2930, %v3890
  %v4817 = vmax.f32 %v2932, %v3892
  %v4818 = vmax.f32 %v2936, %v3896
  %v4819 = vmax.f32 %v2938, %v3898
  %v4820 = vmax.f32 %v2940, %v3900
  %v4821 = vmax.f32 %v2942, %v3902
  %v4822 = vmax.f32 %v2946, %v3906
  %v4823 = vmax.f32 %v2948, %v3908
  %v4824 = vmax.f32 %v2950, %v3910
  %v4825 = vmax.f32 %v2952, %v3912
  %v4826 = vmax.f32 %v2956, %v3916
  %v4827 = vmax.f32 %v2958, %v3918
  %v4828 = vmax.f32 %v2960, %v3920
  %v4829 = vmax.f32 %v2962, %v3922
  %v4830 = vmax.f32 %v2966, %v3926
  %v4831 = vmax.f32 %v2968, %v3928
  %v4832 = vmax.f32 %v2970, %v3930
  %v4833 = vmax.f32 %v2972, %v3932
  %v4834 = vmax.f32 %v2976, %v3936
  %v4835 = vmax.f32 %v2978, %v3938
  %v4836 = vmax.f32 %v2980, %v3940
  %v4837 = vmax.f32 %v2982, %v3942
  %v4838 = vmax.f32 %v2986, %v3946
  %v4839 = vmax.f32 %v2988, %v3948
  %v4840 = vmax.f32 %v2990, %v3950
  %v4841 = vmax.f32 %v2992, %v3952
  %v4842 = vmax.f32 %v2996, %v3956
  %v4843 = vmax.f32 %v2998, %v3958
  %v4844 = vmax.f32 %v3000, %v3960
  %v4845 = vmax.f32 %v3002, %v3962
  %v4846 = vmax.f32 %v3006, %v3966
  %v4847 = vmax.f32 %v3008, %v3968
  %v4848 = vmax.f32 %v3010, %v3970
  %v4849 = vmax.f32 %v3012, %v3972
  %v4850 = vmax.f32 %v3016, %v3976
  %v4851 = vmax.f32 %v3018, %v3978
  %v4852 = vmax.f32 %v3020, %v3980
  %v4853 = vmax.f32 %v3022, %v3982
  %v4854 = vmax.f32 %v3026, %v3986
  %v4855 = vmax.f32 %v3028, %v3988
  %v4856 = vmax.f32 %v3030, %v3990
  %v4857 = vmax.f32 %v3032, %v3992
  %v4858 = vmax.f32 %v3036, %v3996
  %v4859 = vmax.f32 %v3038, %v3998
  %v4860 = vmax.f32 %v3040, %v4000
  %v4861 = vmax.f32 %v3042, %v4002
  %v4862 = vmax.f32 %v3046, %v4006
  %v4863 = vmax.f32 %v3048, %v4008
  %v4864 = vmax.f32 %v3050, %v4010
  %v4865 = vmax.f32 %v3052, %v4012
  %v4866 = vmax.f32 %v3056, %v4016
  %v4867 = vmax.f32 %v3058, %v4018
  %v4868 = vmax.f32 %v3060, %v4020
  %v4869 = vmax.f32 %v3062, %v4022
  %v4870 = vmax.f32 %v3066, %v4026
  %v4871 = vmax.f32 %v3068, %v4028
  %v4872 = vmax.f32 %v3070, %v4030
  %v4873 = vmax.f32 %v3072, %v4032
  %v4874 = vmax.f32 %v3076, %v4036
  %v4875 = vmax.f32 %v3078, %v4038
  %v4876 = vmax.f32 %v3080, %v4040
  %v4877 = vmax.f32 %v3082, %v4042
  %v4878 = vmax.f32 %v3086, %v4046
  %v4879 = vmax.f32 %v3088, %v4048
  %v4880 = vmax.f32 %v3090, %v4050
  %v4881 = vmax.f32 %v3092, %v4052
  %v4882 = vmax.f32 %v3096, %v4056
  %v4883 = vmax.f32 %v3098, %v4058
  %v4884 = vmax.f32 %v3100, %v4060
  %v4885 = vmax.f32 %v3102, %v4062
  %v4886 = vmax.f32 %v3106, %v4066
  %v4887 = vmax.f32 %v3108, %v4068
  %v4888 = vmax.f32 %v3110, %v4070
  %v4889 = vmax.f32 %v3112, %v4072
  %v4890 = vmax.f32 %v3116, %v4076
  %v4891 = vmax.f32 %v3118, %v4078
  %v4892 = vmax.f32 %v3120, %v4080
  %v4893 = vmax.f32 %v3122, %v4082
  %v4894 = vmax.f32 %v3126, %v4086
  %v4895 = vmax.f32 %v3128, %v4088
  %v4896 = vmax.f32 %v3130, %v4090
  %v4897 = vmax.f32 %v3132, %v4092
  %v4898 = vmax.f32 %v3136, %v4096
  %v4899 = vmax.f32 %v3138, %v4098
  %v4900 = vmax.f32 %v3140, %v4100
  %v4901 = vmax.f32 %v3142, %v4102
  %v4902 = vmax.f32 %v3146, %v4106
  %v4903 = vmax.f32 %v3148, %v4108
  %v4904 = vmax.f32 %v3150, %v4110
  %v4905 = vmax.f32 %v3152, %v4112
  %v4906 = vmax.f32 %v3156, %v4116
  %v4907 = vmax.f32 %v3158, %v4118
  %v4908 = vmax.f32 %v3160, %v4120
  %v4909 = vmax.f32 %v3162, %v4122
  %v4910 = vmax.f32 %v3166, %v4126
  %v4911 = vmax.f32 %v3168, %v4128
  %v4912 = vmax.f32 %v3170, %v4130
  %v4913 = vmax.f32 %v3172, %v4132
  %v4914 = vmax.f32 %v3176, %v4136
  %v4915 = vmax.f32 %v3178, %v4138
  %v4916 = vmax.f32 %v3180, %v4140
  %v4917 = vmax.f32 %v3182, %v4142
  %v4918 = vmax.f32 %v3186, %v4146
  %v4919 = vmax.f32 %v3188, %v4148
  %v4920 = vmax.f32 %v3190, %v4150
  %v4921 = vmax.f32 %v3192, %v4152
  %v4922 = vmax.f32 %v3196, %v4156
  %v4923 = vmax.f32 %v3198, %v4158
  %v4924 = vmax.f32 %v3200, %v4160
  %v4925 = vmax.f32 %v3202, %v4162
  %v4926 = vmax.f32 %v3206, %v4166
  %v4927 = vmax.f32 %v3208, %v4168
  %v4928 = vmax.f32 %v3210, %v4170
  %v4929 = vmax.f32 %v3212, %v4172
  %v4930 = vmax.f32 %v3216, %v4176
  %v4931 = vmax.f32 %v3218, %v4178
  %v4932 = vmax.f32 %v3220, %v4180
  %v4933 = vmax.f32 %v3222, %v4182
  %v4934 = vmax.f32 %v3226, %v4186
  %v4935 = vmax.f32 %v3228, %v4188
  %v4936 = vmax.f32 %v3230, %v4190
  %v4937 = vmax.f32 %v3232, %v4192
  %v4938 = vmax.f32 %v3236, %v4196
  %v4939 = vmax.f32 %v3238, %v4198
  %v4940 = vmax.f32 %v3240, %v4200
  %v4941 = vmax.f32 %v3242, %v4202
  %v4942 = vmax.f32 %v3246, %v4206
  %v4943 = vmax.f32 %v3248, %v4208
  %v4944 = vmax.f32 %v3250, %v4210
  %v4945 = vmax.f32 %v3252, %v4212
  %v4946 = vmax.f32 %v3256, %v4216
  %v4947 = vmax.f32 %v3258, %v4218
  %v4948 = vmax.f32 %v3260, %v4220
  %v4949 = vmax.f32 %v3262, %v4222
  %v4950 = vmax.f32 %v3266, %v4226
  %v4951 = vmax.f32 %v3268, %v4228
  %v4952 = vmax.f32 %v3270, %v4230
  %v4953 = vmax.f32 %v3272, %v4232
  %v4954 = vmax.f32 %v3276, %v4236
  %v4955 = vmax.f32 %v3278, %v4238
  %v4956 = vmax.f32 %v3280, %v4240
  %v4957 = vmax.f32 %v3282, %v4242
  %v4958 = vmax.f32 %v3286, %v4246
  %v4959 = vmax.f32 %v3288, %v4248
  %v4960 = vmax.f32 %v3290, %v4250
  %v4961 = vmax.f32 %v3292, %v4252
  %v4962 = vmax.f32 %v3296, %v4256
  %v4963 = vmax.f32 %v3298, %v4258
  %v4964 = vmax.f32 %v3300, %v4260
  %v4965 = vmax.f32 %v3302, %v4262
  %v4966 = vmax.f32 %v3306, %v4266
  %v4967 = vmax.f32 %v3308, %v4268
  %v4968 = vmax.f32 %v3310, %v4270
  %v4969 = vmax.f32 %v3312, %v4272
  %v4970 = vmax.f32 %v3316, %v4276
  %v4971 = vmax.f32 %v3318, %v4278
  %v4972 = vmax.f32 %v3320, %v4280
  %v4973 = vmax.f32 %v3322, %v4282
  %v4974 = vmax.f32 %v3326, %v4286
  %v4975 = vmax.f32 %v3328, %v4288
  %v4976 = vmax.f32 %v3330, %v4290
  %v4977 = vmax.f32 %v3332, %v4292
  %v4978 = vmax.f32 %v3336, %v4296
  %v4979 = vmax.f32 %v3338, %v4298
  %v4980 = vmax.f32 %v3340, %v4300
  %v4981 = vmax.f32 %v3342, %v4302
  %v4982 = vmax.f32 %v3346, %v4306
  %v4983 = vmax.f32 %v3348, %v4308
  %v4984 = vmax.f32 %v3350, %v4310
  %v4985 = vmax.f32 %v3352, %v4312
  %v4986 = vmax.f32 %v3356, %v4316
  %v4987 = vmax.f32 %v3358, %v4318
  %v4988 = vmax.f32 %v3360, %v4320
  %v4989 = vmax.f32 %v3362, %v4322
  %v4990 = vmax.f32 %v3366, %v4326
  %v4991 = vmax.f32 %v3368, %v4328
  %v4992 = vmax.f32 %v3370, %v4330
  %v4993 = vmax.f32 %v3372, %v4332
  %v4994 = vmax.f32 %v3376, %v4336
  %v4995 = vmax.f32 %v3378, %v4338
  %v4996 = vmax.f32 %v3380, %v4340
  %v4997 = vmax.f32 %v3382, %v4342
  %v4998 = vmax.f32 %v3386, %v4346
  %v4999 = vmax.f32 %v3388, %v4348
  %v5000 = vmax.f32 %v3390, %v4350
  %v5001 = vmax.f32 %v3392, %v4352
  %v5002 = vmax.f32 %v3396, %v4356
  %v5003 = vmax.f32 %v3398, %v4358
  %v5004 = vmax.f32 %v3400, %v4360
  %v5005 = vmax.f32 %v3402, %v4362
  %v5006 = vmax.f32 %v3406, %v4366
  %v5007 = vmax.f32 %v3408, %v4368
  %v5008 = vmax.f32 %v3410, %v4370
  %v5009 = vmax.f32 %v3412, %v4372
  %v5010 = vmax.f32 %v3416, %v4376
  %v5011 = vmax.f32 %v3418, %v4378
  %v5012 = vmax.f32 %v3420, %v4380
  %v5013 = vmax.f32 %v3422, %v4382
  %v5014 = vmax.f32 %v3426, %v4386
  %v5015 = vmax.f32 %v3428, %v4388
  %v5016 = vmax.f32 %v3430, %v4390
  %v5017 = vmax.f32 %v3432, %v4392
  %v5018 = vmax.f32 %v3436, %v4396
  %v5019 = vmax.f32 %v3438, %v4398
  %v5020 = vmax.f32 %v3440, %v4400
  %v5021 = vmax.f32 %v3442, %v4402
  %v5022 = vmax.f32 %v3446, %v4406
  %v5023 = vmax.f32 %v3448, %v4408
  %v5024 = vmax.f32 %v3450, %v4410
  %v5025 = vmax.f32 %v3452, %v4412
  %v5026 = vmax.f32 %v3456, %v4416
  %v5027 = vmax.f32 %v3458, %v4418
  %v5028 = vmax.f32 %v3460, %v4420
  %v5029 = vmax.f32 %v3462, %v4422
  %v5030 = vmax.f32 %v3466, %v4426
  %v5031 = vmax.f32 %v3468, %v4428
  %v5032 = vmax.f32 %v3470, %v4430
  %v5033 = vmax.f32 %v3472, %v4432
  %v5034 = vmax.f32 %v3476, %v4436
  %v5035 = vmax.f32 %v3478, %v4438
  %v5036 = vmax.f32 %v3480, %v4440
  %v5037 = vmax.f32 %v3482, %v4442
  %v5038 = vmax.f32 %v3486, %v4446
  %v5039 = vmax.f32 %v3488, %v4448
  %v5040 = vmax.f32 %v3490, %v4450
  %v5041 = vmax.f32 %v3492, %v4452
  %v5042 = vmax.f32 %v3496, %v4456
  %v5043 = vmax.f32 %v3498, %v4458
  %v5044 = vmax.f32 %v3500, %v4460
  %v5045 = vmax.f32 %v3502, %v4462
  %v5046 = vmax.f32 %v3506, %v4466
  %v5047 = vmax.f32 %v3508, %v4468
  %v5048 = vmax.f32 %v3510, %v4470
  %v5049 = vmax.f32 %v3512, %v4472
  %v5050 = vmax.f32 %v3516, %v4476
  %v5051 = vmax.f32 %v3518, %v4478
  %v5052 = vmax.f32 %v3520, %v4480
  %v5053 = vmax.f32 %v3522, %v4482
  %v5054 = vmax.f32 %v3526, %v4486
  %v5055 = vmax.f32 %v3528, %v4488
  %v5056 = vmax.f32 %v3530, %v4490
  %v5057 = vmax.f32 %v3532, %v4492
  %v5058 = vmax.f32 %v3536, %v4496
  %v5059 = vmax.f32 %v3538, %v4498
  %v5060 = vmax.f32 %v3540, %v4500
  %v5061 = vmax.f32 %v3542, %v4502
  %v5062 = vmax.f32 %v3546, %v4506
  %v5063 = vmax.f32 %v3548, %v4508
  %v5064 = vmax.f32 %v3550, %v4510
  %v5065 = vmax.f32 %v3552, %v4512
  %v5066 = vmax.f32 %v3556, %v4516
  %v5067 = vmax.f32 %v3558, %v4518
  %v5068 = vmax.f32 %v3560, %v4520
  %v5069 = vmax.f32 %v3562, %v4522
  %v5070 = vmax.f32 %v3566, %v4526
  %v5071 = vmax.f32 %v3568, %v4528
  %v5072 = vmax.f32 %v3570, %v4530
  %v5073 = vmax.f32 %v3572, %v4532
  %v5074 = vmax.f32 %v3576, %v4536
  %v5075 = vmax.f32 %v3578, %v4538
  %v5076 = vmax.f32 %v3580, %v4540
  %v5077 = vmax.f32 %v3582, %v4542
  %v5078 = vmax.f32 %v3586, %v4546
  %v5079 = vmax.f32 %v3588, %v4548
  %v5080 = vmax.f32 %v3590, %v4550
  %v5081 = vmax.f32 %v3592, %v4552
  %v5082 = vmax.f32 %v3596, %v4556
  %v5083 = vmax.f32 %v3598, %v4558
  %v5084 = vmax.f32 %v3600, %v4560
  %v5085 = vmax.f32 %v3602, %v4562
  %v5086 = vmax.f32 %v3606, %v4566
  %v5087 = vmax.f32 %v3608, %v4568
  %v5088 = vmax.f32 %v3610, %v4570
  %v5089 = vmax.f32 %v3612, %v4572
  %v5090 = vmax.f32 %v3616, %v4576
  %v5091 = vmax.f32 %v3618, %v4578
  %v5092 = vmax.f32 %v3620, %v4580
  %v5093 = vmax.f32 %v3622, %v4582
  %v5094 = vmax.f32 %v3626, %v4586
  %v5095 = vmax.f32 %v3628, %v4588
  %v5096 = vmax.f32 %v3630, %v4590
  %v5097 = vmax.f32 %v3632, %v4592
  %v5098 = vmax.f32 %v3636, %v4596
  %v5099 = vmax.f32 %v3638, %v4598
  %v5100 = vmax.f32 %v3640, %v4600
  %v5101 = vmax.f32 %v3642, %v4602
  %v5102 = vmax.f32 %v3646, %v4606
  %v5103 = vmax.f32 %v3648, %v4608
  %v5104 = vmax.f32 %v3650, %v4610
  %v5105 = vmax.f32 %v3652, %v4612
  %v5106 = vmax.f32 %v3656, %v4616
  %v5107 = vmax.f32 %v3658, %v4618
  %v5108 = vmax.f32 %v3660, %v4620
  %v5109 = vmax.f32 %v3662, %v4622
  %v5110 = vmax.f32 %v3666, %v4626
  %v5111 = vmax.f32 %v3668, %v4628
  %v5112 = vmax.f32 %v3670, %v4630
  %v5113 = vmax.f32 %v3672, %v4632
  %v5114 = vmax.f32 %v3676, %v4636
  %v5115 = vmax.f32 %v3678, %v4638
  %v5116 = vmax.f32 %v3680, %v4640
  %v5117 = vmax.f32 %v3682, %v4642
  %v5118 = vmax.f32 %v3686, %v4646
  %v5119 = vmax.f32 %v3688, %v4648
  %v5120 = vmax.f32 %v3690, %v4650
  %v5121 = vmax.f32 %v3692, %v4652
  %v5122 = vmax.f32 %v3696, %v4656
  %v5123 = vmax.f32 %v3698, %v4658
  %v5124 = vmax.f32 %v3700, %v4660
  %v5125 = vmax.f32 %v3702, %v4662
  %v5126 = vmax.f32 %v3706, %v4666
  %v5127 = vmax.f32 %v3708, %v4668
  %v5128 = vmax.f32 %v3710, %v4670
  %v5129 = vmax.f32 %v3712, %v4672
  %v5130 = vmax.f32 %v3716, %v4676
  %v5131 = vmax.f32 %v3718, %v4678
  %v5132 = vmax.f32 %v3720, %v4680
  %v5133 = vmax.f32 %v3722, %v4682
  %v5134 = vmax.f32 %v3726, %v4686
  %v5135 = vmax.f32 %v3728, %v4688
  %v5136 = vmax.f32 %v3730, %v4690
  %v5137 = vmax.f32 %v3732, %v4692
  %v5138 = vmax.f32 %v3736, %v4696
  %v5139 = vmax.f32 %v3738, %v4698
  %v5140 = vmax.f32 %v3740, %v4700
  %v5141 = vmax.f32 %v3742, %v4702
  %v5142 = vmax.f32 %v3746, %v4706
  %v5143 = vmax.f32 %v3748, %v4708
  %v5144 = vmax.f32 %v3750, %v4710
  %v5145 = vmax.f32 %v3752, %v4712
  %v5146 = vmax.f32 %v3756, %v4716
  %v5147 = vmax.f32 %v3758, %v4718
  %v5148 = vmax.f32 %v3760, %v4720
  %v5149 = vmax.f32 %v3762, %v4722
  %v5150 = vmax.f32 %v3766, %v4726
  %v5151 = vmax.f32 %v3768, %v4728
  %v5152 = vmax.f32 %v3770, %v4730
  %v5153 = vmax.f32 %v3772, %v4732
  %v5154 = vmax.f32 %v3776, %v4736
  %v5155 = vmax.f32 %v3778, %v4738
  %v5156 = vmax.f32 %v3780, %v4740
  %v5157 = vmax.f32 %v3782, %v4742
  %v5158 = vmax.f32 %v3786, %v4746
  %v5159 = vmax.f32 %v3788, %v4748
  %v5160 = vmax.f32 %v3790, %v4750
  %v5161 = vmax.f32 %v3792, %v4752
  %v5162 = vmax.f32 %v3796, %v4756
  %v5163 = vmax.f32 %v3798, %v4758
  %v5164 = vmax.f32 %v3800, %v4760
  %v5165 = vmax.f32 %v3802, %v4762
  %v5166 = vmax.f32 %v3806, %v4766
  %v5167 = vmax.f32 %v3808, %v4768
  %v5168 = vmax.f32 %v3810, %v4770
  %v5169 = vmax.f32 %v3812, %v4772
  %v5170 = vmax.f32 %v3816, %v4776
  %v5171 = vmax.f32 %v3818, %v4778
  %v5172 = vmax.f32 %v3820, %v4780
  %v5173 = vmax.f32 %v3822, %v4782
  %v5174 = vmax.f32 %v3826, %v4786
  %v5175 = vmax.f32 %v3828, %v4788
  %v5176 = vmax.f32 %v3830, %v4790
  %v5177 = vmax.f32 %v3832, %v4792
  %v5178 = vmax.f32 %v4794, %v4795
  %v5179 = vmax.f32 %v4796, %v4797
  %v5180 = vmax.f32 %v4798, %v4799
  %v5181 = vmax.f32 %v4800, %v4801
  %v5182 = vmax.f32 %v4802, %v4803
  %v5183 = vmax.f32 %v4804, %v4805
  %v5184 = vmax.f32 %v4806, %v4807
  %v5185 = vmax.f32 %v4808, %v4809
  %v5186 = vmax.f32 %v4810, %v4811
  %v5187 = vmax.f32 %v4812, %v4813
  %v5188 = vmax.f32 %v4814, %v4815
  %v5189 = vmax.f32 %v4816, %v4817
  %v5190 = vmax.f32 %v4818, %v4819
  %v5191 = vmax.f32 %v4820, %v4821
  %v5192 = vmax.f32 %v4822, %v4823
  %v5193 = vmax.f32 %v4824, %v4825
  %v5194 = vmax.f32 %v4826, %v4827
  %v5195 = vmax.f32 %v4828, %v4829
  %v5196 = vmax.f32 %v4830, %v4831
  %v5197 = vmax.f32 %v4832, %v4833
  %v5198 = vmax.f32 %v4834, %v4835
  %v5199 = vmax.f32 %v4836, %v4837
  %v5200 = vmax.f32 %v4838, %v4839
  %v5201 = vmax.f32 %v4840, %v4841
  %v5202 = vmax.f32 %v4842, %v4843
  %v5203 = vmax.f32 %v4844, %v4845
  %v5204 = vmax.f32 %v4846, %v4847
  %v5205 = vmax.f32 %v4848, %v4849
  %v5206 = vmax.f32 %v4850, %v4851
  %v5207 = vmax.f32 %v4852, %v4853
  %v5208 = vmax.f32 %v4854, %v4855
  %v5209 = vmax.f32 %v4856, %v4857
  %v5210 = vmax.f32 %v4858, %v4859
  %v5211 = vmax.f32 %v4860, %v4861
  %v5212 = vmax.f32 %v4862, %v4863
  %v5213 = vmax.f32 %v4864, %v4865
  %v5214 = vmax.f32 %v4866, %v4867
  %v5215 = vmax.f32 %v4868, %v4869
  %v5216 = vmax.f32 %v4870, %v4871
  %v5217 = vmax.f32 %v4872, %v4873
  %v5218 = vmax.f32 %v4874, %v4875
  %v5219 = vmax.f32 %v4876, %v4877
  %v5220 = vmax.f32 %v4878, %v4879
  %v5221 = vmax.f32 %v4880, %v4881
  %v5222 = vmax.f32 %v4882, %v4883
  %v5223 = vmax.f32 %v4884, %v4885
  %v5224 = vmax.f32 %v4886, %v4887
  %v5225 = vmax.f32 %v4888, %v4889
  %v5226 = vmax.f32 %v4890, %v4891
  %v5227 = vmax.f32 %v4892, %v4893
  %v5228 = vmax.f32 %v4894, %v4895
  %v5229 = vmax.f32 %v4896, %v4897
  %v5230 = vmax.f32 %v4898, %v4899
  %v5231 = vmax.f32 %v4900, %v4901
  %v5232 = vmax.f32 %v4902, %v4903
  %v5233 = vmax.f32 %v4904, %v4905
  %v5234 = vmax.f32 %v4906, %v4907
  %v5235 = vmax.f32 %v4908, %v4909
  %v5236 = vmax.f32 %v4910, %v4911
  %v5237 = vmax.f32 %v4912, %v4913
  %v5238 = vmax.f32 %v4914, %v4915
  %v5239 = vmax.f32 %v4916, %v4917
  %v5240 = vmax.f32 %v4918, %v4919
  %v5241 = vmax.f32 %v4920, %v4921
  %v5242 = vmax.f32 %v4922, %v4923
  %v5243 = vmax.f32 %v4924, %v4925
  %v5244 = vmax.f32 %v4926, %v4927
  %v5245 = vmax.f32 %v4928, %v4929
  %v5246 = vmax.f32 %v4930, %v4931
  %v5247 = vmax.f32 %v4932, %v4933
  %v5248 = vmax.f32 %v4934, %v4935
  %v5249 = vmax.f32 %v4936, %v4937
  %v5250 = vmax.f32 %v4938, %v4939
  %v5251 = vmax.f32 %v4940, %v4941
  %v5252 = vmax.f32 %v4942, %v4943
  %v5253 = vmax.f32 %v4944, %v4945
  %v5254 = vmax.f32 %v4946, %v4947
  %v5255 = vmax.f32 %v4948, %v4949
  %v5256 = vmax.f32 %v4950, %v4951
  %v5257 = vmax.f32 %v4952, %v4953
  %v5258 = vmax.f32 %v4954, %v4955
  %v5259 = vmax.f32 %v4956, %v4957
  %v5260 = vmax.f32 %v4958, %v4959
  %v5261 = vmax.f32 %v4960, %v4961
  %v5262 = vmax.f32 %v4962, %v4963
  %v5263 = vmax.f32 %v4964, %v4965
  %v5264 = vmax.f32 %v4966, %v4967
  %v5265 = vmax.f32 %v4968, %v4969
  %v5266 = vmax.f32 %v4970, %v4971
  %v5267 = vmax.f32 %v4972, %v4973
  %v5268 = vmax.f32 %v4974, %v4975
  %v5269 = vmax.f32 %v4976, %v4977
  %v5270 = vmax.f32 %v4978, %v4979
  %v5271 = vmax.f32 %v4980, %v4981
  %v5272 = vmax.f32 %v4982, %v4983
  %v5273 = vmax.f32 %v4984, %v4985
  %v5274 = vmax.f32 %v4986, %v4987
  %v5275 = vmax.f32 %v4988, %v4989
  %v5276 = vmax.f32 %v4990, %v4991
  %v5277 = vmax.f32 %v4992, %v4993
  %v5278 = vmax.f32 %v4994, %v4995
  %v5279 = vmax.f32 %v4996, %v4997
  %v5280 = vmax.f32 %v4998, %v4999
  %v5281 = vmax.f32 %v5000, %v5001
  %v5282 = vmax.f32 %v5002, %v5003
  %v5283 = vmax.f32 %v5004, %v5005
  %v5284 = vmax.f32 %v5006, %v5007
  %v5285 = vmax.f32 %v5008, %v5009
  %v5286 = vmax.f32 %v5010, %v5011
  %v5287 = vmax.f32 %v5012, %v5013
  %v5288 = vmax.f32 %v5014, %v5015
  %v5289 = vmax.f32 %v5016, %v5017
  %v5290 = vmax.f32 %v5018, %v5019
  %v5291 = vmax.f32 %v5020, %v5021
  %v5292 = vmax.f32 %v5022, %v5023
  %v5293 = vmax.f32 %v5024, %v5025
  %v5294 = vmax.f32 %v5026, %v5027
  %v5295 = vmax.f32 %v5028, %v5029
  %v5296 = vmax.f32 %v5030, %v5031
  %v5297 = vmax.f32 %v5032, %v5033
  %v5298 = vmax.f32 %v5034, %v5035
  %v5299 = vmax.f32 %v5036, %v5037
  %v5300 = vmax.f32 %v5038, %v5039
  %v5301 = vmax.f32 %v5040, %v5041
  %v5302 = vmax.f32 %v5042, %v5043
  %v5303 = vmax.f32 %v5044, %v5045
  %v5304 = vmax.f32 %v5046, %v5047
  %v5305 = vmax.f32 %v5048, %v5049
  %v5306 = vmax.f32 %v5050, %v5051
  %v5307 = vmax.f32 %v5052, %v5053
  %v5308 = vmax.f32 %v5054, %v5055
  %v5309 = vmax.f32 %v5056, %v5057
  %v5310 = vmax.f32 %v5058, %v5059
  %v5311 = vmax.f32 %v5060, %v5061
  %v5312 = vmax.f32 %v5062, %v5063
  %v5313 = vmax.f32 %v5064, %v5065
  %v5314 = vmax.f32 %v5066, %v5067
  %v5315 = vmax.f32 %v5068, %v5069
  %v5316 = vmax.f32 %v5070, %v5071
  %v5317 = vmax.f32 %v5072, %v5073
  %v5318 = vmax.f32 %v5074, %v5075
  %v5319 = vmax.f32 %v5076, %v5077
  %v5320 = vmax.f32 %v5078, %v5079
  %v5321 = vmax.f32 %v5080, %v5081
  %v5322 = vmax.f32 %v5082, %v5083
  %v5323 = vmax.f32 %v5084, %v5085
  %v5324 = vmax.f32 %v5086, %v5087
  %v5325 = vmax.f32 %v5088, %v5089
  %v5326 = vmax.f32 %v5090, %v5091
  %v5327 = vmax.f32 %v5092, %v5093
  %v5328 = vmax.f32 %v5094, %v5095
  %v5329 = vmax.f32 %v5096, %v5097
  %v5330 = vmax.f32 %v5098, %v5099
  %v5331 = vmax.f32 %v5100, %v5101
  %v5332 = vmax.f32 %v5102, %v5103
  %v5333 = vmax.f32 %v5104, %v5105
  %v5334 = vmax.f32 %v5106, %v5107
  %v5335 = vmax.f32 %v5108, %v5109
  %v5336 = vmax.f32 %v5110, %v5111
  %v5337 = vmax.f32 %v5112, %v5113
  %v5338 = vmax.f32 %v5114, %v5115
  %v5339 = vmax.f32 %v5116, %v5117
  %v5340 = vmax.f32 %v5118, %v5119
  %v5341 = vmax.f32 %v5120, %v5121
  %v5342 = vmax.f32 %v5122, %v5123
  %v5343 = vmax.f32 %v5124, %v5125
  %v5344 = vmax.f32 %v5126, %v5127
  %v5345 = vmax.f32 %v5128, %v5129
  %v5346 = vmax.f32 %v5130, %v5131
  %v5347 = vmax.f32 %v5132, %v5133
  %v5348 = vmax.f32 %v5134, %v5135
  %v5349 = vmax.f32 %v5136, %v5137
  %v5350 = vmax.f32 %v5138, %v5139
  %v5351 = vmax.f32 %v5140, %v5141
  %v5352 = vmax.f32 %v5142, %v5143
  %v5353 = vmax.f32 %v5144, %v5145
  %v5354 = vmax.f32 %v5146, %v5147
  %v5355 = vmax.f32 %v5148, %v5149
  %v5356 = vmax.f32 %v5150, %v5151
  %v5357 = vmax.f32 %v5152, %v5153
  %v5358 = vmax.f32 %v5154, %v5155
  %v5359 = vmax.f32 %v5156, %v5157
  %v5360 = vmax.f32 %v5158, %v5159
  %v5361 = vmax.f32 %v5160, %v5161
  %v5362 = vmax.f32 %v5162, %v5163
  %v5363 = vmax.f32 %v5164, %v5165
  %v5364 = vmax.f32 %v5166, %v5167
  %v5365 = vmax.f32 %v5168, %v5169
  %v5366 = vmax.f32 %v5170, %v5171
  %v5367 = vmax.f32 %v5172, %v5173
  %v5368 = vmax.f32 %v5174, %v5175
  %v5369 = vmax.f32 %v5176, %v5177
  %v5370 = vld [vmem:[%s2] sm:$0x1]
  %v5372 = vlaneseq
  %v5373 = vshrl.u32 %v5372, 7
  %v5374 = vsub.s32 0, %v5373
  %v5375 = vrot.slane %v5370, %v5374
  %v5377 = vadd.f32 %v5178, %v5375
  %v5378 = vadd.f32 %v5179, %v5375
  %v5379 = vadd.f32 %v5180, %v5375
  %v5380 = vadd.f32 %v5181, %v5375
  %v5381 = vadd.f32 %v5182, %v5375
  %v5382 = vadd.f32 %v5183, %v5375
  %v5383 = vadd.f32 %v5184, %v5375
  %v5384 = vadd.f32 %v5185, %v5375
  %v5385 = vadd.f32 %v5186, %v5375
  %v5386 = vadd.f32 %v5187, %v5375
  %v5387 = vadd.f32 %v5188, %v5375
  %v5388 = vadd.f32 %v5189, %v5375
  %v5389 = vadd.f32 %v5190, %v5375
  %v5390 = vadd.f32 %v5191, %v5375
  %v5391 = vadd.f32 %v5192, %v5375
  %v5392 = vadd.f32 %v5193, %v5375
  %v5393 = vadd.f32 %v5194, %v5375
  %v5394 = vadd.f32 %v5195, %v5375
  %v5395 = vadd.f32 %v5196, %v5375
  %v5396 = vadd.f32 %v5197, %v5375
  %v5397 = vadd.f32 %v5198, %v5375
  %v5398 = vadd.f32 %v5199, %v5375
  %v5399 = vadd.f32 %v5200, %v5375
  %v5400 = vadd.f32 %v5201, %v5375
  %v5401 = vadd.f32 %v5202, %v5375
  %v5402 = vadd.f32 %v5203, %v5375
  %v5403 = vadd.f32 %v5204, %v5375
  %v5404 = vadd.f32 %v5205, %v5375
  %v5405 = vadd.f32 %v5206, %v5375
  %v5406 = vadd.f32 %v5207, %v5375
  %v5407 = vadd.f32 %v5208, %v5375
  %v5408 = vadd.f32 %v5209, %v5375
  %v5409 = vadd.f32 %v5210, %v5375
  %v5410 = vadd.f32 %v5211, %v5375
  %v5411 = vadd.f32 %v5212, %v5375
  %v5412 = vadd.f32 %v5213, %v5375
  %v5413 = vadd.f32 %v5214, %v5375
  %v5414 = vadd.f32 %v5215, %v5375
  %v5415 = vadd.f32 %v5216, %v5375
  %v5416 = vadd.f32 %v5217, %v5375
  %v5417 = vadd.f32 %v5218, %v5375
  %v5418 = vadd.f32 %v5219, %v5375
  %v5419 = vadd.f32 %v5220, %v5375
  %v5420 = vadd.f32 %v5221, %v5375
  %v5421 = vadd.f32 %v5222, %v5375
  %v5422 = vadd.f32 %v5223, %v5375
  %v5423 = vadd.f32 %v5224, %v5375
  %v5424 = vadd.f32 %v5225, %v5375
  %v5425 = vadd.f32 %v5226, %v5375
  %v5426 = vadd.f32 %v5227, %v5375
  %v5427 = vadd.f32 %v5228, %v5375
  %v5428 = vadd.f32 %v5229, %v5375
  %v5429 = vadd.f32 %v5230, %v5375
  %v5430 = vadd.f32 %v5231, %v5375
  %v5431 = vadd.f32 %v5232, %v5375
  %v5432 = vadd.f32 %v5233, %v5375
  %v5433 = vadd.f32 %v5234, %v5375
  %v5434 = vadd.f32 %v5235, %v5375
  %v5435 = vadd.f32 %v5236, %v5375
  %v5436 = vadd.f32 %v5237, %v5375
  %v5437 = vadd.f32 %v5238, %v5375
  %v5438 = vadd.f32 %v5239, %v5375
  %v5439 = vadd.f32 %v5240, %v5375
  %v5440 = vadd.f32 %v5241, %v5375
  %v5441 = vadd.f32 %v5242, %v5375
  %v5442 = vadd.f32 %v5243, %v5375
  %v5443 = vadd.f32 %v5244, %v5375
  %v5444 = vadd.f32 %v5245, %v5375
  %v5445 = vadd.f32 %v5246, %v5375
  %v5446 = vadd.f32 %v5247, %v5375
  %v5447 = vadd.f32 %v5248, %v5375
  %v5448 = vadd.f32 %v5249, %v5375
  %v5449 = vadd.f32 %v5250, %v5375
  %v5450 = vadd.f32 %v5251, %v5375
  %v5451 = vadd.f32 %v5252, %v5375
  %v5452 = vadd.f32 %v5253, %v5375
  %v5453 = vadd.f32 %v5254, %v5375
  %v5454 = vadd.f32 %v5255, %v5375
  %v5455 = vadd.f32 %v5256, %v5375
  %v5456 = vadd.f32 %v5257, %v5375
  %v5457 = vadd.f32 %v5258, %v5375
  %v5458 = vadd.f32 %v5259, %v5375
  %v5459 = vadd.f32 %v5260, %v5375
  %v5460 = vadd.f32 %v5261, %v5375
  %v5461 = vadd.f32 %v5262, %v5375
  %v5462 = vadd.f32 %v5263, %v5375
  %v5463 = vadd.f32 %v5264, %v5375
  %v5464 = vadd.f32 %v5265, %v5375
  %v5465 = vadd.f32 %v5266, %v5375
  %v5466 = vadd.f32 %v5267, %v5375
  %v5467 = vadd.f32 %v5268, %v5375
  %v5468 = vadd.f32 %v5269, %v5375
  %v5469 = vadd.f32 %v5270, %v5375
  %v5470 = vadd.f32 %v5271, %v5375
  %v5471 = vadd.f32 %v5272, %v5375
  %v5472 = vadd.f32 %v5273, %v5375
  %v5473 = vadd.f32 %v5274, %v5375
  %v5474 = vadd.f32 %v5275, %v5375
  %v5475 = vadd.f32 %v5276, %v5375
  %v5476 = vadd.f32 %v5277, %v5375
  %v5477 = vadd.f32 %v5278, %v5375
  %v5478 = vadd.f32 %v5279, %v5375
  %v5479 = vadd.f32 %v5280, %v5375
  %v5480 = vadd.f32 %v5281, %v5375
  %v5481 = vadd.f32 %v5282, %v5375
  %v5482 = vadd.f32 %v5283, %v5375
  %v5483 = vadd.f32 %v5284, %v5375
  %v5484 = vadd.f32 %v5285, %v5375
  %v5485 = vadd.f32 %v5286, %v5375
  %v5486 = vadd.f32 %v5287, %v5375
  %v5487 = vadd.f32 %v5288, %v5375
  %v5488 = vadd.f32 %v5289, %v5375
  %v5489 = vadd.f32 %v5290, %v5375
  %v5490 = vadd.f32 %v5291, %v5375
  %v5491 = vadd.f32 %v5292, %v5375
  %v5492 = vadd.f32 %v5293, %v5375
  %v5493 = vadd.f32 %v5294, %v5375
  %v5494 = vadd.f32 %v5295, %v5375
  %v5495 = vadd.f32 %v5296, %v5375
  %v5496 = vadd.f32 %v5297, %v5375
  %v5497 = vadd.f32 %v5298, %v5375
  %v5498 = vadd.f32 %v5299, %v5375
  %v5499 = vadd.f32 %v5300, %v5375
  %v5500 = vadd.f32 %v5301, %v5375
  %v5501 = vadd.f32 %v5302, %v5375
  %v5502 = vadd.f32 %v5303, %v5375
  %v5503 = vadd.f32 %v5304, %v5375
  %v5504 = vadd.f32 %v5305, %v5375
  %v5505 = vadd.f32 %v5306, %v5375
  %v5506 = vadd.f32 %v5307, %v5375
  %v5507 = vadd.f32 %v5308, %v5375
  %v5508 = vadd.f32 %v5309, %v5375
  %v5509 = vadd.f32 %v5310, %v5375
  %v5510 = vadd.f32 %v5311, %v5375
  %v5511 = vadd.f32 %v5312, %v5375
  %v5512 = vadd.f32 %v5313, %v5375
  %v5513 = vadd.f32 %v5314, %v5375
  %v5514 = vadd.f32 %v5315, %v5375
  %v5515 = vadd.f32 %v5316, %v5375
  %v5516 = vadd.f32 %v5317, %v5375
  %v5517 = vadd.f32 %v5318, %v5375
  %v5518 = vadd.f32 %v5319, %v5375
  %v5519 = vadd.f32 %v5320, %v5375
  %v5520 = vadd.f32 %v5321, %v5375
  %v5521 = vadd.f32 %v5322, %v5375
  %v5522 = vadd.f32 %v5323, %v5375
  %v5523 = vadd.f32 %v5324, %v5375
  %v5524 = vadd.f32 %v5325, %v5375
  %v5525 = vadd.f32 %v5326, %v5375
  %v5526 = vadd.f32 %v5327, %v5375
  %v5527 = vadd.f32 %v5328, %v5375
  %v5528 = vadd.f32 %v5329, %v5375
  %v5529 = vadd.f32 %v5330, %v5375
  %v5530 = vadd.f32 %v5331, %v5375
  %v5531 = vadd.f32 %v5332, %v5375
  %v5532 = vadd.f32 %v5333, %v5375
  %v5533 = vadd.f32 %v5334, %v5375
  %v5534 = vadd.f32 %v5335, %v5375
  %v5535 = vadd.f32 %v5336, %v5375
  %v5536 = vadd.f32 %v5337, %v5375
  %v5537 = vadd.f32 %v5338, %v5375
  %v5538 = vadd.f32 %v5339, %v5375
  %v5539 = vadd.f32 %v5340, %v5375
  %v5540 = vadd.f32 %v5341, %v5375
  %v5541 = vadd.f32 %v5342, %v5375
  %v5542 = vadd.f32 %v5343, %v5375
  %v5543 = vadd.f32 %v5344, %v5375
  %v5544 = vadd.f32 %v5345, %v5375
  %v5545 = vadd.f32 %v5346, %v5375
  %v5546 = vadd.f32 %v5347, %v5375
  %v5547 = vadd.f32 %v5348, %v5375
  %v5548 = vadd.f32 %v5349, %v5375
  %v5549 = vadd.f32 %v5350, %v5375
  %v5550 = vadd.f32 %v5351, %v5375
  %v5551 = vadd.f32 %v5352, %v5375
  %v5552 = vadd.f32 %v5353, %v5375
  %v5553 = vadd.f32 %v5354, %v5375
  %v5554 = vadd.f32 %v5355, %v5375
  %v5555 = vadd.f32 %v5356, %v5375
  %v5556 = vadd.f32 %v5357, %v5375
  %v5557 = vadd.f32 %v5358, %v5375
  %v5558 = vadd.f32 %v5359, %v5375
  %v5559 = vadd.f32 %v5360, %v5375
  %v5560 = vadd.f32 %v5361, %v5375
  %v5561 = vadd.f32 %v5362, %v5375
  %v5562 = vadd.f32 %v5363, %v5375
  %v5563 = vadd.f32 %v5364, %v5375
  %v5564 = vadd.f32 %v5365, %v5375
  %v5565 = vadd.f32 %v5366, %v5375
  %v5566 = vadd.f32 %v5367, %v5375
  %v5567 = vadd.f32 %v5368, %v5375
  %v5568 = vadd.f32 %v5369, %v5375
  %v5569 = vmax.f32 %v5377, 0.0
  %v5570 = vmax.f32 %v5378, 0.0
  %v5571 = vmax.f32 %v5379, 0.0
  %v5572 = vmax.f32 %v5380, 0.0
  %v5573 = vmax.f32 %v5381, 0.0
  %v5574 = vmax.f32 %v5382, 0.0
  %v5575 = vmax.f32 %v5383, 0.0
  %v5576 = vmax.f32 %v5384, 0.0
  %v5577 = vmax.f32 %v5385, 0.0
  %v5578 = vmax.f32 %v5386, 0.0
  %v5579 = vmax.f32 %v5387, 0.0
  %v5580 = vmax.f32 %v5388, 0.0
  %v5581 = vmax.f32 %v5389, 0.0
  %v5582 = vmax.f32 %v5390, 0.0
  %v5583 = vmax.f32 %v5391, 0.0
  %v5584 = vmax.f32 %v5392, 0.0
  %v5585 = vmax.f32 %v5393, 0.0
  %v5586 = vmax.f32 %v5394, 0.0
  %v5587 = vmax.f32 %v5395, 0.0
  %v5588 = vmax.f32 %v5396, 0.0
  %v5589 = vmax.f32 %v5397, 0.0
  %v5590 = vmax.f32 %v5398, 0.0
  %v5591 = vmax.f32 %v5399, 0.0
  %v5592 = vmax.f32 %v5400, 0.0
  %v5593 = vmax.f32 %v5401, 0.0
  %v5594 = vmax.f32 %v5402, 0.0
  %v5595 = vmax.f32 %v5403, 0.0
  %v5596 = vmax.f32 %v5404, 0.0
  %v5597 = vmax.f32 %v5405, 0.0
  %v5598 = vmax.f32 %v5406, 0.0
  %v5599 = vmax.f32 %v5407, 0.0
  %v5600 = vmax.f32 %v5408, 0.0
  %v5601 = vmax.f32 %v5409, 0.0
  %v5602 = vmax.f32 %v5410, 0.0
  %v5603 = vmax.f32 %v5411, 0.0
  %v5604 = vmax.f32 %v5412, 0.0
  %v5605 = vmax.f32 %v5413, 0.0
  %v5606 = vmax.f32 %v5414, 0.0
  %v5607 = vmax.f32 %v5415, 0.0
  %v5608 = vmax.f32 %v5416, 0.0
  %v5609 = vmax.f32 %v5417, 0.0
  %v5610 = vmax.f32 %v5418, 0.0
  %v5611 = vmax.f32 %v5419, 0.0
  %v5612 = vmax.f32 %v5420, 0.0
  %v5613 = vmax.f32 %v5421, 0.0
  %v5614 = vmax.f32 %v5422, 0.0
  %v5615 = vmax.f32 %v5423, 0.0
  %v5616 = vmax.f32 %v5424, 0.0
  %v5617 = vmax.f32 %v5425, 0.0
  %v5618 = vmax.f32 %v5426, 0.0
  %v5619 = vmax.f32 %v5427, 0.0
  %v5620 = vmax.f32 %v5428, 0.0
  %v5621 = vmax.f32 %v5429, 0.0
  %v5622 = vmax.f32 %v5430, 0.0
  %v5623 = vmax.f32 %v5431, 0.0
  %v5624 = vmax.f32 %v5432, 0.0
  %v5625 = vmax.f32 %v5433, 0.0
  %v5626 = vmax.f32 %v5434, 0.0
  %v5627 = vmax.f32 %v5435, 0.0
  %v5628 = vmax.f32 %v5436, 0.0
  %v5629 = vmax.f32 %v5437, 0.0
  %v5630 = vmax.f32 %v5438, 0.0
  %v5631 = vmax.f32 %v5439, 0.0
  %v5632 = vmax.f32 %v5440, 0.0
  %v5633 = vmax.f32 %v5441, 0.0
  %v5634 = vmax.f32 %v5442, 0.0
  %v5635 = vmax.f32 %v5443, 0.0
  %v5636 = vmax.f32 %v5444, 0.0
  %v5637 = vmax.f32 %v5445, 0.0
  %v5638 = vmax.f32 %v5446, 0.0
  %v5639 = vmax.f32 %v5447, 0.0
  %v5640 = vmax.f32 %v5448, 0.0
  %v5641 = vmax.f32 %v5449, 0.0
  %v5642 = vmax.f32 %v5450, 0.0
  %v5643 = vmax.f32 %v5451, 0.0
  %v5644 = vmax.f32 %v5452, 0.0
  %v5645 = vmax.f32 %v5453, 0.0
  %v5646 = vmax.f32 %v5454, 0.0
  %v5647 = vmax.f32 %v5455, 0.0
  %v5648 = vmax.f32 %v5456, 0.0
  %v5649 = vmax.f32 %v5457, 0.0
  %v5650 = vmax.f32 %v5458, 0.0
  %v5651 = vmax.f32 %v5459, 0.0
  %v5652 = vmax.f32 %v5460, 0.0
  %v5653 = vmax.f32 %v5461, 0.0
  %v5654 = vmax.f32 %v5462, 0.0
  %v5655 = vmax.f32 %v5463, 0.0
  %v5656 = vmax.f32 %v5464, 0.0
  %v5657 = vmax.f32 %v5465, 0.0
  %v5658 = vmax.f32 %v5466, 0.0
  %v5659 = vmax.f32 %v5467, 0.0
  %v5660 = vmax.f32 %v5468, 0.0
  %v5661 = vmax.f32 %v5469, 0.0
  %v5662 = vmax.f32 %v5470, 0.0
  %v5663 = vmax.f32 %v5471, 0.0
  %v5664 = vmax.f32 %v5472, 0.0
  %v5665 = vmax.f32 %v5473, 0.0
  %v5666 = vmax.f32 %v5474, 0.0
  %v5667 = vmax.f32 %v5475, 0.0
  %v5668 = vmax.f32 %v5476, 0.0
  %v5669 = vmax.f32 %v5477, 0.0
  %v5670 = vmax.f32 %v5478, 0.0
  %v5671 = vmax.f32 %v5479, 0.0
  %v5672 = vmax.f32 %v5480, 0.0
  %v5673 = vmax.f32 %v5481, 0.0
  %v5674 = vmax.f32 %v5482, 0.0
  %v5675 = vmax.f32 %v5483, 0.0
  %v5676 = vmax.f32 %v5484, 0.0
  %v5677 = vmax.f32 %v5485, 0.0
  %v5678 = vmax.f32 %v5486, 0.0
  %v5679 = vmax.f32 %v5487, 0.0
  %v5680 = vmax.f32 %v5488, 0.0
  %v5681 = vmax.f32 %v5489, 0.0
  %v5682 = vmax.f32 %v5490, 0.0
  %v5683 = vmax.f32 %v5491, 0.0
  %v5684 = vmax.f32 %v5492, 0.0
  %v5685 = vmax.f32 %v5493, 0.0
  %v5686 = vmax.f32 %v5494, 0.0
  %v5687 = vmax.f32 %v5495, 0.0
  %v5688 = vmax.f32 %v5496, 0.0
  %v5689 = vmax.f32 %v5497, 0.0
  %v5690 = vmax.f32 %v5498, 0.0
  %v5691 = vmax.f32 %v5499, 0.0
  %v5692 = vmax.f32 %v5500, 0.0
  %v5693 = vmax.f32 %v5501, 0.0
  %v5694 = vmax.f32 %v5502, 0.0
  %v5695 = vmax.f32 %v5503, 0.0
  %v5696 = vmax.f32 %v5504, 0.0
  %v5697 = vmax.f32 %v5505, 0.0
  %v5698 = vmax.f32 %v5506, 0.0
  %v5699 = vmax.f32 %v5507, 0.0
  %v5700 = vmax.f32 %v5508, 0.0
  %v5701 = vmax.f32 %v5509, 0.0
  %v5702 = vmax.f32 %v5510, 0.0
  %v5703 = vmax.f32 %v5511, 0.0
  %v5704 = vmax.f32 %v5512, 0.0
  %v5705 = vmax.f32 %v5513, 0.0
  %v5706 = vmax.f32 %v5514, 0.0
  %v5707 = vmax.f32 %v5515, 0.0
  %v5708 = vmax.f32 %v5516, 0.0
  %v5709 = vmax.f32 %v5517, 0.0
  %v5710 = vmax.f32 %v5518, 0.0
  %v5711 = vmax.f32 %v5519, 0.0
  %v5712 = vmax.f32 %v5520, 0.0
  %v5713 = vmax.f32 %v5521, 0.0
  %v5714 = vmax.f32 %v5522, 0.0
  %v5715 = vmax.f32 %v5523, 0.0
  %v5716 = vmax.f32 %v5524, 0.0
  %v5717 = vmax.f32 %v5525, 0.0
  %v5718 = vmax.f32 %v5526, 0.0
  %v5719 = vmax.f32 %v5527, 0.0
  %v5720 = vmax.f32 %v5528, 0.0
  %v5721 = vmax.f32 %v5529, 0.0
  %v5722 = vmax.f32 %v5530, 0.0
  %v5723 = vmax.f32 %v5531, 0.0
  %v5724 = vmax.f32 %v5532, 0.0
  %v5725 = vmax.f32 %v5533, 0.0
  %v5726 = vmax.f32 %v5534, 0.0
  %v5727 = vmax.f32 %v5535, 0.0
  %v5728 = vmax.f32 %v5536, 0.0
  %v5729 = vmax.f32 %v5537, 0.0
  %v5730 = vmax.f32 %v5538, 0.0
  %v5731 = vmax.f32 %v5539, 0.0
  %v5732 = vmax.f32 %v5540, 0.0
  %v5733 = vmax.f32 %v5541, 0.0
  %v5734 = vmax.f32 %v5542, 0.0
  %v5735 = vmax.f32 %v5543, 0.0
  %v5736 = vmax.f32 %v5544, 0.0
  %v5737 = vmax.f32 %v5545, 0.0
  %v5738 = vmax.f32 %v5546, 0.0
  %v5739 = vmax.f32 %v5547, 0.0
  %v5740 = vmax.f32 %v5548, 0.0
  %v5741 = vmax.f32 %v5549, 0.0
  %v5742 = vmax.f32 %v5550, 0.0
  %v5743 = vmax.f32 %v5551, 0.0
  %v5744 = vmax.f32 %v5552, 0.0
  %v5745 = vmax.f32 %v5553, 0.0
  %v5746 = vmax.f32 %v5554, 0.0
  %v5747 = vmax.f32 %v5555, 0.0
  %v5748 = vmax.f32 %v5556, 0.0
  %v5749 = vmax.f32 %v5557, 0.0
  %v5750 = vmax.f32 %v5558, 0.0
  %v5751 = vmax.f32 %v5559, 0.0
  %v5752 = vmax.f32 %v5560, 0.0
  %v5753 = vmax.f32 %v5561, 0.0
  %v5754 = vmax.f32 %v5562, 0.0
  %v5755 = vmax.f32 %v5563, 0.0
  %v5756 = vmax.f32 %v5564, 0.0
  %v5757 = vmax.f32 %v5565, 0.0
  %v5758 = vmax.f32 %v5566, 0.0
  %v5759 = vmax.f32 %v5567, 0.0
  %v5760 = vmax.f32 %v5568, 0.0
  %v5761 = vld [vmem:[%s3] sm:$0xff]
  %v5762 = vld [vmem:[%s3 + $0x8] sm:$0xff]
  %v5763 = vld [vmem:[%s3 + $0x10] sm:$0xff]
  %v5764 = vld [vmem:[%s3 + $0x18] sm:$0xff]
  %v5765 = vld [vmem:[%s3 + $0x20] sm:$0xff]
  %v5766 = vld [vmem:[%s3 + $0x28] sm:$0xff]
  %v5767 = vld [vmem:[%s3 + $0x30] sm:$0xff]
  %v5768 = vld [vmem:[%s3 + $0x38] sm:$0xff]
  %v5769 = vld [vmem:[%s3 + $0x40] sm:$0xff]
  %v5770 = vld [vmem:[%s3 + $0x48] sm:$0xff]
  %v5771 = vld [vmem:[%s3 + $0x50] sm:$0xff]
  %v5772 = vld [vmem:[%s3 + $0x58] sm:$0xff]
  %v5773 = vld [vmem:[%s3 + $0x60] sm:$0xff]
  %v5774 = vld [vmem:[%s3 + $0x68] sm:$0xff]
  %v5775 = vld [vmem:[%s3 + $0x70] sm:$0xff]
  %v5776 = vld [vmem:[%s3 + $0x78] sm:$0xff]
  %v5777 = vld [vmem:[%s3 + $0x80] sm:$0xff]
  %v5778 = vld [vmem:[%s3 + $0x88] sm:$0xff]
  %v5779 = vld [vmem:[%s3 + $0x90] sm:$0xff]
  %v5780 = vld [vmem:[%s3 + $0x98] sm:$0xff]
  %v5781 = vld [vmem:[%s3 + $0xa0] sm:$0xff]
  %v5782 = vld [vmem:[%s3 + $0xa8] sm:$0xff]
  %v5783 = vld [vmem:[%s3 + $0xb0] sm:$0xff]
  %v5784 = vld [vmem:[%s3 + $0xb8] sm:$0xff]
  %v5785 = vld [vmem:[%s3 + $0xc0] sm:$0xff]
  %v5786 = vld [vmem:[%s3 + $0xc8] sm:$0xff]
  %v5787 = vld [vmem:[%s3 + $0xd0] sm:$0xff]
  %v5788 = vld [vmem:[%s3 + $0xd8] sm:$0xff]
  %v5789 = vld [vmem:[%s3 + $0xe0] sm:$0xff]
  %v5790 = vld [vmem:[%s3 + $0xe8] sm:$0xff]
  %v5791 = vld [vmem:[%s3 + $0xf0] sm:$0xff]
  %v5792 = vld [vmem:[%s3 + $0xf8] sm:$0xff]
  %v5793 = vld [vmem:[%s3 + $0x100] sm:$0xff]
  %v5794 = vld [vmem:[%s3 + $0x108] sm:$0xff]
  %v5795 = vld [vmem:[%s3 + $0x110] sm:$0xff]
  %v5796 = vld [vmem:[%s3 + $0x118] sm:$0xff]
  %v5797 = vld [vmem:[%s3 + $0x120] sm:$0xff]
  %v5798 = vld [vmem:[%s3 + $0x128] sm:$0xff]
  %v5799 = vld [vmem:[%s3 + $0x130] sm:$0xff]
  %v5800 = vld [vmem:[%s3 + $0x138] sm:$0xff]
  %v5801 = vld [vmem:[%s3 + $0x140] sm:$0xff]
  %v5802 = vld [vmem:[%s3 + $0x148] sm:$0xff]
  %v5803 = vld [vmem:[%s3 + $0x150] sm:$0xff]
  %v5804 = vld [vmem:[%s3 + $0x158] sm:$0xff]
  %v5805 = vld [vmem:[%s3 + $0x160] sm:$0xff]
  %v5806 = vld [vmem:[%s3 + $0x168] sm:$0xff]
  %v5807 = vld [vmem:[%s3 + $0x170] sm:$0xff]
  %v5808 = vld [vmem:[%s3 + $0x178] sm:$0xff]
  %v5809 = vld [vmem:[%s3 + $0x180] sm:$0xff]
  %v5810 = vld [vmem:[%s3 + $0x188] sm:$0xff]
  %v5811 = vld [vmem:[%s3 + $0x190] sm:$0xff]
  %v5812 = vld [vmem:[%s3 + $0x198] sm:$0xff]
  %v5813 = vld [vmem:[%s3 + $0x1a0] sm:$0xff]
  %v5814 = vld [vmem:[%s3 + $0x1a8] sm:$0xff]
  %v5815 = vld [vmem:[%s3 + $0x1b0] sm:$0xff]
  %v5816 = vld [vmem:[%s3 + $0x1b8] sm:$0xff]
  %v5817 = vld [vmem:[%s3 + $0x1c0] sm:$0xff]
  %v5818 = vld [vmem:[%s3 + $0x1c8] sm:$0xff]
  %v5819 = vld [vmem:[%s3 + $0x1d0] sm:$0xff]
  %v5820 = vld [vmem:[%s3 + $0x1d8] sm:$0xff]
  %v5821 = vld [vmem:[%s3 + $0x1e0] sm:$0xff]
  %v5822 = vld [vmem:[%s3 + $0x1e8] sm:$0xff]
  %v5823 = vld [vmem:[%s3 + $0x1f0] sm:$0xff]
  %v5824 = vld [vmem:[%s3 + $0x1f8] sm:$0xff]
  %v5825 = vld [vmem:[%s3 + $0x200] sm:$0xff]
  %v5826 = vld [vmem:[%s3 + $0x208] sm:$0xff]
  %v5827 = vld [vmem:[%s3 + $0x210] sm:$0xff]
  %v5828 = vld [vmem:[%s3 + $0x218] sm:$0xff]
  %v5829 = vld [vmem:[%s3 + $0x220] sm:$0xff]
  %v5830 = vld [vmem:[%s3 + $0x228] sm:$0xff]
  %v5831 = vld [vmem:[%s3 + $0x230] sm:$0xff]
  %v5832 = vld [vmem:[%s3 + $0x238] sm:$0xff]
  %v5833 = vld [vmem:[%s3 + $0x240] sm:$0xff]
  %v5834 = vld [vmem:[%s3 + $0x248] sm:$0xff]
  %v5835 = vld [vmem:[%s3 + $0x250] sm:$0xff]
  %v5836 = vld [vmem:[%s3 + $0x258] sm:$0xff]
  %v5837 = vld [vmem:[%s3 + $0x260] sm:$0xff]
  %v5838 = vld [vmem:[%s3 + $0x268] sm:$0xff]
  %v5839 = vld [vmem:[%s3 + $0x270] sm:$0xff]
  %v5840 = vld [vmem:[%s3 + $0x278] sm:$0xff]
  %v5841 = vld [vmem:[%s3 + $0x280] sm:$0xff]
  %v5842 = vld [vmem:[%s3 + $0x288] sm:$0xff]
  %v5843 = vld [vmem:[%s3 + $0x290] sm:$0xff]
  %v5844 = vld [vmem:[%s3 + $0x298] sm:$0xff]
  %v5845 = vld [vmem:[%s3 + $0x2a0] sm:$0xff]
  %v5846 = vld [vmem:[%s3 + $0x2a8] sm:$0xff]
  %v5847 = vld [vmem:[%s3 + $0x2b0] sm:$0xff]
  %v5848 = vld [vmem:[%s3 + $0x2b8] sm:$0xff]
  %v5849 = vld [vmem:[%s3 + $0x2c0] sm:$0xff]
  %v5850 = vld [vmem:[%s3 + $0x2c8] sm:$0xff]
  %v5851 = vld [vmem:[%s3 + $0x2d0] sm:$0xff]
  %v5852 = vld [vmem:[%s3 + $0x2d8] sm:$0xff]
  %v5853 = vld [vmem:[%s3 + $0x2e0] sm:$0xff]
  %v5854 = vld [vmem:[%s3 + $0x2e8] sm:$0xff]
  %v5855 = vld [vmem:[%s3 + $0x2f0] sm:$0xff]
  %v5856 = vld [vmem:[%s3 + $0x2f8] sm:$0xff]
  %v5857 = vld [vmem:[%s3 + $0x300] sm:$0xff]
  %v5858 = vld [vmem:[%s3 + $0x308] sm:$0xff]
  %v5859 = vld [vmem:[%s3 + $0x310] sm:$0xff]
  %v5860 = vld [vmem:[%s3 + $0x318] sm:$0xff]
  %v5861 = vld [vmem:[%s3 + $0x320] sm:$0xff]
  %v5862 = vld [vmem:[%s3 + $0x328] sm:$0xff]
  %v5863 = vld [vmem:[%s3 + $0x330] sm:$0xff]
  %v5864 = vld [vmem:[%s3 + $0x338] sm:$0xff]
  %v5865 = vld [vmem:[%s3 + $0x340] sm:$0xff]
  %v5866 = vld [vmem:[%s3 + $0x348] sm:$0xff]
  %v5867 = vld [vmem:[%s3 + $0x350] sm:$0xff]
  %v5868 = vld [vmem:[%s3 + $0x358] sm:$0xff]
  %v5869 = vld [vmem:[%s3 + $0x360] sm:$0xff]
  %v5870 = vld [vmem:[%s3 + $0x368] sm:$0xff]
  %v5871 = vld [vmem:[%s3 + $0x370] sm:$0xff]
  %v5872 = vld [vmem:[%s3 + $0x378] sm:$0xff]
  %v5873 = vld [vmem:[%s3 + $0x380] sm:$0xff]
  %v5874 = vld [vmem:[%s3 + $0x388] sm:$0xff]
  %v5875 = vld [vmem:[%s3 + $0x390] sm:$0xff]
  %v5876 = vld [vmem:[%s3 + $0x398] sm:$0xff]
  %v5877 = vld [vmem:[%s3 + $0x3a0] sm:$0xff]
  %v5878 = vld [vmem:[%s3 + $0x3a8] sm:$0xff]
  %v5879 = vld [vmem:[%s3 + $0x3b0] sm:$0xff]
  %v5880 = vld [vmem:[%s3 + $0x3b8] sm:$0xff]
  %v5881 = vld [vmem:[%s3 + $0x3c0] sm:$0xff]
  %v5882 = vld [vmem:[%s3 + $0x3c8] sm:$0xff]
  %v5883 = vld [vmem:[%s3 + $0x3d0] sm:$0xff]
  %v5884 = vld [vmem:[%s3 + $0x3d8] sm:$0xff]
  %v5885 = vld [vmem:[%s3 + $0x3e0] sm:$0xff]
  %v5886 = vld [vmem:[%s3 + $0x3e8] sm:$0xff]
  %v5887 = vld [vmem:[%s3 + $0x3f0] sm:$0xff]
  %v5888 = vld [vmem:[%s3 + $0x3f8] sm:$0xff]
  %v5889 = vld [vmem:[%s3 + $0x400] sm:$0xff]
  %v5890 = vld [vmem:[%s3 + $0x408] sm:$0xff]
  %v5891 = vld [vmem:[%s3 + $0x410] sm:$0xff]
  %v5892 = vld [vmem:[%s3 + $0x418] sm:$0xff]
  %v5893 = vld [vmem:[%s3 + $0x420] sm:$0xff]
  %v5894 = vld [vmem:[%s3 + $0x428] sm:$0xff]
  %v5895 = vld [vmem:[%s3 + $0x430] sm:$0xff]
  %v5896 = vld [vmem:[%s3 + $0x438] sm:$0xff]
  %v5897 = vld [vmem:[%s3 + $0x440] sm:$0xff]
  %v5898 = vld [vmem:[%s3 + $0x448] sm:$0xff]
  %v5899 = vld [vmem:[%s3 + $0x450] sm:$0xff]
  %v5900 = vld [vmem:[%s3 + $0x458] sm:$0xff]
  %v5901 = vld [vmem:[%s3 + $0x460] sm:$0xff]
  %v5902 = vld [vmem:[%s3 + $0x468] sm:$0xff]
  %v5903 = vld [vmem:[%s3 + $0x470] sm:$0xff]
  %v5904 = vld [vmem:[%s3 + $0x478] sm:$0xff]
  %v5905 = vld [vmem:[%s3 + $0x480] sm:$0xff]
  %v5906 = vld [vmem:[%s3 + $0x488] sm:$0xff]
  %v5907 = vld [vmem:[%s3 + $0x490] sm:$0xff]
  %v5908 = vld [vmem:[%s3 + $0x498] sm:$0xff]
  %v5909 = vld [vmem:[%s3 + $0x4a0] sm:$0xff]
  %v5910 = vld [vmem:[%s3 + $0x4a8] sm:$0xff]
  %v5911 = vld [vmem:[%s3 + $0x4b0] sm:$0xff]
  %v5912 = vld [vmem:[%s3 + $0x4b8] sm:$0xff]
  %v5913 = vld [vmem:[%s3 + $0x4c0] sm:$0xff]
  %v5914 = vld [vmem:[%s3 + $0x4c8] sm:$0xff]
  %v5915 = vld [vmem:[%s3 + $0x4d0] sm:$0xff]
  %v5916 = vld [vmem:[%s3 + $0x4d8] sm:$0xff]
  %v5917 = vld [vmem:[%s3 + $0x4e0] sm:$0xff]
  %v5918 = vld [vmem:[%s3 + $0x4e8] sm:$0xff]
  %v5919 = vld [vmem:[%s3 + $0x4f0] sm:$0xff]
  %v5920 = vld [vmem:[%s3 + $0x4f8] sm:$0xff]
  %5921 = vmatprep.subr.mxu0 %v5762
  %5922 = vmatpush1.msra.mxu0 %v5761
  %5923 = vmatprep.subr.mxu0 %v5764
  %5924 = vmatpush1.msra.mxu0 %v5763
  %5925 = vmatprep.subr.mxu0 %v5766
  %5926 = vmatpush1.msra.mxu0 %v5765
  %5927 = vmatprep.subr.mxu0 %v5768
  %5928 = vmatpush1.msra.mxu0 %v5767
  %5929 = vmatprep.subr.mxu0 %v5770
  %5930 = vmatpush1.msra.mxu0 %v5769
  %5931 = vmatprep.subr.mxu0 %v5772
  %5932 = vmatpush1.msra.mxu0 %v5771
  %5933 = vmatprep.subr.mxu0 %v5774
  %5934 = vmatpush1.msra.mxu0 %v5773
  %5935 = vmatprep.subr.mxu0 %v5776
  %5936 = vmatpush1.msra.mxu0 %v5775
  %5937 = vmatprep.subr.mxu0 %v5778
  %5938 = vmatpush1.msra.mxu0 %v5777
  %5939 = vmatprep.subr.mxu0 %v5780
  %5940 = vmatpush1.msra.mxu0 %v5779
  %5941 = vmatprep.subr.mxu0 %v5782
  %5942 = vmatpush1.msra.mxu0 %v5781
  %5943 = vmatprep.subr.mxu0 %v5784
  %5944 = vmatpush1.msra.mxu0 %v5783
  %5945 = vmatprep.subr.mxu0 %v5786
  %5946 = vmatpush1.msra.mxu0 %v5785
  %5947 = vmatprep.subr.mxu0 %v5788
  %5948 = vmatpush1.msra.mxu0 %v5787
  %5949 = vmatprep.subr.mxu0 %v5790
  %5950 = vmatpush1.msra.mxu0 %v5789
  %5951 = vmatprep.subr.mxu0 %v5792
  %5952 = vmatpush1.msra.mxu0 %v5791
  %5953 = vmatprep.subr.mxu0 %v5794
  %5954 = vmatpush1.msra.mxu0 %v5793
  %5955 = vmatprep.subr.mxu0 %v5796
  %5956 = vmatpush1.msra.mxu0 %v5795
  %5957 = vmatprep.subr.mxu0 %v5798
  %5958 = vmatpush1.msra.mxu0 %v5797
  %5959 = vmatprep.subr.mxu0 %v5800
  %5960 = vmatpush1.msra.mxu0 %v5799
  %5961 = vmatprep.subr.mxu0 %v5802
  %5962 = vmatpush1.msra.mxu0 %v5801
  %5963 = vmatprep.subr.mxu0 %v5804
  %5964 = vmatpush1.msra.mxu0 %v5803
  %5965 = vmatprep.subr.mxu0 %v5806
  %5966 = vmatpush1.msra.mxu0 %v5805
  %5967 = vmatprep.subr.mxu0 %v5808
  %5968 = vmatpush1.msra.mxu0 %v5807
  %5969 = vmatprep.subr.mxu0 %v5810
  %5970 = vmatpush1.msra.mxu0 %v5809
  %5971 = vmatprep.subr.mxu0 %v5812
  %5972 = vmatpush1.msra.mxu0 %v5811
  %5973 = vmatprep.subr.mxu0 %v5814
  %5974 = vmatpush1.msra.mxu0 %v5813
  %5975 = vmatprep.subr.mxu0 %v5816
  %5976 = vmatpush1.msra.mxu0 %v5815
  %5977 = vmatprep.subr.mxu0 %v5818
  %5978 = vmatpush1.msra.mxu0 %v5817
  %5979 = vmatprep.subr.mxu0 %v5820
  %5980 = vmatpush1.msra.mxu0 %v5819
  %5981 = vmatprep.subr.mxu0 %v5822
  %5982 = vmatpush1.msra.mxu0 %v5821
  %5983 = vmatprep.subr.mxu0 %v5824
  %5984 = vmatpush1.msra.mxu0 %v5823
  %5985 = vmatprep.mubr.f32.mxu0 %v5585
  %5986 = vmatmul.mubr.f32.gmra.mrb[0].mxu0 %v5569
  %v5987 = vpop.f32.mrb[0].mxu0
  %v5988 = vadd.f32 0.0, %v5987
  %v5989 = vpop.f32.mrb[0].mxu0
  %v5990 = vadd.f32 0.0, %v5989
  %5991 = vmatprep.mubr.f32.mxu0 %v5586
  %5992 = vmatmul.mubr.f32.gmra.mrb[0].mxu0 %v5570
  %v5993 = vpop.f32.mrb[0].mxu0
  %v5994 = vadd.f32 0.0, %v5993
  %v5995 = vpop.f32.mrb[0].mxu0
  %v5996 = vadd.f32 0.0, %v5995
  %5997 = vmatprep.mubr.f32.mxu0 %v5587
  %5998 = vmatmul.mubr.f32.gmra.mrb[0].mxu0 %v5571
  %v5999 = vpop.f32.mrb[0].mxu0
  %v6000 = vadd.f32 0.0, %v5999
  %v6001 = vpop.f32.mrb[0].mxu0
  %v6002 = vadd.f32 0.0, %v6001
  %6003 = vmatprep.mubr.f32.mxu0 %v5588
  %6004 = vmatmul.mubr.f32.gmra.mrb[0].mxu0 %v5572
  %v6005 = vpop.f32.mrb[0].mxu0
  %v6006 = vadd.f32 0.0, %v6005
  %v6007 = vpop.f32.mrb[0].mxu0
  %v6008 = vadd.f32 0.0, %v6007
  %6009 = vmatprep.mubr.f32.mxu0 %v5589
  %6010 = vmatmul.mubr.f32.gmra.mrb[0].mxu0 %v5573
  %v6011 = vpop.f32.mrb[0].mxu0
  %v6012 = vadd.f32 0.0, %v6011
  %v6013 = vpop.f32.mrb[0].mxu0
  %v6014 = vadd.f32 0.0, %v6013
  %6015 = vmatprep.mubr.f32.mxu0 %v5590
  %6016 = vmatmul.mubr.f32.gmra.mrb[0].mxu0 %v5574
  %v6017 = vpop.f32.mrb[0].mxu0
  %v6018 = vadd.f32 0.0, %v6017
  %v6019 = vpop.f32.mrb[0].mxu0
  %v6020 = vadd.f32 0.0, %v6019
  %6021 = vmatprep.mubr.f32.mxu0 %v5591
  %6022 = vmatmul.mubr.f32.gmra.mrb[0].mxu0 %v5575
  %v6023 = vpop.f32.mrb[0].mxu0
  %v6024 = vadd.f32 0.0, %v6023
  %v6025 = vpop.f32.mrb[0].mxu0
  %v6026 = vadd.f32 0.0, %v6025
  %6027 = vmatprep.mubr.f32.mxu0 %v5592
  %6028 = vmatmul.mubr.f32.gmra.mrb[0].mxu0 %v5576
  %v6029 = vpop.f32.mrb[0].mxu0
  %v6030 = vadd.f32 0.0, %v6029
  %v6031 = vpop.f32.mrb[0].mxu0
  %v6032 = vadd.f32 0.0, %v6031
  %6033 = vmatprep.mubr.f32.mxu0 %v5593
  %6034 = vmatmul.mubr.f32.gmra.mrb[0].mxu0 %v5577
  %v6035 = vpop.f32.mrb[0].mxu0
  %v6036 = vadd.f32 0.0, %v6035
  %v6037 = vpop.f32.mrb[0].mxu0
  %v6038 = vadd.f32 0.0, %v6037
  %6039 = vmatprep.mubr.f32.mxu0 %v5594
  %6040 = vmatmul.mubr.f32.gmra.mrb[0].mxu0 %v5578
  %v6041 = vpop.f32.mrb[0].mxu0
  %v6042 = vadd.f32 0.0, %v6041
  %v6043 = vpop.f32.mrb[0].mxu0
  %v6044 = vadd.f32 0.0, %v6043
  %6045 = vmatprep.mubr.f32.mxu0 %v5595
  %6046 = vmatmul.mubr.f32.gmra.mrb[0].mxu0 %v5579
  %v6047 = vpop.f32.mrb[0].mxu0
  %v6048 = vadd.f32 0.0, %v6047
  %v6049 = vpop.f32.mrb[0].mxu0
  %v6050 = vadd.f32 0.0, %v6049
  %6051 = vmatprep.mubr.f32.mxu0 %v5596
  %6052 = vmatmul.mubr.f32.gmra.mrb[0].mxu0 %v5580
  %v6053 = vpop.f32.mrb[0].mxu0
  %v6054 = vadd.f32 0.0, %v6053
  %v6055 = vpop.f32.mrb[0].mxu0
  %v6056 = vadd.f32 0.0, %v6055
  %6057 = vmatprep.mubr.f32.mxu0 %v5597
  %6058 = vmatmul.mubr.f32.gmra.mrb[0].mxu0 %v5581
  %v6059 = vpop.f32.mrb[0].mxu0
  %v6060 = vadd.f32 0.0, %v6059
  %v6061 = vpop.f32.mrb[0].mxu0
  %v6062 = vadd.f32 0.0, %v6061
  %6063 = vmatprep.mubr.f32.mxu0 %v5598
  %6064 = vmatmul.mubr.f32.gmra.mrb[0].mxu0 %v5582
  %v6065 = vpop.f32.mrb[0].mxu0
  %v6066 = vadd.f32 0.0, %v6065
  %v6067 = vpop.f32.mrb[0].mxu0
  %v6068 = vadd.f32 0.0, %v6067
  %6069 = vmatprep.mubr.f32.mxu0 %v5599
  %6070 = vmatmul.mubr.f32.gmra.mrb[0].mxu0 %v5583
  %v6071 = vpop.f32.mrb[0].mxu0
  %v6072 = vadd.f32 0.0, %v6071
  %v6073 = vpop.f32.mrb[0].mxu0
  %v6074 = vadd.f32 0.0, %v6073
  %6075 = vmatprep.mubr.f32.mxu0 %v5600
  %6076 = vmatmul.mubr.f32.gmra.mrb[0].mxu0 %v5584
  %v6077 = vpop.f32.mrb[0].mxu0
  %v6078 = vadd.f32 0.0, %v6077
  %v6079 = vpop.f32.mrb[0].mxu0
  %v6080 = vadd.f32 0.0, %v6079
  %6081 = vmatprep.mubr.f32.mxu0 %v5601
  %6082 = vmatmul.mubr.f32.gmra.mrb[0].mxu0 %v5585
  %v6083 = vpop.f32.mrb[0].mxu0
  %v6084 = vadd.f32 0.0, %v6083
  %v6085 = vpop.f32.mrb[0].mxu0
  %v6086 = vadd.f32 0.0, %v6085
  %6087 = vmatprep.mubr.f32.mxu0 %v5602
  %6088 = vmatmul.mubr.f32.gmra.mrb[0].mxu0 %v5586
  %v6089 = vpop.f32.mrb[0].mxu0
  %v6090 = vadd.f32 0.0, %v6089
  %v6091 = vpop.f32.mrb[0].mxu0
  %v6092 = vadd.f32 0.0, %v6091
  %6093 = vmatprep.mubr.f32.mxu0 %v5603
  %6094 = vmatmul.mubr.f32.gmra.mrb[0].mxu0 %v5587
  %v6095 = vpop.f32.mrb[0].mxu0
  %v6096 = vadd.f32 0.0, %v6095
  %v6097 = vpop.f32.mrb[0].mxu0
  %v6098 = vadd.f32 0.0, %v6097
  %6099 = vmatprep.mubr.f32.mxu0 %v5604
  %6100 = vmatmul.mubr.f32.gmra.mrb[0].mxu0 %v5588
  %v6101 = vpop.f32.mrb[0].mxu0
  %v6102 = vadd.f32 0.0, %v6101
  %v6103 = vpop.f32.mrb[0].mxu0
  %v6104 = vadd.f32 0.0, %v6103
  %6105 = vmatprep.mubr.f32.mxu0 %v5605
  %6106 = vmatmul.mubr.f32.gmra.mrb[0].mxu0 %v5589
  %v6107 = vpop.f32.mrb[0].mxu0
  %v6108 = vadd.f32 0.0, %v6107
  %v6109 = vpop.f32.mrb[0].mxu0
  %v6110 = vadd.f32 0.0, %v6109
  %6111 = vmatprep.mubr.f32.mxu0 %v5606
  %6112 = vmatmul.mubr.f32.gmra.mrb[0].mxu0 %v5590
  %v6113 = vpop.f32.mrb[0].mxu0
  %v6114 = vadd.f32 0.0, %v6113
  %v6115 = vpop.f32.mrb[0].mxu0
  %v6116 = vadd.f32 0.0, %v6115
  %6117 = vmatprep.mubr.f32.mxu0 %v5607
  %6118 = vmatmul.mubr.f32.gmra.mrb[0].mxu0 %v5591
  %v6119 = vpop.f32.mrb[0].mxu0
  %v6120 = vadd.f32 0.0, %v6119
  %v6121 = vpop.f32.mrb[0].mxu0
  %v6122 = vadd.f32 0.0, %v6121
  %6123 = vmatprep.mubr.f32.mxu0 %v5608
  %6124 = vmatmul.mubr.f32.gmra.mrb[0].mxu0 %v5592
  %v6125 = vpop.f32.mrb[0].mxu0
  %v6126 = vadd.f32 0.0, %v6125
  %v6127 = vpop.f32.mrb[0].mxu0
  %v6128 = vadd.f32 0.0, %v6127
  %6129 = vmatprep.mubr.f32.mxu0 %v5609
  %6130 = vmatmul.mubr.f32.gmra.mrb[0].mxu0 %v5593
  %v6131 = vpop.f32.mrb[0].mxu0
  %v6132 = vadd.f32 0.0, %v6131
  %v6133 = vpop.f32.mrb[0].mxu0
  %v6134 = vadd.f32 0.0, %v6133
  %6135 = vmatprep.mubr.f32.mxu0 %v5610
  %6136 = vmatmul.mubr.f32.gmra.mrb[0].mxu0 %v5594
  %v6137 = vpop.f32.mrb[0].mxu0
  %v6138 = vadd.f32 0.0, %v6137
  %v6139 = vpop.f32.mrb[0].mxu0
  %v6140 = vadd.f32 0.0, %v6139
  %6141 = vmatprep.mubr.f32.mxu0 %v5611
  %6142 = vmatmul.mubr.f32.gmra.mrb[0].mxu0 %v5595
  %v6143 = vpop.f32.mrb[0].mxu0
  %v6144 = vadd.f32 0.0, %v6143
  %v6145 = vpop.f32.mrb[0].mxu0
  %v6146 = vadd.f32 0.0, %v6145
  %6147 = vmatprep.mubr.f32.mxu0 %v5612
  %6148 = vmatmul.mubr.f32.gmra.mrb[0].mxu0 %v5596
  %v6149 = vpop.f32.mrb[0].mxu0
  %v6150 = vadd.f32 0.0, %v6149
  %v6151 = vpop.f32.mrb[0].mxu0
  %v6152 = vadd.f32 0.0, %v6151
  %6153 = vmatprep.mubr.f32.mxu0 %v5613
  %6154 = vmatmul.mubr.f32.gmra.mrb[0].mxu0 %v5597
  %v6155 = vpop.f32.mrb[0].mxu0
  %v6156 = vadd.f32 0.0, %v6155
  %v6157 = vpop.f32.mrb[0].mxu0
  %v6158 = vadd.f32 0.0, %v6157
  %6159 = vmatprep.mubr.f32.mxu0 %v5614
  %6160 = vmatmul.mubr.f32.gmra.mrb[0].mxu0 %v5598
  %v6161 = vpop.f32.mrb[0].mxu0
  %v6162 = vadd.f32 0.0, %v6161
  %v6163 = vpop.f32.mrb[0].mxu0
  %v6164 = vadd.f32 0.0, %v6163
  %6165 = vmatprep.mubr.f32.mxu0 %v5615
  %6166 = vmatmul.mubr.f32.gmra.mrb[0].mxu0 %v5599
  %v6167 = vpop.f32.mrb[0].mxu0
  %v6168 = vadd.f32 0.0, %v6167
  %v6169 = vpop.f32.mrb[0].mxu0
  %v6170 = vadd.f32 0.0, %v6169
  %6171 = vmatprep.mubr.f32.mxu0 %v5616
  %6172 = vmatmul.mubr.f32.gmra.mrb[0].mxu0 %v5600
  %v6173 = vpop.f32.mrb[0].mxu0
  %v6174 = vadd.f32 0.0, %v6173
  %v6175 = vpop.f32.mrb[0].mxu0
  %v6176 = vadd.f32 0.0, %v6175
  %6177 = vmatprep.mubr.f32.mxu0 %v5617
  %6178 = vmatmul.mubr.f32.gmra.mrb[0].mxu0 %v5601
  %v6179 = vpop.f32.mrb[0].mxu0
  %v6180 = vadd.f32 0.0, %v6179
  %v6181 = vpop.f32.mrb[0].mxu0
  %v6182 = vadd.f32 0.0, %v6181
  %6183 = vmatprep.mubr.f32.mxu0 %v5618
  %6184 = vmatmul.mubr.f32.gmra.mrb[0].mxu0 %v5602
  %v6185 = vpop.f32.mrb[0].mxu0
  %v6186 = vadd.f32 0.0, %v6185
  %v6187 = vpop.f32.mrb[0].mxu0
  %v6188 = vadd.f32 0.0, %v6187
  %6189 = vmatprep.mubr.f32.mxu0 %v5619
  %6190 = vmatmul.mubr.f32.gmra.mrb[0].mxu0 %v5603
  %v6191 = vpop.f32.mrb[0].mxu0
  %v6192 = vadd.f32 0.0, %v6191
  %v6193 = vpop.f32.mrb[0].mxu0
  %v6194 = vadd.f32 0.0, %v6193
  %6195 = vmatprep.mubr.f32.mxu0 %v5620
  %6196 = vmatmul.mubr.f32.gmra.mrb[0].mxu0 %v5604
  %v6197 = vpop.f32.mrb[0].mxu0
  %v6198 = vadd.f32 0.0, %v6197
  %v6199 = vpop.f32.mrb[0].mxu0
  %v6200 = vadd.f32 0.0, %v6199
  %6201 = vmatprep.mubr.f32.mxu0 %v5621
  %6202 = vmatmul.mubr.f32.gmra.mrb[0].mxu0 %v5605
  %v6203 = vpop.f32.mrb[0].mxu0
  %v6204 = vadd.f32 0.0, %v6203
  %v6205 = vpop.f32.mrb[0].mxu0
  %v6206 = vadd.f32 0.0, %v6205
  %6207 = vmatprep.mubr.f32.mxu0 %v5622
  %6208 = vmatmul.mubr.f32.gmra.mrb[0].mxu0 %v5606
  %v6209 = vpop.f32.mrb[0].mxu0
  %v6210 = vadd.f32 0.0, %v6209
  %v6211 = vpop.f32.mrb[0].mxu0
  %v6212 = vadd.f32 0.0, %v6211
  %6213 = vmatprep.mubr.f32.mxu0 %v5623
  %6214 = vmatmul.mubr.f32.gmra.mrb[0].mxu0 %v5607
  %v6215 = vpop.f32.mrb[0].mxu0
  %v6216 = vadd.f32 0.0, %v6215
  %v6217 = vpop.f32.mrb[0].mxu0
  %v6218 = vadd.f32 0.0, %v6217
  %6219 = vmatprep.mubr.f32.mxu0 %v5624
  %6220 = vmatmul.mubr.f32.gmra.mrb[0].mxu0 %v5608
  %v6221 = vpop.f32.mrb[0].mxu0
  %v6222 = vadd.f32 0.0, %v6221
  %v6223 = vpop.f32.mrb[0].mxu0
  %v6224 = vadd.f32 0.0, %v6223
  %6225 = vmatprep.mubr.f32.mxu0 %v5625
  %6226 = vmatmul.mubr.f32.gmra.mrb[0].mxu0 %v5609
  %v6227 = vpop.f32.mrb[0].mxu0
  %v6228 = vadd.f32 0.0, %v6227
  %v6229 = vpop.f32.mrb[0].mxu0
  %v6230 = vadd.f32 0.0, %v6229
  %6231 = vmatprep.mubr.f32.mxu0 %v5626
  %6232 = vmatmul.mubr.f32.gmra.mrb[0].mxu0 %v5610
  %v6233 = vpop.f32.mrb[0].mxu0
  %v6234 = vadd.f32 0.0, %v6233
  %v6235 = vpop.f32.mrb[0].mxu0
  %v6236 = vadd.f32 0.0, %v6235
  %6237 = vmatprep.mubr.f32.mxu0 %v5627
  %6238 = vmatmul.mubr.f32.gmra.mrb[0].mxu0 %v5611
  %v6239 = vpop.f32.mrb[0].mxu0
  %v6240 = vadd.f32 0.0, %v6239
  %v6241 = vpop.f32.mrb[0].mxu0
  %v6242 = vadd.f32 0.0, %v6241
  %6243 = vmatprep.mubr.f32.mxu0 %v5628
  %6244 = vmatmul.mubr.f32.gmra.mrb[0].mxu0 %v5612
  %v6245 = vpop.f32.mrb[0].mxu0
  %v6246 = vadd.f32 0.0, %v6245
  %v6247 = vpop.f32.mrb[0].mxu0
  %v6248 = vadd.f32 0.0, %v6247
  %6249 = vmatprep.mubr.f32.mxu0 %v5629
  %6250 = vmatmul.mubr.f32.gmra.mrb[0].mxu0 %v5613
  %v6251 = vpop.f32.mrb[0].mxu0
  %v6252 = vadd.f32 0.0, %v6251
  %v6253 = vpop.f32.mrb[0].mxu0
  %v6254 = vadd.f32 0.0, %v6253
  %6255 = vmatprep.mubr.f32.mxu0 %v5630
  %6256 = vmatmul.mubr.f32.gmra.mrb[0].mxu0 %v5614
  %v6257 = vpop.f32.mrb[0].mxu0
  %v6258 = vadd.f32 0.0, %v6257
  %v6259 = vpop.f32.mrb[0].mxu0
  %v6260 = vadd.f32 0.0, %v6259
  %6261 = vmatprep.mubr.f32.mxu0 %v5631
  %6262 = vmatmul.mubr.f32.gmra.mrb[0].mxu0 %v5615
  %v6263 = vpop.f32.mrb[0].mxu0
  %v6264 = vadd.f32 0.0, %v6263
  %v6265 = vpop.f32.mrb[0].mxu0
  %v6266 = vadd.f32 0.0, %v6265
  %6267 = vmatprep.mubr.f32.mxu0 %v5632
  %6268 = vmatmul.mubr.f32.gmra.mrb[0].mxu0 %v5616
  %v6269 = vpop.f32.mrb[0].mxu0
  %v6270 = vadd.f32 0.0, %v6269
  %v6271 = vpop.f32.mrb[0].mxu0
  %v6272 = vadd.f32 0.0, %v6271
  %6273 = vmatprep.mubr.f32.mxu0 %v5633
  %6274 = vmatmul.mubr.f32.gmra.mrb[0].mxu0 %v5617
  %v6275 = vpop.f32.mrb[0].mxu0
  %v6276 = vadd.f32 0.0, %v6275
  %v6277 = vpop.f32.mrb[0].mxu0
  %v6278 = vadd.f32 0.0, %v6277
  %6279 = vmatprep.mubr.f32.mxu0 %v5634
  %6280 = vmatmul.mubr.f32.gmra.mrb[0].mxu0 %v5618
  %v6281 = vpop.f32.mrb[0].mxu0
  %v6282 = vadd.f32 0.0, %v6281
  %v6283 = vpop.f32.mrb[0].mxu0
  %v6284 = vadd.f32 0.0, %v6283
  %6285 = vmatprep.mubr.f32.mxu0 %v5635
  %6286 = vmatmul.mubr.f32.gmra.mrb[0].mxu0 %v5619
  %v6287 = vpop.f32.mrb[0].mxu0
  %v6288 = vadd.f32 0.0, %v6287
  %v6289 = vpop.f32.mrb[0].mxu0
  %v6290 = vadd.f32 0.0, %v6289
  %6291 = vmatprep.mubr.f32.mxu0 %v5636
  %6292 = vmatmul.mubr.f32.gmra.mrb[0].mxu0 %v5620
  %v6293 = vpop.f32.mrb[0].mxu0
  %v6294 = vadd.f32 0.0, %v6293
  %v6295 = vpop.f32.mrb[0].mxu0
  %v6296 = vadd.f32 0.0, %v6295
  %6297 = vmatprep.mubr.f32.mxu0 %v5637
  %6298 = vmatmul.mubr.f32.gmra.mrb[0].mxu0 %v5621
  %v6299 = vpop.f32.mrb[0].mxu0
  %v6300 = vadd.f32 0.0, %v6299
  %v6301 = vpop.f32.mrb[0].mxu0
  %v6302 = vadd.f32 0.0, %v6301
  %6303 = vmatprep.mubr.f32.mxu0 %v5638
  %6304 = vmatmul.mubr.f32.gmra.mrb[0].mxu0 %v5622
  %v6305 = vpop.f32.mrb[0].mxu0
  %v6306 = vadd.f32 0.0, %v6305
  %v6307 = vpop.f32.mrb[0].mxu0
  %v6308 = vadd.f32 0.0, %v6307
  %6309 = vmatprep.mubr.f32.mxu0 %v5639
  %6310 = vmatmul.mubr.f32.gmra.mrb[0].mxu0 %v5623
  %v6311 = vpop.f32.mrb[0].mxu0
  %v6312 = vadd.f32 0.0, %v6311
  %v6313 = vpop.f32.mrb[0].mxu0
  %v6314 = vadd.f32 0.0, %v6313
  %6315 = vmatprep.mubr.f32.mxu0 %v5640
  %6316 = vmatmul.mubr.f32.gmra.mrb[0].mxu0 %v5624
  %v6317 = vpop.f32.mrb[0].mxu0
  %v6318 = vadd.f32 0.0, %v6317
  %v6319 = vpop.f32.mrb[0].mxu0
  %v6320 = vadd.f32 0.0, %v6319
  %6321 = vmatprep.mubr.f32.mxu0 %v5641
  %6322 = vmatmul.mubr.f32.gmra.mrb[0].mxu0 %v5625
  %v6323 = vpop.f32.mrb[0].mxu0
  %v6324 = vadd.f32 0.0, %v6323
  %v6325 = vpop.f32.mrb[0].mxu0
  %v6326 = vadd.f32 0.0, %v6325
  %6327 = vmatprep.mubr.f32.mxu0 %v5642
  %6328 = vmatmul.mubr.f32.gmra.mrb[0].mxu0 %v5626
  %v6329 = vpop.f32.mrb[0].mxu0
  %v6330 = vadd.f32 0.0, %v6329
  %v6331 = vpop.f32.mrb[0].mxu0
  %v6332 = vadd.f32 0.0, %v6331
  %6333 = vmatprep.mubr.f32.mxu0 %v5643
  %6334 = vmatmul.mubr.f32.gmra.mrb[0].mxu0 %v5627
  %v6335 = vpop.f32.mrb[0].mxu0
  %v6336 = vadd.f32 0.0, %v6335
  %v6337 = vpop.f32.mrb[0].mxu0
  %v6338 = vadd.f32 0.0, %v6337
  %6339 = vmatprep.mubr.f32.mxu0 %v5644
  %6340 = vmatmul.mubr.f32.gmra.mrb[0].mxu0 %v5628
  %v6341 = vpop.f32.mrb[0].mxu0
  %v6342 = vadd.f32 0.0, %v6341
  %v6343 = vpop.f32.mrb[0].mxu0
  %v6344 = vadd.f32 0.0, %v6343
  %6345 = vmatprep.mubr.f32.mxu0 %v5645
  %6346 = vmatmul.mubr.f32.gmra.mrb[0].mxu0 %v5629
  %v6347 = vpop.f32.mrb[0].mxu0
  %v6348 = vadd.f32 0.0, %v6347
  %v6349 = vpop.f32.mrb[0].mxu0
  %v6350 = vadd.f32 0.0, %v6349
  %6351 = vmatprep.mubr.f32.mxu0 %v5646
  %6352 = vmatmul.mubr.f32.gmra.mrb[0].mxu0 %v5630
  %v6353 = vpop.f32.mrb[0].mxu0
  %v6354 = vadd.f32 0.0, %v6353
  %v6355 = vpop.f32.mrb[0].mxu0
  %v6356 = vadd.f32 0.0, %v6355
  %6357 = vmatprep.mubr.f32.mxu0 %v5647
  %6358 = vmatmul.mubr.f32.gmra.mrb[0].mxu0 %v5631
  %v6359 = vpop.f32.mrb[0].mxu0
  %v6360 = vadd.f32 0.0, %v6359
  %v6361 = vpop.f32.mrb[0].mxu0
  %v6362 = vadd.f32 0.0, %v6361
  %6363 = vmatprep.mubr.f32.mxu0 %v5648
  %6364 = vmatmul.mubr.f32.gmra.mrb[0].mxu0 %v5632
  %v6365 = vpop.f32.mrb[0].mxu0
  %v6366 = vadd.f32 0.0, %v6365
  %v6367 = vpop.f32.mrb[0].mxu0
  %v6368 = vadd.f32 0.0, %v6367
  %6369 = vmatprep.mubr.f32.mxu0 %v5649
  %6370 = vmatmul.mubr.f32.gmra.mrb[0].mxu0 %v5633
  %v6371 = vpop.f32.mrb[0].mxu0
  %v6372 = vadd.f32 0.0, %v6371
  %v6373 = vpop.f32.mrb[0].mxu0
  %v6374 = vadd.f32 0.0, %v6373
  %6375 = vmatprep.mubr.f32.mxu0 %v5650
  %6376 = vmatmul.mubr.f32.gmra.mrb[0].mxu0 %v5634
  %v6377 = vpop.f32.mrb[0].mxu0
  %v6378 = vadd.f32 0.0, %v6377
  %v6379 = vpop.f32.mrb[0].mxu0
  %v6380 = vadd.f32 0.0, %v6379
  %6381 = vmatprep.mubr.f32.mxu0 %v5651
  %6382 = vmatmul.mubr.f32.gmra.mrb[0].mxu0 %v5635
  %v6383 = vpop.f32.mrb[0].mxu0
  %v6384 = vadd.f32 0.0, %v6383
  %v6385 = vpop.f32.mrb[0].mxu0
  %v6386 = vadd.f32 0.0, %v6385
  %6387 = vmatprep.mubr.f32.mxu0 %v5652
  %6388 = vmatmul.mubr.f32.gmra.mrb[0].mxu0 %v5636
  %v6389 = vpop.f32.mrb[0].mxu0
  %v6390 = vadd.f32 0.0, %v6389
  %v6391 = vpop.f32.mrb[0].mxu0
  %v6392 = vadd.f32 0.0, %v6391
  %6393 = vmatprep.mubr.f32.mxu0 %v5653
  %6394 = vmatmul.mubr.f32.gmra.mrb[0].mxu0 %v5637
  %v6395 = vpop.f32.mrb[0].mxu0
  %v6396 = vadd.f32 0.0, %v6395
  %v6397 = vpop.f32.mrb[0].mxu0
  %v6398 = vadd.f32 0.0, %v6397
  %6399 = vmatprep.mubr.f32.mxu0 %v5654
  %6400 = vmatmul.mubr.f32.gmra.mrb[0].mxu0 %v5638
  %v6401 = vpop.f32.mrb[0].mxu0
  %v6402 = vadd.f32 0.0, %v6401
  %v6403 = vpop.f32.mrb[0].mxu0
  %v6404 = vadd.f32 0.0, %v6403
  %6405 = vmatprep.mubr.f32.mxu0 %v5655
  %6406 = vmatmul.mubr.f32.gmra.mrb[0].mxu0 %v5639
  %v6407 = vpop.f32.mrb[0].mxu0
  %v6408 = vadd.f32 0.0, %v6407
  %v6409 = vpop.f32.mrb[0].mxu0
  %v6410 = vadd.f32 0.0, %v6409
  %6411 = vmatprep.mubr.f32.mxu0 %v5656
  %6412 = vmatmul.mubr.f32.gmra.mrb[0].mxu0 %v5640
  %v6413 = vpop.f32.mrb[0].mxu0
  %v6414 = vadd.f32 0.0, %v6413
  %v6415 = vpop.f32.mrb[0].mxu0
  %v6416 = vadd.f32 0.0, %v6415
  %6417 = vmatprep.mubr.f32.mxu0 %v5657
  %6418 = vmatmul.mubr.f32.gmra.mrb[0].mxu0 %v5641
  %v6419 = vpop.f32.mrb[0].mxu0
  %v6420 = vadd.f32 0.0, %v6419
  %v6421 = vpop.f32.mrb[0].mxu0
  %v6422 = vadd.f32 0.0, %v6421
  %6423 = vmatprep.mubr.f32.mxu0 %v5658
  %6424 = vmatmul.mubr.f32.gmra.mrb[0].mxu0 %v5642
  %v6425 = vpop.f32.mrb[0].mxu0
  %v6426 = vadd.f32 0.0, %v6425
  %v6427 = vpop.f32.mrb[0].mxu0
  %v6428 = vadd.f32 0.0, %v6427
  %6429 = vmatprep.mubr.f32.mxu0 %v5659
  %6430 = vmatmul.mubr.f32.gmra.mrb[0].mxu0 %v5643
  %v6431 = vpop.f32.mrb[0].mxu0
  %v6432 = vadd.f32 0.0, %v6431
  %v6433 = vpop.f32.mrb[0].mxu0
  %v6434 = vadd.f32 0.0, %v6433
  %6435 = vmatprep.mubr.f32.mxu0 %v5660
  %6436 = vmatmul.mubr.f32.gmra.mrb[0].mxu0 %v5644
  %v6437 = vpop.f32.mrb[0].mxu0
  %v6438 = vadd.f32 0.0, %v6437
  %v6439 = vpop.f32.mrb[0].mxu0
  %v6440 = vadd.f32 0.0, %v6439
  %6441 = vmatprep.mubr.f32.mxu0 %v5661
  %6442 = vmatmul.mubr.f32.gmra.mrb[0].mxu0 %v5645
  %v6443 = vpop.f32.mrb[0].mxu0
  %v6444 = vadd.f32 0.0, %v6443
  %v6445 = vpop.f32.mrb[0].mxu0
  %v6446 = vadd.f32 0.0, %v6445
  %6447 = vmatprep.mubr.f32.mxu0 %v5662
  %6448 = vmatmul.mubr.f32.gmra.mrb[0].mxu0 %v5646
  %v6449 = vpop.f32.mrb[0].mxu0
  %v6450 = vadd.f32 0.0, %v6449
  %v6451 = vpop.f32.mrb[0].mxu0
  %v6452 = vadd.f32 0.0, %v6451
  %6453 = vmatprep.mubr.f32.mxu0 %v5663
  %6454 = vmatmul.mubr.f32.gmra.mrb[0].mxu0 %v5647
  %v6455 = vpop.f32.mrb[0].mxu0
  %v6456 = vadd.f32 0.0, %v6455
  %v6457 = vpop.f32.mrb[0].mxu0
  %v6458 = vadd.f32 0.0, %v6457
  %6459 = vmatprep.mubr.f32.mxu0 %v5664
  %6460 = vmatmul.mubr.f32.gmra.mrb[0].mxu0 %v5648
  %v6461 = vpop.f32.mrb[0].mxu0
  %v6462 = vadd.f32 0.0, %v6461
  %v6463 = vpop.f32.mrb[0].mxu0
  %v6464 = vadd.f32 0.0, %v6463
  %6465 = vmatprep.mubr.f32.mxu0 %v5665
  %6466 = vmatmul.mubr.f32.gmra.mrb[0].mxu0 %v5649
  %v6467 = vpop.f32.mrb[0].mxu0
  %v6468 = vadd.f32 0.0, %v6467
  %v6469 = vpop.f32.mrb[0].mxu0
  %v6470 = vadd.f32 0.0, %v6469
  %6471 = vmatprep.mubr.f32.mxu0 %v5666
  %6472 = vmatmul.mubr.f32.gmra.mrb[0].mxu0 %v5650
  %v6473 = vpop.f32.mrb[0].mxu0
  %v6474 = vadd.f32 0.0, %v6473
  %v6475 = vpop.f32.mrb[0].mxu0
  %v6476 = vadd.f32 0.0, %v6475
  %6477 = vmatprep.mubr.f32.mxu0 %v5667
  %6478 = vmatmul.mubr.f32.gmra.mrb[0].mxu0 %v5651
  %v6479 = vpop.f32.mrb[0].mxu0
  %v6480 = vadd.f32 0.0, %v6479
  %v6481 = vpop.f32.mrb[0].mxu0
  %v6482 = vadd.f32 0.0, %v6481
  %6483 = vmatprep.mubr.f32.mxu0 %v5668
  %6484 = vmatmul.mubr.f32.gmra.mrb[0].mxu0 %v5652
  %v6485 = vpop.f32.mrb[0].mxu0
  %v6486 = vadd.f32 0.0, %v6485
  %v6487 = vpop.f32.mrb[0].mxu0
  %v6488 = vadd.f32 0.0, %v6487
  %6489 = vmatprep.mubr.f32.mxu0 %v5669
  %6490 = vmatmul.mubr.f32.gmra.mrb[0].mxu0 %v5653
  %v6491 = vpop.f32.mrb[0].mxu0
  %v6492 = vadd.f32 0.0, %v6491
  %v6493 = vpop.f32.mrb[0].mxu0
  %v6494 = vadd.f32 0.0, %v6493
  %6495 = vmatprep.mubr.f32.mxu0 %v5670
  %6496 = vmatmul.mubr.f32.gmra.mrb[0].mxu0 %v5654
  %v6497 = vpop.f32.mrb[0].mxu0
  %v6498 = vadd.f32 0.0, %v6497
  %v6499 = vpop.f32.mrb[0].mxu0
  %v6500 = vadd.f32 0.0, %v6499
  %6501 = vmatprep.mubr.f32.mxu0 %v5671
  %6502 = vmatmul.mubr.f32.gmra.mrb[0].mxu0 %v5655
  %v6503 = vpop.f32.mrb[0].mxu0
  %v6504 = vadd.f32 0.0, %v6503
  %v6505 = vpop.f32.mrb[0].mxu0
  %v6506 = vadd.f32 0.0, %v6505
  %6507 = vmatprep.mubr.f32.mxu0 %v5672
  %6508 = vmatmul.mubr.f32.gmra.mrb[0].mxu0 %v5656
  %v6509 = vpop.f32.mrb[0].mxu0
  %v6510 = vadd.f32 0.0, %v6509
  %v6511 = vpop.f32.mrb[0].mxu0
  %v6512 = vadd.f32 0.0, %v6511
  %6513 = vmatprep.mubr.f32.mxu0 %v5673
  %6514 = vmatmul.mubr.f32.gmra.mrb[0].mxu0 %v5657
  %v6515 = vpop.f32.mrb[0].mxu0
  %v6516 = vadd.f32 0.0, %v6515
  %v6517 = vpop.f32.mrb[0].mxu0
  %v6518 = vadd.f32 0.0, %v6517
  %6519 = vmatprep.mubr.f32.mxu0 %v5674
  %6520 = vmatmul.mubr.f32.gmra.mrb[0].mxu0 %v5658
  %v6521 = vpop.f32.mrb[0].mxu0
  %v6522 = vadd.f32 0.0, %v6521
  %v6523 = vpop.f32.mrb[0].mxu0
  %v6524 = vadd.f32 0.0, %v6523
  %6525 = vmatprep.mubr.f32.mxu0 %v5675
  %6526 = vmatmul.mubr.f32.gmra.mrb[0].mxu0 %v5659
  %v6527 = vpop.f32.mrb[0].mxu0
  %v6528 = vadd.f32 0.0, %v6527
  %v6529 = vpop.f32.mrb[0].mxu0
  %v6530 = vadd.f32 0.0, %v6529
  %6531 = vmatprep.mubr.f32.mxu0 %v5676
  %6532 = vmatmul.mubr.f32.gmra.mrb[0].mxu0 %v5660
  %v6533 = vpop.f32.mrb[0].mxu0
  %v6534 = vadd.f32 0.0, %v6533
  %v6535 = vpop.f32.mrb[0].mxu0
  %v6536 = vadd.f32 0.0, %v6535
  %6537 = vmatprep.mubr.f32.mxu0 %v5677
  %6538 = vmatmul.mubr.f32.gmra.mrb[0].mxu0 %v5661
  %v6539 = vpop.f32.mrb[0].mxu0
  %v6540 = vadd.f32 0.0, %v6539
  %v6541 = vpop.f32.mrb[0].mxu0
  %v6542 = vadd.f32 0.0, %v6541
  %6543 = vmatprep.mubr.f32.mxu0 %v5678
  %6544 = vmatmul.mubr.f32.gmra.mrb[0].mxu0 %v5662
  %v6545 = vpop.f32.mrb[0].mxu0
  %v6546 = vadd.f32 0.0, %v6545
  %v6547 = vpop.f32.mrb[0].mxu0
  %v6548 = vadd.f32 0.0, %v6547
  %6549 = vmatprep.mubr.f32.mxu0 %v5679
  %6550 = vmatmul.mubr.f32.gmra.mrb[0].mxu0 %v5663
  %v6551 = vpop.f32.mrb[0].mxu0
  %v6552 = vadd.f32 0.0, %v6551
  %v6553 = vpop.f32.mrb[0].mxu0
  %v6554 = vadd.f32 0.0, %v6553
  %6555 = vmatprep.mubr.f32.mxu0 %v5680
  %6556 = vmatmul.mubr.f32.gmra.mrb[0].mxu0 %v5664
  %v6557 = vpop.f32.mrb[0].mxu0
  %v6558 = vadd.f32 0.0, %v6557
  %v6559 = vpop.f32.mrb[0].mxu0
  %v6560 = vadd.f32 0.0, %v6559
  %6561 = vmatprep.mubr.f32.mxu0 %v5681
  %6562 = vmatmul.mubr.f32.gmra.mrb[0].mxu0 %v5665
  %v6563 = vpop.f32.mrb[0].mxu0
  %v6564 = vadd.f32 0.0, %v6563
  %v6565 = vpop.f32.mrb[0].mxu0
  %v6566 = vadd.f32 0.0, %v6565
  %6567 = vmatprep.mubr.f32.mxu0 %v5682
  %6568 = vmatmul.mubr.f32.gmra.mrb[0].mxu0 %v5666
  %v6569 = vpop.f32.mrb[0].mxu0
  %v6570 = vadd.f32 0.0, %v6569
  %v6571 = vpop.f32.mrb[0].mxu0
  %v6572 = vadd.f32 0.0, %v6571
  %6573 = vmatprep.mubr.f32.mxu0 %v5683
  %6574 = vmatmul.mubr.f32.gmra.mrb[0].mxu0 %v5667
  %v6575 = vpop.f32.mrb[0].mxu0
  %v6576 = vadd.f32 0.0, %v6575
  %v6577 = vpop.f32.mrb[0].mxu0
  %v6578 = vadd.f32 0.0, %v6577
  %6579 = vmatprep.mubr.f32.mxu0 %v5684
  %6580 = vmatmul.mubr.f32.gmra.mrb[0].mxu0 %v5668
  %v6581 = vpop.f32.mrb[0].mxu0
  %v6582 = vadd.f32 0.0, %v6581
  %v6583 = vpop.f32.mrb[0].mxu0
  %v6584 = vadd.f32 0.0, %v6583
  %6585 = vmatprep.mubr.f32.mxu0 %v5685
  %6586 = vmatmul.mubr.f32.gmra.mrb[0].mxu0 %v5669
  %v6587 = vpop.f32.mrb[0].mxu0
  %v6588 = vadd.f32 0.0, %v6587
  %v6589 = vpop.f32.mrb[0].mxu0
  %v6590 = vadd.f32 0.0, %v6589
  %6591 = vmatprep.mubr.f32.mxu0 %v5686
  %6592 = vmatmul.mubr.f32.gmra.mrb[0].mxu0 %v5670
  %v6593 = vpop.f32.mrb[0].mxu0
  %v6594 = vadd.f32 0.0, %v6593
  %v6595 = vpop.f32.mrb[0].mxu0
  %v6596 = vadd.f32 0.0, %v6595
  %6597 = vmatprep.mubr.f32.mxu0 %v5687
  %6598 = vmatmul.mubr.f32.gmra.mrb[0].mxu0 %v5671
  %v6599 = vpop.f32.mrb[0].mxu0
  %v6600 = vadd.f32 0.0, %v6599
  %v6601 = vpop.f32.mrb[0].mxu0
  %v6602 = vadd.f32 0.0, %v6601
  %6603 = vmatprep.mubr.f32.mxu0 %v5688
  %6604 = vmatmul.mubr.f32.gmra.mrb[0].mxu0 %v5672
  %v6605 = vpop.f32.mrb[0].mxu0
  %v6606 = vadd.f32 0.0, %v6605
  %v6607 = vpop.f32.mrb[0].mxu0
  %v6608 = vadd.f32 0.0, %v6607
  %6609 = vmatprep.mubr.f32.mxu0 %v5689
  %6610 = vmatmul.mubr.f32.gmra.mrb[0].mxu0 %v5673
  %v6611 = vpop.f32.mrb[0].mxu0
  %v6612 = vadd.f32 0.0, %v6611
  %v6613 = vpop.f32.mrb[0].mxu0
  %v6614 = vadd.f32 0.0, %v6613
  %6615 = vmatprep.mubr.f32.mxu0 %v5690
  %6616 = vmatmul.mubr.f32.gmra.mrb[0].mxu0 %v5674
  %v6617 = vpop.f32.mrb[0].mxu0
  %v6618 = vadd.f32 0.0, %v6617
  %v6619 = vpop.f32.mrb[0].mxu0
  %v6620 = vadd.f32 0.0, %v6619
  %6621 = vmatprep.mubr.f32.mxu0 %v5691
  %6622 = vmatmul.mubr.f32.gmra.mrb[0].mxu0 %v5675
  %v6623 = vpop.f32.mrb[0].mxu0
  %v6624 = vadd.f32 0.0, %v6623
  %v6625 = vpop.f32.mrb[0].mxu0
  %v6626 = vadd.f32 0.0, %v6625
  %6627 = vmatprep.mubr.f32.mxu0 %v5692
  %6628 = vmatmul.mubr.f32.gmra.mrb[0].mxu0 %v5676
  %v6629 = vpop.f32.mrb[0].mxu0
  %v6630 = vadd.f32 0.0, %v6629
  %v6631 = vpop.f32.mrb[0].mxu0
  %v6632 = vadd.f32 0.0, %v6631
  %6633 = vmatprep.mubr.f32.mxu0 %v5693
  %6634 = vmatmul.mubr.f32.gmra.mrb[0].mxu0 %v5677
  %v6635 = vpop.f32.mrb[0].mxu0
  %v6636 = vadd.f32 0.0, %v6635
  %v6637 = vpop.f32.mrb[0].mxu0
  %v6638 = vadd.f32 0.0, %v6637
  %6639 = vmatprep.mubr.f32.mxu0 %v5694
  %6640 = vmatmul.mubr.f32.gmra.mrb[0].mxu0 %v5678
  %v6641 = vpop.f32.mrb[0].mxu0
  %v6642 = vadd.f32 0.0, %v6641
  %v6643 = vpop.f32.mrb[0].mxu0
  %v6644 = vadd.f32 0.0, %v6643
  %6645 = vmatprep.mubr.f32.mxu0 %v5695
  %6646 = vmatmul.mubr.f32.gmra.mrb[0].mxu0 %v5679
  %v6647 = vpop.f32.mrb[0].mxu0
  %v6648 = vadd.f32 0.0, %v6647
  %v6649 = vpop.f32.mrb[0].mxu0
  %v6650 = vadd.f32 0.0, %v6649
  %6651 = vmatprep.mubr.f32.mxu0 %v5696
  %6652 = vmatmul.mubr.f32.gmra.mrb[0].mxu0 %v5680
  %v6653 = vpop.f32.mrb[0].mxu0
  %v6654 = vadd.f32 0.0, %v6653
  %v6655 = vpop.f32.mrb[0].mxu0
  %v6656 = vadd.f32 0.0, %v6655
  %6657 = vmatprep.mubr.f32.mxu0 %v5697
  %6658 = vmatmul.mubr.f32.gmra.mrb[0].mxu0 %v5681
  %v6659 = vpop.f32.mrb[0].mxu0
  %v6660 = vadd.f32 0.0, %v6659
  %v6661 = vpop.f32.mrb[0].mxu0
  %v6662 = vadd.f32 0.0, %v6661
  %6663 = vmatprep.mubr.f32.mxu0 %v5698
  %6664 = vmatmul.mubr.f32.gmra.mrb[0].mxu0 %v5682
  %v6665 = vpop.f32.mrb[0].mxu0
  %v6666 = vadd.f32 0.0, %v6665
  %v6667 = vpop.f32.mrb[0].mxu0
  %v6668 = vadd.f32 0.0, %v6667
  %6669 = vmatprep.mubr.f32.mxu0 %v5699
  %6670 = vmatmul.mubr.f32.gmra.mrb[0].mxu0 %v5683
  %v6671 = vpop.f32.mrb[0].mxu0
  %v6672 = vadd.f32 0.0, %v6671
  %v6673 = vpop.f32.mrb[0].mxu0
  %v6674 = vadd.f32 0.0, %v6673
  %6675 = vmatprep.mubr.f32.mxu0 %v5700
  %6676 = vmatmul.mubr.f32.gmra.mrb[0].mxu0 %v5684
  %v6677 = vpop.f32.mrb[0].mxu0
  %v6678 = vadd.f32 0.0, %v6677
  %v6679 = vpop.f32.mrb[0].mxu0
  %v6680 = vadd.f32 0.0, %v6679
  %6681 = vmatprep.mubr.f32.mxu0 %v5701
  %6682 = vmatmul.mubr.f32.gmra.mrb[0].mxu0 %v5685
  %v6683 = vpop.f32.mrb[0].mxu0
  %v6684 = vadd.f32 0.0, %v6683
  %v6685 = vpop.f32.mrb[0].mxu0
  %v6686 = vadd.f32 0.0, %v6685
  %6687 = vmatprep.mubr.f32.mxu0 %v5702
  %6688 = vmatmul.mubr.f32.gmra.mrb[0].mxu0 %v5686
  %v6689 = vpop.f32.mrb[0].mxu0
  %v6690 = vadd.f32 0.0, %v6689
  %v6691 = vpop.f32.mrb[0].mxu0
  %v6692 = vadd.f32 0.0, %v6691
  %6693 = vmatprep.mubr.f32.mxu0 %v5703
  %6694 = vmatmul.mubr.f32.gmra.mrb[0].mxu0 %v5687
  %v6695 = vpop.f32.mrb[0].mxu0
  %v6696 = vadd.f32 0.0, %v6695
  %v6697 = vpop.f32.mrb[0].mxu0
  %v6698 = vadd.f32 0.0, %v6697
  %6699 = vmatprep.mubr.f32.mxu0 %v5704
  %6700 = vmatmul.mubr.f32.gmra.mrb[0].mxu0 %v5688
  %v6701 = vpop.f32.mrb[0].mxu0
  %v6702 = vadd.f32 0.0, %v6701
  %v6703 = vpop.f32.mrb[0].mxu0
  %v6704 = vadd.f32 0.0, %v6703
  %6705 = vmatprep.mubr.f32.mxu0 %v5705
  %6706 = vmatmul.mubr.f32.gmra.mrb[0].mxu0 %v5689
  %v6707 = vpop.f32.mrb[0].mxu0
  %v6708 = vadd.f32 0.0, %v6707
  %v6709 = vpop.f32.mrb[0].mxu0
  %v6710 = vadd.f32 0.0, %v6709
  %6711 = vmatprep.mubr.f32.mxu0 %v5706
  %6712 = vmatmul.mubr.f32.gmra.mrb[0].mxu0 %v5690
  %v6713 = vpop.f32.mrb[0].mxu0
  %v6714 = vadd.f32 0.0, %v6713
  %v6715 = vpop.f32.mrb[0].mxu0
  %v6716 = vadd.f32 0.0, %v6715
  %6717 = vmatprep.mubr.f32.mxu0 %v5707
  %6718 = vmatmul.mubr.f32.gmra.mrb[0].mxu0 %v5691
  %v6719 = vpop.f32.mrb[0].mxu0
  %v6720 = vadd.f32 0.0, %v6719
  %v6721 = vpop.f32.mrb[0].mxu0
  %v6722 = vadd.f32 0.0, %v6721
  %6723 = vmatprep.mubr.f32.mxu0 %v5708
  %6724 = vmatmul.mubr.f32.gmra.mrb[0].mxu0 %v5692
  %v6725 = vpop.f32.mrb[0].mxu0
  %v6726 = vadd.f32 0.0, %v6725
  %v6727 = vpop.f32.mrb[0].mxu0
  %v6728 = vadd.f32 0.0, %v6727
  %6729 = vmatprep.mubr.f32.mxu0 %v5709
  %6730 = vmatmul.mubr.f32.gmra.mrb[0].mxu0 %v5693
  %v6731 = vpop.f32.mrb[0].mxu0
  %v6732 = vadd.f32 0.0, %v6731
  %v6733 = vpop.f32.mrb[0].mxu0
  %v6734 = vadd.f32 0.0, %v6733
  %6735 = vmatprep.mubr.f32.mxu0 %v5710
  %6736 = vmatmul.mubr.f32.gmra.mrb[0].mxu0 %v5694
  %v6737 = vpop.f32.mrb[0].mxu0
  %v6738 = vadd.f32 0.0, %v6737
  %v6739 = vpop.f32.mrb[0].mxu0
  %v6740 = vadd.f32 0.0, %v6739
  %6741 = vmatprep.mubr.f32.mxu0 %v5711
  %6742 = vmatmul.mubr.f32.gmra.mrb[0].mxu0 %v5695
  %v6743 = vpop.f32.mrb[0].mxu0
  %v6744 = vadd.f32 0.0, %v6743
  %v6745 = vpop.f32.mrb[0].mxu0
  %v6746 = vadd.f32 0.0, %v6745
  %6747 = vmatprep.mubr.f32.mxu0 %v5712
  %6748 = vmatmul.mubr.f32.gmra.mrb[0].mxu0 %v5696
  %v6749 = vpop.f32.mrb[0].mxu0
  %v6750 = vadd.f32 0.0, %v6749
  %v6751 = vpop.f32.mrb[0].mxu0
  %v6752 = vadd.f32 0.0, %v6751
  %6753 = vdwg.mxu0
  %6754 = vmatprep.subr.mxu0 %v5826
  %6755 = vmatpush1.msra.mxu0 %v5825
  %6756 = vmatprep.subr.mxu0 %v5828
  %6757 = vmatpush1.msra.mxu0 %v5827
  %6758 = vmatprep.subr.mxu0 %v5830
  %6759 = vmatpush1.msra.mxu0 %v5829
  %6760 = vmatprep.subr.mxu0 %v5832
  %6761 = vmatpush1.msra.mxu0 %v5831
  %6762 = vmatprep.subr.mxu0 %v5834
  %6763 = vmatpush1.msra.mxu0 %v5833
  %6764 = vmatprep.subr.mxu0 %v5836
  %6765 = vmatpush1.msra.mxu0 %v5835
  %6766 = vmatprep.subr.mxu0 %v5838
  %6767 = vmatpush1.msra.mxu0 %v5837
  %6768 = vmatprep.subr.mxu0 %v5840
  %6769 = vmatpush1.msra.mxu0 %v5839
  %6770 = vmatprep.subr.mxu0 %v5842
  %6771 = vmatpush1.msra.mxu0 %v5841
  %6772 = vmatprep.subr.mxu0 %v5844
  %6773 = vmatpush1.msra.mxu0 %v5843
  %6774 = vmatprep.subr.mxu0 %v5846
  %6775 = vmatpush1.msra.mxu0 %v5845
  %6776 = vmatprep.subr.mxu0 %v5848
  %6777 = vmatpush1.msra.mxu0 %v5847
  %6778 = vmatprep.subr.mxu0 %v5850
  %6779 = vmatpush1.msra.mxu0 %v5849
  %6780 = vmatprep.subr.mxu0 %v5852
  %6781 = vmatpush1.msra.mxu0 %v5851
  %6782 = vmatprep.subr.mxu0 %v5854
  %6783 = vmatpush1.msra.mxu0 %v5853
  %6784 = vmatprep.subr.mxu0 %v5856
  %6785 = vmatpush1.msra.mxu0 %v5855
  %6786 = vmatprep.subr.mxu0 %v5858
  %6787 = vmatpush1.msra.mxu0 %v5857
  %6788 = vmatprep.subr.mxu0 %v5860
  %6789 = vmatpush1.msra.mxu0 %v5859
  %6790 = vmatprep.subr.mxu0 %v5862
  %6791 = vmatpush1.msra.mxu0 %v5861
  %6792 = vmatprep.subr.mxu0 %v5864
  %6793 = vmatpush1.msra.mxu0 %v5863
  %6794 = vmatprep.subr.mxu0 %v5866
  %6795 = vmatpush1.msra.mxu0 %v5865
  %6796 = vmatprep.subr.mxu0 %v5868
  %6797 = vmatpush1.msra.mxu0 %v5867
  %6798 = vmatprep.subr.mxu0 %v5870
  %6799 = vmatpush1.msra.mxu0 %v5869
  %6800 = vmatprep.subr.mxu0 %v5872
  %6801 = vmatpush1.msra.mxu0 %v5871
  %6802 = vmatprep.subr.mxu0 %v5874
  %6803 = vmatpush1.msra.mxu0 %v5873
  %6804 = vmatprep.subr.mxu0 %v5876
  %6805 = vmatpush1.msra.mxu0 %v5875
  %6806 = vmatprep.subr.mxu0 %v5878
  %6807 = vmatpush1.msra.mxu0 %v5877
  %6808 = vmatprep.subr.mxu0 %v5880
  %6809 = vmatpush1.msra.mxu0 %v5879
  %6810 = vmatprep.subr.mxu0 %v5882
  %6811 = vmatpush1.msra.mxu0 %v5881
  %6812 = vmatprep.subr.mxu0 %v5884
  %6813 = vmatpush1.msra.mxu0 %v5883
  %6814 = vmatprep.subr.mxu0 %v5886
  %6815 = vmatpush1.msra.mxu0 %v5885
  %6816 = vmatprep.subr.mxu0 %v5888
  %6817 = vmatpush1.msra.mxu0 %v5887
  %6818 = vmatprep.mubr.f32.mxu0 %v5617
  %6819 = vmatmul.mubr.f32.gmra.mrb[0].mxu0 %v5601
  %v6820 = vpop.f32.mrb[0].mxu0
  %v6821 = vadd.f32 %v5988, %v6820
  %v6822 = vpop.f32.mrb[0].mxu0
  %v6823 = vadd.f32 %v5990, %v6822
  %6824 = vmatprep.mubr.f32.mxu0 %v5618
  %6825 = vmatmul.mubr.f32.gmra.mrb[0].mxu0 %v5602
  %v6826 = vpop.f32.mrb[0].mxu0
  %v6827 = vadd.f32 %v5994, %v6826
  %v6828 = vpop.f32.mrb[0].mxu0
  %v6829 = vadd.f32 %v5996, %v6828
  %6830 = vmatprep.mubr.f32.mxu0 %v5619
  %6831 = vmatmul.mubr.f32.gmra.mrb[0].mxu0 %v5603
  %v6832 = vpop.f32.mrb[0].mxu0
  %v6833 = vadd.f32 %v6000, %v6832
  %v6834 = vpop.f32.mrb[0].mxu0
  %v6835 = vadd.f32 %v6002, %v6834
  %6836 = vmatprep.mubr.f32.mxu0 %v5620
  %6837 = vmatmul.mubr.f32.gmra.mrb[0].mxu0 %v5604
  %v6838 = vpop.f32.mrb[0].mxu0
  %v6839 = vadd.f32 %v6006, %v6838
  %v6840 = vpop.f32.mrb[0].mxu0
  %v6841 = vadd.f32 %v6008, %v6840
  %6842 = vmatprep.mubr.f32.mxu0 %v5621
  %6843 = vmatmul.mubr.f32.gmra.mrb[0].mxu0 %v5605
  %v6844 = vpop.f32.mrb[0].mxu0
  %v6845 = vadd.f32 %v6012, %v6844
  %v6846 = vpop.f32.mrb[0].mxu0
  %v6847 = vadd.f32 %v6014, %v6846
  %6848 = vmatprep.mubr.f32.mxu0 %v5622
  %6849 = vmatmul.mubr.f32.gmra.mrb[0].mxu0 %v5606
  %v6850 = vpop.f32.mrb[0].mxu0
  %v6851 = vadd.f32 %v6018, %v6850
  %v6852 = vpop.f32.mrb[0].mxu0
  %v6853 = vadd.f32 %v6020, %v6852
  %6854 = vmatprep.mubr.f32.mxu0 %v5623
  %6855 = vmatmul.mubr.f32.gmra.mrb[0].mxu0 %v5607
  %v6856 = vpop.f32.mrb[0].mxu0
  %v6857 = vadd.f32 %v6024, %v6856
  %v6858 = vpop.f32.mrb[0].mxu0
  %v6859 = vadd.f32 %v6026, %v6858
  %6860 = vmatprep.mubr.f32.mxu0 %v5624
  %6861 = vmatmul.mubr.f32.gmra.mrb[0].mxu0 %v5608
  %v6862 = vpop.f32.mrb[0].mxu0
  %v6863 = vadd.f32 %v6030, %v6862
  %v6864 = vpop.f32.mrb[0].mxu0
  %v6865 = vadd.f32 %v6032, %v6864
  %6866 = vmatprep.mubr.f32.mxu0 %v5625
  %6867 = vmatmul.mubr.f32.gmra.mrb[0].mxu0 %v5609
  %v6868 = vpop.f32.mrb[0].mxu0
  %v6869 = vadd.f32 %v6036, %v6868
  %v6870 = vpop.f32.mrb[0].mxu0
  %v6871 = vadd.f32 %v6038, %v6870
  %6872 = vmatprep.mubr.f32.mxu0 %v5626
  %6873 = vmatmul.mubr.f32.gmra.mrb[0].mxu0 %v5610
  %v6874 = vpop.f32.mrb[0].mxu0
  %v6875 = vadd.f32 %v6042, %v6874
  %v6876 = vpop.f32.mrb[0].mxu0
  %v6877 = vadd.f32 %v6044, %v6876
  %6878 = vmatprep.mubr.f32.mxu0 %v5627
  %6879 = vmatmul.mubr.f32.gmra.mrb[0].mxu0 %v5611
  %v6880 = vpop.f32.mrb[0].mxu0
  %v6881 = vadd.f32 %v6048, %v6880
  %v6882 = vpop.f32.mrb[0].mxu0
  %v6883 = vadd.f32 %v6050, %v6882
  %6884 = vmatprep.mubr.f32.mxu0 %v5628
  %6885 = vmatmul.mubr.f32.gmra.mrb[0].mxu0 %v5612
  %v6886 = vpop.f32.mrb[0].mxu0
  %v6887 = vadd.f32 %v6054, %v6886
  %v6888 = vpop.f32.mrb[0].mxu0
  %v6889 = vadd.f32 %v6056, %v6888
  %6890 = vmatprep.mubr.f32.mxu0 %v5629
  %6891 = vmatmul.mubr.f32.gmra.mrb[0].mxu0 %v5613
  %v6892 = vpop.f32.mrb[0].mxu0
  %v6893 = vadd.f32 %v6060, %v6892
  %v6894 = vpop.f32.mrb[0].mxu0
  %v6895 = vadd.f32 %v6062, %v6894
  %6896 = vmatprep.mubr.f32.mxu0 %v5630
  %6897 = vmatmul.mubr.f32.gmra.mrb[0].mxu0 %v5614
  %v6898 = vpop.f32.mrb[0].mxu0
  %v6899 = vadd.f32 %v6066, %v6898
  %v6900 = vpop.f32.mrb[0].mxu0
  %v6901 = vadd.f32 %v6068, %v6900
  %6902 = vmatprep.mubr.f32.mxu0 %v5631
  %6903 = vmatmul.mubr.f32.gmra.mrb[0].mxu0 %v5615
  %v6904 = vpop.f32.mrb[0].mxu0
  %v6905 = vadd.f32 %v6072, %v6904
  %v6906 = vpop.f32.mrb[0].mxu0
  %v6907 = vadd.f32 %v6074, %v6906
  %6908 = vmatprep.mubr.f32.mxu0 %v5632
  %6909 = vmatmul.mubr.f32.gmra.mrb[0].mxu0 %v5616
  %v6910 = vpop.f32.mrb[0].mxu0
  %v6911 = vadd.f32 %v6078, %v6910
  %v6912 = vpop.f32.mrb[0].mxu0
  %v6913 = vadd.f32 %v6080, %v6912
  %6914 = vmatprep.mubr.f32.mxu0 %v5633
  %6915 = vmatmul.mubr.f32.gmra.mrb[0].mxu0 %v5617
  %v6916 = vpop.f32.mrb[0].mxu0
  %v6917 = vadd.f32 %v6084, %v6916
  %v6918 = vpop.f32.mrb[0].mxu0
  %v6919 = vadd.f32 %v6086, %v6918
  %6920 = vmatprep.mubr.f32.mxu0 %v5634
  %6921 = vmatmul.mubr.f32.gmra.mrb[0].mxu0 %v5618
  %v6922 = vpop.f32.mrb[0].mxu0
  %v6923 = vadd.f32 %v6090, %v6922
  %v6924 = vpop.f32.mrb[0].mxu0
  %v6925 = vadd.f32 %v6092, %v6924
  %6926 = vmatprep.mubr.f32.mxu0 %v5635
  %6927 = vmatmul.mubr.f32.gmra.mrb[0].mxu0 %v5619
  %v6928 = vpop.f32.mrb[0].mxu0
  %v6929 = vadd.f32 %v6096, %v6928
  %v6930 = vpop.f32.mrb[0].mxu0
  %v6931 = vadd.f32 %v6098, %v6930
  %6932 = vmatprep.mubr.f32.mxu0 %v5636
  %6933 = vmatmul.mubr.f32.gmra.mrb[0].mxu0 %v5620
  %v6934 = vpop.f32.mrb[0].mxu0
  %v6935 = vadd.f32 %v6102, %v6934
  %v6936 = vpop.f32.mrb[0].mxu0
  %v6937 = vadd.f32 %v6104, %v6936
  %6938 = vmatprep.mubr.f32.mxu0 %v5637
  %6939 = vmatmul.mubr.f32.gmra.mrb[0].mxu0 %v5621
  %v6940 = vpop.f32.mrb[0].mxu0
  %v6941 = vadd.f32 %v6108, %v6940
  %v6942 = vpop.f32.mrb[0].mxu0
  %v6943 = vadd.f32 %v6110, %v6942
  %6944 = vmatprep.mubr.f32.mxu0 %v5638
  %6945 = vmatmul.mubr.f32.gmra.mrb[0].mxu0 %v5622
  %v6946 = vpop.f32.mrb[0].mxu0
  %v6947 = vadd.f32 %v6114, %v6946
  %v6948 = vpop.f32.mrb[0].mxu0
  %v6949 = vadd.f32 %v6116, %v6948
  %6950 = vmatprep.mubr.f32.mxu0 %v5639
  %6951 = vmatmul.mubr.f32.gmra.mrb[0].mxu0 %v5623
  %v6952 = vpop.f32.mrb[0].mxu0
  %v6953 = vadd.f32 %v6120, %v6952
  %v6954 = vpop.f32.mrb[0].mxu0
  %v6955 = vadd.f32 %v6122, %v6954
  %6956 = vmatprep.mubr.f32.mxu0 %v5640
  %6957 = vmatmul.mubr.f32.gmra.mrb[0].mxu0 %v5624
  %v6958 = vpop.f32.mrb[0].mxu0
  %v6959 = vadd.f32 %v6126, %v6958
  %v6960 = vpop.f32.mrb[0].mxu0
  %v6961 = vadd.f32 %v6128, %v6960
  %6962 = vmatprep.mubr.f32.mxu0 %v5641
  %6963 = vmatmul.mubr.f32.gmra.mrb[0].mxu0 %v5625
  %v6964 = vpop.f32.mrb[0].mxu0
  %v6965 = vadd.f32 %v6132, %v6964
  %v6966 = vpop.f32.mrb[0].mxu0
  %v6967 = vadd.f32 %v6134, %v6966
  %6968 = vmatprep.mubr.f32.mxu0 %v5642
  %6969 = vmatmul.mubr.f32.gmra.mrb[0].mxu0 %v5626
  %v6970 = vpop.f32.mrb[0].mxu0
  %v6971 = vadd.f32 %v6138, %v6970
  %v6972 = vpop.f32.mrb[0].mxu0
  %v6973 = vadd.f32 %v6140, %v6972
  %6974 = vmatprep.mubr.f32.mxu0 %v5643
  %6975 = vmatmul.mubr.f32.gmra.mrb[0].mxu0 %v5627
  %v6976 = vpop.f32.mrb[0].mxu0
  %v6977 = vadd.f32 %v6144, %v6976
  %v6978 = vpop.f32.mrb[0].mxu0
  %v6979 = vadd.f32 %v6146, %v6978
  %6980 = vmatprep.mubr.f32.mxu0 %v5644
  %6981 = vmatmul.mubr.f32.gmra.mrb[0].mxu0 %v5628
  %v6982 = vpop.f32.mrb[0].mxu0
  %v6983 = vadd.f32 %v6150, %v6982
  %v6984 = vpop.f32.mrb[0].mxu0
  %v6985 = vadd.f32 %v6152, %v6984
  %6986 = vmatprep.mubr.f32.mxu0 %v5645
  %6987 = vmatmul.mubr.f32.gmra.mrb[0].mxu0 %v5629
  %v6988 = vpop.f32.mrb[0].mxu0
  %v6989 = vadd.f32 %v6156, %v6988
  %v6990 = vpop.f32.mrb[0].mxu0
  %v6991 = vadd.f32 %v6158, %v6990
  %6992 = vmatprep.mubr.f32.mxu0 %v5646
  %6993 = vmatmul.mubr.f32.gmra.mrb[0].mxu0 %v5630
  %v6994 = vpop.f32.mrb[0].mxu0
  %v6995 = vadd.f32 %v6162, %v6994
  %v6996 = vpop.f32.mrb[0].mxu0
  %v6997 = vadd.f32 %v6164, %v6996
  %6998 = vmatprep.mubr.f32.mxu0 %v5647
  %6999 = vmatmul.mubr.f32.gmra.mrb[0].mxu0 %v5631
  %v7000 = vpop.f32.mrb[0].mxu0
  %v7001 = vadd.f32 %v6168, %v7000
  %v7002 = vpop.f32.mrb[0].mxu0
  %v7003 = vadd.f32 %v6170, %v7002
  %7004 = vmatprep.mubr.f32.mxu0 %v5648
  %7005 = vmatmul.mubr.f32.gmra.mrb[0].mxu0 %v5632
  %v7006 = vpop.f32.mrb[0].mxu0
  %v7007 = vadd.f32 %v6174, %v7006
  %v7008 = vpop.f32.mrb[0].mxu0
  %v7009 = vadd.f32 %v6176, %v7008
  %7010 = vmatprep.mubr.f32.mxu0 %v5649
  %7011 = vmatmul.mubr.f32.gmra.mrb[0].mxu0 %v5633
  %v7012 = vpop.f32.mrb[0].mxu0
  %v7013 = vadd.f32 %v6180, %v7012
  %v7014 = vpop.f32.mrb[0].mxu0
  %v7015 = vadd.f32 %v6182, %v7014
  %7016 = vmatprep.mubr.f32.mxu0 %v5650
  %7017 = vmatmul.mubr.f32.gmra.mrb[0].mxu0 %v5634
  %v7018 = vpop.f32.mrb[0].mxu0
  %v7019 = vadd.f32 %v6186, %v7018
  %v7020 = vpop.f32.mrb[0].mxu0
  %v7021 = vadd.f32 %v6188, %v7020
  %7022 = vmatprep.mubr.f32.mxu0 %v5651
  %7023 = vmatmul.mubr.f32.gmra.mrb[0].mxu0 %v5635
  %v7024 = vpop.f32.mrb[0].mxu0
  %v7025 = vadd.f32 %v6192, %v7024
  %v7026 = vpop.f32.mrb[0].mxu0
  %v7027 = vadd.f32 %v6194, %v7026
  %7028 = vmatprep.mubr.f32.mxu0 %v5652
  %7029 = vmatmul.mubr.f32.gmra.mrb[0].mxu0 %v5636
  %v7030 = vpop.f32.mrb[0].mxu0
  %v7031 = vadd.f32 %v6198, %v7030
  %v7032 = vpop.f32.mrb[0].mxu0
  %v7033 = vadd.f32 %v6200, %v7032
  %7034 = vmatprep.mubr.f32.mxu0 %v5653
  %7035 = vmatmul.mubr.f32.gmra.mrb[0].mxu0 %v5637
  %v7036 = vpop.f32.mrb[0].mxu0
  %v7037 = vadd.f32 %v6204, %v7036
  %v7038 = vpop.f32.mrb[0].mxu0
  %v7039 = vadd.f32 %v6206, %v7038
  %7040 = vmatprep.mubr.f32.mxu0 %v5654
  %7041 = vmatmul.mubr.f32.gmra.mrb[0].mxu0 %v5638
  %v7042 = vpop.f32.mrb[0].mxu0
  %v7043 = vadd.f32 %v6210, %v7042
  %v7044 = vpop.f32.mrb[0].mxu0
  %v7045 = vadd.f32 %v6212, %v7044
  %7046 = vmatprep.mubr.f32.mxu0 %v5655
  %7047 = vmatmul.mubr.f32.gmra.mrb[0].mxu0 %v5639
  %v7048 = vpop.f32.mrb[0].mxu0
  %v7049 = vadd.f32 %v6216, %v7048
  %v7050 = vpop.f32.mrb[0].mxu0
  %v7051 = vadd.f32 %v6218, %v7050
  %7052 = vmatprep.mubr.f32.mxu0 %v5656
  %7053 = vmatmul.mubr.f32.gmra.mrb[0].mxu0 %v5640
  %v7054 = vpop.f32.mrb[0].mxu0
  %v7055 = vadd.f32 %v6222, %v7054
  %v7056 = vpop.f32.mrb[0].mxu0
  %v7057 = vadd.f32 %v6224, %v7056
  %7058 = vmatprep.mubr.f32.mxu0 %v5657
  %7059 = vmatmul.mubr.f32.gmra.mrb[0].mxu0 %v5641
  %v7060 = vpop.f32.mrb[0].mxu0
  %v7061 = vadd.f32 %v6228, %v7060
  %v7062 = vpop.f32.mrb[0].mxu0
  %v7063 = vadd.f32 %v6230, %v7062
  %7064 = vmatprep.mubr.f32.mxu0 %v5658
  %7065 = vmatmul.mubr.f32.gmra.mrb[0].mxu0 %v5642
  %v7066 = vpop.f32.mrb[0].mxu0
  %v7067 = vadd.f32 %v6234, %v7066
  %v7068 = vpop.f32.mrb[0].mxu0
  %v7069 = vadd.f32 %v6236, %v7068
  %7070 = vmatprep.mubr.f32.mxu0 %v5659
  %7071 = vmatmul.mubr.f32.gmra.mrb[0].mxu0 %v5643
  %v7072 = vpop.f32.mrb[0].mxu0
  %v7073 = vadd.f32 %v6240, %v7072
  %v7074 = vpop.f32.mrb[0].mxu0
  %v7075 = vadd.f32 %v6242, %v7074
  %7076 = vmatprep.mubr.f32.mxu0 %v5660
  %7077 = vmatmul.mubr.f32.gmra.mrb[0].mxu0 %v5644
  %v7078 = vpop.f32.mrb[0].mxu0
  %v7079 = vadd.f32 %v6246, %v7078
  %v7080 = vpop.f32.mrb[0].mxu0
  %v7081 = vadd.f32 %v6248, %v7080
  %7082 = vmatprep.mubr.f32.mxu0 %v5661
  %7083 = vmatmul.mubr.f32.gmra.mrb[0].mxu0 %v5645
  %v7084 = vpop.f32.mrb[0].mxu0
  %v7085 = vadd.f32 %v6252, %v7084
  %v7086 = vpop.f32.mrb[0].mxu0
  %v7087 = vadd.f32 %v6254, %v7086
  %7088 = vmatprep.mubr.f32.mxu0 %v5662
  %7089 = vmatmul.mubr.f32.gmra.mrb[0].mxu0 %v5646
  %v7090 = vpop.f32.mrb[0].mxu0
  %v7091 = vadd.f32 %v6258, %v7090
  %v7092 = vpop.f32.mrb[0].mxu0
  %v7093 = vadd.f32 %v6260, %v7092
  %7094 = vmatprep.mubr.f32.mxu0 %v5663
  %7095 = vmatmul.mubr.f32.gmra.mrb[0].mxu0 %v5647
  %v7096 = vpop.f32.mrb[0].mxu0
  %v7097 = vadd.f32 %v6264, %v7096
  %v7098 = vpop.f32.mrb[0].mxu0
  %v7099 = vadd.f32 %v6266, %v7098
  %7100 = vmatprep.mubr.f32.mxu0 %v5664
  %7101 = vmatmul.mubr.f32.gmra.mrb[0].mxu0 %v5648
  %v7102 = vpop.f32.mrb[0].mxu0
  %v7103 = vadd.f32 %v6270, %v7102
  %v7104 = vpop.f32.mrb[0].mxu0
  %v7105 = vadd.f32 %v6272, %v7104
  %7106 = vmatprep.mubr.f32.mxu0 %v5665
  %7107 = vmatmul.mubr.f32.gmra.mrb[0].mxu0 %v5649
  %v7108 = vpop.f32.mrb[0].mxu0
  %v7109 = vadd.f32 %v6276, %v7108
  %v7110 = vpop.f32.mrb[0].mxu0
  %v7111 = vadd.f32 %v6278, %v7110
  %7112 = vmatprep.mubr.f32.mxu0 %v5666
  %7113 = vmatmul.mubr.f32.gmra.mrb[0].mxu0 %v5650
  %v7114 = vpop.f32.mrb[0].mxu0
  %v7115 = vadd.f32 %v6282, %v7114
  %v7116 = vpop.f32.mrb[0].mxu0
  %v7117 = vadd.f32 %v6284, %v7116
  %7118 = vmatprep.mubr.f32.mxu0 %v5667
  %7119 = vmatmul.mubr.f32.gmra.mrb[0].mxu0 %v5651
  %v7120 = vpop.f32.mrb[0].mxu0
  %v7121 = vadd.f32 %v6288, %v7120
  %v7122 = vpop.f32.mrb[0].mxu0
  %v7123 = vadd.f32 %v6290, %v7122
  %7124 = vmatprep.mubr.f32.mxu0 %v5668
  %7125 = vmatmul.mubr.f32.gmra.mrb[0].mxu0 %v5652
  %v7126 = vpop.f32.mrb[0].mxu0
  %v7127 = vadd.f32 %v6294, %v7126
  %v7128 = vpop.f32.mrb[0].mxu0
  %v7129 = vadd.f32 %v6296, %v7128
  %7130 = vmatprep.mubr.f32.mxu0 %v5669
  %7131 = vmatmul.mubr.f32.gmra.mrb[0].mxu0 %v5653
  %v7132 = vpop.f32.mrb[0].mxu0
  %v7133 = vadd.f32 %v6300, %v7132
  %v7134 = vpop.f32.mrb[0].mxu0
  %v7135 = vadd.f32 %v6302, %v7134
  %7136 = vmatprep.mubr.f32.mxu0 %v5670
  %7137 = vmatmul.mubr.f32.gmra.mrb[0].mxu0 %v5654
  %v7138 = vpop.f32.mrb[0].mxu0
  %v7139 = vadd.f32 %v6306, %v7138
  %v7140 = vpop.f32.mrb[0].mxu0
  %v7141 = vadd.f32 %v6308, %v7140
  %7142 = vmatprep.mubr.f32.mxu0 %v5671
  %7143 = vmatmul.mubr.f32.gmra.mrb[0].mxu0 %v5655
  %v7144 = vpop.f32.mrb[0].mxu0
  %v7145 = vadd.f32 %v6312, %v7144
  %v7146 = vpop.f32.mrb[0].mxu0
  %v7147 = vadd.f32 %v6314, %v7146
  %7148 = vmatprep.mubr.f32.mxu0 %v5672
  %7149 = vmatmul.mubr.f32.gmra.mrb[0].mxu0 %v5656
  %v7150 = vpop.f32.mrb[0].mxu0
  %v7151 = vadd.f32 %v6318, %v7150
  %v7152 = vpop.f32.mrb[0].mxu0
  %v7153 = vadd.f32 %v6320, %v7152
  %7154 = vmatprep.mubr.f32.mxu0 %v5673
  %7155 = vmatmul.mubr.f32.gmra.mrb[0].mxu0 %v5657
  %v7156 = vpop.f32.mrb[0].mxu0
  %v7157 = vadd.f32 %v6324, %v7156
  %v7158 = vpop.f32.mrb[0].mxu0
  %v7159 = vadd.f32 %v6326, %v7158
  %7160 = vmatprep.mubr.f32.mxu0 %v5674
  %7161 = vmatmul.mubr.f32.gmra.mrb[0].mxu0 %v5658
  %v7162 = vpop.f32.mrb[0].mxu0
  %v7163 = vadd.f32 %v6330, %v7162
  %v7164 = vpop.f32.mrb[0].mxu0
  %v7165 = vadd.f32 %v6332, %v7164
  %7166 = vmatprep.mubr.f32.mxu0 %v5675
  %7167 = vmatmul.mubr.f32.gmra.mrb[0].mxu0 %v5659
  %v7168 = vpop.f32.mrb[0].mxu0
  %v7169 = vadd.f32 %v6336, %v7168
  %v7170 = vpop.f32.mrb[0].mxu0
  %v7171 = vadd.f32 %v6338, %v7170
  %7172 = vmatprep.mubr.f32.mxu0 %v5676
  %7173 = vmatmul.mubr.f32.gmra.mrb[0].mxu0 %v5660
  %v7174 = vpop.f32.mrb[0].mxu0
  %v7175 = vadd.f32 %v6342, %v7174
  %v7176 = vpop.f32.mrb[0].mxu0
  %v7177 = vadd.f32 %v6344, %v7176
  %7178 = vmatprep.mubr.f32.mxu0 %v5677
  %7179 = vmatmul.mubr.f32.gmra.mrb[0].mxu0 %v5661
  %v7180 = vpop.f32.mrb[0].mxu0
  %v7181 = vadd.f32 %v6348, %v7180
  %v7182 = vpop.f32.mrb[0].mxu0
  %v7183 = vadd.f32 %v6350, %v7182
  %7184 = vmatprep.mubr.f32.mxu0 %v5678
  %7185 = vmatmul.mubr.f32.gmra.mrb[0].mxu0 %v5662
  %v7186 = vpop.f32.mrb[0].mxu0
  %v7187 = vadd.f32 %v6354, %v7186
  %v7188 = vpop.f32.mrb[0].mxu0
  %v7189 = vadd.f32 %v6356, %v7188
  %7190 = vmatprep.mubr.f32.mxu0 %v5679
  %7191 = vmatmul.mubr.f32.gmra.mrb[0].mxu0 %v5663
  %v7192 = vpop.f32.mrb[0].mxu0
  %v7193 = vadd.f32 %v6360, %v7192
  %v7194 = vpop.f32.mrb[0].mxu0
  %v7195 = vadd.f32 %v6362, %v7194
  %7196 = vmatprep.mubr.f32.mxu0 %v5680
  %7197 = vmatmul.mubr.f32.gmra.mrb[0].mxu0 %v5664
  %v7198 = vpop.f32.mrb[0].mxu0
  %v7199 = vadd.f32 %v6366, %v7198
  %v7200 = vpop.f32.mrb[0].mxu0
  %v7201 = vadd.f32 %v6368, %v7200
  %7202 = vmatprep.mubr.f32.mxu0 %v5681
  %7203 = vmatmul.mubr.f32.gmra.mrb[0].mxu0 %v5665
  %v7204 = vpop.f32.mrb[0].mxu0
  %v7205 = vadd.f32 %v6372, %v7204
  %v7206 = vpop.f32.mrb[0].mxu0
  %v7207 = vadd.f32 %v6374, %v7206
  %7208 = vmatprep.mubr.f32.mxu0 %v5682
  %7209 = vmatmul.mubr.f32.gmra.mrb[0].mxu0 %v5666
  %v7210 = vpop.f32.mrb[0].mxu0
  %v7211 = vadd.f32 %v6378, %v7210
  %v7212 = vpop.f32.mrb[0].mxu0
  %v7213 = vadd.f32 %v6380, %v7212
  %7214 = vmatprep.mubr.f32.mxu0 %v5683
  %7215 = vmatmul.mubr.f32.gmra.mrb[0].mxu0 %v5667
  %v7216 = vpop.f32.mrb[0].mxu0
  %v7217 = vadd.f32 %v6384, %v7216
  %v7218 = vpop.f32.mrb[0].mxu0
  %v7219 = vadd.f32 %v6386, %v7218
  %7220 = vmatprep.mubr.f32.mxu0 %v5684
  %7221 = vmatmul.mubr.f32.gmra.mrb[0].mxu0 %v5668
  %v7222 = vpop.f32.mrb[0].mxu0
  %v7223 = vadd.f32 %v6390, %v7222
  %v7224 = vpop.f32.mrb[0].mxu0
  %v7225 = vadd.f32 %v6392, %v7224
  %7226 = vmatprep.mubr.f32.mxu0 %v5685
  %7227 = vmatmul.mubr.f32.gmra.mrb[0].mxu0 %v5669
  %v7228 = vpop.f32.mrb[0].mxu0
  %v7229 = vadd.f32 %v6396, %v7228
  %v7230 = vpop.f32.mrb[0].mxu0
  %v7231 = vadd.f32 %v6398, %v7230
  %7232 = vmatprep.mubr.f32.mxu0 %v5686
  %7233 = vmatmul.mubr.f32.gmra.mrb[0].mxu0 %v5670
  %v7234 = vpop.f32.mrb[0].mxu0
  %v7235 = vadd.f32 %v6402, %v7234
  %v7236 = vpop.f32.mrb[0].mxu0
  %v7237 = vadd.f32 %v6404, %v7236
  %7238 = vmatprep.mubr.f32.mxu0 %v5687
  %7239 = vmatmul.mubr.f32.gmra.mrb[0].mxu0 %v5671
  %v7240 = vpop.f32.mrb[0].mxu0
  %v7241 = vadd.f32 %v6408, %v7240
  %v7242 = vpop.f32.mrb[0].mxu0
  %v7243 = vadd.f32 %v6410, %v7242
  %7244 = vmatprep.mubr.f32.mxu0 %v5688
  %7245 = vmatmul.mubr.f32.gmra.mrb[0].mxu0 %v5672
  %v7246 = vpop.f32.mrb[0].mxu0
  %v7247 = vadd.f32 %v6414, %v7246
  %v7248 = vpop.f32.mrb[0].mxu0
  %v7249 = vadd.f32 %v6416, %v7248
  %7250 = vmatprep.mubr.f32.mxu0 %v5689
  %7251 = vmatmul.mubr.f32.gmra.mrb[0].mxu0 %v5673
  %v7252 = vpop.f32.mrb[0].mxu0
  %v7253 = vadd.f32 %v6420, %v7252
  %v7254 = vpop.f32.mrb[0].mxu0
  %v7255 = vadd.f32 %v6422, %v7254
  %7256 = vmatprep.mubr.f32.mxu0 %v5690
  %7257 = vmatmul.mubr.f32.gmra.mrb[0].mxu0 %v5674
  %v7258 = vpop.f32.mrb[0].mxu0
  %v7259 = vadd.f32 %v6426, %v7258
  %v7260 = vpop.f32.mrb[0].mxu0
  %v7261 = vadd.f32 %v6428, %v7260
  %7262 = vmatprep.mubr.f32.mxu0 %v5691
  %7263 = vmatmul.mubr.f32.gmra.mrb[0].mxu0 %v5675
  %v7264 = vpop.f32.mrb[0].mxu0
  %v7265 = vadd.f32 %v6432, %v7264
  %v7266 = vpop.f32.mrb[0].mxu0
  %v7267 = vadd.f32 %v6434, %v7266
  %7268 = vmatprep.mubr.f32.mxu0 %v5692
  %7269 = vmatmul.mubr.f32.gmra.mrb[0].mxu0 %v5676
  %v7270 = vpop.f32.mrb[0].mxu0
  %v7271 = vadd.f32 %v6438, %v7270
  %v7272 = vpop.f32.mrb[0].mxu0
  %v7273 = vadd.f32 %v6440, %v7272
  %7274 = vmatprep.mubr.f32.mxu0 %v5693
  %7275 = vmatmul.mubr.f32.gmra.mrb[0].mxu0 %v5677
  %v7276 = vpop.f32.mrb[0].mxu0
  %v7277 = vadd.f32 %v6444, %v7276
  %v7278 = vpop.f32.mrb[0].mxu0
  %v7279 = vadd.f32 %v6446, %v7278
  %7280 = vmatprep.mubr.f32.mxu0 %v5694
  %7281 = vmatmul.mubr.f32.gmra.mrb[0].mxu0 %v5678
  %v7282 = vpop.f32.mrb[0].mxu0
  %v7283 = vadd.f32 %v6450, %v7282
  %v7284 = vpop.f32.mrb[0].mxu0
  %v7285 = vadd.f32 %v6452, %v7284
  %7286 = vmatprep.mubr.f32.mxu0 %v5695
  %7287 = vmatmul.mubr.f32.gmra.mrb[0].mxu0 %v5679
  %v7288 = vpop.f32.mrb[0].mxu0
  %v7289 = vadd.f32 %v6456, %v7288
  %v7290 = vpop.f32.mrb[0].mxu0
  %v7291 = vadd.f32 %v6458, %v7290
  %7292 = vmatprep.mubr.f32.mxu0 %v5696
  %7293 = vmatmul.mubr.f32.gmra.mrb[0].mxu0 %v5680
  %v7294 = vpop.f32.mrb[0].mxu0
  %v7295 = vadd.f32 %v6462, %v7294
  %v7296 = vpop.f32.mrb[0].mxu0
  %v7297 = vadd.f32 %v6464, %v7296
  %7298 = vmatprep.mubr.f32.mxu0 %v5697
  %7299 = vmatmul.mubr.f32.gmra.mrb[0].mxu0 %v5681
  %v7300 = vpop.f32.mrb[0].mxu0
  %v7301 = vadd.f32 %v6468, %v7300
  %v7302 = vpop.f32.mrb[0].mxu0
  %v7303 = vadd.f32 %v6470, %v7302
  %7304 = vmatprep.mubr.f32.mxu0 %v5698
  %7305 = vmatmul.mubr.f32.gmra.mrb[0].mxu0 %v5682
  %v7306 = vpop.f32.mrb[0].mxu0
  %v7307 = vadd.f32 %v6474, %v7306
  %v7308 = vpop.f32.mrb[0].mxu0
  %v7309 = vadd.f32 %v6476, %v7308
  %7310 = vmatprep.mubr.f32.mxu0 %v5699
  %7311 = vmatmul.mubr.f32.gmra.mrb[0].mxu0 %v5683
  %v7312 = vpop.f32.mrb[0].mxu0
  %v7313 = vadd.f32 %v6480, %v7312
  %v7314 = vpop.f32.mrb[0].mxu0
  %v7315 = vadd.f32 %v6482, %v7314
  %7316 = vmatprep.mubr.f32.mxu0 %v5700
  %7317 = vmatmul.mubr.f32.gmra.mrb[0].mxu0 %v5684
  %v7318 = vpop.f32.mrb[0].mxu0
  %v7319 = vadd.f32 %v6486, %v7318
  %v7320 = vpop.f32.mrb[0].mxu0
  %v7321 = vadd.f32 %v6488, %v7320
  %7322 = vmatprep.mubr.f32.mxu0 %v5701
  %7323 = vmatmul.mubr.f32.gmra.mrb[0].mxu0 %v5685
  %v7324 = vpop.f32.mrb[0].mxu0
  %v7325 = vadd.f32 %v6492, %v7324
  %v7326 = vpop.f32.mrb[0].mxu0
  %v7327 = vadd.f32 %v6494, %v7326
  %7328 = vmatprep.mubr.f32.mxu0 %v5702
  %7329 = vmatmul.mubr.f32.gmra.mrb[0].mxu0 %v5686
  %v7330 = vpop.f32.mrb[0].mxu0
  %v7331 = vadd.f32 %v6498, %v7330
  %v7332 = vpop.f32.mrb[0].mxu0
  %v7333 = vadd.f32 %v6500, %v7332
  %7334 = vmatprep.mubr.f32.mxu0 %v5703
  %7335 = vmatmul.mubr.f32.gmra.mrb[0].mxu0 %v5687
  %v7336 = vpop.f32.mrb[0].mxu0
  %v7337 = vadd.f32 %v6504, %v7336
  %v7338 = vpop.f32.mrb[0].mxu0
  %v7339 = vadd.f32 %v6506, %v7338
  %7340 = vmatprep.mubr.f32.mxu0 %v5704
  %7341 = vmatmul.mubr.f32.gmra.mrb[0].mxu0 %v5688
  %v7342 = vpop.f32.mrb[0].mxu0
  %v7343 = vadd.f32 %v6510, %v7342
  %v7344 = vpop.f32.mrb[0].mxu0
  %v7345 = vadd.f32 %v6512, %v7344
  %7346 = vmatprep.mubr.f32.mxu0 %v5705
  %7347 = vmatmul.mubr.f32.gmra.mrb[0].mxu0 %v5689
  %v7348 = vpop.f32.mrb[0].mxu0
  %v7349 = vadd.f32 %v6516, %v7348
  %v7350 = vpop.f32.mrb[0].mxu0
  %v7351 = vadd.f32 %v6518, %v7350
  %7352 = vmatprep.mubr.f32.mxu0 %v5706
  %7353 = vmatmul.mubr.f32.gmra.mrb[0].mxu0 %v5690
  %v7354 = vpop.f32.mrb[0].mxu0
  %v7355 = vadd.f32 %v6522, %v7354
  %v7356 = vpop.f32.mrb[0].mxu0
  %v7357 = vadd.f32 %v6524, %v7356
  %7358 = vmatprep.mubr.f32.mxu0 %v5707
  %7359 = vmatmul.mubr.f32.gmra.mrb[0].mxu0 %v5691
  %v7360 = vpop.f32.mrb[0].mxu0
  %v7361 = vadd.f32 %v6528, %v7360
  %v7362 = vpop.f32.mrb[0].mxu0
  %v7363 = vadd.f32 %v6530, %v7362
  %7364 = vmatprep.mubr.f32.mxu0 %v5708
  %7365 = vmatmul.mubr.f32.gmra.mrb[0].mxu0 %v5692
  %v7366 = vpop.f32.mrb[0].mxu0
  %v7367 = vadd.f32 %v6534, %v7366
  %v7368 = vpop.f32.mrb[0].mxu0
  %v7369 = vadd.f32 %v6536, %v7368
  %7370 = vmatprep.mubr.f32.mxu0 %v5709
  %7371 = vmatmul.mubr.f32.gmra.mrb[0].mxu0 %v5693
  %v7372 = vpop.f32.mrb[0].mxu0
  %v7373 = vadd.f32 %v6540, %v7372
  %v7374 = vpop.f32.mrb[0].mxu0
  %v7375 = vadd.f32 %v6542, %v7374
  %7376 = vmatprep.mubr.f32.mxu0 %v5710
  %7377 = vmatmul.mubr.f32.gmra.mrb[0].mxu0 %v5694
  %v7378 = vpop.f32.mrb[0].mxu0
  %v7379 = vadd.f32 %v6546, %v7378
  %v7380 = vpop.f32.mrb[0].mxu0
  %v7381 = vadd.f32 %v6548, %v7380
  %7382 = vmatprep.mubr.f32.mxu0 %v5711
  %7383 = vmatmul.mubr.f32.gmra.mrb[0].mxu0 %v5695
  %v7384 = vpop.f32.mrb[0].mxu0
  %v7385 = vadd.f32 %v6552, %v7384
  %v7386 = vpop.f32.mrb[0].mxu0
  %v7387 = vadd.f32 %v6554, %v7386
  %7388 = vmatprep.mubr.f32.mxu0 %v5712
  %7389 = vmatmul.mubr.f32.gmra.mrb[0].mxu0 %v5696
  %v7390 = vpop.f32.mrb[0].mxu0
  %v7391 = vadd.f32 %v6558, %v7390
  %v7392 = vpop.f32.mrb[0].mxu0
  %v7393 = vadd.f32 %v6560, %v7392
  %7394 = vmatprep.mubr.f32.mxu0 %v5713
  %7395 = vmatmul.mubr.f32.gmra.mrb[0].mxu0 %v5697
  %v7396 = vpop.f32.mrb[0].mxu0
  %v7397 = vadd.f32 %v6564, %v7396
  %v7398 = vpop.f32.mrb[0].mxu0
  %v7399 = vadd.f32 %v6566, %v7398
  %7400 = vmatprep.mubr.f32.mxu0 %v5714
  %7401 = vmatmul.mubr.f32.gmra.mrb[0].mxu0 %v5698
  %v7402 = vpop.f32.mrb[0].mxu0
  %v7403 = vadd.f32 %v6570, %v7402
  %v7404 = vpop.f32.mrb[0].mxu0
  %v7405 = vadd.f32 %v6572, %v7404
  %7406 = vmatprep.mubr.f32.mxu0 %v5715
  %7407 = vmatmul.mubr.f32.gmra.mrb[0].mxu0 %v5699
  %v7408 = vpop.f32.mrb[0].mxu0
  %v7409 = vadd.f32 %v6576, %v7408
  %v7410 = vpop.f32.mrb[0].mxu0
  %v7411 = vadd.f32 %v6578, %v7410
  %7412 = vmatprep.mubr.f32.mxu0 %v5716
  %7413 = vmatmul.mubr.f32.gmra.mrb[0].mxu0 %v5700
  %v7414 = vpop.f32.mrb[0].mxu0
  %v7415 = vadd.f32 %v6582, %v7414
  %v7416 = vpop.f32.mrb[0].mxu0
  %v7417 = vadd.f32 %v6584, %v7416
  %7418 = vmatprep.mubr.f32.mxu0 %v5717
  %7419 = vmatmul.mubr.f32.gmra.mrb[0].mxu0 %v5701
  %v7420 = vpop.f32.mrb[0].mxu0
  %v7421 = vadd.f32 %v6588, %v7420
  %v7422 = vpop.f32.mrb[0].mxu0
  %v7423 = vadd.f32 %v6590, %v7422
  %7424 = vmatprep.mubr.f32.mxu0 %v5718
  %7425 = vmatmul.mubr.f32.gmra.mrb[0].mxu0 %v5702
  %v7426 = vpop.f32.mrb[0].mxu0
  %v7427 = vadd.f32 %v6594, %v7426
  %v7428 = vpop.f32.mrb[0].mxu0
  %v7429 = vadd.f32 %v6596, %v7428
  %7430 = vmatprep.mubr.f32.mxu0 %v5719
  %7431 = vmatmul.mubr.f32.gmra.mrb[0].mxu0 %v5703
  %v7432 = vpop.f32.mrb[0].mxu0
  %v7433 = vadd.f32 %v6600, %v7432
  %v7434 = vpop.f32.mrb[0].mxu0
  %v7435 = vadd.f32 %v6602, %v7434
  %7436 = vmatprep.mubr.f32.mxu0 %v5720
  %7437 = vmatmul.mubr.f32.gmra.mrb[0].mxu0 %v5704
  %v7438 = vpop.f32.mrb[0].mxu0
  %v7439 = vadd.f32 %v6606, %v7438
  %v7440 = vpop.f32.mrb[0].mxu0
  %v7441 = vadd.f32 %v6608, %v7440
  %7442 = vmatprep.mubr.f32.mxu0 %v5721
  %7443 = vmatmul.mubr.f32.gmra.mrb[0].mxu0 %v5705
  %v7444 = vpop.f32.mrb[0].mxu0
  %v7445 = vadd.f32 %v6612, %v7444
  %v7446 = vpop.f32.mrb[0].mxu0
  %v7447 = vadd.f32 %v6614, %v7446
  %7448 = vmatprep.mubr.f32.mxu0 %v5722
  %7449 = vmatmul.mubr.f32.gmra.mrb[0].mxu0 %v5706
  %v7450 = vpop.f32.mrb[0].mxu0
  %v7451 = vadd.f32 %v6618, %v7450
  %v7452 = vpop.f32.mrb[0].mxu0
  %v7453 = vadd.f32 %v6620, %v7452
  %7454 = vmatprep.mubr.f32.mxu0 %v5723
  %7455 = vmatmul.mubr.f32.gmra.mrb[0].mxu0 %v5707
  %v7456 = vpop.f32.mrb[0].mxu0
  %v7457 = vadd.f32 %v6624, %v7456
  %v7458 = vpop.f32.mrb[0].mxu0
  %v7459 = vadd.f32 %v6626, %v7458
  %7460 = vmatprep.mubr.f32.mxu0 %v5724
  %7461 = vmatmul.mubr.f32.gmra.mrb[0].mxu0 %v5708
  %v7462 = vpop.f32.mrb[0].mxu0
  %v7463 = vadd.f32 %v6630, %v7462
  %v7464 = vpop.f32.mrb[0].mxu0
  %v7465 = vadd.f32 %v6632, %v7464
  %7466 = vmatprep.mubr.f32.mxu0 %v5725
  %7467 = vmatmul.mubr.f32.gmra.mrb[0].mxu0 %v5709
  %v7468 = vpop.f32.mrb[0].mxu0
  %v7469 = vadd.f32 %v6636, %v7468
  %v7470 = vpop.f32.mrb[0].mxu0
  %v7471 = vadd.f32 %v6638, %v7470
  %7472 = vmatprep.mubr.f32.mxu0 %v5726
  %7473 = vmatmul.mubr.f32.gmra.mrb[0].mxu0 %v5710
  %v7474 = vpop.f32.mrb[0].mxu0
  %v7475 = vadd.f32 %v6642, %v7474
  %v7476 = vpop.f32.mrb[0].mxu0
  %v7477 = vadd.f32 %v6644, %v7476
  %7478 = vmatprep.mubr.f32.mxu0 %v5727
  %7479 = vmatmul.mubr.f32.gmra.mrb[0].mxu0 %v5711
  %v7480 = vpop.f32.mrb[0].mxu0
  %v7481 = vadd.f32 %v6648, %v7480
  %v7482 = vpop.f32.mrb[0].mxu0
  %v7483 = vadd.f32 %v6650, %v7482
  %7484 = vmatprep.mubr.f32.mxu0 %v5728
  %7485 = vmatmul.mubr.f32.gmra.mrb[0].mxu0 %v5712
  %v7486 = vpop.f32.mrb[0].mxu0
  %v7487 = vadd.f32 %v6654, %v7486
  %v7488 = vpop.f32.mrb[0].mxu0
  %v7489 = vadd.f32 %v6656, %v7488
  %7490 = vmatprep.mubr.f32.mxu0 %v5729
  %7491 = vmatmul.mubr.f32.gmra.mrb[0].mxu0 %v5713
  %v7492 = vpop.f32.mrb[0].mxu0
  %v7493 = vadd.f32 %v6660, %v7492
  %v7494 = vpop.f32.mrb[0].mxu0
  %v7495 = vadd.f32 %v6662, %v7494
  %7496 = vmatprep.mubr.f32.mxu0 %v5730
  %7497 = vmatmul.mubr.f32.gmra.mrb[0].mxu0 %v5714
  %v7498 = vpop.f32.mrb[0].mxu0
  %v7499 = vadd.f32 %v6666, %v7498
  %v7500 = vpop.f32.mrb[0].mxu0
  %v7501 = vadd.f32 %v6668, %v7500
  %7502 = vmatprep.mubr.f32.mxu0 %v5731
  %7503 = vmatmul.mubr.f32.gmra.mrb[0].mxu0 %v5715
  %v7504 = vpop.f32.mrb[0].mxu0
  %v7505 = vadd.f32 %v6672, %v7504
  %v7506 = vpop.f32.mrb[0].mxu0
  %v7507 = vadd.f32 %v6674, %v7506
  %7508 = vmatprep.mubr.f32.mxu0 %v5732
  %7509 = vmatmul.mubr.f32.gmra.mrb[0].mxu0 %v5716
  %v7510 = vpop.f32.mrb[0].mxu0
  %v7511 = vadd.f32 %v6678, %v7510
  %v7512 = vpop.f32.mrb[0].mxu0
  %v7513 = vadd.f32 %v6680, %v7512
  %7514 = vmatprep.mubr.f32.mxu0 %v5733
  %7515 = vmatmul.mubr.f32.gmra.mrb[0].mxu0 %v5717
  %v7516 = vpop.f32.mrb[0].mxu0
  %v7517 = vadd.f32 %v6684, %v7516
  %v7518 = vpop.f32.mrb[0].mxu0
  %v7519 = vadd.f32 %v6686, %v7518
  %7520 = vmatprep.mubr.f32.mxu0 %v5734
  %7521 = vmatmul.mubr.f32.gmra.mrb[0].mxu0 %v5718
  %v7522 = vpop.f32.mrb[0].mxu0
  %v7523 = vadd.f32 %v6690, %v7522
  %v7524 = vpop.f32.mrb[0].mxu0
  %v7525 = vadd.f32 %v6692, %v7524
  %7526 = vmatprep.mubr.f32.mxu0 %v5735
  %7527 = vmatmul.mubr.f32.gmra.mrb[0].mxu0 %v5719
  %v7528 = vpop.f32.mrb[0].mxu0
  %v7529 = vadd.f32 %v6696, %v7528
  %v7530 = vpop.f32.mrb[0].mxu0
  %v7531 = vadd.f32 %v6698, %v7530
  %7532 = vmatprep.mubr.f32.mxu0 %v5736
  %7533 = vmatmul.mubr.f32.gmra.mrb[0].mxu0 %v5720
  %v7534 = vpop.f32.mrb[0].mxu0
  %v7535 = vadd.f32 %v6702, %v7534
  %v7536 = vpop.f32.mrb[0].mxu0
  %v7537 = vadd.f32 %v6704, %v7536
  %7538 = vmatprep.mubr.f32.mxu0 %v5737
  %7539 = vmatmul.mubr.f32.gmra.mrb[0].mxu0 %v5721
  %v7540 = vpop.f32.mrb[0].mxu0
  %v7541 = vadd.f32 %v6708, %v7540
  %v7542 = vpop.f32.mrb[0].mxu0
  %v7543 = vadd.f32 %v6710, %v7542
  %7544 = vmatprep.mubr.f32.mxu0 %v5738
  %7545 = vmatmul.mubr.f32.gmra.mrb[0].mxu0 %v5722
  %v7546 = vpop.f32.mrb[0].mxu0
  %v7547 = vadd.f32 %v6714, %v7546
  %v7548 = vpop.f32.mrb[0].mxu0
  %v7549 = vadd.f32 %v6716, %v7548
  %7550 = vmatprep.mubr.f32.mxu0 %v5739
  %7551 = vmatmul.mubr.f32.gmra.mrb[0].mxu0 %v5723
  %v7552 = vpop.f32.mrb[0].mxu0
  %v7553 = vadd.f32 %v6720, %v7552
  %v7554 = vpop.f32.mrb[0].mxu0
  %v7555 = vadd.f32 %v6722, %v7554
  %7556 = vmatprep.mubr.f32.mxu0 %v5740
  %7557 = vmatmul.mubr.f32.gmra.mrb[0].mxu0 %v5724
  %v7558 = vpop.f32.mrb[0].mxu0
  %v7559 = vadd.f32 %v6726, %v7558
  %v7560 = vpop.f32.mrb[0].mxu0
  %v7561 = vadd.f32 %v6728, %v7560
  %7562 = vmatprep.mubr.f32.mxu0 %v5741
  %7563 = vmatmul.mubr.f32.gmra.mrb[0].mxu0 %v5725
  %v7564 = vpop.f32.mrb[0].mxu0
  %v7565 = vadd.f32 %v6732, %v7564
  %v7566 = vpop.f32.mrb[0].mxu0
  %v7567 = vadd.f32 %v6734, %v7566
  %7568 = vmatprep.mubr.f32.mxu0 %v5742
  %7569 = vmatmul.mubr.f32.gmra.mrb[0].mxu0 %v5726
  %v7570 = vpop.f32.mrb[0].mxu0
  %v7571 = vadd.f32 %v6738, %v7570
  %v7572 = vpop.f32.mrb[0].mxu0
  %v7573 = vadd.f32 %v6740, %v7572
  %7574 = vmatprep.mubr.f32.mxu0 %v5743
  %7575 = vmatmul.mubr.f32.gmra.mrb[0].mxu0 %v5727
  %v7576 = vpop.f32.mrb[0].mxu0
  %v7577 = vadd.f32 %v6744, %v7576
  %v7578 = vpop.f32.mrb[0].mxu0
  %v7579 = vadd.f32 %v6746, %v7578
  %7580 = vmatprep.mubr.f32.mxu0 %v5744
  %7581 = vmatmul.mubr.f32.gmra.mrb[0].mxu0 %v5728
  %v7582 = vpop.f32.mrb[0].mxu0
  %v7583 = vadd.f32 %v6750, %v7582
  %v7584 = vpop.f32.mrb[0].mxu0
  %v7585 = vadd.f32 %v6752, %v7584
  %7586 = vdwg.mxu0
  %7587 = vmatprep.subr.mxu0 %v5890
  %7588 = vmatpush1.msra.mxu0 %v5889
  %7589 = vmatprep.subr.mxu0 %v5892
  %7590 = vmatpush1.msra.mxu0 %v5891
  %7591 = vmatprep.subr.mxu0 %v5894
  %7592 = vmatpush1.msra.mxu0 %v5893
  %7593 = vmatprep.subr.mxu0 %v5896
  %7594 = vmatpush1.msra.mxu0 %v5895
  %7595 = vmatprep.subr.mxu0 %v5898
  %7596 = vmatpush1.msra.mxu0 %v5897
  %7597 = vmatprep.subr.mxu0 %v5900
  %7598 = vmatpush1.msra.mxu0 %v5899
  %7599 = vmatprep.subr.mxu0 %v5902
  %7600 = vmatpush1.msra.mxu0 %v5901
  %7601 = vmatprep.subr.mxu0 %v5904
  %7602 = vmatpush1.msra.mxu0 %v5903
  %7603 = vmatprep.subr.mxu0 %v5906
  %7604 = vmatpush1.msra.mxu0 %v5905
  %7605 = vmatprep.subr.mxu0 %v5908
  %7606 = vmatpush1.msra.mxu0 %v5907
  %7607 = vmatprep.subr.mxu0 %v5910
  %7608 = vmatpush1.msra.mxu0 %v5909
  %7609 = vmatprep.subr.mxu0 %v5912
  %7610 = vmatpush1.msra.mxu0 %v5911
  %7611 = vmatprep.subr.mxu0 %v5914
  %7612 = vmatpush1.msra.mxu0 %v5913
  %7613 = vmatprep.subr.mxu0 %v5916
  %7614 = vmatpush1.msra.mxu0 %v5915
  %7615 = vmatprep.subr.mxu0 %v5918
  %7616 = vmatpush1.msra.mxu0 %v5917
  %7617 = vmatprep.subr.mxu0 %v5920
  %7618 = vmatpush1.msra.mxu0 %v5919
  %7619 = vmatprep.subr.mxu0 0.0
  %7620 = vmatpush1.msra.mxu0 0.0
  %7621 = vmatprep.subr.mxu0 0.0
  %7622 = vmatpush1.msra.mxu0 0.0
  %7623 = vmatprep.subr.mxu0 0.0
  %7624 = vmatpush1.msra.mxu0 0.0
  %7625 = vmatprep.subr.mxu0 0.0
  %7626 = vmatpush1.msra.mxu0 0.0
  %7627 = vmatprep.subr.mxu0 0.0
  %7628 = vmatpush1.msra.mxu0 0.0
  %7629 = vmatprep.subr.mxu0 0.0
  %7630 = vmatpush1.msra.mxu0 0.0
  %7631 = vmatprep.subr.mxu0 0.0
  %7632 = vmatpush1.msra.mxu0 0.0
  %7633 = vmatprep.subr.mxu0 0.0
  %7634 = vmatpush1.msra.mxu0 0.0
  %7635 = vmatprep.subr.mxu0 0.0
  %7636 = vmatpush1.msra.mxu0 0.0
  %7637 = vmatprep.subr.mxu0 0.0
  %7638 = vmatpush1.msra.mxu0 0.0
  %7639 = vmatprep.subr.mxu0 0.0
  %7640 = vmatpush1.msra.mxu0 0.0
  %7641 = vmatprep.subr.mxu0 0.0
  %7642 = vmatpush1.msra.mxu0 0.0
  %7643 = vmatprep.subr.mxu0 0.0
  %7644 = vmatpush1.msra.mxu0 0.0
  %7645 = vmatprep.subr.mxu0 0.0
  %7646 = vmatpush1.msra.mxu0 0.0
  %7647 = vmatprep.subr.mxu0 0.0
  %7648 = vmatpush1.msra.mxu0 0.0
  %7649 = vmatprep.subr.mxu0 0.0
  %7650 = vmatpush1.msra.mxu0 0.0
  %7651 = vmatprep.mubr.f32.mxu0 0.0
  %7652 = vmatmul.mubr.f32.gmra.mrb[0].mxu0 %v5633
  %v7653 = vpop.f32.mrb[0].mxu0
  %v7654 = vadd.f32 %v6821, %v7653
  %v7655 = vpop.f32.mrb[0].mxu0
  %v7656 = vadd.f32 %v6823, %v7655
  %7657 = vmatprep.mubr.f32.mxu0 0.0
  %7658 = vmatmul.mubr.f32.gmra.mrb[0].mxu0 %v5634
  %v7659 = vpop.f32.mrb[0].mxu0
  %v7660 = vadd.f32 %v6827, %v7659
  %v7661 = vpop.f32.mrb[0].mxu0
  %v7662 = vadd.f32 %v6829, %v7661
  %7663 = vmatprep.mubr.f32.mxu0 0.0
  %7664 = vmatmul.mubr.f32.gmra.mrb[0].mxu0 %v5635
  %v7665 = vpop.f32.mrb[0].mxu0
  %v7666 = vadd.f32 %v6833, %v7665
  %v7667 = vpop.f32.mrb[0].mxu0
  %v7668 = vadd.f32 %v6835, %v7667
  %7669 = vmatprep.mubr.f32.mxu0 0.0
  %7670 = vmatmul.mubr.f32.gmra.mrb[0].mxu0 %v5636
  %v7671 = vpop.f32.mrb[0].mxu0
  %v7672 = vadd.f32 %v6839, %v7671
  %v7673 = vpop.f32.mrb[0].mxu0
  %v7674 = vadd.f32 %v6841, %v7673
  %7675 = vmatprep.mubr.f32.mxu0 0.0
  %7676 = vmatmul.mubr.f32.gmra.mrb[0].mxu0 %v5637
  %v7677 = vpop.f32.mrb[0].mxu0
  %v7678 = vadd.f32 %v6845, %v7677
  %v7679 = vpop.f32.mrb[0].mxu0
  %v7680 = vadd.f32 %v6847, %v7679
  %7681 = vmatprep.mubr.f32.mxu0 0.0
  %7682 = vmatmul.mubr.f32.gmra.mrb[0].mxu0 %v5638
  %v7683 = vpop.f32.mrb[0].mxu0
  %v7684 = vadd.f32 %v6851, %v7683
  %v7685 = vpop.f32.mrb[0].mxu0
  %v7686 = vadd.f32 %v6853, %v7685
  %7687 = vmatprep.mubr.f32.mxu0 0.0
  %7688 = vmatmul.mubr.f32.gmra.mrb[0].mxu0 %v5639
  %v7689 = vpop.f32.mrb[0].mxu0
  %v7690 = vadd.f32 %v6857, %v7689
  %v7691 = vpop.f32.mrb[0].mxu0
  %v7692 = vadd.f32 %v6859, %v7691
  %7693 = vmatprep.mubr.f32.mxu0 0.0
  %7694 = vmatmul.mubr.f32.gmra.mrb[0].mxu0 %v5640
  %v7695 = vpop.f32.mrb[0].mxu0
  %v7696 = vadd.f32 %v6863, %v7695
  %v7697 = vpop.f32.mrb[0].mxu0
  %v7698 = vadd.f32 %v6865, %v7697
  %7699 = vmatprep.mubr.f32.mxu0 0.0
  %7700 = vmatmul.mubr.f32.gmra.mrb[0].mxu0 %v5641
  %v7701 = vpop.f32.mrb[0].mxu0
  %v7702 = vadd.f32 %v6869, %v7701
  %v7703 = vpop.f32.mrb[0].mxu0
  %v7704 = vadd.f32 %v6871, %v7703
  %7705 = vmatprep.mubr.f32.mxu0 0.0
  %7706 = vmatmul.mubr.f32.gmra.mrb[0].mxu0 %v5642
  %v7707 = vpop.f32.mrb[0].mxu0
  %v7708 = vadd.f32 %v6875, %v7707
  %v7709 = vpop.f32.mrb[0].mxu0
  %v7710 = vadd.f32 %v6877, %v7709
  %7711 = vmatprep.mubr.f32.mxu0 0.0
  %7712 = vmatmul.mubr.f32.gmra.mrb[0].mxu0 %v5643
  %v7713 = vpop.f32.mrb[0].mxu0
  %v7714 = vadd.f32 %v6881, %v7713
  %v7715 = vpop.f32.mrb[0].mxu0
  %v7716 = vadd.f32 %v6883, %v7715
  %7717 = vmatprep.mubr.f32.mxu0 0.0
  %7718 = vmatmul.mubr.f32.gmra.mrb[0].mxu0 %v5644
  %v7719 = vpop.f32.mrb[0].mxu0
  %v7720 = vadd.f32 %v6887, %v7719
  %v7721 = vpop.f32.mrb[0].mxu0
  %v7722 = vadd.f32 %v6889, %v7721
  %7723 = vmatprep.mubr.f32.mxu0 0.0
  %7724 = vmatmul.mubr.f32.gmra.mrb[0].mxu0 %v5645
  %v7725 = vpop.f32.mrb[0].mxu0
  %v7726 = vadd.f32 %v6893, %v7725
  %v7727 = vpop.f32.mrb[0].mxu0
  %v7728 = vadd.f32 %v6895, %v7727
  %7729 = vmatprep.mubr.f32.mxu0 0.0
  %7730 = vmatmul.mubr.f32.gmra.mrb[0].mxu0 %v5646
  %v7731 = vpop.f32.mrb[0].mxu0
  %v7732 = vadd.f32 %v6899, %v7731
  %v7733 = vpop.f32.mrb[0].mxu0
  %v7734 = vadd.f32 %v6901, %v7733
  %7735 = vmatprep.mubr.f32.mxu0 0.0
  %7736 = vmatmul.mubr.f32.gmra.mrb[0].mxu0 %v5647
  %v7737 = vpop.f32.mrb[0].mxu0
  %v7738 = vadd.f32 %v6905, %v7737
  %v7739 = vpop.f32.mrb[0].mxu0
  %v7740 = vadd.f32 %v6907, %v7739
  %7741 = vmatprep.mubr.f32.mxu0 0.0
  %7742 = vmatmul.mubr.f32.gmra.mrb[0].mxu0 %v5648
  %v7743 = vpop.f32.mrb[0].mxu0
  %v7744 = vadd.f32 %v6911, %v7743
  %v7745 = vpop.f32.mrb[0].mxu0
  %v7746 = vadd.f32 %v6913, %v7745
  %7747 = vmatprep.mubr.f32.mxu0 0.0
  %7748 = vmatmul.mubr.f32.gmra.mrb[0].mxu0 %v5649
  %v7749 = vpop.f32.mrb[0].mxu0
  %v7750 = vadd.f32 %v6917, %v7749
  %v7751 = vpop.f32.mrb[0].mxu0
  %v7752 = vadd.f32 %v6919, %v7751
  %7753 = vmatprep.mubr.f32.mxu0 0.0
  %7754 = vmatmul.mubr.f32.gmra.mrb[0].mxu0 %v5650
  %v7755 = vpop.f32.mrb[0].mxu0
  %v7756 = vadd.f32 %v6923, %v7755
  %v7757 = vpop.f32.mrb[0].mxu0
  %v7758 = vadd.f32 %v6925, %v7757
  %7759 = vmatprep.mubr.f32.mxu0 0.0
  %7760 = vmatmul.mubr.f32.gmra.mrb[0].mxu0 %v5651
  %v7761 = vpop.f32.mrb[0].mxu0
  %v7762 = vadd.f32 %v6929, %v7761
  %v7763 = vpop.f32.mrb[0].mxu0
  %v7764 = vadd.f32 %v6931, %v7763
  %7765 = vmatprep.mubr.f32.mxu0 0.0
  %7766 = vmatmul.mubr.f32.gmra.mrb[0].mxu0 %v5652
  %v7767 = vpop.f32.mrb[0].mxu0
  %v7768 = vadd.f32 %v6935, %v7767
  %v7769 = vpop.f32.mrb[0].mxu0
  %v7770 = vadd.f32 %v6937, %v7769
  %7771 = vmatprep.mubr.f32.mxu0 0.0
  %7772 = vmatmul.mubr.f32.gmra.mrb[0].mxu0 %v5653
  %v7773 = vpop.f32.mrb[0].mxu0
  %v7774 = vadd.f32 %v6941, %v7773
  %v7775 = vpop.f32.mrb[0].mxu0
  %v7776 = vadd.f32 %v6943, %v7775
  %7777 = vmatprep.mubr.f32.mxu0 0.0
  %7778 = vmatmul.mubr.f32.gmra.mrb[0].mxu0 %v5654
  %v7779 = vpop.f32.mrb[0].mxu0
  %v7780 = vadd.f32 %v6947, %v7779
  %v7781 = vpop.f32.mrb[0].mxu0
  %v7782 = vadd.f32 %v6949, %v7781
  %7783 = vmatprep.mubr.f32.mxu0 0.0
  %7784 = vmatmul.mubr.f32.gmra.mrb[0].mxu0 %v5655
  %v7785 = vpop.f32.mrb[0].mxu0
  %v7786 = vadd.f32 %v6953, %v7785
  %v7787 = vpop.f32.mrb[0].mxu0
  %v7788 = vadd.f32 %v6955, %v7787
  %7789 = vmatprep.mubr.f32.mxu0 0.0
  %7790 = vmatmul.mubr.f32.gmra.mrb[0].mxu0 %v5656
  %v7791 = vpop.f32.mrb[0].mxu0
  %v7792 = vadd.f32 %v6959, %v7791
  %v7793 = vpop.f32.mrb[0].mxu0
  %v7794 = vadd.f32 %v6961, %v7793
  %7795 = vmatprep.mubr.f32.mxu0 0.0
  %7796 = vmatmul.mubr.f32.gmra.mrb[0].mxu0 %v5657
  %v7797 = vpop.f32.mrb[0].mxu0
  %v7798 = vadd.f32 %v6965, %v7797
  %v7799 = vpop.f32.mrb[0].mxu0
  %v7800 = vadd.f32 %v6967, %v7799
  %7801 = vmatprep.mubr.f32.mxu0 0.0
  %7802 = vmatmul.mubr.f32.gmra.mrb[0].mxu0 %v5658
  %v7803 = vpop.f32.mrb[0].mxu0
  %v7804 = vadd.f32 %v6971, %v7803
  %v7805 = vpop.f32.mrb[0].mxu0
  %v7806 = vadd.f32 %v6973, %v7805
  %7807 = vmatprep.mubr.f32.mxu0 0.0
  %7808 = vmatmul.mubr.f32.gmra.mrb[0].mxu0 %v5659
  %v7809 = vpop.f32.mrb[0].mxu0
  %v7810 = vadd.f32 %v6977, %v7809
  %v7811 = vpop.f32.mrb[0].mxu0
  %v7812 = vadd.f32 %v6979, %v7811
  %7813 = vmatprep.mubr.f32.mxu0 0.0
  %7814 = vmatmul.mubr.f32.gmra.mrb[0].mxu0 %v5660
  %v7815 = vpop.f32.mrb[0].mxu0
  %v7816 = vadd.f32 %v6983, %v7815
  %v7817 = vpop.f32.mrb[0].mxu0
  %v7818 = vadd.f32 %v6985, %v7817
  %7819 = vmatprep.mubr.f32.mxu0 0.0
  %7820 = vmatmul.mubr.f32.gmra.mrb[0].mxu0 %v5661
  %v7821 = vpop.f32.mrb[0].mxu0
  %v7822 = vadd.f32 %v6989, %v7821
  %v7823 = vpop.f32.mrb[0].mxu0
  %v7824 = vadd.f32 %v6991, %v7823
  %7825 = vmatprep.mubr.f32.mxu0 0.0
  %7826 = vmatmul.mubr.f32.gmra.mrb[0].mxu0 %v5662
  %v7827 = vpop.f32.mrb[0].mxu0
  %v7828 = vadd.f32 %v6995, %v7827
  %v7829 = vpop.f32.mrb[0].mxu0
  %v7830 = vadd.f32 %v6997, %v7829
  %7831 = vmatprep.mubr.f32.mxu0 0.0
  %7832 = vmatmul.mubr.f32.gmra.mrb[0].mxu0 %v5663
  %v7833 = vpop.f32.mrb[0].mxu0
  %v7834 = vadd.f32 %v7001, %v7833
  %v7835 = vpop.f32.mrb[0].mxu0
  %v7836 = vadd.f32 %v7003, %v7835
  %7837 = vmatprep.mubr.f32.mxu0 0.0
  %7838 = vmatmul.mubr.f32.gmra.mrb[0].mxu0 %v5664
  %v7839 = vpop.f32.mrb[0].mxu0
  %v7840 = vadd.f32 %v7007, %v7839
  %v7841 = vpop.f32.mrb[0].mxu0
  %v7842 = vadd.f32 %v7009, %v7841
  %7843 = vmatprep.mubr.f32.mxu0 0.0
  %7844 = vmatmul.mubr.f32.gmra.mrb[0].mxu0 %v5665
  %v7845 = vpop.f32.mrb[0].mxu0
  %v7846 = vadd.f32 %v7013, %v7845
  %v7847 = vpop.f32.mrb[0].mxu0
  %v7848 = vadd.f32 %v7015, %v7847
  %7849 = vmatprep.mubr.f32.mxu0 0.0
  %7850 = vmatmul.mubr.f32.gmra.mrb[0].mxu0 %v5666
  %v7851 = vpop.f32.mrb[0].mxu0
  %v7852 = vadd.f32 %v7019, %v7851
  %v7853 = vpop.f32.mrb[0].mxu0
  %v7854 = vadd.f32 %v7021, %v7853
  %7855 = vmatprep.mubr.f32.mxu0 0.0
  %7856 = vmatmul.mubr.f32.gmra.mrb[0].mxu0 %v5667
  %v7857 = vpop.f32.mrb[0].mxu0
  %v7858 = vadd.f32 %v7025, %v7857
  %v7859 = vpop.f32.mrb[0].mxu0
  %v7860 = vadd.f32 %v7027, %v7859
  %7861 = vmatprep.mubr.f32.mxu0 0.0
  %7862 = vmatmul.mubr.f32.gmra.mrb[0].mxu0 %v5668
  %v7863 = vpop.f32.mrb[0].mxu0
  %v7864 = vadd.f32 %v7031, %v7863
  %v7865 = vpop.f32.mrb[0].mxu0
  %v7866 = vadd.f32 %v7033, %v7865
  %7867 = vmatprep.mubr.f32.mxu0 0.0
  %7868 = vmatmul.mubr.f32.gmra.mrb[0].mxu0 %v5669
  %v7869 = vpop.f32.mrb[0].mxu0
  %v7870 = vadd.f32 %v7037, %v7869
  %v7871 = vpop.f32.mrb[0].mxu0
  %v7872 = vadd.f32 %v7039, %v7871
  %7873 = vmatprep.mubr.f32.mxu0 0.0
  %7874 = vmatmul.mubr.f32.gmra.mrb[0].mxu0 %v5670
  %v7875 = vpop.f32.mrb[0].mxu0
  %v7876 = vadd.f32 %v7043, %v7875
  %v7877 = vpop.f32.mrb[0].mxu0
  %v7878 = vadd.f32 %v7045, %v7877
  %7879 = vmatprep.mubr.f32.mxu0 0.0
  %7880 = vmatmul.mubr.f32.gmra.mrb[0].mxu0 %v5671
  %v7881 = vpop.f32.mrb[0].mxu0
  %v7882 = vadd.f32 %v7049, %v7881
  %v7883 = vpop.f32.mrb[0].mxu0
  %v7884 = vadd.f32 %v7051, %v7883
  %7885 = vmatprep.mubr.f32.mxu0 0.0
  %7886 = vmatmul.mubr.f32.gmra.mrb[0].mxu0 %v5672
  %v7887 = vpop.f32.mrb[0].mxu0
  %v7888 = vadd.f32 %v7055, %v7887
  %v7889 = vpop.f32.mrb[0].mxu0
  %v7890 = vadd.f32 %v7057, %v7889
  %7891 = vmatprep.mubr.f32.mxu0 0.0
  %7892 = vmatmul.mubr.f32.gmra.mrb[0].mxu0 %v5673
  %v7893 = vpop.f32.mrb[0].mxu0
  %v7894 = vadd.f32 %v7061, %v7893
  %v7895 = vpop.f32.mrb[0].mxu0
  %v7896 = vadd.f32 %v7063, %v7895
  %7897 = vmatprep.mubr.f32.mxu0 0.0
  %7898 = vmatmul.mubr.f32.gmra.mrb[0].mxu0 %v5674
  %v7899 = vpop.f32.mrb[0].mxu0
  %v7900 = vadd.f32 %v7067, %v7899
  %v7901 = vpop.f32.mrb[0].mxu0
  %v7902 = vadd.f32 %v7069, %v7901
  %7903 = vmatprep.mubr.f32.mxu0 0.0
  %7904 = vmatmul.mubr.f32.gmra.mrb[0].mxu0 %v5675
  %v7905 = vpop.f32.mrb[0].mxu0
  %v7906 = vadd.f32 %v7073, %v7905
  %v7907 = vpop.f32.mrb[0].mxu0
  %v7908 = vadd.f32 %v7075, %v7907
  %7909 = vmatprep.mubr.f32.mxu0 0.0
  %7910 = vmatmul.mubr.f32.gmra.mrb[0].mxu0 %v5676
  %v7911 = vpop.f32.mrb[0].mxu0
  %v7912 = vadd.f32 %v7079, %v7911
  %v7913 = vpop.f32.mrb[0].mxu0
  %v7914 = vadd.f32 %v7081, %v7913
  %7915 = vmatprep.mubr.f32.mxu0 0.0
  %7916 = vmatmul.mubr.f32.gmra.mrb[0].mxu0 %v5677
  %v7917 = vpop.f32.mrb[0].mxu0
  %v7918 = vadd.f32 %v7085, %v7917
  %v7919 = vpop.f32.mrb[0].mxu0
  %v7920 = vadd.f32 %v7087, %v7919
  %7921 = vmatprep.mubr.f32.mxu0 0.0
  %7922 = vmatmul.mubr.f32.gmra.mrb[0].mxu0 %v5678
  %v7923 = vpop.f32.mrb[0].mxu0
  %v7924 = vadd.f32 %v7091, %v7923
  %v7925 = vpop.f32.mrb[0].mxu0
  %v7926 = vadd.f32 %v7093, %v7925
  %7927 = vmatprep.mubr.f32.mxu0 0.0
  %7928 = vmatmul.mubr.f32.gmra.mrb[0].mxu0 %v5679
  %v7929 = vpop.f32.mrb[0].mxu0
  %v7930 = vadd.f32 %v7097, %v7929
  %v7931 = vpop.f32.mrb[0].mxu0
  %v7932 = vadd.f32 %v7099, %v7931
  %7933 = vmatprep.mubr.f32.mxu0 0.0
  %7934 = vmatmul.mubr.f32.gmra.mrb[0].mxu0 %v5680
  %v7935 = vpop.f32.mrb[0].mxu0
  %v7936 = vadd.f32 %v7103, %v7935
  %v7937 = vpop.f32.mrb[0].mxu0
  %v7938 = vadd.f32 %v7105, %v7937
  %7939 = vmatprep.mubr.f32.mxu0 0.0
  %7940 = vmatmul.mubr.f32.gmra.mrb[0].mxu0 %v5681
  %v7941 = vpop.f32.mrb[0].mxu0
  %v7942 = vadd.f32 %v7109, %v7941
  %v7943 = vpop.f32.mrb[0].mxu0
  %v7944 = vadd.f32 %v7111, %v7943
  %7945 = vmatprep.mubr.f32.mxu0 0.0
  %7946 = vmatmul.mubr.f32.gmra.mrb[0].mxu0 %v5682
  %v7947 = vpop.f32.mrb[0].mxu0
  %v7948 = vadd.f32 %v7115, %v7947
  %v7949 = vpop.f32.mrb[0].mxu0
  %v7950 = vadd.f32 %v7117, %v7949
  %7951 = vmatprep.mubr.f32.mxu0 0.0
  %7952 = vmatmul.mubr.f32.gmra.mrb[0].mxu0 %v5683
  %v7953 = vpop.f32.mrb[0].mxu0
  %v7954 = vadd.f32 %v7121, %v7953
  %v7955 = vpop.f32.mrb[0].mxu0
  %v7956 = vadd.f32 %v7123, %v7955
  %7957 = vmatprep.mubr.f32.mxu0 0.0
  %7958 = vmatmul.mubr.f32.gmra.mrb[0].mxu0 %v5684
  %v7959 = vpop.f32.mrb[0].mxu0
  %v7960 = vadd.f32 %v7127, %v7959
  %v7961 = vpop.f32.mrb[0].mxu0
  %v7962 = vadd.f32 %v7129, %v7961
  %7963 = vmatprep.mubr.f32.mxu0 0.0
  %7964 = vmatmul.mubr.f32.gmra.mrb[0].mxu0 %v5685
  %v7965 = vpop.f32.mrb[0].mxu0
  %v7966 = vadd.f32 %v7133, %v7965
  %v7967 = vpop.f32.mrb[0].mxu0
  %v7968 = vadd.f32 %v7135, %v7967
  %7969 = vmatprep.mubr.f32.mxu0 0.0
  %7970 = vmatmul.mubr.f32.gmra.mrb[0].mxu0 %v5686
  %v7971 = vpop.f32.mrb[0].mxu0
  %v7972 = vadd.f32 %v7139, %v7971
  %v7973 = vpop.f32.mrb[0].mxu0
  %v7974 = vadd.f32 %v7141, %v7973
  %7975 = vmatprep.mubr.f32.mxu0 0.0
  %7976 = vmatmul.mubr.f32.gmra.mrb[0].mxu0 %v5687
  %v7977 = vpop.f32.mrb[0].mxu0
  %v7978 = vadd.f32 %v7145, %v7977
  %v7979 = vpop.f32.mrb[0].mxu0
  %v7980 = vadd.f32 %v7147, %v7979
  %7981 = vmatprep.mubr.f32.mxu0 0.0
  %7982 = vmatmul.mubr.f32.gmra.mrb[0].mxu0 %v5688
  %v7983 = vpop.f32.mrb[0].mxu0
  %v7984 = vadd.f32 %v7151, %v7983
  %v7985 = vpop.f32.mrb[0].mxu0
  %v7986 = vadd.f32 %v7153, %v7985
  %7987 = vmatprep.mubr.f32.mxu0 0.0
  %7988 = vmatmul.mubr.f32.gmra.mrb[0].mxu0 %v5689
  %v7989 = vpop.f32.mrb[0].mxu0
  %v7990 = vadd.f32 %v7157, %v7989
  %v7991 = vpop.f32.mrb[0].mxu0
  %v7992 = vadd.f32 %v7159, %v7991
  %7993 = vmatprep.mubr.f32.mxu0 0.0
  %7994 = vmatmul.mubr.f32.gmra.mrb[0].mxu0 %v5690
  %v7995 = vpop.f32.mrb[0].mxu0
  %v7996 = vadd.f32 %v7163, %v7995
  %v7997 = vpop.f32.mrb[0].mxu0
  %v7998 = vadd.f32 %v7165, %v7997
  %7999 = vmatprep.mubr.f32.mxu0 0.0
  %8000 = vmatmul.mubr.f32.gmra.mrb[0].mxu0 %v5691
  %v8001 = vpop.f32.mrb[0].mxu0
  %v8002 = vadd.f32 %v7169, %v8001
  %v8003 = vpop.f32.mrb[0].mxu0
  %v8004 = vadd.f32 %v7171, %v8003
  %8005 = vmatprep.mubr.f32.mxu0 0.0
  %8006 = vmatmul.mubr.f32.gmra.mrb[0].mxu0 %v5692
  %v8007 = vpop.f32.mrb[0].mxu0
  %v8008 = vadd.f32 %v7175, %v8007
  %v8009 = vpop.f32.mrb[0].mxu0
  %v8010 = vadd.f32 %v7177, %v8009
  %8011 = vmatprep.mubr.f32.mxu0 0.0
  %8012 = vmatmul.mubr.f32.gmra.mrb[0].mxu0 %v5693
  %v8013 = vpop.f32.mrb[0].mxu0
  %v8014 = vadd.f32 %v7181, %v8013
  %v8015 = vpop.f32.mrb[0].mxu0
  %v8016 = vadd.f32 %v7183, %v8015
  %8017 = vmatprep.mubr.f32.mxu0 0.0
  %8018 = vmatmul.mubr.f32.gmra.mrb[0].mxu0 %v5694
  %v8019 = vpop.f32.mrb[0].mxu0
  %v8020 = vadd.f32 %v7187, %v8019
  %v8021 = vpop.f32.mrb[0].mxu0
  %v8022 = vadd.f32 %v7189, %v8021
  %8023 = vmatprep.mubr.f32.mxu0 0.0
  %8024 = vmatmul.mubr.f32.gmra.mrb[0].mxu0 %v5695
  %v8025 = vpop.f32.mrb[0].mxu0
  %v8026 = vadd.f32 %v7193, %v8025
  %v8027 = vpop.f32.mrb[0].mxu0
  %v8028 = vadd.f32 %v7195, %v8027
  %8029 = vmatprep.mubr.f32.mxu0 0.0
  %8030 = vmatmul.mubr.f32.gmra.mrb[0].mxu0 %v5696
  %v8031 = vpop.f32.mrb[0].mxu0
  %v8032 = vadd.f32 %v7199, %v8031
  %v8033 = vpop.f32.mrb[0].mxu0
  %v8034 = vadd.f32 %v7201, %v8033
  %8035 = vmatprep.mubr.f32.mxu0 0.0
  %8036 = vmatmul.mubr.f32.gmra.mrb[0].mxu0 %v5697
  %v8037 = vpop.f32.mrb[0].mxu0
  %v8038 = vadd.f32 %v7205, %v8037
  %v8039 = vpop.f32.mrb[0].mxu0
  %v8040 = vadd.f32 %v7207, %v8039
  %8041 = vmatprep.mubr.f32.mxu0 0.0
  %8042 = vmatmul.mubr.f32.gmra.mrb[0].mxu0 %v5698
  %v8043 = vpop.f32.mrb[0].mxu0
  %v8044 = vadd.f32 %v7211, %v8043
  %v8045 = vpop.f32.mrb[0].mxu0
  %v8046 = vadd.f32 %v7213, %v8045
  %8047 = vmatprep.mubr.f32.mxu0 0.0
  %8048 = vmatmul.mubr.f32.gmra.mrb[0].mxu0 %v5699
  %v8049 = vpop.f32.mrb[0].mxu0
  %v8050 = vadd.f32 %v7217, %v8049
  %v8051 = vpop.f32.mrb[0].mxu0
  %v8052 = vadd.f32 %v7219, %v8051
  %8053 = vmatprep.mubr.f32.mxu0 0.0
  %8054 = vmatmul.mubr.f32.gmra.mrb[0].mxu0 %v5700
  %v8055 = vpop.f32.mrb[0].mxu0
  %v8056 = vadd.f32 %v7223, %v8055
  %v8057 = vpop.f32.mrb[0].mxu0
  %v8058 = vadd.f32 %v7225, %v8057
  %8059 = vmatprep.mubr.f32.mxu0 0.0
  %8060 = vmatmul.mubr.f32.gmra.mrb[0].mxu0 %v5701
  %v8061 = vpop.f32.mrb[0].mxu0
  %v8062 = vadd.f32 %v7229, %v8061
  %v8063 = vpop.f32.mrb[0].mxu0
  %v8064 = vadd.f32 %v7231, %v8063
  %8065 = vmatprep.mubr.f32.mxu0 0.0
  %8066 = vmatmul.mubr.f32.gmra.mrb[0].mxu0 %v5702
  %v8067 = vpop.f32.mrb[0].mxu0
  %v8068 = vadd.f32 %v7235, %v8067
  %v8069 = vpop.f32.mrb[0].mxu0
  %v8070 = vadd.f32 %v7237, %v8069
  %8071 = vmatprep.mubr.f32.mxu0 0.0
  %8072 = vmatmul.mubr.f32.gmra.mrb[0].mxu0 %v5703
  %v8073 = vpop.f32.mrb[0].mxu0
  %v8074 = vadd.f32 %v7241, %v8073
  %v8075 = vpop.f32.mrb[0].mxu0
  %v8076 = vadd.f32 %v7243, %v8075
  %8077 = vmatprep.mubr.f32.mxu0 0.0
  %8078 = vmatmul.mubr.f32.gmra.mrb[0].mxu0 %v5704
  %v8079 = vpop.f32.mrb[0].mxu0
  %v8080 = vadd.f32 %v7247, %v8079
  %v8081 = vpop.f32.mrb[0].mxu0
  %v8082 = vadd.f32 %v7249, %v8081
  %8083 = vmatprep.mubr.f32.mxu0 0.0
  %8084 = vmatmul.mubr.f32.gmra.mrb[0].mxu0 %v5705
  %v8085 = vpop.f32.mrb[0].mxu0
  %v8086 = vadd.f32 %v7253, %v8085
  %v8087 = vpop.f32.mrb[0].mxu0
  %v8088 = vadd.f32 %v7255, %v8087
  %8089 = vmatprep.mubr.f32.mxu0 0.0
  %8090 = vmatmul.mubr.f32.gmra.mrb[0].mxu0 %v5706
  %v8091 = vpop.f32.mrb[0].mxu0
  %v8092 = vadd.f32 %v7259, %v8091
  %v8093 = vpop.f32.mrb[0].mxu0
  %v8094 = vadd.f32 %v7261, %v8093
  %8095 = vmatprep.mubr.f32.mxu0 0.0
  %8096 = vmatmul.mubr.f32.gmra.mrb[0].mxu0 %v5707
  %v8097 = vpop.f32.mrb[0].mxu0
  %v8098 = vadd.f32 %v7265, %v8097
  %v8099 = vpop.f32.mrb[0].mxu0
  %v8100 = vadd.f32 %v7267, %v8099
  %8101 = vmatprep.mubr.f32.mxu0 0.0
  %8102 = vmatmul.mubr.f32.gmra.mrb[0].mxu0 %v5708
  %v8103 = vpop.f32.mrb[0].mxu0
  %v8104 = vadd.f32 %v7271, %v8103
  %v8105 = vpop.f32.mrb[0].mxu0
  %v8106 = vadd.f32 %v7273, %v8105
  %8107 = vmatprep.mubr.f32.mxu0 0.0
  %8108 = vmatmul.mubr.f32.gmra.mrb[0].mxu0 %v5709
  %v8109 = vpop.f32.mrb[0].mxu0
  %v8110 = vadd.f32 %v7277, %v8109
  %v8111 = vpop.f32.mrb[0].mxu0
  %v8112 = vadd.f32 %v7279, %v8111
  %8113 = vmatprep.mubr.f32.mxu0 0.0
  %8114 = vmatmul.mubr.f32.gmra.mrb[0].mxu0 %v5710
  %v8115 = vpop.f32.mrb[0].mxu0
  %v8116 = vadd.f32 %v7283, %v8115
  %v8117 = vpop.f32.mrb[0].mxu0
  %v8118 = vadd.f32 %v7285, %v8117
  %8119 = vmatprep.mubr.f32.mxu0 0.0
  %8120 = vmatmul.mubr.f32.gmra.mrb[0].mxu0 %v5711
  %v8121 = vpop.f32.mrb[0].mxu0
  %v8122 = vadd.f32 %v7289, %v8121
  %v8123 = vpop.f32.mrb[0].mxu0
  %v8124 = vadd.f32 %v7291, %v8123
  %8125 = vmatprep.mubr.f32.mxu0 0.0
  %8126 = vmatmul.mubr.f32.gmra.mrb[0].mxu0 %v5712
  %v8127 = vpop.f32.mrb[0].mxu0
  %v8128 = vadd.f32 %v7295, %v8127
  %v8129 = vpop.f32.mrb[0].mxu0
  %v8130 = vadd.f32 %v7297, %v8129
  %8131 = vmatprep.mubr.f32.mxu0 0.0
  %8132 = vmatmul.mubr.f32.gmra.mrb[0].mxu0 %v5713
  %v8133 = vpop.f32.mrb[0].mxu0
  %v8134 = vadd.f32 %v7301, %v8133
  %v8135 = vpop.f32.mrb[0].mxu0
  %v8136 = vadd.f32 %v7303, %v8135
  %8137 = vmatprep.mubr.f32.mxu0 0.0
  %8138 = vmatmul.mubr.f32.gmra.mrb[0].mxu0 %v5714
  %v8139 = vpop.f32.mrb[0].mxu0
  %v8140 = vadd.f32 %v7307, %v8139
  %v8141 = vpop.f32.mrb[0].mxu0
  %v8142 = vadd.f32 %v7309, %v8141
  %8143 = vmatprep.mubr.f32.mxu0 0.0
  %8144 = vmatmul.mubr.f32.gmra.mrb[0].mxu0 %v5715
  %v8145 = vpop.f32.mrb[0].mxu0
  %v8146 = vadd.f32 %v7313, %v8145
  %v8147 = vpop.f32.mrb[0].mxu0
  %v8148 = vadd.f32 %v7315, %v8147
  %8149 = vmatprep.mubr.f32.mxu0 0.0
  %8150 = vmatmul.mubr.f32.gmra.mrb[0].mxu0 %v5716
  %v8151 = vpop.f32.mrb[0].mxu0
  %v8152 = vadd.f32 %v7319, %v8151
  %v8153 = vpop.f32.mrb[0].mxu0
  %v8154 = vadd.f32 %v7321, %v8153
  %8155 = vmatprep.mubr.f32.mxu0 0.0
  %8156 = vmatmul.mubr.f32.gmra.mrb[0].mxu0 %v5717
  %v8157 = vpop.f32.mrb[0].mxu0
  %v8158 = vadd.f32 %v7325, %v8157
  %v8159 = vpop.f32.mrb[0].mxu0
  %v8160 = vadd.f32 %v7327, %v8159
  %8161 = vmatprep.mubr.f32.mxu0 0.0
  %8162 = vmatmul.mubr.f32.gmra.mrb[0].mxu0 %v5718
  %v8163 = vpop.f32.mrb[0].mxu0
  %v8164 = vadd.f32 %v7331, %v8163
  %v8165 = vpop.f32.mrb[0].mxu0
  %v8166 = vadd.f32 %v7333, %v8165
  %8167 = vmatprep.mubr.f32.mxu0 0.0
  %8168 = vmatmul.mubr.f32.gmra.mrb[0].mxu0 %v5719
  %v8169 = vpop.f32.mrb[0].mxu0
  %v8170 = vadd.f32 %v7337, %v8169
  %v8171 = vpop.f32.mrb[0].mxu0
  %v8172 = vadd.f32 %v7339, %v8171
  %8173 = vmatprep.mubr.f32.mxu0 0.0
  %8174 = vmatmul.mubr.f32.gmra.mrb[0].mxu0 %v5720
  %v8175 = vpop.f32.mrb[0].mxu0
  %v8176 = vadd.f32 %v7343, %v8175
  %v8177 = vpop.f32.mrb[0].mxu0
  %v8178 = vadd.f32 %v7345, %v8177
  %8179 = vmatprep.mubr.f32.mxu0 0.0
  %8180 = vmatmul.mubr.f32.gmra.mrb[0].mxu0 %v5721
  %v8181 = vpop.f32.mrb[0].mxu0
  %v8182 = vadd.f32 %v7349, %v8181
  %v8183 = vpop.f32.mrb[0].mxu0
  %v8184 = vadd.f32 %v7351, %v8183
  %8185 = vmatprep.mubr.f32.mxu0 0.0
  %8186 = vmatmul.mubr.f32.gmra.mrb[0].mxu0 %v5722
  %v8187 = vpop.f32.mrb[0].mxu0
  %v8188 = vadd.f32 %v7355, %v8187
  %v8189 = vpop.f32.mrb[0].mxu0
  %v8190 = vadd.f32 %v7357, %v8189
  %8191 = vmatprep.mubr.f32.mxu0 0.0
  %8192 = vmatmul.mubr.f32.gmra.mrb[0].mxu0 %v5723
  %v8193 = vpop.f32.mrb[0].mxu0
  %v8194 = vadd.f32 %v7361, %v8193
  %v8195 = vpop.f32.mrb[0].mxu0
  %v8196 = vadd.f32 %v7363, %v8195
  %8197 = vmatprep.mubr.f32.mxu0 0.0
  %8198 = vmatmul.mubr.f32.gmra.mrb[0].mxu0 %v5724
  %v8199 = vpop.f32.mrb[0].mxu0
  %v8200 = vadd.f32 %v7367, %v8199
  %v8201 = vpop.f32.mrb[0].mxu0
  %v8202 = vadd.f32 %v7369, %v8201
  %8203 = vmatprep.mubr.f32.mxu0 0.0
  %8204 = vmatmul.mubr.f32.gmra.mrb[0].mxu0 %v5725
  %v8205 = vpop.f32.mrb[0].mxu0
  %v8206 = vadd.f32 %v7373, %v8205
  %v8207 = vpop.f32.mrb[0].mxu0
  %v8208 = vadd.f32 %v7375, %v8207
  %8209 = vmatprep.mubr.f32.mxu0 0.0
  %8210 = vmatmul.mubr.f32.gmra.mrb[0].mxu0 %v5726
  %v8211 = vpop.f32.mrb[0].mxu0
  %v8212 = vadd.f32 %v7379, %v8211
  %v8213 = vpop.f32.mrb[0].mxu0
  %v8214 = vadd.f32 %v7381, %v8213
  %8215 = vmatprep.mubr.f32.mxu0 0.0
  %8216 = vmatmul.mubr.f32.gmra.mrb[0].mxu0 %v5727
  %v8217 = vpop.f32.mrb[0].mxu0
  %v8218 = vadd.f32 %v7385, %v8217
  %v8219 = vpop.f32.mrb[0].mxu0
  %v8220 = vadd.f32 %v7387, %v8219
  %8221 = vmatprep.mubr.f32.mxu0 0.0
  %8222 = vmatmul.mubr.f32.gmra.mrb[0].mxu0 %v5728
  %v8223 = vpop.f32.mrb[0].mxu0
  %v8224 = vadd.f32 %v7391, %v8223
  %v8225 = vpop.f32.mrb[0].mxu0
  %v8226 = vadd.f32 %v7393, %v8225
  %8227 = vmatprep.mubr.f32.mxu0 0.0
  %8228 = vmatmul.mubr.f32.gmra.mrb[0].mxu0 %v5729
  %v8229 = vpop.f32.mrb[0].mxu0
  %v8230 = vadd.f32 %v7397, %v8229
  %v8231 = vpop.f32.mrb[0].mxu0
  %v8232 = vadd.f32 %v7399, %v8231
  %8233 = vmatprep.mubr.f32.mxu0 0.0
  %8234 = vmatmul.mubr.f32.gmra.mrb[0].mxu0 %v5730
  %v8235 = vpop.f32.mrb[0].mxu0
  %v8236 = vadd.f32 %v7403, %v8235
  %v8237 = vpop.f32.mrb[0].mxu0
  %v8238 = vadd.f32 %v7405, %v8237
  %8239 = vmatprep.mubr.f32.mxu0 0.0
  %8240 = vmatmul.mubr.f32.gmra.mrb[0].mxu0 %v5731
  %v8241 = vpop.f32.mrb[0].mxu0
  %v8242 = vadd.f32 %v7409, %v8241
  %v8243 = vpop.f32.mrb[0].mxu0
  %v8244 = vadd.f32 %v7411, %v8243
  %8245 = vmatprep.mubr.f32.mxu0 0.0
  %8246 = vmatmul.mubr.f32.gmra.mrb[0].mxu0 %v5732
  %v8247 = vpop.f32.mrb[0].mxu0
  %v8248 = vadd.f32 %v7415, %v8247
  %v8249 = vpop.f32.mrb[0].mxu0
  %v8250 = vadd.f32 %v7417, %v8249
  %8251 = vmatprep.mubr.f32.mxu0 0.0
  %8252 = vmatmul.mubr.f32.gmra.mrb[0].mxu0 %v5733
  %v8253 = vpop.f32.mrb[0].mxu0
  %v8254 = vadd.f32 %v7421, %v8253
  %v8255 = vpop.f32.mrb[0].mxu0
  %v8256 = vadd.f32 %v7423, %v8255
  %8257 = vmatprep.mubr.f32.mxu0 0.0
  %8258 = vmatmul.mubr.f32.gmra.mrb[0].mxu0 %v5734
  %v8259 = vpop.f32.mrb[0].mxu0
  %v8260 = vadd.f32 %v7427, %v8259
  %v8261 = vpop.f32.mrb[0].mxu0
  %v8262 = vadd.f32 %v7429, %v8261
  %8263 = vmatprep.mubr.f32.mxu0 0.0
  %8264 = vmatmul.mubr.f32.gmra.mrb[0].mxu0 %v5735
  %v8265 = vpop.f32.mrb[0].mxu0
  %v8266 = vadd.f32 %v7433, %v8265
  %v8267 = vpop.f32.mrb[0].mxu0
  %v8268 = vadd.f32 %v7435, %v8267
  %8269 = vmatprep.mubr.f32.mxu0 0.0
  %8270 = vmatmul.mubr.f32.gmra.mrb[0].mxu0 %v5736
  %v8271 = vpop.f32.mrb[0].mxu0
  %v8272 = vadd.f32 %v7439, %v8271
  %v8273 = vpop.f32.mrb[0].mxu0
  %v8274 = vadd.f32 %v7441, %v8273
  %8275 = vmatprep.mubr.f32.mxu0 0.0
  %8276 = vmatmul.mubr.f32.gmra.mrb[0].mxu0 %v5737
  %v8277 = vpop.f32.mrb[0].mxu0
  %v8278 = vadd.f32 %v7445, %v8277
  %v8279 = vpop.f32.mrb[0].mxu0
  %v8280 = vadd.f32 %v7447, %v8279
  %8281 = vmatprep.mubr.f32.mxu0 0.0
  %8282 = vmatmul.mubr.f32.gmra.mrb[0].mxu0 %v5738
  %v8283 = vpop.f32.mrb[0].mxu0
  %v8284 = vadd.f32 %v7451, %v8283
  %v8285 = vpop.f32.mrb[0].mxu0
  %v8286 = vadd.f32 %v7453, %v8285
  %8287 = vmatprep.mubr.f32.mxu0 0.0
  %8288 = vmatmul.mubr.f32.gmra.mrb[0].mxu0 %v5739
  %v8289 = vpop.f32.mrb[0].mxu0
  %v8290 = vadd.f32 %v7457, %v8289
  %v8291 = vpop.f32.mrb[0].mxu0
  %v8292 = vadd.f32 %v7459, %v8291
  %8293 = vmatprep.mubr.f32.mxu0 0.0
  %8294 = vmatmul.mubr.f32.gmra.mrb[0].mxu0 %v5740
  %v8295 = vpop.f32.mrb[0].mxu0
  %v8296 = vadd.f32 %v7463, %v8295
  %v8297 = vpop.f32.mrb[0].mxu0
  %v8298 = vadd.f32 %v7465, %v8297
  %8299 = vmatprep.mubr.f32.mxu0 0.0
  %8300 = vmatmul.mubr.f32.gmra.mrb[0].mxu0 %v5741
  %v8301 = vpop.f32.mrb[0].mxu0
  %v8302 = vadd.f32 %v7469, %v8301
  %v8303 = vpop.f32.mrb[0].mxu0
  %v8304 = vadd.f32 %v7471, %v8303
  %8305 = vmatprep.mubr.f32.mxu0 0.0
  %8306 = vmatmul.mubr.f32.gmra.mrb[0].mxu0 %v5742
  %v8307 = vpop.f32.mrb[0].mxu0
  %v8308 = vadd.f32 %v7475, %v8307
  %v8309 = vpop.f32.mrb[0].mxu0
  %v8310 = vadd.f32 %v7477, %v8309
  %8311 = vmatprep.mubr.f32.mxu0 0.0
  %8312 = vmatmul.mubr.f32.gmra.mrb[0].mxu0 %v5743
  %v8313 = vpop.f32.mrb[0].mxu0
  %v8314 = vadd.f32 %v7481, %v8313
  %v8315 = vpop.f32.mrb[0].mxu0
  %v8316 = vadd.f32 %v7483, %v8315
  %8317 = vmatprep.mubr.f32.mxu0 0.0
  %8318 = vmatmul.mubr.f32.gmra.mrb[0].mxu0 %v5744
  %v8319 = vpop.f32.mrb[0].mxu0
  %v8320 = vadd.f32 %v7487, %v8319
  %v8321 = vpop.f32.mrb[0].mxu0
  %v8322 = vadd.f32 %v7489, %v8321
  %8323 = vmatprep.mubr.f32.mxu0 0.0
  %8324 = vmatmul.mubr.f32.gmra.mrb[0].mxu0 %v5745
  %v8325 = vpop.f32.mrb[0].mxu0
  %v8326 = vadd.f32 %v7493, %v8325
  %v8327 = vpop.f32.mrb[0].mxu0
  %v8328 = vadd.f32 %v7495, %v8327
  %8329 = vmatprep.mubr.f32.mxu0 0.0
  %8330 = vmatmul.mubr.f32.gmra.mrb[0].mxu0 %v5746
  %v8331 = vpop.f32.mrb[0].mxu0
  %v8332 = vadd.f32 %v7499, %v8331
  %v8333 = vpop.f32.mrb[0].mxu0
  %v8334 = vadd.f32 %v7501, %v8333
  %8335 = vmatprep.mubr.f32.mxu0 0.0
  %8336 = vmatmul.mubr.f32.gmra.mrb[0].mxu0 %v5747
  %v8337 = vpop.f32.mrb[0].mxu0
  %v8338 = vadd.f32 %v7505, %v8337
  %v8339 = vpop.f32.mrb[0].mxu0
  %v8340 = vadd.f32 %v7507, %v8339
  %8341 = vmatprep.mubr.f32.mxu0 0.0
  %8342 = vmatmul.mubr.f32.gmra.mrb[0].mxu0 %v5748
  %v8343 = vpop.f32.mrb[0].mxu0
  %v8344 = vadd.f32 %v7511, %v8343
  %v8345 = vpop.f32.mrb[0].mxu0
  %v8346 = vadd.f32 %v7513, %v8345
  %8347 = vmatprep.mubr.f32.mxu0 0.0
  %8348 = vmatmul.mubr.f32.gmra.mrb[0].mxu0 %v5749
  %v8349 = vpop.f32.mrb[0].mxu0
  %v8350 = vadd.f32 %v7517, %v8349
  %v8351 = vpop.f32.mrb[0].mxu0
  %v8352 = vadd.f32 %v7519, %v8351
  %8353 = vmatprep.mubr.f32.mxu0 0.0
  %8354 = vmatmul.mubr.f32.gmra.mrb[0].mxu0 %v5750
  %v8355 = vpop.f32.mrb[0].mxu0
  %v8356 = vadd.f32 %v7523, %v8355
  %v8357 = vpop.f32.mrb[0].mxu0
  %v8358 = vadd.f32 %v7525, %v8357
  %8359 = vmatprep.mubr.f32.mxu0 0.0
  %8360 = vmatmul.mubr.f32.gmra.mrb[0].mxu0 %v5751
  %v8361 = vpop.f32.mrb[0].mxu0
  %v8362 = vadd.f32 %v7529, %v8361
  %v8363 = vpop.f32.mrb[0].mxu0
  %v8364 = vadd.f32 %v7531, %v8363
  %8365 = vmatprep.mubr.f32.mxu0 0.0
  %8366 = vmatmul.mubr.f32.gmra.mrb[0].mxu0 %v5752
  %v8367 = vpop.f32.mrb[0].mxu0
  %v8368 = vadd.f32 %v7535, %v8367
  %v8369 = vpop.f32.mrb[0].mxu0
  %v8370 = vadd.f32 %v7537, %v8369
  %8371 = vmatprep.mubr.f32.mxu0 0.0
  %8372 = vmatmul.mubr.f32.gmra.mrb[0].mxu0 %v5753
  %v8373 = vpop.f32.mrb[0].mxu0
  %v8374 = vadd.f32 %v7541, %v8373
  %v8375 = vpop.f32.mrb[0].mxu0
  %v8376 = vadd.f32 %v7543, %v8375
  %8377 = vmatprep.mubr.f32.mxu0 0.0
  %8378 = vmatmul.mubr.f32.gmra.mrb[0].mxu0 %v5754
  %v8379 = vpop.f32.mrb[0].mxu0
  %v8380 = vadd.f32 %v7547, %v8379
  %v8381 = vpop.f32.mrb[0].mxu0
  %v8382 = vadd.f32 %v7549, %v8381
  %8383 = vmatprep.mubr.f32.mxu0 0.0
  %8384 = vmatmul.mubr.f32.gmra.mrb[0].mxu0 %v5755
  %v8385 = vpop.f32.mrb[0].mxu0
  %v8386 = vadd.f32 %v7553, %v8385
  %v8387 = vpop.f32.mrb[0].mxu0
  %v8388 = vadd.f32 %v7555, %v8387
  %8389 = vmatprep.mubr.f32.mxu0 0.0
  %8390 = vmatmul.mubr.f32.gmra.mrb[0].mxu0 %v5756
  %v8391 = vpop.f32.mrb[0].mxu0
  %v8392 = vadd.f32 %v7559, %v8391
  %v8393 = vpop.f32.mrb[0].mxu0
  %v8394 = vadd.f32 %v7561, %v8393
  %8395 = vmatprep.mubr.f32.mxu0 0.0
  %8396 = vmatmul.mubr.f32.gmra.mrb[0].mxu0 %v5757
  %v8397 = vpop.f32.mrb[0].mxu0
  %v8398 = vadd.f32 %v7565, %v8397
  %v8399 = vpop.f32.mrb[0].mxu0
  %v8400 = vadd.f32 %v7567, %v8399
  %8401 = vmatprep.mubr.f32.mxu0 0.0
  %8402 = vmatmul.mubr.f32.gmra.mrb[0].mxu0 %v5758
  %v8403 = vpop.f32.mrb[0].mxu0
  %v8404 = vadd.f32 %v7571, %v8403
  %v8405 = vpop.f32.mrb[0].mxu0
  %v8406 = vadd.f32 %v7573, %v8405
  %8407 = vmatprep.mubr.f32.mxu0 0.0
  %8408 = vmatmul.mubr.f32.gmra.mrb[0].mxu0 %v5759
  %v8409 = vpop.f32.mrb[0].mxu0
  %v8410 = vadd.f32 %v7577, %v8409
  %v8411 = vpop.f32.mrb[0].mxu0
  %v8412 = vadd.f32 %v7579, %v8411
  %8413 = vmatprep.mubr.f32.mxu0 0.0
  %8414 = vmatmul.mubr.f32.gmra.mrb[0].mxu0 %v5760
  %v8415 = vpop.f32.mrb[0].mxu0
  %v8416 = vadd.f32 %v7583, %v8415
  %v8417 = vpop.f32.mrb[0].mxu0
  %v8418 = vadd.f32 %v7585, %v8417
  %8419 = vdwg.mxu0
  %v8420 = vmax.f32 %v7654, %v7750
  %v8421 = vmax.f32 %v7660, %v7756
  %v8422 = vmax.f32 %v7666, %v7762
  %v8423 = vmax.f32 %v7672, %v7768
  %v8424 = vmax.f32 %v7678, %v7774
  %v8425 = vmax.f32 %v7684, %v7780
  %v8426 = vmax.f32 %v7690, %v7786
  %v8427 = vmax.f32 %v7696, %v7792
  %v8428 = vmax.f32 %v7702, %v7798
  %v8429 = vmax.f32 %v7708, %v7804
  %v8430 = vmax.f32 %v7714, %v7810
  %v8431 = vmax.f32 %v7720, %v7816
  %v8432 = vmax.f32 %v7726, %v7822
  %v8433 = vmax.f32 %v7732, %v7828
  %v8434 = vmax.f32 %v7738, %v7834
  %v8435 = vmax.f32 %v7744, %v7840
  %v8436 = vmax.f32 %v7656, %v7752
  %v8437 = vmax.f32 %v7662, %v7758
  %v8438 = vmax.f32 %v7668, %v7764
  %v8439 = vmax.f32 %v7674, %v7770
  %v8440 = vmax.f32 %v7680, %v7776
  %v8441 = vmax.f32 %v7686, %v7782
  %v8442 = vmax.f32 %v7692, %v7788
  %v8443 = vmax.f32 %v7698, %v7794
  %v8444 = vmax.f32 %v7704, %v7800
  %v8445 = vmax.f32 %v7710, %v7806
  %v8446 = vmax.f32 %v7716, %v7812
  %v8447 = vmax.f32 %v7722, %v7818
  %v8448 = vmax.f32 %v7728, %v7824
  %v8449 = vmax.f32 %v7734, %v7830
  %v8450 = vmax.f32 %v7740, %v7836
  %v8451 = vmax.f32 %v7746, %v7842
  %v8452 = vmax.f32 %v8420, %v8436
  %v8453 = vmax.f32 %v8421, %v8437
  %v8454 = vmax.f32 %v8422, %v8438
  %v8455 = vmax.f32 %v8423, %v8439
  %v8456 = vmax.f32 %v8424, %v8440
  %v8457 = vmax.f32 %v8425, %v8441
  %v8458 = vmax.f32 %v8426, %v8442
  %v8459 = vmax.f32 %v8427, %v8443
  %v8460 = vmax.f32 %v8428, %v8444
  %v8461 = vmax.f32 %v8429, %v8445
  %v8462 = vmax.f32 %v8430, %v8446
  %v8463 = vmax.f32 %v8431, %v8447
  %v8464 = vmax.f32 %v8432, %v8448
  %v8465 = vmax.f32 %v8433, %v8449
  %v8466 = vmax.f32 %v8434, %v8450
  %v8467 = vmax.f32 %v8435, %v8451
  %v8468 = vld [vmem:[%s4] sm:$0x1]
  %v8470 = vlaneseq
  %v8471 = vshrl.u32 %v8470, 7
  %v8472 = vsub.s32 0, %v8471
  %v8473 = vrot.slane %v8468, %v8472
  %v8475 = vadd.f32 %v8452, %v8473
  %v8476 = vadd.f32 %v8453, %v8473
  %v8477 = vadd.f32 %v8454, %v8473
  %v8478 = vadd.f32 %v8455, %v8473
  %v8479 = vadd.f32 %v8456, %v8473
  %v8480 = vadd.f32 %v8457, %v8473
  %v8481 = vadd.f32 %v8458, %v8473
  %v8482 = vadd.f32 %v8459, %v8473
  %v8483 = vadd.f32 %v8460, %v8473
  %v8484 = vadd.f32 %v8461, %v8473
  %v8485 = vadd.f32 %v8462, %v8473
  %v8486 = vadd.f32 %v8463, %v8473
  %v8487 = vadd.f32 %v8464, %v8473
  %v8488 = vadd.f32 %v8465, %v8473
  %v8489 = vadd.f32 %v8466, %v8473
  %v8490 = vadd.f32 %v8467, %v8473
  %v8491 = vmax.f32 %v8475, 0.0
  %v8492 = vmax.f32 %v8476, 0.0
  %v8493 = vmax.f32 %v8477, 0.0
  %v8494 = vmax.f32 %v8478, 0.0
  %v8495 = vmax.f32 %v8479, 0.0
  %v8496 = vmax.f32 %v8480, 0.0
  %v8497 = vmax.f32 %v8481, 0.0
  %v8498 = vmax.f32 %v8482, 0.0
  %v8499 = vmax.f32 %v8483, 0.0
  %v8500 = vmax.f32 %v8484, 0.0
  %v8501 = vmax.f32 %v8485, 0.0
  %v8502 = vmax.f32 %v8486, 0.0
  %v8503 = vmax.f32 %v8487, 0.0
  %v8504 = vmax.f32 %v8488, 0.0
  %v8505 = vmax.f32 %v8489, 0.0
  %v8506 = vmax.f32 %v8490, 0.0
  %v8507 = vmax.f32 %v7846, %v7942
  %v8508 = vmax.f32 %v7852, %v7948
  %v8509 = vmax.f32 %v7858, %v7954
  %v8510 = vmax.f32 %v7864, %v7960
  %v8511 = vmax.f32 %v7870, %v7966
  %v8512 = vmax.f32 %v7876, %v7972
  %v8513 = vmax.f32 %v7882, %v7978
  %v8514 = vmax.f32 %v7888, %v7984
  %v8515 = vmax.f32 %v7894, %v7990
  %v8516 = vmax.f32 %v7900, %v7996
  %v8517 = vmax.f32 %v7906, %v8002
  %v8518 = vmax.f32 %v7912, %v8008
  %v8519 = vmax.f32 %v7918, %v8014
  %v8520 = vmax.f32 %v7924, %v8020
  %v8521 = vmax.f32 %v7930, %v8026
  %v8522 = vmax.f32 %v7936, %v8032
  %v8523 = vmax.f32 %v7848, %v7944
  %v8524 = vmax.f32 %v7854, %v7950
  %v8525 = vmax.f32 %v7860, %v7956
  %v8526 = vmax.f32 %v7866, %v7962
  %v8527 = vmax.f32 %v7872, %v7968
  %v8528 = vmax.f32 %v7878, %v7974
  %v8529 = vmax.f32 %v7884, %v7980
  %v8530 = vmax.f32 %v7890, %v7986
  %v8531 = vmax.f32 %v7896, %v7992
  %v8532 = vmax.f32 %v7902, %v7998
  %v8533 = vmax.f32 %v7908, %v8004
  %v8534 = vmax.f32 %v7914, %v8010
  %v8535 = vmax.f32 %v7920, %v8016
  %v8536 = vmax.f32 %v7926, %v8022
  %v8537 = vmax.f32 %v7932, %v8028
  %v8538 = vmax.f32 %v7938, %v8034
  %v8539 = vmax.f32 %v8507, %v8523
  %v8540 = vmax.f32 %v8508, %v8524
  %v8541 = vmax.f32 %v8509, %v8525
  %v8542 = vmax.f32 %v8510, %v8526
  %v8543 = vmax.f32 %v8511, %v8527
  %v8544 = vmax.f32 %v8512, %v8528
  %v8545 = vmax.f32 %v8513, %v8529
  %v8546 = vmax.f32 %v8514, %v8530
  %v8547 = vmax.f32 %v8515, %v8531
  %v8548 = vmax.f32 %v8516, %v8532
  %v8549 = vmax.f32 %v8517, %v8533
  %v8550 = vmax.f32 %v8518, %v8534
  %v8551 = vmax.f32 %v8519, %v8535
  %v8552 = vmax.f32 %v8520, %v8536
  %v8553 = vmax.f32 %v8521, %v8537
  %v8554 = vmax.f32 %v8522, %v8538
  %v8555 = vadd.f32 %v8539, %v8473
  %v8556 = vadd.f32 %v8540, %v8473
  %v8557 = vadd.f32 %v8541, %v8473
  %v8558 = vadd.f32 %v8542, %v8473
  %v8559 = vadd.f32 %v8543, %v8473
  %v8560 = vadd.f32 %v8544, %v8473
  %v8561 = vadd.f32 %v8545, %v8473
  %v8562 = vadd.f32 %v8546, %v8473
  %v8563 = vadd.f32 %v8547, %v8473
  %v8564 = vadd.f32 %v8548, %v8473
  %v8565 = vadd.f32 %v8549, %v8473
  %v8566 = vadd.f32 %v8550, %v8473
  %v8567 = vadd.f32 %v8551, %v8473
  %v8568 = vadd.f32 %v8552, %v8473
  %v8569 = vadd.f32 %v8553, %v8473
  %v8570 = vadd.f32 %v8554, %v8473
  %v8571 = vmax.f32 %v8555, 0.0
  %v8572 = vmax.f32 %v8556, 0.0
  %v8573 = vmax.f32 %v8557, 0.0
  %v8574 = vmax.f32 %v8558, 0.0
  %v8575 = vmax.f32 %v8559, 0.0
  %v8576 = vmax.f32 %v8560, 0.0
  %v8577 = vmax.f32 %v8561, 0.0
  %v8578 = vmax.f32 %v8562, 0.0
  %v8579 = vmax.f32 %v8563, 0.0
  %v8580 = vmax.f32 %v8564, 0.0
  %v8581 = vmax.f32 %v8565, 0.0
  %v8582 = vmax.f32 %v8566, 0.0
  %v8583 = vmax.f32 %v8567, 0.0
  %v8584 = vmax.f32 %v8568, 0.0
  %v8585 = vmax.f32 %v8569, 0.0
  %v8586 = vmax.f32 %v8570, 0.0
  %v8587 = vmax.f32 %v8038, %v8134
  %v8588 = vmax.f32 %v8044, %v8140
  %v8589 = vmax.f32 %v8050, %v8146
  %v8590 = vmax.f32 %v8056, %v8152
  %v8591 = vmax.f32 %v8062, %v8158
  %v8592 = vmax.f32 %v8068, %v8164
  %v8593 = vmax.f32 %v8074, %v8170
  %v8594 = vmax.f32 %v8080, %v8176
  %v8595 = vmax.f32 %v8086, %v8182
  %v8596 = vmax.f32 %v8092, %v8188
  %v8597 = vmax.f32 %v8098, %v8194
  %v8598 = vmax.f32 %v8104, %v8200
  %v8599 = vmax.f32 %v8110, %v8206
  %v8600 = vmax.f32 %v8116, %v8212
  %v8601 = vmax.f32 %v8122, %v8218
  %v8602 = vmax.f32 %v8128, %v8224
  %v8603 = vmax.f32 %v8040, %v8136
  %v8604 = vmax.f32 %v8046, %v8142
  %v8605 = vmax.f32 %v8052, %v8148
  %v8606 = vmax.f32 %v8058, %v8154
  %v8607 = vmax.f32 %v8064, %v8160
  %v8608 = vmax.f32 %v8070, %v8166
  %v8609 = vmax.f32 %v8076, %v8172
  %v8610 = vmax.f32 %v8082, %v8178
  %v8611 = vmax.f32 %v8088, %v8184
  %v8612 = vmax.f32 %v8094, %v8190
  %v8613 = vmax.f32 %v8100, %v8196
  %v8614 = vmax.f32 %v8106, %v8202
  %v8615 = vmax.f32 %v8112, %v8208
  %v8616 = vmax.f32 %v8118, %v8214
  %v8617 = vmax.f32 %v8124, %v8220
  %v8618 = vmax.f32 %v8130, %v8226
  %v8619 = vmax.f32 %v8587, %v8603
  %v8620 = vmax.f32 %v8588, %v8604
  %v8621 = vmax.f32 %v8589, %v8605
  %v8622 = vmax.f32 %v8590, %v8606
  %v8623 = vmax.f32 %v8591, %v8607
  %v8624 = vmax.f32 %v8592, %v8608
  %v8625 = vmax.f32 %v8593, %v8609
  %v8626 = vmax.f32 %v8594, %v8610
  %v8627 = vmax.f32 %v8595, %v8611
  %v8628 = vmax.f32 %v8596, %v8612
  %v8629 = vmax.f32 %v8597, %v8613
  %v8630 = vmax.f32 %v8598, %v8614
  %v8631 = vmax.f32 %v8599, %v8615
  %v8632 = vmax.f32 %v8600, %v8616
  %v8633 = vmax.f32 %v8601, %v8617
  %v8634 = vmax.f32 %v8602, %v8618
  %v8635 = vadd.f32 %v8619, %v8473
  %v8636 = vadd.f32 %v8620, %v8473
  %v8637 = vadd.f32 %v8621, %v8473
  %v8638 = vadd.f32 %v8622, %v8473
  %v8639 = vadd.f32 %v8623, %v8473
  %v8640 = vadd.f32 %v8624, %v8473
  %v8641 = vadd.f32 %v8625, %v8473
  %v8642 = vadd.f32 %v8626, %v8473
  %v8643 = vadd.f32 %v8627, %v8473
  %v8644 = vadd.f32 %v8628, %v8473
  %v8645 = vadd.f32 %v8629, %v8473
  %v8646 = vadd.f32 %v8630, %v8473
  %v8647 = vadd.f32 %v8631, %v8473
  %v8648 = vadd.f32 %v8632, %v8473
  %v8649 = vadd.f32 %v8633, %v8473
  %v8650 = vadd.f32 %v8634, %v8473
  %v8651 = vmax.f32 %v8635, 0.0
  %v8652 = vmax.f32 %v8636, 0.0
  %v8653 = vmax.f32 %v8637, 0.0
  %v8654 = vmax.f32 %v8638, 0.0
  %v8655 = vmax.f32 %v8639, 0.0
  %v8656 = vmax.f32 %v8640, 0.0
  %v8657 = vmax.f32 %v8641, 0.0
  %v8658 = vmax.f32 %v8642, 0.0
  %v8659 = vmax.f32 %v8643, 0.0
  %v8660 = vmax.f32 %v8644, 0.0
  %v8661 = vmax.f32 %v8645, 0.0
  %v8662 = vmax.f32 %v8646, 0.0
  %v8663 = vmax.f32 %v8647, 0.0
  %v8664 = vmax.f32 %v8648, 0.0
  %v8665 = vmax.f32 %v8649, 0.0
  %v8666 = vmax.f32 %v8650, 0.0
  %v8667 = vmax.f32 %v8230, %v8326
  %v8668 = vmax.f32 %v8236, %v8332
  %v8669 = vmax.f32 %v8242, %v8338
  %v8670 = vmax.f32 %v8248, %v8344
  %v8671 = vmax.f32 %v8254, %v8350
  %v8672 = vmax.f32 %v8260, %v8356
  %v8673 = vmax.f32 %v8266, %v8362
  %v8674 = vmax.f32 %v8272, %v8368
  %v8675 = vmax.f32 %v8278, %v8374
  %v8676 = vmax.f32 %v8284, %v8380
  %v8677 = vmax.f32 %v8290, %v8386
  %v8678 = vmax.f32 %v8296, %v8392
  %v8679 = vmax.f32 %v8302, %v8398
  %v8680 = vmax.f32 %v8308, %v8404
  %v8681 = vmax.f32 %v8314, %v8410
  %v8682 = vmax.f32 %v8320, %v8416
  %v8683 = vmax.f32 %v8232, %v8328
  %v8684 = vmax.f32 %v8238, %v8334
  %v8685 = vmax.f32 %v8244, %v8340
  %v8686 = vmax.f32 %v8250, %v8346
  %v8687 = vmax.f32 %v8256, %v8352
  %v8688 = vmax.f32 %v8262, %v8358
  %v8689 = vmax.f32 %v8268, %v8364
  %v8690 = vmax.f32 %v8274, %v8370
  %v8691 = vmax.f32 %v8280, %v8376
  %v8692 = vmax.f32 %v8286, %v8382
  %v8693 = vmax.f32 %v8292, %v8388
  %v8694 = vmax.f32 %v8298, %v8394
  %v8695 = vmax.f32 %v8304, %v8400
  %v8696 = vmax.f32 %v8310, %v8406
  %v8697 = vmax.f32 %v8316, %v8412
  %v8698 = vmax.f32 %v8322, %v8418
  %v8699 = vmax.f32 %v8667, %v8683
  %v8700 = vmax.f32 %v8668, %v8684
  %v8701 = vmax.f32 %v8669, %v8685
  %v8702 = vmax.f32 %v8670, %v8686
  %v8703 = vmax.f32 %v8671, %v8687
  %v8704 = vmax.f32 %v8672, %v8688
  %v8705 = vmax.f32 %v8673, %v8689
  %v8706 = vmax.f32 %v8674, %v8690
  %v8707 = vmax.f32 %v8675, %v8691
  %v8708 = vmax.f32 %v8676, %v8692
  %v8709 = vmax.f32 %v8677, %v8693
  %v8710 = vmax.f32 %v8678, %v8694
  %v8711 = vmax.f32 %v8679, %v8695
  %v8712 = vmax.f32 %v8680, %v8696
  %v8713 = vmax.f32 %v8681, %v8697
  %v8714 = vmax.f32 %v8682, %v8698
  %v8715 = vadd.f32 %v8699, %v8473
  %v8716 = vadd.f32 %v8700, %v8473
  %v8717 = vadd.f32 %v8701, %v8473
  %v8718 = vadd.f32 %v8702, %v8473
  %v8719 = vadd.f32 %v8703, %v8473
  %v8720 = vadd.f32 %v8704, %v8473
  %v8721 = vadd.f32 %v8705, %v8473
  %v8722 = vadd.f32 %v8706, %v8473
  %v8723 = vadd.f32 %v8707, %v8473
  %v8724 = vadd.f32 %v8708, %v8473
  %v8725 = vadd.f32 %v8709, %v8473
  %v8726 = vadd.f32 %v8710, %v8473
  %v8727 = vadd.f32 %v8711, %v8473
  %v8728 = vadd.f32 %v8712, %v8473
  %v8729 = vadd.f32 %v8713, %v8473
  %v8730 = vadd.f32 %v8714, %v8473
  %v8731 = vmax.f32 %v8715, 0.0
  %v8732 = vmax.f32 %v8716, 0.0
  %v8733 = vmax.f32 %v8717, 0.0
  %v8734 = vmax.f32 %v8718, 0.0
  %v8735 = vmax.f32 %v8719, 0.0
  %v8736 = vmax.f32 %v8720, 0.0
  %v8737 = vmax.f32 %v8721, 0.0
  %v8738 = vmax.f32 %v8722, 0.0
  %v8739 = vmax.f32 %v8723, 0.0
  %v8740 = vmax.f32 %v8724, 0.0
  %v8741 = vmax.f32 %v8725, 0.0
  %v8742 = vmax.f32 %v8726, 0.0
  %v8743 = vmax.f32 %v8727, 0.0
  %v8744 = vmax.f32 %v8728, 0.0
  %v8745 = vmax.f32 %v8729, 0.0
  %v8746 = vmax.f32 %v8730, 0.0
  %v8747 = vld [vmem:[%s5] sm:$0xff]
  %v8748 = vld [vmem:[%s5 + $0x8] sm:$0xff]
  %v8749 = vld [vmem:[%s5 + $0x10] sm:$0xff]
  %v8750 = vld [vmem:[%s5 + $0x18] sm:$0xff]
  %v8751 = vld [vmem:[%s5 + $0x20] sm:$0xff]
  %v8752 = vld [vmem:[%s5 + $0x28] sm:$0xff]
  %v8753 = vld [vmem:[%s5 + $0x30] sm:$0xff]
  %v8754 = vld [vmem:[%s5 + $0x38] sm:$0xff]
  %v8755 = vld [vmem:[%s5 + $0x40] sm:$0xff]
  %v8756 = vld [vmem:[%s5 + $0x48] sm:$0xff]
  %v8757 = vld [vmem:[%s5 + $0x50] sm:$0xff]
  %v8758 = vld [vmem:[%s5 + $0x58] sm:$0xff]
  %v8759 = vld [vmem:[%s5 + $0x60] sm:$0xff]
  %v8760 = vld [vmem:[%s5 + $0x68] sm:$0xff]
  %v8761 = vld [vmem:[%s5 + $0x70] sm:$0xff]
  %v8762 = vld [vmem:[%s5 + $0x78] sm:$0xff]
  %v8763 = vld [vmem:[%s5 + $0x80] sm:$0xff]
  %v8764 = vld [vmem:[%s5 + $0x88] sm:$0xff]
  %v8765 = vld [vmem:[%s5 + $0x90] sm:$0xff]
  %v8766 = vld [vmem:[%s5 + $0x98] sm:$0xff]
  %v8767 = vld [vmem:[%s5 + $0xa0] sm:$0xff]
  %v8768 = vld [vmem:[%s5 + $0xa8] sm:$0xff]
  %v8769 = vld [vmem:[%s5 + $0xb0] sm:$0xff]
  %v8770 = vld [vmem:[%s5 + $0xb8] sm:$0xff]
  %v8771 = vld [vmem:[%s5 + $0xc0] sm:$0xff]
  %v8772 = vld [vmem:[%s5 + $0xc8] sm:$0xff]
  %v8773 = vld [vmem:[%s5 + $0xd0] sm:$0xff]
  %v8774 = vld [vmem:[%s5 + $0xd8] sm:$0xff]
  %v8775 = vld [vmem:[%s5 + $0xe0] sm:$0xff]
  %v8776 = vld [vmem:[%s5 + $0xe8] sm:$0xff]
  %v8777 = vld [vmem:[%s5 + $0xf0] sm:$0xff]
  %v8778 = vld [vmem:[%s5 + $0xf8] sm:$0xff]
  %v8779 = vld [vmem:[%s5 + $0x100] sm:$0xff]
  %v8780 = vld [vmem:[%s5 + $0x108] sm:$0xff]
  %v8781 = vld [vmem:[%s5 + $0x110] sm:$0xff]
  %v8782 = vld [vmem:[%s5 + $0x118] sm:$0xff]
  %v8783 = vld [vmem:[%s5 + $0x120] sm:$0xff]
  %v8784 = vld [vmem:[%s5 + $0x128] sm:$0xff]
  %v8785 = vld [vmem:[%s5 + $0x130] sm:$0xff]
  %v8786 = vld [vmem:[%s5 + $0x138] sm:$0xff]
  %v8787 = vld [vmem:[%s5 + $0x140] sm:$0xff]
  %v8788 = vld [vmem:[%s5 + $0x148] sm:$0xff]
  %v8789 = vld [vmem:[%s5 + $0x150] sm:$0xff]
  %v8790 = vld [vmem:[%s5 + $0x158] sm:$0xff]
  %v8791 = vld [vmem:[%s5 + $0x160] sm:$0xff]
  %v8792 = vld [vmem:[%s5 + $0x168] sm:$0xff]
  %v8793 = vld [vmem:[%s5 + $0x170] sm:$0xff]
  %v8794 = vld [vmem:[%s5 + $0x178] sm:$0xff]
  %v8795 = vld [vmem:[%s5 + $0x180] sm:$0xff]
  %v8796 = vld [vmem:[%s5 + $0x188] sm:$0xff]
  %v8797 = vld [vmem:[%s5 + $0x190] sm:$0xff]
  %v8798 = vld [vmem:[%s5 + $0x198] sm:$0xff]
  %v8799 = vld [vmem:[%s5 + $0x1a0] sm:$0xff]
  %v8800 = vld [vmem:[%s5 + $0x1a8] sm:$0xff]
  %v8801 = vld [vmem:[%s5 + $0x1b0] sm:$0xff]
  %v8802 = vld [vmem:[%s5 + $0x1b8] sm:$0xff]
  %v8803 = vld [vmem:[%s5 + $0x1c0] sm:$0xff]
  %v8804 = vld [vmem:[%s5 + $0x1c8] sm:$0xff]
  %v8805 = vld [vmem:[%s5 + $0x1d0] sm:$0xff]
  %v8806 = vld [vmem:[%s5 + $0x1d8] sm:$0xff]
  %v8807 = vld [vmem:[%s5 + $0x1e0] sm:$0xff]
  %v8808 = vld [vmem:[%s5 + $0x1e8] sm:$0xff]
  %v8809 = vld [vmem:[%s5 + $0x1f0] sm:$0xff]
  %v8810 = vld [vmem:[%s5 + $0x1f8] sm:$0xff]
  %v8811 = vld [vmem:[%s6] sm:$0x1]
  %v8813 = vlaneseq
  %v8814 = vshrl.u32 %v8813, 7
  %v8815 = vsub.s32 0, %v8814
  %v8816 = vrot.slane %v8811, %v8815
  %8818 = vmatprep.subr.mxu0 0.0
  %8819 = vmatpush1.msra.mxu0 %v8747
  %8820 = vmatprep.subr.mxu0 0.0
  %8821 = vmatpush1.msra.mxu0 %v8748
  %8822 = vmatprep.subr.mxu0 0.0
  %8823 = vmatpush1.msra.mxu0 %v8749
  %8824 = vmatprep.subr.mxu0 0.0
  %8825 = vmatpush1.msra.mxu0 %v8750
  %8826 = vmatprep.subr.mxu0 0.0
  %8827 = vmatpush1.msra.mxu0 %v8751
  %8828 = vmatprep.subr.mxu0 0.0
  %8829 = vmatpush1.msra.mxu0 %v8752
  %8830 = vmatprep.subr.mxu0 0.0
  %8831 = vmatpush1.msra.mxu0 %v8753
  %8832 = vmatprep.subr.mxu0 0.0
  %8833 = vmatpush1.msra.mxu0 %v8754
  %8834 = vmatprep.subr.mxu0 0.0
  %8835 = vmatpush1.msra.mxu0 %v8755
  %8836 = vmatprep.subr.mxu0 0.0
  %8837 = vmatpush1.msra.mxu0 %v8756
  %8838 = vmatprep.subr.mxu0 0.0
  %8839 = vmatpush1.msra.mxu0 %v8757
  %8840 = vmatprep.subr.mxu0 0.0
  %8841 = vmatpush1.msra.mxu0 %v8758
  %8842 = vmatprep.subr.mxu0 0.0
  %8843 = vmatpush1.msra.mxu0 %v8759
  %8844 = vmatprep.subr.mxu0 0.0
  %8845 = vmatpush1.msra.mxu0 %v8760
  %8846 = vmatprep.subr.mxu0 0.0
  %8847 = vmatpush1.msra.mxu0 %v8761
  %8848 = vmatprep.subr.mxu0 0.0
  %8849 = vmatpush1.msra.mxu0 %v8762
  %8850 = vmatprep.subr.mxu0 0.0
  %8851 = vmatpush1.msra.mxu0 %v8763
  %8852 = vmatprep.subr.mxu0 0.0
  %8853 = vmatpush1.msra.mxu0 %v8764
  %8854 = vmatprep.subr.mxu0 0.0
  %8855 = vmatpush1.msra.mxu0 %v8765
  %8856 = vmatprep.subr.mxu0 0.0
  %8857 = vmatpush1.msra.mxu0 %v8766
  %8858 = vmatprep.subr.mxu0 0.0
  %8859 = vmatpush1.msra.mxu0 %v8767
  %8860 = vmatprep.subr.mxu0 0.0
  %8861 = vmatpush1.msra.mxu0 %v8768
  %8862 = vmatprep.subr.mxu0 0.0
  %8863 = vmatpush1.msra.mxu0 %v8769
  %8864 = vmatprep.subr.mxu0 0.0
  %8865 = vmatpush1.msra.mxu0 %v8770
  %8866 = vmatprep.subr.mxu0 0.0
  %8867 = vmatpush1.msra.mxu0 %v8771
  %8868 = vmatprep.subr.mxu0 0.0
  %8869 = vmatpush1.msra.mxu0 %v8772
  %8870 = vmatprep.subr.mxu0 0.0
  %8871 = vmatpush1.msra.mxu0 %v8773
  %8872 = vmatprep.subr.mxu0 0.0
  %8873 = vmatpush1.msra.mxu0 %v8774
  %8874 = vmatprep.subr.mxu0 0.0
  %8875 = vmatpush1.msra.mxu0 %v8775
  %8876 = vmatprep.subr.mxu0 0.0
  %8877 = vmatpush1.msra.mxu0 %v8776
  %8878 = vmatprep.subr.mxu0 0.0
  %8879 = vmatpush1.msra.mxu0 %v8777
  %8880 = vmatprep.subr.mxu0 0.0
  %8881 = vmatpush1.msra.mxu0 %v8778
  %8882 = vmatprep.mubr.f32.mxu0 %v8571
  %8883 = vmatmul.mubr.f32.gmra.mrb[0].mxu0 %v8491
  %v8884 = vpop.f32.mrb[0].mxu0
  %v8885 = vadd.f32 %v8816, %v8884
  %v8886 = vpop.f32.mrb[0].mxu0
  %8887 = vmatprep.mubr.f32.mxu0 %v8572
  %8888 = vmatmul.mubr.f32.gmra.mrb[0].mxu0 %v8492
  %v8889 = vpop.f32.mrb[0].mxu0
  %v8890 = vadd.f32 %v8816, %v8889
  %v8891 = vpop.f32.mrb[0].mxu0
  %8892 = vmatprep.mubr.f32.mxu0 %v8573
  %8893 = vmatmul.mubr.f32.gmra.mrb[0].mxu0 %v8493
  %v8894 = vpop.f32.mrb[0].mxu0
  %v8895 = vadd.f32 %v8816, %v8894
  %v8896 = vpop.f32.mrb[0].mxu0
  %8897 = vmatprep.mubr.f32.mxu0 %v8574
  %8898 = vmatmul.mubr.f32.gmra.mrb[0].mxu0 %v8494
  %v8899 = vpop.f32.mrb[0].mxu0
  %v8900 = vadd.f32 %v8816, %v8899
  %v8901 = vpop.f32.mrb[0].mxu0
  %8902 = vmatprep.mubr.f32.mxu0 %v8575
  %8903 = vmatmul.mubr.f32.gmra.mrb[0].mxu0 %v8495
  %v8904 = vpop.f32.mrb[0].mxu0
  %v8905 = vadd.f32 %v8816, %v8904
  %v8906 = vpop.f32.mrb[0].mxu0
  %8907 = vmatprep.mubr.f32.mxu0 %v8576
  %8908 = vmatmul.mubr.f32.gmra.mrb[0].mxu0 %v8496
  %v8909 = vpop.f32.mrb[0].mxu0
  %v8910 = vadd.f32 %v8816, %v8909
  %v8911 = vpop.f32.mrb[0].mxu0
  %8912 = vmatprep.mubr.f32.mxu0 %v8577
  %8913 = vmatmul.mubr.f32.gmra.mrb[0].mxu0 %v8497
  %v8914 = vpop.f32.mrb[0].mxu0
  %v8915 = vadd.f32 %v8816, %v8914
  %v8916 = vpop.f32.mrb[0].mxu0
  %8917 = vmatprep.mubr.f32.mxu0 %v8578
  %8918 = vmatmul.mubr.f32.gmra.mrb[0].mxu0 %v8498
  %v8919 = vpop.f32.mrb[0].mxu0
  %v8920 = vadd.f32 %v8816, %v8919
  %v8921 = vpop.f32.mrb[0].mxu0
  %8922 = vmatprep.mubr.f32.mxu0 %v8579
  %8923 = vmatmul.mubr.f32.gmra.mrb[0].mxu0 %v8499
  %v8924 = vpop.f32.mrb[0].mxu0
  %v8925 = vadd.f32 %v8816, %v8924
  %v8926 = vpop.f32.mrb[0].mxu0
  %8927 = vmatprep.mubr.f32.mxu0 %v8580
  %8928 = vmatmul.mubr.f32.gmra.mrb[0].mxu0 %v8500
  %v8929 = vpop.f32.mrb[0].mxu0
  %v8930 = vadd.f32 %v8816, %v8929
  %v8931 = vpop.f32.mrb[0].mxu0
  %8932 = vmatprep.mubr.f32.mxu0 %v8581
  %8933 = vmatmul.mubr.f32.gmra.mrb[0].mxu0 %v8501
  %v8934 = vpop.f32.mrb[0].mxu0
  %v8935 = vadd.f32 %v8816, %v8934
  %v8936 = vpop.f32.mrb[0].mxu0
  %8937 = vmatprep.mubr.f32.mxu0 %v8582
  %8938 = vmatmul.mubr.f32.gmra.mrb[0].mxu0 %v8502
  %v8939 = vpop.f32.mrb[0].mxu0
  %v8940 = vadd.f32 %v8816, %v8939
  %v8941 = vpop.f32.mrb[0].mxu0
  %8942 = vmatprep.mubr.f32.mxu0 %v8583
  %8943 = vmatmul.mubr.f32.gmra.mrb[0].mxu0 %v8503
  %v8944 = vpop.f32.mrb[0].mxu0
  %v8945 = vadd.f32 %v8816, %v8944
  %v8946 = vpop.f32.mrb[0].mxu0
  %8947 = vmatprep.mubr.f32.mxu0 %v8584
  %8948 = vmatmul.mubr.f32.gmra.mrb[0].mxu0 %v8504
  %v8949 = vpop.f32.mrb[0].mxu0
  %v8950 = vadd.f32 %v8816, %v8949
  %v8951 = vpop.f32.mrb[0].mxu0
  %8952 = vmatprep.mubr.f32.mxu0 %v8585
  %8953 = vmatmul.mubr.f32.gmra.mrb[0].mxu0 %v8505
  %v8954 = vpop.f32.mrb[0].mxu0
  %v8955 = vadd.f32 %v8816, %v8954
  %v8956 = vpop.f32.mrb[0].mxu0
  %8957 = vmatprep.mubr.f32.mxu0 %v8586
  %8958 = vmatmul.mubr.f32.gmra.mrb[0].mxu0 %v8506
  %v8959 = vpop.f32.mrb[0].mxu0
  %v8960 = vadd.f32 %v8816, %v8959
  %v8961 = vpop.f32.mrb[0].mxu0
  %8962 = vdwg.mxu0
  %8963 = vmatprep.subr.mxu0 0.0
  %8964 = vmatpush1.msra.mxu0 %v8779
  %8965 = vmatprep.subr.mxu0 0.0
  %8966 = vmatpush1.msra.mxu0 %v8780
  %8967 = vmatprep.subr.mxu0 0.0
  %8968 = vmatpush1.msra.mxu0 %v8781
  %8969 = vmatprep.subr.mxu0 0.0
  %8970 = vmatpush1.msra.mxu0 %v8782
  %8971 = vmatprep.subr.mxu0 0.0
  %8972 = vmatpush1.msra.mxu0 %v8783
  %8973 = vmatprep.subr.mxu0 0.0
  %8974 = vmatpush1.msra.mxu0 %v8784
  %8975 = vmatprep.subr.mxu0 0.0
  %8976 = vmatpush1.msra.mxu0 %v8785
  %8977 = vmatprep.subr.mxu0 0.0
  %8978 = vmatpush1.msra.mxu0 %v8786
  %8979 = vmatprep.subr.mxu0 0.0
  %8980 = vmatpush1.msra.mxu0 %v8787
  %8981 = vmatprep.subr.mxu0 0.0
  %8982 = vmatpush1.msra.mxu0 %v8788
  %8983 = vmatprep.subr.mxu0 0.0
  %8984 = vmatpush1.msra.mxu0 %v8789
  %8985 = vmatprep.subr.mxu0 0.0
  %8986 = vmatpush1.msra.mxu0 %v8790
  %8987 = vmatprep.subr.mxu0 0.0
  %8988 = vmatpush1.msra.mxu0 %v8791
  %8989 = vmatprep.subr.mxu0 0.0
  %8990 = vmatpush1.msra.mxu0 %v8792
  %8991 = vmatprep.subr.mxu0 0.0
  %8992 = vmatpush1.msra.mxu0 %v8793
  %8993 = vmatprep.subr.mxu0 0.0
  %8994 = vmatpush1.msra.mxu0 %v8794
  %8995 = vmatprep.subr.mxu0 0.0
  %8996 = vmatpush1.msra.mxu0 %v8795
  %8997 = vmatprep.subr.mxu0 0.0
  %8998 = vmatpush1.msra.mxu0 %v8796
  %8999 = vmatprep.subr.mxu0 0.0
  %9000 = vmatpush1.msra.mxu0 %v8797
  %9001 = vmatprep.subr.mxu0 0.0
  %9002 = vmatpush1.msra.mxu0 %v8798
  %9003 = vmatprep.subr.mxu0 0.0
  %9004 = vmatpush1.msra.mxu0 %v8799
  %9005 = vmatprep.subr.mxu0 0.0
  %9006 = vmatpush1.msra.mxu0 %v8800
  %9007 = vmatprep.subr.mxu0 0.0
  %9008 = vmatpush1.msra.mxu0 %v8801
  %9009 = vmatprep.subr.mxu0 0.0
  %9010 = vmatpush1.msra.mxu0 %v8802
  %9011 = vmatprep.subr.mxu0 0.0
  %9012 = vmatpush1.msra.mxu0 %v8803
  %9013 = vmatprep.subr.mxu0 0.0
  %9014 = vmatpush1.msra.mxu0 %v8804
  %9015 = vmatprep.subr.mxu0 0.0
  %9016 = vmatpush1.msra.mxu0 %v8805
  %9017 = vmatprep.subr.mxu0 0.0
  %9018 = vmatpush1.msra.mxu0 %v8806
  %9019 = vmatprep.subr.mxu0 0.0
  %9020 = vmatpush1.msra.mxu0 %v8807
  %9021 = vmatprep.subr.mxu0 0.0
  %9022 = vmatpush1.msra.mxu0 %v8808
  %9023 = vmatprep.subr.mxu0 0.0
  %9024 = vmatpush1.msra.mxu0 %v8809
  %9025 = vmatprep.subr.mxu0 0.0
  %9026 = vmatpush1.msra.mxu0 %v8810
  %9027 = vmatprep.mubr.f32.mxu0 %v8731
  %9028 = vmatmul.mubr.f32.gmra.mrb[0].mxu0 %v8651
  %v9029 = vpop.f32.mrb[0].mxu0
  %v9030 = vadd.f32 %v8885, %v9029
  %v9031 = vpop.f32.mrb[0].mxu0
  %9032 = vmatprep.mubr.f32.mxu0 %v8732
  %9033 = vmatmul.mubr.f32.gmra.mrb[0].mxu0 %v8652
  %v9034 = vpop.f32.mrb[0].mxu0
  %v9035 = vadd.f32 %v8890, %v9034
  %v9036 = vpop.f32.mrb[0].mxu0
  %9037 = vmatprep.mubr.f32.mxu0 %v8733
  %9038 = vmatmul.mubr.f32.gmra.mrb[0].mxu0 %v8653
  %v9039 = vpop.f32.mrb[0].mxu0
  %v9040 = vadd.f32 %v8895, %v9039
  %v9041 = vpop.f32.mrb[0].mxu0
  %9042 = vmatprep.mubr.f32.mxu0 %v8734
  %9043 = vmatmul.mubr.f32.gmra.mrb[0].mxu0 %v8654
  %v9044 = vpop.f32.mrb[0].mxu0
  %v9045 = vadd.f32 %v8900, %v9044
  %v9046 = vpop.f32.mrb[0].mxu0
  %9047 = vmatprep.mubr.f32.mxu0 %v8735
  %9048 = vmatmul.mubr.f32.gmra.mrb[0].mxu0 %v8655
  %v9049 = vpop.f32.mrb[0].mxu0
  %v9050 = vadd.f32 %v8905, %v9049
  %v9051 = vpop.f32.mrb[0].mxu0
  %9052 = vmatprep.mubr.f32.mxu0 %v8736
  %9053 = vmatmul.mubr.f32.gmra.mrb[0].mxu0 %v8656
  %v9054 = vpop.f32.mrb[0].mxu0
  %v9055 = vadd.f32 %v8910, %v9054
  %v9056 = vpop.f32.mrb[0].mxu0
  %9057 = vmatprep.mubr.f32.mxu0 %v8737
  %9058 = vmatmul.mubr.f32.gmra.mrb[0].mxu0 %v8657
  %v9059 = vpop.f32.mrb[0].mxu0
  %v9060 = vadd.f32 %v8915, %v9059
  %v9061 = vpop.f32.mrb[0].mxu0
  %9062 = vmatprep.mubr.f32.mxu0 %v8738
  %9063 = vmatmul.mubr.f32.gmra.mrb[0].mxu0 %v8658
  %v9064 = vpop.f32.mrb[0].mxu0
  %v9065 = vadd.f32 %v8920, %v9064
  %v9066 = vpop.f32.mrb[0].mxu0
  %9067 = vmatprep.mubr.f32.mxu0 %v8739
  %9068 = vmatmul.mubr.f32.gmra.mrb[0].mxu0 %v8659
  %v9069 = vpop.f32.mrb[0].mxu0
  %v9070 = vadd.f32 %v8925, %v9069
  %v9071 = vpop.f32.mrb[0].mxu0
  %9072 = vmatprep.mubr.f32.mxu0 %v8740
  %9073 = vmatmul.mubr.f32.gmra.mrb[0].mxu0 %v8660
  %v9074 = vpop.f32.mrb[0].mxu0
  %v9075 = vadd.f32 %v8930, %v9074
  %v9076 = vpop.f32.mrb[0].mxu0
  %9077 = vmatprep.mubr.f32.mxu0 %v8741
  %9078 = vmatmul.mubr.f32.gmra.mrb[0].mxu0 %v8661
  %v9079 = vpop.f32.mrb[0].mxu0
  %v9080 = vadd.f32 %v8935, %v9079
  %v9081 = vpop.f32.mrb[0].mxu0
  %9082 = vmatprep.mubr.f32.mxu0 %v8742
  %9083 = vmatmul.mubr.f32.gmra.mrb[0].mxu0 %v8662
  %v9084 = vpop.f32.mrb[0].mxu0
  %v9085 = vadd.f32 %v8940, %v9084
  %v9086 = vpop.f32.mrb[0].mxu0
  %9087 = vmatprep.mubr.f32.mxu0 %v8743
  %9088 = vmatmul.mubr.f32.gmra.mrb[0].mxu0 %v8663
  %v9089 = vpop.f32.mrb[0].mxu0
  %v9090 = vadd.f32 %v8945, %v9089
  %v9091 = vpop.f32.mrb[0].mxu0
  %9092 = vmatprep.mubr.f32.mxu0 %v8744
  %9093 = vmatmul.mubr.f32.gmra.mrb[0].mxu0 %v8664
  %v9094 = vpop.f32.mrb[0].mxu0
  %v9095 = vadd.f32 %v8950, %v9094
  %v9096 = vpop.f32.mrb[0].mxu0
  %9097 = vmatprep.mubr.f32.mxu0 %v8745
  %9098 = vmatmul.mubr.f32.gmra.mrb[0].mxu0 %v8665
  %v9099 = vpop.f32.mrb[0].mxu0
  %v9100 = vadd.f32 %v8955, %v9099
  %v9101 = vpop.f32.mrb[0].mxu0
  %9102 = vmatprep.mubr.f32.mxu0 %v8746
  %9103 = vmatmul.mubr.f32.gmra.mrb[0].mxu0 %v8666
  %v9104 = vpop.f32.mrb[0].mxu0
  %v9105 = vadd.f32 %v8960, %v9104
  %v9106 = vpop.f32.mrb[0].mxu0
  %9107 = vdwg.mxu0
  %v9108 = vmax.f32 %v9030, 0.0
  %v9109 = vmax.f32 %v9035, 0.0
  %v9110 = vmax.f32 %v9040, 0.0
  %v9111 = vmax.f32 %v9045, 0.0
  %v9112 = vmax.f32 %v9050, 0.0
  %v9113 = vmax.f32 %v9055, 0.0
  %v9114 = vmax.f32 %v9060, 0.0
  %v9115 = vmax.f32 %v9065, 0.0
  %v9116 = vmax.f32 %v9070, 0.0
  %v9117 = vmax.f32 %v9075, 0.0
  %v9118 = vmax.f32 %v9080, 0.0
  %v9119 = vmax.f32 %v9085, 0.0
  %v9120 = vmax.f32 %v9090, 0.0
  %v9121 = vmax.f32 %v9095, 0.0
  %v9122 = vmax.f32 %v9100, 0.0
  %v9123 = vmax.f32 %v9105, 0.0
  %v9124 = vld [vmem:[%s7] sm:$0xff]
  %v9125 = vld [vmem:[%s7 + $0x8] sm:$0xff]
  %v9126 = vld [vmem:[%s7 + $0x10] sm:$0xff]
  %v9127 = vld [vmem:[%s7 + $0x18] sm:$0xff]
  %v9128 = vld [vmem:[%s7 + $0x20] sm:$0xff]
  %v9129 = vld [vmem:[%s7 + $0x28] sm:$0xff]
  %v9130 = vld [vmem:[%s7 + $0x30] sm:$0xff]
  %v9131 = vld [vmem:[%s7 + $0x38] sm:$0xff]
  %v9132 = vld [vmem:[%s7 + $0x40] sm:$0xff]
  %v9133 = vld [vmem:[%s7 + $0x48] sm:$0xff]
  %v9134 = vld [vmem:[%s7 + $0x50] sm:$0xff]
  %v9135 = vld [vmem:[%s7 + $0x58] sm:$0xff]
  %v9136 = vld [vmem:[%s7 + $0x60] sm:$0xff]
  %v9137 = vld [vmem:[%s7 + $0x68] sm:$0xff]
  %v9138 = vld [vmem:[%s7 + $0x70] sm:$0xff]
  %v9139 = vld [vmem:[%s7 + $0x78] sm:$0xff]
  %v9140 = vld [vmem:[%s8] sm:$0x1]
  %v9142 = vlaneseq
  %v9143 = vshrl.u32 %v9142, 7
  %v9144 = vsub.s32 0, %v9143
  %v9145 = vrot.slane %v9140, %v9144
  %9147 = vmatprep.subr.mxu0 0.0
  %9148 = vmatpush1.msra.mxu0 %v9124
  %9149 = vmatprep.subr.mxu0 0.0
  %9150 = vmatpush1.msra.mxu0 %v9125
  %9151 = vmatprep.subr.mxu0 0.0
  %9152 = vmatpush1.msra.mxu0 %v9126
  %9153 = vmatprep.subr.mxu0 0.0
  %9154 = vmatpush1.msra.mxu0 %v9127
  %9155 = vmatprep.subr.mxu0 0.0
  %9156 = vmatpush1.msra.mxu0 %v9128
  %9157 = vmatprep.subr.mxu0 0.0
  %9158 = vmatpush1.msra.mxu0 %v9129
  %9159 = vmatprep.subr.mxu0 0.0
  %9160 = vmatpush1.msra.mxu0 %v9130
  %9161 = vmatprep.subr.mxu0 0.0
  %9162 = vmatpush1.msra.mxu0 %v9131
  %9163 = vmatprep.subr.mxu0 0.0
  %9164 = vmatpush1.msra.mxu0 %v9132
  %9165 = vmatprep.subr.mxu0 0.0
  %9166 = vmatpush1.msra.mxu0 %v9133
  %9167 = vmatprep.subr.mxu0 0.0
  %9168 = vmatpush1.msra.mxu0 %v9134
  %9169 = vmatprep.subr.mxu0 0.0
  %9170 = vmatpush1.msra.mxu0 %v9135
  %9171 = vmatprep.subr.mxu0 0.0
  %9172 = vmatpush1.msra.mxu0 %v9136
  %9173 = vmatprep.subr.mxu0 0.0
  %9174 = vmatpush1.msra.mxu0 %v9137
  %9175 = vmatprep.subr.mxu0 0.0
  %9176 = vmatpush1.msra.mxu0 %v9138
  %9177 = vmatprep.subr.mxu0 0.0
  %9178 = vmatpush1.msra.mxu0 %v9139
  %9179 = vmatprep.subr.mxu0 0.0
  %9180 = vmatpush1.msra.mxu0 0.0
  %9181 = vmatprep.subr.mxu0 0.0
  %9182 = vmatpush1.msra.mxu0 0.0
  %9183 = vmatprep.subr.mxu0 0.0
  %9184 = vmatpush1.msra.mxu0 0.0
  %9185 = vmatprep.subr.mxu0 0.0
  %9186 = vmatpush1.msra.mxu0 0.0
  %9187 = vmatprep.subr.mxu0 0.0
  %9188 = vmatpush1.msra.mxu0 0.0
  %9189 = vmatprep.subr.mxu0 0.0
  %9190 = vmatpush1.msra.mxu0 0.0
  %9191 = vmatprep.subr.mxu0 0.0
  %9192 = vmatpush1.msra.mxu0 0.0
  %9193 = vmatprep.subr.mxu0 0.0
  %9194 = vmatpush1.msra.mxu0 0.0
  %9195 = vmatprep.subr.mxu0 0.0
  %9196 = vmatpush1.msra.mxu0 0.0
  %9197 = vmatprep.subr.mxu0 0.0
  %9198 = vmatpush1.msra.mxu0 0.0
  %9199 = vmatprep.subr.mxu0 0.0
  %9200 = vmatpush1.msra.mxu0 0.0
  %9201 = vmatprep.subr.mxu0 0.0
  %9202 = vmatpush1.msra.mxu0 0.0
  %9203 = vmatprep.subr.mxu0 0.0
  %9204 = vmatpush1.msra.mxu0 0.0
  %9205 = vmatprep.subr.mxu0 0.0
  %9206 = vmatpush1.msra.mxu0 0.0
  %9207 = vmatprep.subr.mxu0 0.0
  %9208 = vmatpush1.msra.mxu0 0.0
  %9209 = vmatprep.subr.mxu0 0.0
  %9210 = vmatpush1.msra.mxu0 0.0
  %9211 = vmatprep.mubr.f32.mxu0 0.0
  %9212 = vmatmul.mubr.f32.gmra.mrb[0].mxu0 %v9108
  %v9213 = vpop.f32.mrb[0].mxu0
  %v9214 = vadd.f32 %v9145, %v9213
  %v9215 = vpop.f32.mrb[0].mxu0
  %9216 = vmatprep.mubr.f32.mxu0 0.0
  %9217 = vmatmul.mubr.f32.gmra.mrb[0].mxu0 %v9109
  %v9218 = vpop.f32.mrb[0].mxu0
  %v9219 = vadd.f32 %v9145, %v9218
  %v9220 = vpop.f32.mrb[0].mxu0
  %9221 = vmatprep.mubr.f32.mxu0 0.0
  %9222 = vmatmul.mubr.f32.gmra.mrb[0].mxu0 %v9110
  %v9223 = vpop.f32.mrb[0].mxu0
  %v9224 = vadd.f32 %v9145, %v9223
  %v9225 = vpop.f32.mrb[0].mxu0
  %9226 = vmatprep.mubr.f32.mxu0 0.0
  %9227 = vmatmul.mubr.f32.gmra.mrb[0].mxu0 %v9111
  %v9228 = vpop.f32.mrb[0].mxu0
  %v9229 = vadd.f32 %v9145, %v9228
  %v9230 = vpop.f32.mrb[0].mxu0
  %9231 = vmatprep.mubr.f32.mxu0 0.0
  %9232 = vmatmul.mubr.f32.gmra.mrb[0].mxu0 %v9112
  %v9233 = vpop.f32.mrb[0].mxu0
  %v9234 = vadd.f32 %v9145, %v9233
  %v9235 = vpop.f32.mrb[0].mxu0
  %9236 = vmatprep.mubr.f32.mxu0 0.0
  %9237 = vmatmul.mubr.f32.gmra.mrb[0].mxu0 %v9113
  %v9238 = vpop.f32.mrb[0].mxu0
  %v9239 = vadd.f32 %v9145, %v9238
  %v9240 = vpop.f32.mrb[0].mxu0
  %9241 = vmatprep.mubr.f32.mxu0 0.0
  %9242 = vmatmul.mubr.f32.gmra.mrb[0].mxu0 %v9114
  %v9243 = vpop.f32.mrb[0].mxu0
  %v9244 = vadd.f32 %v9145, %v9243
  %v9245 = vpop.f32.mrb[0].mxu0
  %9246 = vmatprep.mubr.f32.mxu0 0.0
  %9247 = vmatmul.mubr.f32.gmra.mrb[0].mxu0 %v9115
  %v9248 = vpop.f32.mrb[0].mxu0
  %v9249 = vadd.f32 %v9145, %v9248
  %v9250 = vpop.f32.mrb[0].mxu0
  %9251 = vmatprep.mubr.f32.mxu0 0.0
  %9252 = vmatmul.mubr.f32.gmra.mrb[0].mxu0 %v9116
  %v9253 = vpop.f32.mrb[0].mxu0
  %v9254 = vadd.f32 %v9145, %v9253
  %v9255 = vpop.f32.mrb[0].mxu0
  %9256 = vmatprep.mubr.f32.mxu0 0.0
  %9257 = vmatmul.mubr.f32.gmra.mrb[0].mxu0 %v9117
  %v9258 = vpop.f32.mrb[0].mxu0
  %v9259 = vadd.f32 %v9145, %v9258
  %v9260 = vpop.f32.mrb[0].mxu0
  %9261 = vmatprep.mubr.f32.mxu0 0.0
  %9262 = vmatmul.mubr.f32.gmra.mrb[0].mxu0 %v9118
  %v9263 = vpop.f32.mrb[0].mxu0
  %v9264 = vadd.f32 %v9145, %v9263
  %v9265 = vpop.f32.mrb[0].mxu0
  %9266 = vmatprep.mubr.f32.mxu0 0.0
  %9267 = vmatmul.mubr.f32.gmra.mrb[0].mxu0 %v9119
  %v9268 = vpop.f32.mrb[0].mxu0
  %v9269 = vadd.f32 %v9145, %v9268
  %v9270 = vpop.f32.mrb[0].mxu0
  %9271 = vmatprep.mubr.f32.mxu0 0.0
  %9272 = vmatmul.mubr.f32.gmra.mrb[0].mxu0 %v9120
  %v9273 = vpop.f32.mrb[0].mxu0
  %v9274 = vadd.f32 %v9145, %v9273
  %v9275 = vpop.f32.mrb[0].mxu0
  %9276 = vmatprep.mubr.f32.mxu0 0.0
  %9277 = vmatmul.mubr.f32.gmra.mrb[0].mxu0 %v9121
  %v9278 = vpop.f32.mrb[0].mxu0
  %v9279 = vadd.f32 %v9145, %v9278
  %v9280 = vpop.f32.mrb[0].mxu0
  %9281 = vmatprep.mubr.f32.mxu0 0.0
  %9282 = vmatmul.mubr.f32.gmra.mrb[0].mxu0 %v9122
  %v9283 = vpop.f32.mrb[0].mxu0
  %v9284 = vadd.f32 %v9145, %v9283
  %v9285 = vpop.f32.mrb[0].mxu0
  %9286 = vmatprep.mubr.f32.mxu0 0.0
  %9287 = vmatmul.mubr.f32.gmra.mrb[0].mxu0 %v9123
  %v9288 = vpop.f32.mrb[0].mxu0
  %v9289 = vadd.f32 %v9145, %v9288
  %v9290 = vpop.f32.mrb[0].mxu0
  %9291 = vdwg.mxu0
  %v9292 = vmax.f32 %v9214, 0.0
  %v9293 = vmax.f32 %v9219, 0.0
  %v9294 = vmax.f32 %v9224, 0.0
  %v9295 = vmax.f32 %v9229, 0.0
  %v9296 = vmax.f32 %v9234, 0.0
  %v9297 = vmax.f32 %v9239, 0.0
  %v9298 = vmax.f32 %v9244, 0.0
  %v9299 = vmax.f32 %v9249, 0.0
  %v9300 = vmax.f32 %v9254, 0.0
  %v9301 = vmax.f32 %v9259, 0.0
  %v9302 = vmax.f32 %v9264, 0.0
  %v9303 = vmax.f32 %v9269, 0.0
  %v9304 = vmax.f32 %v9274, 0.0
  %v9305 = vmax.f32 %v9279, 0.0
  %v9306 = vmax.f32 %v9284, 0.0
  %v9307 = vmax.f32 %v9289, 0.0
  %v9308 = vld [vmem:[%s9] sm:$0xff]
  %v9309 = vld [vmem:[%s9 + $0x8] sm:$0xff]
  %v9310 = vld [vmem:[%s9 + $0x10] sm:$0xff]
  %v9311 = vld [vmem:[%s9 + $0x18] sm:$0xff]
  %v9312 = vld [vmem:[%s9 + $0x20] sm:$0xff]
  %v9313 = vld [vmem:[%s9 + $0x28] sm:$0xff]
  %v9314 = vld [vmem:[%s9 + $0x30] sm:$0xff]
  %v9315 = vld [vmem:[%s9 + $0x38] sm:$0xff]
  %v9316 = vld [vmem:[%s9 + $0x40] sm:$0xff]
  %v9317 = vld [vmem:[%s9 + $0x48] sm:$0xff]
  %v9318 = vld [vmem:[%s9 + $0x50] sm:$0xff]
  %v9319 = vld [vmem:[%s9 + $0x58] sm:$0xff]
  %v9320 = vld [vmem:[%s9 + $0x60] sm:$0xff]
  %v9321 = vld [vmem:[%s9 + $0x68] sm:$0xff]
  %v9322 = vld [vmem:[%s9 + $0x70] sm:$0xff]
  %v9323 = vld [vmem:[%s9 + $0x78] sm:$0xff]
  %v9324 = vld [vmem:[%s10] sm:$0x1]
  %v9326 = vlaneseq
  %v9327 = vshrl.u32 %v9326, 7
  %v9328 = vsub.s32 0, %v9327
  %v9329 = vrot.slane %v9324, %v9328
  %9331 = vmatprep.subr.mxu0 0.0
  %9332 = vmatpush1.msra.mxu0 %v9308
  %9333 = vmatprep.subr.mxu0 0.0
  %9334 = vmatpush1.msra.mxu0 %v9309
  %9335 = vmatprep.subr.mxu0 0.0
  %9336 = vmatpush1.msra.mxu0 %v9310
  %9337 = vmatprep.subr.mxu0 0.0
  %9338 = vmatpush1.msra.mxu0 %v9311
  %9339 = vmatprep.subr.mxu0 0.0
  %9340 = vmatpush1.msra.mxu0 %v9312
  %9341 = vmatprep.subr.mxu0 0.0
  %9342 = vmatpush1.msra.mxu0 %v9313
  %9343 = vmatprep.subr.mxu0 0.0
  %9344 = vmatpush1.msra.mxu0 %v9314
  %9345 = vmatprep.subr.mxu0 0.0
  %9346 = vmatpush1.msra.mxu0 %v9315
  %9347 = vmatprep.subr.mxu0 0.0
  %9348 = vmatpush1.msra.mxu0 %v9316
  %9349 = vmatprep.subr.mxu0 0.0
  %9350 = vmatpush1.msra.mxu0 %v9317
  %9351 = vmatprep.subr.mxu0 0.0
  %9352 = vmatpush1.msra.mxu0 %v9318
  %9353 = vmatprep.subr.mxu0 0.0
  %9354 = vmatpush1.msra.mxu0 %v9319
  %9355 = vmatprep.subr.mxu0 0.0
  %9356 = vmatpush1.msra.mxu0 %v9320
  %9357 = vmatprep.subr.mxu0 0.0
  %9358 = vmatpush1.msra.mxu0 %v9321
  %9359 = vmatprep.subr.mxu0 0.0
  %9360 = vmatpush1.msra.mxu0 %v9322
  %9361 = vmatprep.subr.mxu0 0.0
  %9362 = vmatpush1.msra.mxu0 %v9323
  %9363 = vmatprep.subr.mxu0 0.0
  %9364 = vmatpush1.msra.mxu0 0.0
  %9365 = vmatprep.subr.mxu0 0.0
  %9366 = vmatpush1.msra.mxu0 0.0
  %9367 = vmatprep.subr.mxu0 0.0
  %9368 = vmatpush1.msra.mxu0 0.0
  %9369 = vmatprep.subr.mxu0 0.0
  %9370 = vmatpush1.msra.mxu0 0.0
  %9371 = vmatprep.subr.mxu0 0.0
  %9372 = vmatpush1.msra.mxu0 0.0
  %9373 = vmatprep.subr.mxu0 0.0
  %9374 = vmatpush1.msra.mxu0 0.0
  %9375 = vmatprep.subr.mxu0 0.0
  %9376 = vmatpush1.msra.mxu0 0.0
  %9377 = vmatprep.subr.mxu0 0.0
  %9378 = vmatpush1.msra.mxu0 0.0
  %9379 = vmatprep.subr.mxu0 0.0
  %9380 = vmatpush1.msra.mxu0 0.0
  %9381 = vmatprep.subr.mxu0 0.0
  %9382 = vmatpush1.msra.mxu0 0.0
  %9383 = vmatprep.subr.mxu0 0.0
  %9384 = vmatpush1.msra.mxu0 0.0
  %9385 = vmatprep.subr.mxu0 0.0
  %9386 = vmatpush1.msra.mxu0 0.0
  %9387 = vmatprep.subr.mxu0 0.0
  %9388 = vmatpush1.msra.mxu0 0.0
  %9389 = vmatprep.subr.mxu0 0.0
  %9390 = vmatpush1.msra.mxu0 0.0
  %9391 = vmatprep.subr.mxu0 0.0
  %9392 = vmatpush1.msra.mxu0 0.0
  %9393 = vmatprep.subr.mxu0 0.0
  %9394 = vmatpush1.msra.mxu0 0.0
  %9395 = vmatprep.mubr.f32.mxu0 0.0
  %9396 = vmatmul.mubr.f32.gmra.mrb[0].mxu0 %v9292
  %v9397 = vpop.f32.mrb[0].mxu0
  %v9398 = vadd.f32 %v9329, %v9397
  %v9399 = vpop.f32.mrb[0].mxu0
  %9400 = vmatprep.mubr.f32.mxu0 0.0
  %9401 = vmatmul.mubr.f32.gmra.mrb[0].mxu0 %v9293
  %v9402 = vpop.f32.mrb[0].mxu0
  %v9403 = vadd.f32 %v9329, %v9402
  %v9404 = vpop.f32.mrb[0].mxu0
  %9405 = vmatprep.mubr.f32.mxu0 0.0
  %9406 = vmatmul.mubr.f32.gmra.mrb[0].mxu0 %v9294
  %v9407 = vpop.f32.mrb[0].mxu0
  %v9408 = vadd.f32 %v9329, %v9407
  %v9409 = vpop.f32.mrb[0].mxu0
  %9410 = vmatprep.mubr.f32.mxu0 0.0
  %9411 = vmatmul.mubr.f32.gmra.mrb[0].mxu0 %v9295
  %v9412 = vpop.f32.mrb[0].mxu0
  %v9413 = vadd.f32 %v9329, %v9412
  %v9414 = vpop.f32.mrb[0].mxu0
  %9415 = vmatprep.mubr.f32.mxu0 0.0
  %9416 = vmatmul.mubr.f32.gmra.mrb[0].mxu0 %v9296
  %v9417 = vpop.f32.mrb[0].mxu0
  %v9418 = vadd.f32 %v9329, %v9417
  %v9419 = vpop.f32.mrb[0].mxu0
  %9420 = vmatprep.mubr.f32.mxu0 0.0
  %9421 = vmatmul.mubr.f32.gmra.mrb[0].mxu0 %v9297
  %v9422 = vpop.f32.mrb[0].mxu0
  %v9423 = vadd.f32 %v9329, %v9422
  %v9424 = vpop.f32.mrb[0].mxu0
  %9425 = vmatprep.mubr.f32.mxu0 0.0
  %9426 = vmatmul.mubr.f32.gmra.mrb[0].mxu0 %v9298
  %v9427 = vpop.f32.mrb[0].mxu0
  %v9428 = vadd.f32 %v9329, %v9427
  %v9429 = vpop.f32.mrb[0].mxu0
  %9430 = vmatprep.mubr.f32.mxu0 0.0
  %9431 = vmatmul.mubr.f32.gmra.mrb[0].mxu0 %v9299
  %v9432 = vpop.f32.mrb[0].mxu0
  %v9433 = vadd.f32 %v9329, %v9432
  %v9434 = vpop.f32.mrb[0].mxu0
  %9435 = vmatprep.mubr.f32.mxu0 0.0
  %9436 = vmatmul.mubr.f32.gmra.mrb[0].mxu0 %v9300
  %v9437 = vpop.f32.mrb[0].mxu0
  %v9438 = vadd.f32 %v9329, %v9437
  %v9439 = vpop.f32.mrb[0].mxu0
  %9440 = vmatprep.mubr.f32.mxu0 0.0
  %9441 = vmatmul.mubr.f32.gmra.mrb[0].mxu0 %v9301
  %v9442 = vpop.f32.mrb[0].mxu0
  %v9443 = vadd.f32 %v9329, %v9442
  %v9444 = vpop.f32.mrb[0].mxu0
  %9445 = vmatprep.mubr.f32.mxu0 0.0
  %9446 = vmatmul.mubr.f32.gmra.mrb[0].mxu0 %v9302
  %v9447 = vpop.f32.mrb[0].mxu0
  %v9448 = vadd.f32 %v9329, %v9447
  %v9449 = vpop.f32.mrb[0].mxu0
  %9450 = vmatprep.mubr.f32.mxu0 0.0
  %9451 = vmatmul.mubr.f32.gmra.mrb[0].mxu0 %v9303
  %v9452 = vpop.f32.mrb[0].mxu0
  %v9453 = vadd.f32 %v9329, %v9452
  %v9454 = vpop.f32.mrb[0].mxu0
  %9455 = vmatprep.mubr.f32.mxu0 0.0
  %9456 = vmatmul.mubr.f32.gmra.mrb[0].mxu0 %v9304
  %v9457 = vpop.f32.mrb[0].mxu0
  %v9458 = vadd.f32 %v9329, %v9457
  %v9459 = vpop.f32.mrb[0].mxu0
  %9460 = vmatprep.mubr.f32.mxu0 0.0
  %9461 = vmatmul.mubr.f32.gmra.mrb[0].mxu0 %v9305
  %v9462 = vpop.f32.mrb[0].mxu0
  %v9463 = vadd.f32 %v9329, %v9462
  %v9464 = vpop.f32.mrb[0].mxu0
  %9465 = vmatprep.mubr.f32.mxu0 0.0
  %9466 = vmatmul.mubr.f32.gmra.mrb[0].mxu0 %v9306
  %v9467 = vpop.f32.mrb[0].mxu0
  %v9468 = vadd.f32 %v9329, %v9467
  %v9469 = vpop.f32.mrb[0].mxu0
  %9470 = vmatprep.mubr.f32.mxu0 0.0
  %9471 = vmatmul.mubr.f32.gmra.mrb[0].mxu0 %v9307
  %v9472 = vpop.f32.mrb[0].mxu0
  %v9473 = vadd.f32 %v9329, %v9472
  %v9474 = vpop.f32.mrb[0].mxu0
  %9475 = vdwg.mxu0
  %9476 = vst [vmem:[%s11] sm:$0xff] %v9398
  %9477 = vst [vmem:[%s11 + $0x8] sm:$0xff] %v9403
  %9478 = vst [vmem:[%s11 + $0x10] sm:$0xff] %v9408
  %9479 = vst [vmem:[%s11 + $0x18] sm:$0xff] %v9413
  %9480 = vst [vmem:[%s11 + $0x20] sm:$0xff] %v9418
  %9481 = vst [vmem:[%s11 + $0x28] sm:$0xff] %v9423
  %9482 = vst [vmem:[%s11 + $0x30] sm:$0xff] %v9428
  %9483 = vst [vmem:[%s11 + $0x38] sm:$0xff] %v9433
  %9484 = vst [vmem:[%s11 + $0x40] sm:$0xff] %v9438
  %9485 = vst [vmem:[%s11 + $0x48] sm:$0xff] %v9443
  %9486 = vst [vmem:[%s11 + $0x50] sm:$0xff] %v9448
  %9487 = vst [vmem:[%s11 + $0x58] sm:$0xff] %v9453
  %9488 = vst [vmem:[%s11 + $0x60] sm:$0xff] %v9458
  %9489 = vst [vmem:[%s11 + $0x68] sm:$0xff] %v9463
  %9490 = vst [vmem:[%s11 + $0x70] sm:$0xff] %v9468
  %9491 = vst [vmem:[%s11 + $0x78] sm:$0xff] %v9473
  // Predicated region
  $region46: #{fashion_cnn_forward.1} parent=0 // pred_check
    _
  $region47: #{fashion_cnn_forward.1} parent=0 // pred_check_branch
    %9493 = sbr.rel (0) target = $region49
  $region48: #{fashion_cnn_forward.1} parent=0 // pred_region
    _
  $region49: #{fashion_cnn_forward.1} parent=0 // pred_fallthru
    _
  // Predicated region
  $region50: #{fashion_cnn_forward.1} parent=0 // pred_check
    _
  $region51: #{fashion_cnn_forward.1} parent=0 // pred_check_branch
    %9495 = sbr.rel (0) target = $region53
  $region52: #{fashion_cnn_forward.1} parent=0 // pred_region
    _
  $region53: #{fashion_cnn_forward.1} parent=0 // pred_fallthru
    _

</llo_original>
